<compile_context>
chip_gen: v6e
topology: v6e:2x2x1
jax: 0.10.0
libtpu: 0.0.40
codegen_flags: <defaults>
</compile_context>

<pallas_src>
import jax
import jax.numpy as jnp
from jax.experimental import pallas as pl
from jax.experimental.pallas import tpu as pltpu


def _complex_fused_kernel(
    # scalar-prefetch index refs (SMEM), shape (B_pad,)
    e1_idx_ref, rel_idx_ref, e2_idx_ref,
    # embedding tables, left in place (HBM) via memory_space=pl.ANY
    emb_e_real, emb_e_img, emb_rel_real, emb_rel_img,
    # output block: (1, 1, TILE_ROWS) float32 (lane-dense scores)
    out_ref,
    # VMEM scratch: six (TILE_ROWS, D) gather buffers + per-row DMA semaphores
    e1r_buf, e1i_buf, rr_buf, ri_buf, e2r_buf, e2i_buf,
    copy_sems,
):
    tile_rows = e1r_buf.shape[0]
    base = pl.program_id(0) * tile_rows

    # Build the gather DMAs for this tile: 6 row-copies per batch row, all six
    # sharing that row's DMA semaphore (all copies are the same size, so the
    # shared signal/wait accounting balances).
    copies = []
    for i in range(tile_rows):
        e1 = e1_idx_ref[base + i]
        rel = rel_idx_ref[base + i]
        e2 = e2_idx_ref[base + i]
        sem = copy_sems.at[i]
        dst = pl.ds(i, 1)
        copies += [
            pltpu.make_async_copy(emb_e_real.at[pl.ds(e1, 1)], e1r_buf.at[dst], sem),
            pltpu.make_async_copy(emb_e_img.at[pl.ds(e1, 1)], e1i_buf.at[dst], sem),
            pltpu.make_async_copy(emb_rel_real.at[pl.ds(rel, 1)], rr_buf.at[dst], sem),
            pltpu.make_async_copy(emb_rel_img.at[pl.ds(rel, 1)], ri_buf.at[dst], sem),
            pltpu.make_async_copy(emb_e_real.at[pl.ds(e2, 1)], e2r_buf.at[dst], sem),
            pltpu.make_async_copy(emb_e_img.at[pl.ds(e2, 1)], e2i_buf.at[dst], sem),
        ]
    # Issue everything, then wait for everything (latencies overlap each other).
    for cp in copies:
        cp.start()
    for cp in copies:
        cp.wait()

    # Upcast to f32 (free for f32 tables; keeps accumulation exact for bf16 tables).
    e1r = e1r_buf[...].astype(jnp.float32)
    e1i = e1i_buf[...].astype(jnp.float32)
    rr = rr_buf[...].astype(jnp.float32)
    ri = ri_buf[...].astype(jnp.float32)
    e2r = e2r_buf[...].astype(jnp.float32)
    e2i = e2i_buf[...].astype(jnp.float32)

    # Factored ComplEx score (6 muls/elem instead of 8):
    #   rr*(e1r*e2r + e1i*e2i) + ri*(e1r*e2i - e1i*e2r)
    prod = rr * (e1r * e2r + e1i * e2i) + ri * (e1r * e2i - e1i * e2r)
    scores = jnp.sum(prod, axis=-1)                     # (TILE_ROWS,)
    out_ref[...] = scores.reshape(1, 1, tile_rows)      # lane-dense store


def complex_forward(params, e1_idx, rel_idx, e2_idx, *, tile_rows=16):
    """Fused gather + ComplEx score. Returns (B,) float32 scores.

    tile_rows: batch rows gathered/scored per grid step (8-32 is a good range;
    larger values just unroll more DMA issues per step).
    """
    B = e1_idx.shape[0]
    D = params.emb_e_real.shape[-1]
    num_tiles = pl.cdiv(B, tile_rows)
    b_pad = num_tiles * tile_rows

    def prep(idx):
        idx = idx.astype(jnp.int32)
        if b_pad != B:
            idx = jnp.pad(idx, (0, b_pad - B))  # padded rows use index 0; discarded below
        return idx

    e1p, relp, e2p = prep(e1_idx), prep(rel_idx), prep(e2_idx)
    table_dtype = params.emb_e_real.dtype

    scratch = [pltpu.VMEM((tile_rows, D), table_dtype) for _ in range(6)]
    scratch.append(pltpu.SemaphoreType.DMA((tile_rows,)))

    out = pl.pallas_call(
        _complex_fused_kernel,
        out_shape=jax.ShapeDtypeStruct((num_tiles, 1, tile_rows), jnp.float32),
        grid_spec=pltpu.PrefetchScalarGridSpec(
            num_scalar_prefetch=3,
            grid=(num_tiles,),
            in_specs=[pl.BlockSpec(memory_space=pl.ANY)] * 4,
            out_specs=pl.BlockSpec(
                (1, 1, tile_rows), lambda t, e1_r, rel_r, e2_r: (t, 0, 0)
            ),
            scratch_shapes=scratch,
        ),
        compiler_params=pltpu.CompilerParams(
            dimension_semantics=("parallel",),   # batch tiles split across TCs on v7x
        ),
    )(
        e1p, relp, e2p,
        params.emb_e_real, params.emb_e_img,
        params.emb_rel_real, params.emb_rel_img,
    )
    return out.reshape(b_pad)[:B]


class ComplExParams:
    """Xavier-uniform initialized embedding tables (optionally bf16 storage)."""

    def __init__(self, key, num_entities, num_relations, embedding_dim,
                 dtype=jnp.float32):
        def xavier(k, shape):
            fan_out, fan_in = shape  # nn.Embedding weight: (num, dim)
            bound = (6.0 / (fan_in + fan_out)) ** 0.5
            w = jax.random.uniform(k, shape, jnp.float32, -bound, bound)
            return w.astype(dtype)

        k1, k2, k3, k4 = jax.random.split(key, 4)
        self.emb_e_real = xavier(k1, (num_entities, embedding_dim))
        self.emb_e_img = xavier(k2, (num_entities, embedding_dim))
        self.emb_rel_real = xavier(k3, (num_relations, embedding_dim))
        self.emb_rel_img = xavier(k4, (num_relations, embedding_dim))


def complex_forward_ref(params, e1_idx, rel_idx, e2_idx):
    f32 = lambda x: x.astype(jnp.float32)
    e1_real = f32(params.emb_e_real[e1_idx])
    e1_img = f32(params.emb_e_img[e1_idx])
    rel_real = f32(params.emb_rel_real[rel_idx])
    rel_img = f32(params.emb_rel_img[rel_idx])
    e2_real = f32(params.emb_e_real[e2_idx])
    e2_img = f32(params.emb_e_img[e2_idx])
    return jnp.sum(
        rel_real * e1_real * e2_real
        + rel_real * e1_img * e2_img
        + rel_img * e1_real * e2_img
        - rel_img * e1_img * e2_real,
        axis=1,
    )


if __name__ == "__main__":
    num_entities = 64
    num_relations = 8
    embedding_dim = 128
    batch = 24  # not a multiple of tile_rows -> exercises the padding path

    key = jax.random.PRNGKey(0)
    pkey, k_e1, k_rel, k_e2 = jax.random.split(key, 4)

    params = ComplExParams(pkey, num_entities, num_relations, embedding_dim)

    e1_idx = jax.random.randint(k_e1, (batch,), 0, num_entities)
    rel_idx = jax.random.randint(k_rel, (batch,), 0, num_relations)
    e2_idx = jax.random.randint(k_e2, (batch,), 0, num_entities)

    scores = complex_forward(params, e1_idx, rel_idx, e2_idx, tile_rows=16)
    scores = jax.block_until_ready(scores)

    ref = complex_forward_ref(params, e1_idx, rel_idx, e2_idx)
    assert scores.shape == (batch,)
    assert jnp.allclose(scores, ref, atol=1e-4, rtol=1e-4), (scores, ref)

    print("KERNEL_OK")
</pallas_src>

<mosaic_0001>
module attributes {stable_mosaic.version = 11 : i64} {
  func.func @_complex_fused_kernel(%arg0: i32, %arg1: memref<32xi32, #tpu.memory_space<smem>>, %arg2: memref<32xi32, #tpu.memory_space<smem>>, %arg3: memref<32xi32, #tpu.memory_space<smem>>, %arg4: memref<64x128xf32, #tpu.memory_space<any>>, %arg5: memref<64x128xf32, #tpu.memory_space<any>>, %arg6: memref<8x128xf32, #tpu.memory_space<any>>, %arg7: memref<8x128xf32, #tpu.memory_space<any>>, %arg8: memref<1x1x16xf32, #tpu.memory_space<vmem>>, %arg9: memref<16x128xf32, #tpu.memory_space<vmem>>, %arg10: memref<16x128xf32, #tpu.memory_space<vmem>>, %arg11: memref<16x128xf32, #tpu.memory_space<vmem>>, %arg12: memref<16x128xf32, #tpu.memory_space<vmem>>, %arg13: memref<16x128xf32, #tpu.memory_space<vmem>>, %arg14: memref<16x128xf32, #tpu.memory_space<vmem>>, %arg15: memref<16x!tpu.dma_semaphore, #tpu.memory_space<semaphore_mem>>) attributes {dimension_semantics = [#tpu.dimension_semantics<parallel>], iteration_bounds = array<i64: 2>, scalar_prefetch = 3 : i64, scratch_operands = 7 : i64, tpu.core_type = #tpu.core_type<tc>, window_params = [{}, {}, {}, {}, {transform_indices = @transform_4, window_bounds = array<i64: 1, 1, 16>}]} {
    %c16_i32 = arith.constant 16 : i32
    %0 = arith.muli %arg0, %c16_i32 : i32
    %c0_i32 = arith.constant 0 : i32
    %1 = arith.addi %0, %c0_i32 : i32
    %2 = arith.index_cast %1 : i32 to index
    %3 = memref.load %arg1[%2] : memref<32xi32, #tpu.memory_space<smem>>
    %c0_i32_0 = arith.constant 0 : i32
    %4 = arith.addi %0, %c0_i32_0 : i32
    %5 = arith.index_cast %4 : i32 to index
    %6 = memref.load %arg2[%5] : memref<32xi32, #tpu.memory_space<smem>>
    %c0_i32_1 = arith.constant 0 : i32
    %7 = arith.addi %0, %c0_i32_1 : i32
    %8 = arith.index_cast %7 : i32 to index
    %9 = memref.load %arg3[%8] : memref<32xi32, #tpu.memory_space<smem>>
    %c1_i32 = arith.constant 1 : i32
    %10 = arith.addi %0, %c1_i32 : i32
    %11 = arith.index_cast %10 : i32 to index
    %12 = memref.load %arg1[%11] : memref<32xi32, #tpu.memory_space<smem>>
    %c1_i32_2 = arith.constant 1 : i32
    %13 = arith.addi %0, %c1_i32_2 : i32
    %14 = arith.index_cast %13 : i32 to index
    %15 = memref.load %arg2[%14] : memref<32xi32, #tpu.memory_space<smem>>
    %c1_i32_3 = arith.constant 1 : i32
    %16 = arith.addi %0, %c1_i32_3 : i32
    %17 = arith.index_cast %16 : i32 to index
    %18 = memref.load %arg3[%17] : memref<32xi32, #tpu.memory_space<smem>>
    %c2_i32 = arith.constant 2 : i32
    %19 = arith.addi %0, %c2_i32 : i32
    %20 = arith.index_cast %19 : i32 to index
    %21 = memref.load %arg1[%20] : memref<32xi32, #tpu.memory_space<smem>>
    %c2_i32_4 = arith.constant 2 : i32
    %22 = arith.addi %0, %c2_i32_4 : i32
    %23 = arith.index_cast %22 : i32 to index
    %24 = memref.load %arg2[%23] : memref<32xi32, #tpu.memory_space<smem>>
    %c2_i32_5 = arith.constant 2 : i32
    %25 = arith.addi %0, %c2_i32_5 : i32
    %26 = arith.index_cast %25 : i32 to index
    %27 = memref.load %arg3[%26] : memref<32xi32, #tpu.memory_space<smem>>
    %c3_i32 = arith.constant 3 : i32
    %28 = arith.addi %0, %c3_i32 : i32
    %29 = arith.index_cast %28 : i32 to index
    %30 = memref.load %arg1[%29] : memref<32xi32, #tpu.memory_space<smem>>
    %c3_i32_6 = arith.constant 3 : i32
    %31 = arith.addi %0, %c3_i32_6 : i32
    %32 = arith.index_cast %31 : i32 to index
    %33 = memref.load %arg2[%32] : memref<32xi32, #tpu.memory_space<smem>>
    %c3_i32_7 = arith.constant 3 : i32
    %34 = arith.addi %0, %c3_i32_7 : i32
    %35 = arith.index_cast %34 : i32 to index
    %36 = memref.load %arg3[%35] : memref<32xi32, #tpu.memory_space<smem>>
    %c4_i32 = arith.constant 4 : i32
    %37 = arith.addi %0, %c4_i32 : i32
    %38 = arith.index_cast %37 : i32 to index
    %39 = memref.load %arg1[%38] : memref<32xi32, #tpu.memory_space<smem>>
    %c4_i32_8 = arith.constant 4 : i32
    %40 = arith.addi %0, %c4_i32_8 : i32
    %41 = arith.index_cast %40 : i32 to index
    %42 = memref.load %arg2[%41] : memref<32xi32, #tpu.memory_space<smem>>
    %c4_i32_9 = arith.constant 4 : i32
    %43 = arith.addi %0, %c4_i32_9 : i32
    %44 = arith.index_cast %43 : i32 to index
    %45 = memref.load %arg3[%44] : memref<32xi32, #tpu.memory_space<smem>>
    %c5_i32 = arith.constant 5 : i32
    %46 = arith.addi %0, %c5_i32 : i32
    %47 = arith.index_cast %46 : i32 to index
    %48 = memref.load %arg1[%47] : memref<32xi32, #tpu.memory_space<smem>>
    %c5_i32_10 = arith.constant 5 : i32
    %49 = arith.addi %0, %c5_i32_10 : i32
    %50 = arith.index_cast %49 : i32 to index
    %51 = memref.load %arg2[%50] : memref<32xi32, #tpu.memory_space<smem>>
    %c5_i32_11 = arith.constant 5 : i32
    %52 = arith.addi %0, %c5_i32_11 : i32
    %53 = arith.index_cast %52 : i32 to index
    %54 = memref.load %arg3[%53] : memref<32xi32, #tpu.memory_space<smem>>
    %c6_i32 = arith.constant 6 : i32
    %55 = arith.addi %0, %c6_i32 : i32
    %56 = arith.index_cast %55 : i32 to index
    %57 = memref.load %arg1[%56] : memref<32xi32, #tpu.memory_space<smem>>
    %c6_i32_12 = arith.constant 6 : i32
    %58 = arith.addi %0, %c6_i32_12 : i32
    %59 = arith.index_cast %58 : i32 to index
    %60 = memref.load %arg2[%59] : memref<32xi32, #tpu.memory_space<smem>>
    %c6_i32_13 = arith.constant 6 : i32
    %61 = arith.addi %0, %c6_i32_13 : i32
    %62 = arith.index_cast %61 : i32 to index
    %63 = memref.load %arg3[%62] : memref<32xi32, #tpu.memory_space<smem>>
    %c7_i32 = arith.constant 7 : i32
    %64 = arith.addi %0, %c7_i32 : i32
    %65 = arith.index_cast %64 : i32 to index
    %66 = memref.load %arg1[%65] : memref<32xi32, #tpu.memory_space<smem>>
    %c7_i32_14 = arith.constant 7 : i32
    %67 = arith.addi %0, %c7_i32_14 : i32
    %68 = arith.index_cast %67 : i32 to index
    %69 = memref.load %arg2[%68] : memref<32xi32, #tpu.memory_space<smem>>
    %c7_i32_15 = arith.constant 7 : i32
    %70 = arith.addi %0, %c7_i32_15 : i32
    %71 = arith.index_cast %70 : i32 to index
    %72 = memref.load %arg3[%71] : memref<32xi32, #tpu.memory_space<smem>>
    %c8_i32 = arith.constant 8 : i32
    %73 = arith.addi %0, %c8_i32 : i32
    %74 = arith.index_cast %73 : i32 to index
    %75 = memref.load %arg1[%74] : memref<32xi32, #tpu.memory_space<smem>>
    %c8_i32_16 = arith.constant 8 : i32
    %76 = arith.addi %0, %c8_i32_16 : i32
    %77 = arith.index_cast %76 : i32 to index
    %78 = memref.load %arg2[%77] : memref<32xi32, #tpu.memory_space<smem>>
    %c8_i32_17 = arith.constant 8 : i32
    %79 = arith.addi %0, %c8_i32_17 : i32
    %80 = arith.index_cast %79 : i32 to index
    %81 = memref.load %arg3[%80] : memref<32xi32, #tpu.memory_space<smem>>
    %c9_i32 = arith.constant 9 : i32
    %82 = arith.addi %0, %c9_i32 : i32
    %83 = arith.index_cast %82 : i32 to index
    %84 = memref.load %arg1[%83] : memref<32xi32, #tpu.memory_space<smem>>
    %c9_i32_18 = arith.constant 9 : i32
    %85 = arith.addi %0, %c9_i32_18 : i32
    %86 = arith.index_cast %85 : i32 to index
    %87 = memref.load %arg2[%86] : memref<32xi32, #tpu.memory_space<smem>>
    %c9_i32_19 = arith.constant 9 : i32
    %88 = arith.addi %0, %c9_i32_19 : i32
    %89 = arith.index_cast %88 : i32 to index
    %90 = memref.load %arg3[%89] : memref<32xi32, #tpu.memory_space<smem>>
    %c10_i32 = arith.constant 10 : i32
    %91 = arith.addi %0, %c10_i32 : i32
    %92 = arith.index_cast %91 : i32 to index
    %93 = memref.load %arg1[%92] : memref<32xi32, #tpu.memory_space<smem>>
    %c10_i32_20 = arith.constant 10 : i32
    %94 = arith.addi %0, %c10_i32_20 : i32
    %95 = arith.index_cast %94 : i32 to index
    %96 = memref.load %arg2[%95] : memref<32xi32, #tpu.memory_space<smem>>
    %c10_i32_21 = arith.constant 10 : i32
    %97 = arith.addi %0, %c10_i32_21 : i32
    %98 = arith.index_cast %97 : i32 to index
    %99 = memref.load %arg3[%98] : memref<32xi32, #tpu.memory_space<smem>>
    %c11_i32 = arith.constant 11 : i32
    %100 = arith.addi %0, %c11_i32 : i32
    %101 = arith.index_cast %100 : i32 to index
    %102 = memref.load %arg1[%101] : memref<32xi32, #tpu.memory_space<smem>>
    %c11_i32_22 = arith.constant 11 : i32
    %103 = arith.addi %0, %c11_i32_22 : i32
    %104 = arith.index_cast %103 : i32 to index
    %105 = memref.load %arg2[%104] : memref<32xi32, #tpu.memory_space<smem>>
    %c11_i32_23 = arith.constant 11 : i32
    %106 = arith.addi %0, %c11_i32_23 : i32
    %107 = arith.index_cast %106 : i32 to index
    %108 = memref.load %arg3[%107] : memref<32xi32, #tpu.memory_space<smem>>
    %c12_i32 = arith.constant 12 : i32
    %109 = arith.addi %0, %c12_i32 : i32
    %110 = arith.index_cast %109 : i32 to index
    %111 = memref.load %arg1[%110] : memref<32xi32, #tpu.memory_space<smem>>
    %c12_i32_24 = arith.constant 12 : i32
    %112 = arith.addi %0, %c12_i32_24 : i32
    %113 = arith.index_cast %112 : i32 to index
    %114 = memref.load %arg2[%113] : memref<32xi32, #tpu.memory_space<smem>>
    %c12_i32_25 = arith.constant 12 : i32
    %115 = arith.addi %0, %c12_i32_25 : i32
    %116 = arith.index_cast %115 : i32 to index
    %117 = memref.load %arg3[%116] : memref<32xi32, #tpu.memory_space<smem>>
    %c13_i32 = arith.constant 13 : i32
    %118 = arith.addi %0, %c13_i32 : i32
    %119 = arith.index_cast %118 : i32 to index
    %120 = memref.load %arg1[%119] : memref<32xi32, #tpu.memory_space<smem>>
    %c13_i32_26 = arith.constant 13 : i32
    %121 = arith.addi %0, %c13_i32_26 : i32
    %122 = arith.index_cast %121 : i32 to index
    %123 = memref.load %arg2[%122] : memref<32xi32, #tpu.memory_space<smem>>
    %c13_i32_27 = arith.constant 13 : i32
    %124 = arith.addi %0, %c13_i32_27 : i32
    %125 = arith.index_cast %124 : i32 to index
    %126 = memref.load %arg3[%125] : memref<32xi32, #tpu.memory_space<smem>>
    %c14_i32 = arith.constant 14 : i32
    %127 = arith.addi %0, %c14_i32 : i32
    %128 = arith.index_cast %127 : i32 to index
    %129 = memref.load %arg1[%128] : memref<32xi32, #tpu.memory_space<smem>>
    %c14_i32_28 = arith.constant 14 : i32
    %130 = arith.addi %0, %c14_i32_28 : i32
    %131 = arith.index_cast %130 : i32 to index
    %132 = memref.load %arg2[%131] : memref<32xi32, #tpu.memory_space<smem>>
    %c14_i32_29 = arith.constant 14 : i32
    %133 = arith.addi %0, %c14_i32_29 : i32
    %134 = arith.index_cast %133 : i32 to index
    %135 = memref.load %arg3[%134] : memref<32xi32, #tpu.memory_space<smem>>
    %c15_i32 = arith.constant 15 : i32
    %136 = arith.addi %0, %c15_i32 : i32
    %137 = arith.index_cast %136 : i32 to index
    %138 = memref.load %arg1[%137] : memref<32xi32, #tpu.memory_space<smem>>
    %c15_i32_30 = arith.constant 15 : i32
    %139 = arith.addi %0, %c15_i32_30 : i32
    %140 = arith.index_cast %139 : i32 to index
    %141 = memref.load %arg2[%140] : memref<32xi32, #tpu.memory_space<smem>>
    %c15_i32_31 = arith.constant 15 : i32
    %142 = arith.addi %0, %c15_i32_31 : i32
    %143 = arith.index_cast %142 : i32 to index
    %144 = memref.load %arg3[%143] : memref<32xi32, #tpu.memory_space<smem>>
    %c0_i32_32 = arith.constant 0 : i32
    %c0_i32_33 = arith.constant 0 : i32
    %145 = tpu.memref_slice %arg4[%3, %c0_i32_33] : memref<64x128xf32, #tpu.memory_space<any>> -> memref<1x128xf32, #tpu.memory_space<any>>
    %c0_i32_34 = arith.constant 0 : i32
    %c0_i32_35 = arith.constant 0 : i32
    %146 = tpu.memref_slice %arg9[%c0_i32_34, %c0_i32_35] : memref<16x128xf32, #tpu.memory_space<vmem>> -> memref<1x128xf32, #tpu.memory_space<vmem>>
    %147 = tpu.memref_slice %arg15[%c0_i32_32] : memref<16x!tpu.dma_semaphore, #tpu.memory_space<semaphore_mem>> -> memref<1x!tpu.dma_semaphore, #tpu.memory_space<semaphore_mem>>
    %148 = tpu.memref_squeeze %147 : memref<1x!tpu.dma_semaphore, #tpu.memory_space<semaphore_mem>> -> memref<!tpu.dma_semaphore, #tpu.memory_space<semaphore_mem>>
    tpu.enqueue_dma source(%145 : memref<1x128xf32, #tpu.memory_space<any>>) target(%146 : memref<1x128xf32, #tpu.memory_space<vmem>>) target_semaphore(%148 : memref<!tpu.dma_semaphore, #tpu.memory_space<semaphore_mem>>)
    %c0_i32_36 = arith.constant 0 : i32
    %c0_i32_37 = arith.constant 0 : i32
    %149 = tpu.memref_slice %arg5[%3, %c0_i32_37] : memref<64x128xf32, #tpu.memory_space<any>> -> memref<1x128xf32, #tpu.memory_space<any>>
    %c0_i32_38 = arith.constant 0 : i32
    %c0_i32_39 = arith.constant 0 : i32
    %150 = tpu.memref_slice %arg10[%c0_i32_38, %c0_i32_39] : memref<16x128xf32, #tpu.memory_space<vmem>> -> memref<1x128xf32, #tpu.memory_space<vmem>>
    %151 = tpu.memref_slice %arg15[%c0_i32_36] : memref<16x!tpu.dma_semaphore, #tpu.memory_space<semaphore_mem>> -> memref<1x!tpu.dma_semaphore, #tpu.memory_space<semaphore_mem>>
    %152 = tpu.memref_squeeze %151 : memref<1x!tpu.dma_semaphore, #tpu.memory_space<semaphore_mem>> -> memref<!tpu.dma_semaphore, #tpu.memory_space<semaphore_mem>>
    tpu.enqueue_dma source(%149 : memref<1x128xf32, #tpu.memory_space<any>>) target(%150 : memref<1x128xf32, #tpu.memory_space<vmem>>) target_semaphore(%152 : memref<!tpu.dma_semaphore, #tpu.memory_space<semaphore_mem>>)
    %c0_i32_40 = arith.constant 0 : i32
    %c0_i32_41 = arith.constant 0 : i32
    %153 = tpu.memref_slice %arg6[%6, %c0_i32_41] : memref<8x128xf32, #tpu.memory_space<any>> -> memref<1x128xf32, #tpu.memory_space<any>>
    %c0_i32_42 = arith.constant 0 : i32
    %c0_i32_43 = arith.constant 0 : i32
    %154 = tpu.memref_slice %arg11[%c0_i32_42, %c0_i32_43] : memref<16x128xf32, #tpu.memory_space<vmem>> -> memref<1x128xf32, #tpu.memory_space<vmem>>
    %155 = tpu.memref_slice %arg15[%c0_i32_40] : memref<16x!tpu.dma_semaphore, #tpu.memory_space<semaphore_mem>> -> memref<1x!tpu.dma_semaphore, #tpu.memory_space<semaphore_mem>>
    %156 = tpu.memref_squeeze %155 : memref<1x!tpu.dma_semaphore, #tpu.memory_space<semaphore_mem>> -> memref<!tpu.dma_semaphore, #tpu.memory_space<semaphore_mem>>
    tpu.enqueue_dma source(%153 : memref<1x128xf32, #tpu.memory_space<any>>) target(%154 : memref<1x128xf32, #tpu.memory_space<vmem>>) target_semaphore(%156 : memref<!tpu.dma_semaphore, #tpu.memory_space<semaphore_mem>>)
    %c0_i32_44 = arith.constant 0 : i32
    %c0_i32_45 = arith.constant 0 : i32
    %157 = tpu.memref_slice %arg7[%6, %c0_i32_45] : memref<8x128xf32, #tpu.memory_space<any>> -> memref<1x128xf32, #tpu.memory_space<any>>
    %c0_i32_46 = arith.constant 0 : i32
    %c0_i32_47 = arith.constant 0 : i32
    %158 = tpu.memref_slice %arg12[%c0_i32_46, %c0_i32_47] : memref<16x128xf32, #tpu.memory_space<vmem>> -> memref<1x128xf32, #tpu.memory_space<vmem>>
    %159 = tpu.memref_slice %arg15[%c0_i32_44] : memref<16x!tpu.dma_semaphore, #tpu.memory_space<semaphore_mem>> -> memref<1x!tpu.dma_semaphore, #tpu.memory_space<semaphore_mem>>
    %160 = tpu.memref_squeeze %159 : memref<1x!tpu.dma_semaphore, #tpu.memory_space<semaphore_mem>> -> memref<!tpu.dma_semaphore, #tpu.memory_space<semaphore_mem>>
    tpu.enqueue_dma source(%157 : memref<1x128xf32, #tpu.memory_space<any>>) target(%158 : memref<1x128xf32, #tpu.memory_space<vmem>>) target_semaphore(%160 : memref<!tpu.dma_semaphore, #tpu.memory_space<semaphore_mem>>)
    %c0_i32_48 = arith.constant 0 : i32
    %c0_i32_49 = arith.constant 0 : i32
    %161 = tpu.memref_slice %arg4[%9, %c0_i32_49] : memref<64x128xf32, #tpu.memory_space<any>> -> memref<1x128xf32, #tpu.memory_space<any>>
    %c0_i32_50 = arith.constant 0 : i32
    %c0_i32_51 = arith.constant 0 : i32
    %162 = tpu.memref_slice %arg13[%c0_i32_50, %c0_i32_51] : memref<16x128xf32, #tpu.memory_space<vmem>> -> memref<1x128xf32, #tpu.memory_space<vmem>>
    %163 = tpu.memref_slice %arg15[%c0_i32_48] : memref<16x!tpu.dma_semaphore, #tpu.memory_space<semaphore_mem>> -> memref<1x!tpu.dma_semaphore, #tpu.memory_space<semaphore_mem>>
    %164 = tpu.memref_squeeze %163 : memref<1x!tpu.dma_semaphore, #tpu.memory_space<semaphore_mem>> -> memref<!tpu.dma_semaphore, #tpu.memory_space<semaphore_mem>>
    tpu.enqueue_dma source(%161 : memref<1x128xf32, #tpu.memory_space<any>>) target(%162 : memref<1x128xf32, #tpu.memory_space<vmem>>) target_semaphore(%164 : memref<!tpu.dma_semaphore, #tpu.memory_space<semaphore_mem>>)
    %c0_i32_52 = arith.constant 0 : i32
    %c0_i32_53 = arith.constant 0 : i32
    %165 = tpu.memref_slice %arg5[%9, %c0_i32_53] : memref<64x128xf32, #tpu.memory_space<any>> -> memref<1x128xf32, #tpu.memory_space<any>>
    %c0_i32_54 = arith.constant 0 : i32
    %c0_i32_55 = arith.constant 0 : i32
    %166 = tpu.memref_slice %arg14[%c0_i32_54, %c0_i32_55] : memref<16x128xf32, #tpu.memory_space<vmem>> -> memref<1x128xf32, #tpu.memory_space<vmem>>
    %167 = tpu.memref_slice %arg15[%c0_i32_52] : memref<16x!tpu.dma_semaphore, #tpu.memory_space<semaphore_mem>> -> memref<1x!tpu.dma_semaphore, #tpu.memory_space<semaphore_mem>>
    %168 = tpu.memref_squeeze %167 : memref<1x!tpu.dma_semaphore, #tpu.memory_space<semaphore_mem>> -> memref<!tpu.dma_semaphore, #tpu.memory_space<semaphore_mem>>
    tpu.enqueue_dma source(%165 : memref<1x128xf32, #tpu.memory_space<any>>) target(%166 : memref<1x128xf32, #tpu.memory_space<vmem>>) target_semaphore(%168 : memref<!tpu.dma_semaphore, #tpu.memory_space<semaphore_mem>>)
    %c1_i32_56 = arith.constant 1 : i32
    %c0_i32_57 = arith.constant 0 : i32
    %169 = tpu.memref_slice %arg4[%12, %c0_i32_57] : memref<64x128xf32, #tpu.memory_space<any>> -> memref<1x128xf32, #tpu.memory_space<any>>
    %c1_i32_58 = arith.constant 1 : i32
    %c0_i32_59 = arith.constant 0 : i32
    %170 = tpu.memref_slice %arg9[%c1_i32_58, %c0_i32_59] : memref<16x128xf32, #tpu.memory_space<vmem>> -> memref<1x128xf32, #tpu.memory_space<vmem>>
    %171 = tpu.memref_slice %arg15[%c1_i32_56] : memref<16x!tpu.dma_semaphore, #tpu.memory_space<semaphore_mem>> -> memref<1x!tpu.dma_semaphore, #tpu.memory_space<semaphore_mem>>
    %172 = tpu.memref_squeeze %171 : memref<1x!tpu.dma_semaphore, #tpu.memory_space<semaphore_mem>> -> memref<!tpu.dma_semaphore, #tpu.memory_space<semaphore_mem>>
    tpu.enqueue_dma source(%169 : memref<1x128xf32, #tpu.memory_space<any>>) target(%170 : memref<1x128xf32, #tpu.memory_space<vmem>>) target_semaphore(%172 : memref<!tpu.dma_semaphore, #tpu.memory_space<semaphore_mem>>)
    %c1_i32_60 = arith.constant 1 : i32
    %c0_i32_61 = arith.constant 0 : i32
    %173 = tpu.memref_slice %arg5[%12, %c0_i32_61] : memref<64x128xf32, #tpu.memory_space<any>> -> memref<1x128xf32, #tpu.memory_space<any>>
    %c1_i32_62 = arith.constant 1 : i32
    %c0_i32_63 = arith.constant 0 : i32
    %174 = tpu.memref_slice %arg10[%c1_i32_62, %c0_i32_63] : memref<16x128xf32, #tpu.memory_space<vmem>> -> memref<1x128xf32, #tpu.memory_space<vmem>>
    %175 = tpu.memref_slice %arg15[%c1_i32_60] : memref<16x!tpu.dma_semaphore, #tpu.memory_space<semaphore_mem>> -> memref<1x!tpu.dma_semaphore, #tpu.memory_space<semaphore_mem>>
    %176 = tpu.memref_squeeze %175 : memref<1x!tpu.dma_semaphore, #tpu.memory_space<semaphore_mem>> -> memref<!tpu.dma_semaphore, #tpu.memory_space<semaphore_mem>>
    tpu.enqueue_dma source(%173 : memref<1x128xf32, #tpu.memory_space<any>>) target(%174 : memref<1x128xf32, #tpu.memory_space<vmem>>) target_semaphore(%176 : memref<!tpu.dma_semaphore, #tpu.memory_space<semaphore_mem>>)
    %c1_i32_64 = arith.constant 1 : i32
    %c0_i32_65 = arith.constant 0 : i32
    %177 = tpu.memref_slice %arg6[%15, %c0_i32_65] : memref<8x128xf32, #tpu.memory_space<any>> -> memref<1x128xf32, #tpu.memory_space<any>>
    %c1_i32_66 = arith.constant 1 : i32
    %c0_i32_67 = arith.constant 0 : i32
    %178 = tpu.memref_slice %arg11[%c1_i32_66, %c0_i32_67] : memref<16x128xf32, #tpu.memory_space<vmem>> -> memref<1x128xf32, #tpu.memory_space<vmem>>
    %179 = tpu.memref_slice %arg15[%c1_i32_64] : memref<16x!tpu.dma_semaphore, #tpu.memory_space<semaphore_mem>> -> memref<1x!tpu.dma_semaphore, #tpu.memory_space<semaphore_mem>>
    %180 = tpu.memref_squeeze %179 : memref<1x!tpu.dma_semaphore, #tpu.memory_space<semaphore_mem>> -> memref<!tpu.dma_semaphore, #tpu.memory_space<semaphore_mem>>
    tpu.enqueue_dma source(%177 : memref<1x128xf32, #tpu.memory_space<any>>) target(%178 : memref<1x128xf32, #tpu.memory_space<vmem>>) target_semaphore(%180 : memref<!tpu.dma_semaphore, #tpu.memory_space<semaphore_mem>>)
    %c1_i32_68 = arith.constant 1 : i32
    %c0_i32_69 = arith.constant 0 : i32
    %181 = tpu.memref_slice %arg7[%15, %c0_i32_69] : memref<8x128xf32, #tpu.memory_space<any>> -> memref<1x128xf32, #tpu.memory_space<any>>
    %c1_i32_70 = arith.constant 1 : i32
    %c0_i32_71 = arith.constant 0 : i32
    %182 = tpu.memref_slice %arg12[%c1_i32_70, %c0_i32_71] : memref<16x128xf32, #tpu.memory_space<vmem>> -> memref<1x128xf32, #tpu.memory_space<vmem>>
    %183 = tpu.memref_slice %arg15[%c1_i32_68] : memref<16x!tpu.dma_semaphore, #tpu.memory_space<semaphore_mem>> -> memref<1x!tpu.dma_semaphore, #tpu.memory_space<semaphore_mem>>
    %184 = tpu.memref_squeeze %183 : memref<1x!tpu.dma_semaphore, #tpu.memory_space<semaphore_mem>> -> memref<!tpu.dma_semaphore, #tpu.memory_space<semaphore_mem>>
    tpu.enqueue_dma source(%181 : memref<1x128xf32, #tpu.memory_space<any>>) target(%182 : memref<1x128xf32, #tpu.memory_space<vmem>>) target_semaphore(%184 : memref<!tpu.dma_semaphore, #tpu.memory_space<semaphore_mem>>)
    %c1_i32_72 = arith.constant 1 : i32
    %c0_i32_73 = arith.constant 0 : i32
    %185 = tpu.memref_slice %arg4[%18, %c0_i32_73] : memref<64x128xf32, #tpu.memory_space<any>> -> memref<1x128xf32, #tpu.memory_space<any>>
    %c1_i32_74 = arith.constant 1 : i32
    %c0_i32_75 = arith.constant 0 : i32
    %186 = tpu.memref_slice %arg13[%c1_i32_74, %c0_i32_75] : memref<16x128xf32, #tpu.memory_space<vmem>> -> memref<1x128xf32, #tpu.memory_space<vmem>>
    %187 = tpu.memref_slice %arg15[%c1_i32_72] : memref<16x!tpu.dma_semaphore, #tpu.memory_space<semaphore_mem>> -> memref<1x!tpu.dma_semaphore, #tpu.memory_space<semaphore_mem>>
    %188 = tpu.memref_squeeze %187 : memref<1x!tpu.dma_semaphore, #tpu.memory_space<semaphore_mem>> -> memref<!tpu.dma_semaphore, #tpu.memory_space<semaphore_mem>>
    tpu.enqueue_dma source(%185 : memref<1x128xf32, #tpu.memory_space<any>>) target(%186 : memref<1x128xf32, #tpu.memory_space<vmem>>) target_semaphore(%188 : memref<!tpu.dma_semaphore, #tpu.memory_space<semaphore_mem>>)
    %c1_i32_76 = arith.constant 1 : i32
    %c0_i32_77 = arith.constant 0 : i32
    %189 = tpu.memref_slice %arg5[%18, %c0_i32_77] : memref<64x128xf32, #tpu.memory_space<any>> -> memref<1x128xf32, #tpu.memory_space<any>>
    %c1_i32_78 = arith.constant 1 : i32
    %c0_i32_79 = arith.constant 0 : i32
    %190 = tpu.memref_slice %arg14[%c1_i32_78, %c0_i32_79] : memref<16x128xf32, #tpu.memory_space<vmem>> -> memref<1x128xf32, #tpu.memory_space<vmem>>
    %191 = tpu.memref_slice %arg15[%c1_i32_76] : memref<16x!tpu.dma_semaphore, #tpu.memory_space<semaphore_mem>> -> memref<1x!tpu.dma_semaphore, #tpu.memory_space<semaphore_mem>>
    %192 = tpu.memref_squeeze %191 : memref<1x!tpu.dma_semaphore, #tpu.memory_space<semaphore_mem>> -> memref<!tpu.dma_semaphore, #tpu.memory_space<semaphore_mem>>
    tpu.enqueue_dma source(%189 : memref<1x128xf32, #tpu.memory_space<any>>) target(%190 : memref<1x128xf32, #tpu.memory_space<vmem>>) target_semaphore(%192 : memref<!tpu.dma_semaphore, #tpu.memory_space<semaphore_mem>>)
    %c2_i32_80 = arith.constant 2 : i32
    %c0_i32_81 = arith.constant 0 : i32
    %193 = tpu.memref_slice %arg4[%21, %c0_i32_81] : memref<64x128xf32, #tpu.memory_space<any>> -> memref<1x128xf32, #tpu.memory_space<any>>
    %c2_i32_82 = arith.constant 2 : i32
    %c0_i32_83 = arith.constant 0 : i32
    %194 = tpu.memref_slice %arg9[%c2_i32_82, %c0_i32_83] : memref<16x128xf32, #tpu.memory_space<vmem>> -> memref<1x128xf32, #tpu.memory_space<vmem>>
    %195 = tpu.memref_slice %arg15[%c2_i32_80] : memref<16x!tpu.dma_semaphore, #tpu.memory_space<semaphore_mem>> -> memref<1x!tpu.dma_semaphore, #tpu.memory_space<semaphore_mem>>
    %196 = tpu.memref_squeeze %195 : memref<1x!tpu.dma_semaphore, #tpu.memory_space<semaphore_mem>> -> memref<!tpu.dma_semaphore, #tpu.memory_space<semaphore_mem>>
    tpu.enqueue_dma source(%193 : memref<1x128xf32, #tpu.memory_space<any>>) target(%194 : memref<1x128xf32, #tpu.memory_space<vmem>>) target_semaphore(%196 : memref<!tpu.dma_semaphore, #tpu.memory_space<semaphore_mem>>)
    %c2_i32_84 = arith.constant 2 : i32
    %c0_i32_85 = arith.constant 0 : i32
    %197 = tpu.memref_slice %arg5[%21, %c0_i32_85] : memref<64x128xf32, #tpu.memory_space<any>> -> memref<1x128xf32, #tpu.memory_space<any>>
    %c2_i32_86 = arith.constant 2 : i32
    %c0_i32_87 = arith.constant 0 : i32
    %198 = tpu.memref_slice %arg10[%c2_i32_86, %c0_i32_87] : memref<16x128xf32, #tpu.memory_space<vmem>> -> memref<1x128xf32, #tpu.memory_space<vmem>>
    %199 = tpu.memref_slice %arg15[%c2_i32_84] : memref<16x!tpu.dma_semaphore, #tpu.memory_space<semaphore_mem>> -> memref<1x!tpu.dma_semaphore, #tpu.memory_space<semaphore_mem>>
    %200 = tpu.memref_squeeze %199 : memref<1x!tpu.dma_semaphore, #tpu.memory_space<semaphore_mem>> -> memref<!tpu.dma_semaphore, #tpu.memory_space<semaphore_mem>>
    tpu.enqueue_dma source(%197 : memref<1x128xf32, #tpu.memory_space<any>>) target(%198 : memref<1x128xf32, #tpu.memory_space<vmem>>) target_semaphore(%200 : memref<!tpu.dma_semaphore, #tpu.memory_space<semaphore_mem>>)
    %c2_i32_88 = arith.constant 2 : i32
    %c0_i32_89 = arith.constant 0 : i32
    %201 = tpu.memref_slice %arg6[%24, %c0_i32_89] : memref<8x128xf32, #tpu.memory_space<any>> -> memref<1x128xf32, #tpu.memory_space<any>>
    %c2_i32_90 = arith.constant 2 : i32
    %c0_i32_91 = arith.constant 0 : i32
    %202 = tpu.memref_slice %arg11[%c2_i32_90, %c0_i32_91] : memref<16x128xf32, #tpu.memory_space<vmem>> -> memref<1x128xf32, #tpu.memory_space<vmem>>
    %203 = tpu.memref_slice %arg15[%c2_i32_88] : memref<16x!tpu.dma_semaphore, #tpu.memory_space<semaphore_mem>> -> memref<1x!tpu.dma_semaphore, #tpu.memory_space<semaphore_mem>>
    %204 = tpu.memref_squeeze %203 : memref<1x!tpu.dma_semaphore, #tpu.memory_space<semaphore_mem>> -> memref<!tpu.dma_semaphore, #tpu.memory_space<semaphore_mem>>
    tpu.enqueue_dma source(%201 : memref<1x128xf32, #tpu.memory_space<any>>) target(%202 : memref<1x128xf32, #tpu.memory_space<vmem>>) target_semaphore(%204 : memref<!tpu.dma_semaphore, #tpu.memory_space<semaphore_mem>>)
    %c2_i32_92 = arith.constant 2 : i32
    %c0_i32_93 = arith.constant 0 : i32
    %205 = tpu.memref_slice %arg7[%24, %c0_i32_93] : memref<8x128xf32, #tpu.memory_space<any>> -> memref<1x128xf32, #tpu.memory_space<any>>
    %c2_i32_94 = arith.constant 2 : i32
    %c0_i32_95 = arith.constant 0 : i32
    %206 = tpu.memref_slice %arg12[%c2_i32_94, %c0_i32_95] : memref<16x128xf32, #tpu.memory_space<vmem>> -> memref<1x128xf32, #tpu.memory_space<vmem>>
    %207 = tpu.memref_slice %arg15[%c2_i32_92] : memref<16x!tpu.dma_semaphore, #tpu.memory_space<semaphore_mem>> -> memref<1x!tpu.dma_semaphore, #tpu.memory_space<semaphore_mem>>
    %208 = tpu.memref_squeeze %207 : memref<1x!tpu.dma_semaphore, #tpu.memory_space<semaphore_mem>> -> memref<!tpu.dma_semaphore, #tpu.memory_space<semaphore_mem>>
    tpu.enqueue_dma source(%205 : memref<1x128xf32, #tpu.memory_space<any>>) target(%206 : memref<1x128xf32, #tpu.memory_space<vmem>>) target_semaphore(%208 : memref<!tpu.dma_semaphore, #tpu.memory_space<semaphore_mem>>)
    %c2_i32_96 = arith.constant 2 : i32
    %c0_i32_97 = arith.constant 0 : i32
    %209 = tpu.memref_slice %arg4[%27, %c0_i32_97] : memref<64x128xf32, #tpu.memory_space<any>> -> memref<1x128xf32, #tpu.memory_space<any>>
    %c2_i32_98 = arith.constant 2 : i32
    %c0_i32_99 = arith.constant 0 : i32
    %210 = tpu.memref_slice %arg13[%c2_i32_98, %c0_i32_99] : memref<16x128xf32, #tpu.memory_space<vmem>> -> memref<1x128xf32, #tpu.memory_space<vmem>>
    %211 = tpu.memref_slice %arg15[%c2_i32_96] : memref<16x!tpu.dma_semaphore, #tpu.memory_space<semaphore_mem>> -> memref<1x!tpu.dma_semaphore, #tpu.memory_space<semaphore_mem>>
    %212 = tpu.memref_squeeze %211 : memref<1x!tpu.dma_semaphore, #tpu.memory_space<semaphore_mem>> -> memref<!tpu.dma_semaphore, #tpu.memory_space<semaphore_mem>>
    tpu.enqueue_dma source(%209 : memref<1x128xf32, #tpu.memory_space<any>>) target(%210 : memref<1x128xf32, #tpu.memory_space<vmem>>) target_semaphore(%212 : memref<!tpu.dma_semaphore, #tpu.memory_space<semaphore_mem>>)
    %c2_i32_100 = arith.constant 2 : i32
    %c0_i32_101 = arith.constant 0 : i32
    %213 = tpu.memref_slice %arg5[%27, %c0_i32_101] : memref<64x128xf32, #tpu.memory_space<any>> -> memref<1x128xf32, #tpu.memory_space<any>>
    %c2_i32_102 = arith.constant 2 : i32
    %c0_i32_103 = arith.constant 0 : i32
    %214 = tpu.memref_slice %arg14[%c2_i32_102, %c0_i32_103] : memref<16x128xf32, #tpu.memory_space<vmem>> -> memref<1x128xf32, #tpu.memory_space<vmem>>
    %215 = tpu.memref_slice %arg15[%c2_i32_100] : memref<16x!tpu.dma_semaphore, #tpu.memory_space<semaphore_mem>> -> memref<1x!tpu.dma_semaphore, #tpu.memory_space<semaphore_mem>>
    %216 = tpu.memref_squeeze %215 : memref<1x!tpu.dma_semaphore, #tpu.memory_space<semaphore_mem>> -> memref<!tpu.dma_semaphore, #tpu.memory_space<semaphore_mem>>
    tpu.enqueue_dma source(%213 : memref<1x128xf32, #tpu.memory_space<any>>) target(%214 : memref<1x128xf32, #tpu.memory_space<vmem>>) target_semaphore(%216 : memref<!tpu.dma_semaphore, #tpu.memory_space<semaphore_mem>>)
    %c3_i32_104 = arith.constant 3 : i32
    %c0_i32_105 = arith.constant 0 : i32
    %217 = tpu.memref_slice %arg4[%30, %c0_i32_105] : memref<64x128xf32, #tpu.memory_space<any>> -> memref<1x128xf32, #tpu.memory_space<any>>
    %c3_i32_106 = arith.constant 3 : i32
    %c0_i32_107 = arith.constant 0 : i32
    %218 = tpu.memref_slice %arg9[%c3_i32_106, %c0_i32_107] : memref<16x128xf32, #tpu.memory_space<vmem>> -> memref<1x128xf32, #tpu.memory_space<vmem>>
    %219 = tpu.memref_slice %arg15[%c3_i32_104] : memref<16x!tpu.dma_semaphore, #tpu.memory_space<semaphore_mem>> -> memref<1x!tpu.dma_semaphore, #tpu.memory_space<semaphore_mem>>
    %220 = tpu.memref_squeeze %219 : memref<1x!tpu.dma_semaphore, #tpu.memory_space<semaphore_mem>> -> memref<!tpu.dma_semaphore, #tpu.memory_space<semaphore_mem>>
    tpu.enqueue_dma source(%217 : memref<1x128xf32, #tpu.memory_space<any>>) target(%218 : memref<1x128xf32, #tpu.memory_space<vmem>>) target_semaphore(%220 : memref<!tpu.dma_semaphore, #tpu.memory_space<semaphore_mem>>)
    %c3_i32_108 = arith.constant 3 : i32
    %c0_i32_109 = arith.constant 0 : i32
    %221 = tpu.memref_slice %arg5[%30, %c0_i32_109] : memref<64x128xf32, #tpu.memory_space<any>> -> memref<1x128xf32, #tpu.memory_space<any>>
    %c3_i32_110 = arith.constant 3 : i32
    %c0_i32_111 = arith.constant 0 : i32
    %222 = tpu.memref_slice %arg10[%c3_i32_110, %c0_i32_111] : memref<16x128xf32, #tpu.memory_space<vmem>> -> memref<1x128xf32, #tpu.memory_space<vmem>>
    %223 = tpu.memref_slice %arg15[%c3_i32_108] : memref<16x!tpu.dma_semaphore, #tpu.memory_space<semaphore_mem>> -> memref<1x!tpu.dma_semaphore, #tpu.memory_space<semaphore_mem>>
    %224 = tpu.memref_squeeze %223 : memref<1x!tpu.dma_semaphore, #tpu.memory_space<semaphore_mem>> -> memref<!tpu.dma_semaphore, #tpu.memory_space<semaphore_mem>>
    tpu.enqueue_dma source(%221 : memref<1x128xf32, #tpu.memory_space<any>>) target(%222 : memref<1x128xf32, #tpu.memory_space<vmem>>) target_semaphore(%224 : memref<!tpu.dma_semaphore, #tpu.memory_space<semaphore_mem>>)
    %c3_i32_112 = arith.constant 3 : i32
    %c0_i32_113 = arith.constant 0 : i32
    %225 = tpu.memref_slice %arg6[%33, %c0_i32_113] : memref<8x128xf32, #tpu.memory_space<any>> -> memref<1x128xf32, #tpu.memory_space<any>>
    %c3_i32_114 = arith.constant 3 : i32
    %c0_i32_115 = arith.constant 0 : i32
    %226 = tpu.memref_slice %arg11[%c3_i32_114, %c0_i32_115] : memref<16x128xf32, #tpu.memory_space<vmem>> -> memref<1x128xf32, #tpu.memory_space<vmem>>
    %227 = tpu.memref_slice %arg15[%c3_i32_112] : memref<16x!tpu.dma_semaphore, #tpu.memory_space<semaphore_mem>> -> memref<1x!tpu.dma_semaphore, #tpu.memory_space<semaphore_mem>>
    %228 = tpu.memref_squeeze %227 : memref<1x!tpu.dma_semaphore, #tpu.memory_space<semaphore_mem>> -> memref<!tpu.dma_semaphore, #tpu.memory_space<semaphore_mem>>
    tpu.enqueue_dma source(%225 : memref<1x128xf32, #tpu.memory_space<any>>) target(%226 : memref<1x128xf32, #tpu.memory_space<vmem>>) target_semaphore(%228 : memref<!tpu.dma_semaphore, #tpu.memory_space<semaphore_mem>>)
    %c3_i32_116 = arith.constant 3 : i32
    %c0_i32_117 = arith.constant 0 : i32
    %229 = tpu.memref_slice %arg7[%33, %c0_i32_117] : memref<8x128xf32, #tpu.memory_space<any>> -> memref<1x128xf32, #tpu.memory_space<any>>
    %c3_i32_118 = arith.constant 3 : i32
    %c0_i32_119 = arith.constant 0 : i32
    %230 = tpu.memref_slice %arg12[%c3_i32_118, %c0_i32_119] : memref<16x128xf32, #tpu.memory_space<vmem>> -> memref<1x128xf32, #tpu.memory_space<vmem>>
    %231 = tpu.memref_slice %arg15[%c3_i32_116] : memref<16x!tpu.dma_semaphore, #tpu.memory_space<semaphore_mem>> -> memref<1x!tpu.dma_semaphore, #tpu.memory_space<semaphore_mem>>
    %232 = tpu.memref_squeeze %231 : memref<1x!tpu.dma_semaphore, #tpu.memory_space<semaphore_mem>> -> memref<!tpu.dma_semaphore, #tpu.memory_space<semaphore_mem>>
    tpu.enqueue_dma source(%229 : memref<1x128xf32, #tpu.memory_space<any>>) target(%230 : memref<1x128xf32, #tpu.memory_space<vmem>>) target_semaphore(%232 : memref<!tpu.dma_semaphore, #tpu.memory_space<semaphore_mem>>)
    %c3_i32_120 = arith.constant 3 : i32
    %c0_i32_121 = arith.constant 0 : i32
    %233 = tpu.memref_slice %arg4[%36, %c0_i32_121] : memref<64x128xf32, #tpu.memory_space<any>> -> memref<1x128xf32, #tpu.memory_space<any>>
    %c3_i32_122 = arith.constant 3 : i32
    %c0_i32_123 = arith.constant 0 : i32
    %234 = tpu.memref_slice %arg13[%c3_i32_122, %c0_i32_123] : memref<16x128xf32, #tpu.memory_space<vmem>> -> memref<1x128xf32, #tpu.memory_space<vmem>>
    %235 = tpu.memref_slice %arg15[%c3_i32_120] : memref<16x!tpu.dma_semaphore, #tpu.memory_space<semaphore_mem>> -> memref<1x!tpu.dma_semaphore, #tpu.memory_space<semaphore_mem>>
    %236 = tpu.memref_squeeze %235 : memref<1x!tpu.dma_semaphore, #tpu.memory_space<semaphore_mem>> -> memref<!tpu.dma_semaphore, #tpu.memory_space<semaphore_mem>>
    tpu.enqueue_dma source(%233 : memref<1x128xf32, #tpu.memory_space<any>>) target(%234 : memref<1x128xf32, #tpu.memory_space<vmem>>) target_semaphore(%236 : memref<!tpu.dma_semaphore, #tpu.memory_space<semaphore_mem>>)
    %c3_i32_124 = arith.constant 3 : i32
    %c0_i32_125 = arith.constant 0 : i32
    %237 = tpu.memref_slice %arg5[%36, %c0_i32_125] : memref<64x128xf32, #tpu.memory_space<any>> -> memref<1x128xf32, #tpu.memory_space<any>>
    %c3_i32_126 = arith.constant 3 : i32
    %c0_i32_127 = arith.constant 0 : i32
    %238 = tpu.memref_slice %arg14[%c3_i32_126, %c0_i32_127] : memref<16x128xf32, #tpu.memory_space<vmem>> -> memref<1x128xf32, #tpu.memory_space<vmem>>
    %239 = tpu.memref_slice %arg15[%c3_i32_124] : memref<16x!tpu.dma_semaphore, #tpu.memory_space<semaphore_mem>> -> memref<1x!tpu.dma_semaphore, #tpu.memory_space<semaphore_mem>>
    %240 = tpu.memref_squeeze %239 : memref<1x!tpu.dma_semaphore, #tpu.memory_space<semaphore_mem>> -> memref<!tpu.dma_semaphore, #tpu.memory_space<semaphore_mem>>
    tpu.enqueue_dma source(%237 : memref<1x128xf32, #tpu.memory_space<any>>) target(%238 : memref<1x128xf32, #tpu.memory_space<vmem>>) target_semaphore(%240 : memref<!tpu.dma_semaphore, #tpu.memory_space<semaphore_mem>>)
    %c4_i32_128 = arith.constant 4 : i32
    %c0_i32_129 = arith.constant 0 : i32
    %241 = tpu.memref_slice %arg4[%39, %c0_i32_129] : memref<64x128xf32, #tpu.memory_space<any>> -> memref<1x128xf32, #tpu.memory_space<any>>
    %c4_i32_130 = arith.constant 4 : i32
    %c0_i32_131 = arith.constant 0 : i32
    %242 = tpu.memref_slice %arg9[%c4_i32_130, %c0_i32_131] : memref<16x128xf32, #tpu.memory_space<vmem>> -> memref<1x128xf32, #tpu.memory_space<vmem>>
    %243 = tpu.memref_slice %arg15[%c4_i32_128] : memref<16x!tpu.dma_semaphore, #tpu.memory_space<semaphore_mem>> -> memref<1x!tpu.dma_semaphore, #tpu.memory_space<semaphore_mem>>
    %244 = tpu.memref_squeeze %243 : memref<1x!tpu.dma_semaphore, #tpu.memory_space<semaphore_mem>> -> memref<!tpu.dma_semaphore, #tpu.memory_space<semaphore_mem>>
    tpu.enqueue_dma source(%241 : memref<1x128xf32, #tpu.memory_space<any>>) target(%242 : memref<1x128xf32, #tpu.memory_space<vmem>>) target_semaphore(%244 : memref<!tpu.dma_semaphore, #tpu.memory_space<semaphore_mem>>)
    %c4_i32_132 = arith.constant 4 : i32
    %c0_i32_133 = arith.constant 0 : i32
    %245 = tpu.memref_slice %arg5[%39, %c0_i32_133] : memref<64x128xf32, #tpu.memory_space<any>> -> memref<1x128xf32, #tpu.memory_space<any>>
    %c4_i32_134 = arith.constant 4 : i32
    %c0_i32_135 = arith.constant 0 : i32
    %246 = tpu.memref_slice %arg10[%c4_i32_134, %c0_i32_135] : memref<16x128xf32, #tpu.memory_space<vmem>> -> memref<1x128xf32, #tpu.memory_space<vmem>>
    %247 = tpu.memref_slice %arg15[%c4_i32_132] : memref<16x!tpu.dma_semaphore, #tpu.memory_space<semaphore_mem>> -> memref<1x!tpu.dma_semaphore, #tpu.memory_space<semaphore_mem>>
    %248 = tpu.memref_squeeze %247 : memref<1x!tpu.dma_semaphore, #tpu.memory_space<semaphore_mem>> -> memref<!tpu.dma_semaphore, #tpu.memory_space<semaphore_mem>>
    tpu.enqueue_dma source(%245 : memref<1x128xf32, #tpu.memory_space<any>>) target(%246 : memref<1x128xf32, #tpu.memory_space<vmem>>) target_semaphore(%248 : memref<!tpu.dma_semaphore, #tpu.memory_space<semaphore_mem>>)
    %c4_i32_136 = arith.constant 4 : i32
    %c0_i32_137 = arith.constant 0 : i32
    %249 = tpu.memref_slice %arg6[%42, %c0_i32_137] : memref<8x128xf32, #tpu.memory_space<any>> -> memref<1x128xf32, #tpu.memory_space<any>>
    %c4_i32_138 = arith.constant 4 : i32
    %c0_i32_139 = arith.constant 0 : i32
    %250 = tpu.memref_slice %arg11[%c4_i32_138, %c0_i32_139] : memref<16x128xf32, #tpu.memory_space<vmem>> -> memref<1x128xf32, #tpu.memory_space<vmem>>
    %251 = tpu.memref_slice %arg15[%c4_i32_136] : memref<16x!tpu.dma_semaphore, #tpu.memory_space<semaphore_mem>> -> memref<1x!tpu.dma_semaphore, #tpu.memory_space<semaphore_mem>>
    %252 = tpu.memref_squeeze %251 : memref<1x!tpu.dma_semaphore, #tpu.memory_space<semaphore_mem>> -> memref<!tpu.dma_semaphore, #tpu.memory_space<semaphore_mem>>
    tpu.enqueue_dma source(%249 : memref<1x128xf32, #tpu.memory_space<any>>) target(%250 : memref<1x128xf32, #tpu.memory_space<vmem>>) target_semaphore(%252 : memref<!tpu.dma_semaphore, #tpu.memory_space<semaphore_mem>>)
    %c4_i32_140 = arith.constant 4 : i32
    %c0_i32_141 = arith.constant 0 : i32
    %253 = tpu.memref_slice %arg7[%42, %c0_i32_141] : memref<8x128xf32, #tpu.memory_space<any>> -> memref<1x128xf32, #tpu.memory_space<any>>
    %c4_i32_142 = arith.constant 4 : i32
    %c0_i32_143 = arith.constant 0 : i32
    %254 = tpu.memref_slice %arg12[%c4_i32_142, %c0_i32_143] : memref<16x128xf32, #tpu.memory_space<vmem>> -> memref<1x128xf32, #tpu.memory_space<vmem>>
    %255 = tpu.memref_slice %arg15[%c4_i32_140] : memref<16x!tpu.dma_semaphore, #tpu.memory_space<semaphore_mem>> -> memref<1x!tpu.dma_semaphore, #tpu.memory_space<semaphore_mem>>
    %256 = tpu.memref_squeeze %255 : memref<1x!tpu.dma_semaphore, #tpu.memory_space<semaphore_mem>> -> memref<!tpu.dma_semaphore, #tpu.memory_space<semaphore_mem>>
    tpu.enqueue_dma source(%253 : memref<1x128xf32, #tpu.memory_space<any>>) target(%254 : memref<1x128xf32, #tpu.memory_space<vmem>>) target_semaphore(%256 : memref<!tpu.dma_semaphore, #tpu.memory_space<semaphore_mem>>)
    %c4_i32_144 = arith.constant 4 : i32
    %c0_i32_145 = arith.constant 0 : i32
    %257 = tpu.memref_slice %arg4[%45, %c0_i32_145] : memref<64x128xf32, #tpu.memory_space<any>> -> memref<1x128xf32, #tpu.memory_space<any>>
    %c4_i32_146 = arith.constant 4 : i32
    %c0_i32_147 = arith.constant 0 : i32
    %258 = tpu.memref_slice %arg13[%c4_i32_146, %c0_i32_147] : memref<16x128xf32, #tpu.memory_space<vmem>> -> memref<1x128xf32, #tpu.memory_space<vmem>>
    %259 = tpu.memref_slice %arg15[%c4_i32_144] : memref<16x!tpu.dma_semaphore, #tpu.memory_space<semaphore_mem>> -> memref<1x!tpu.dma_semaphore, #tpu.memory_space<semaphore_mem>>
    %260 = tpu.memref_squeeze %259 : memref<1x!tpu.dma_semaphore, #tpu.memory_space<semaphore_mem>> -> memref<!tpu.dma_semaphore, #tpu.memory_space<semaphore_mem>>
    tpu.enqueue_dma source(%257 : memref<1x128xf32, #tpu.memory_space<any>>) target(%258 : memref<1x128xf32, #tpu.memory_space<vmem>>) target_semaphore(%260 : memref<!tpu.dma_semaphore, #tpu.memory_space<semaphore_mem>>)
    %c4_i32_148 = arith.constant 4 : i32
    %c0_i32_149 = arith.constant 0 : i32
    %261 = tpu.memref_slice %arg5[%45, %c0_i32_149] : memref<64x128xf32, #tpu.memory_space<any>> -> memref<1x128xf32, #tpu.memory_space<any>>
    %c4_i32_150 = arith.constant 4 : i32
    %c0_i32_151 = arith.constant 0 : i32
    %262 = tpu.memref_slice %arg14[%c4_i32_150, %c0_i32_151] : memref<16x128xf32, #tpu.memory_space<vmem>> -> memref<1x128xf32, #tpu.memory_space<vmem>>
    %263 = tpu.memref_slice %arg15[%c4_i32_148] : memref<16x!tpu.dma_semaphore, #tpu.memory_space<semaphore_mem>> -> memref<1x!tpu.dma_semaphore, #tpu.memory_space<semaphore_mem>>
    %264 = tpu.memref_squeeze %263 : memref<1x!tpu.dma_semaphore, #tpu.memory_space<semaphore_mem>> -> memref<!tpu.dma_semaphore, #tpu.memory_space<semaphore_mem>>
    tpu.enqueue_dma source(%261 : memref<1x128xf32, #tpu.memory_space<any>>) target(%262 : memref<1x128xf32, #tpu.memory_space<vmem>>) target_semaphore(%264 : memref<!tpu.dma_semaphore, #tpu.memory_space<semaphore_mem>>)
    %c5_i32_152 = arith.constant 5 : i32
    %c0_i32_153 = arith.constant 0 : i32
    %265 = tpu.memref_slice %arg4[%48, %c0_i32_153] : memref<64x128xf32, #tpu.memory_space<any>> -> memref<1x128xf32, #tpu.memory_space<any>>
    %c5_i32_154 = arith.constant 5 : i32
    %c0_i32_155 = arith.constant 0 : i32
    %266 = tpu.memref_slice %arg9[%c5_i32_154, %c0_i32_155] : memref<16x128xf32, #tpu.memory_space<vmem>> -> memref<1x128xf32, #tpu.memory_space<vmem>>
    %267 = tpu.memref_slice %arg15[%c5_i32_152] : memref<16x!tpu.dma_semaphore, #tpu.memory_space<semaphore_mem>> -> memref<1x!tpu.dma_semaphore, #tpu.memory_space<semaphore_mem>>
    %268 = tpu.memref_squeeze %267 : memref<1x!tpu.dma_semaphore, #tpu.memory_space<semaphore_mem>> -> memref<!tpu.dma_semaphore, #tpu.memory_space<semaphore_mem>>
    tpu.enqueue_dma source(%265 : memref<1x128xf32, #tpu.memory_space<any>>) target(%266 : memref<1x128xf32, #tpu.memory_space<vmem>>) target_semaphore(%268 : memref<!tpu.dma_semaphore, #tpu.memory_space<semaphore_mem>>)
    %c5_i32_156 = arith.constant 5 : i32
    %c0_i32_157 = arith.constant 0 : i32
    %269 = tpu.memref_slice %arg5[%48, %c0_i32_157] : memref<64x128xf32, #tpu.memory_space<any>> -> memref<1x128xf32, #tpu.memory_space<any>>
    %c5_i32_158 = arith.constant 5 : i32
    %c0_i32_159 = arith.constant 0 : i32
    %270 = tpu.memref_slice %arg10[%c5_i32_158, %c0_i32_159] : memref<16x128xf32, #tpu.memory_space<vmem>> -> memref<1x128xf32, #tpu.memory_space<vmem>>
    %271 = tpu.memref_slice %arg15[%c5_i32_156] : memref<16x!tpu.dma_semaphore, #tpu.memory_space<semaphore_mem>> -> memref<1x!tpu.dma_semaphore, #tpu.memory_space<semaphore_mem>>
    %272 = tpu.memref_squeeze %271 : memref<1x!tpu.dma_semaphore, #tpu.memory_space<semaphore_mem>> -> memref<!tpu.dma_semaphore, #tpu.memory_space<semaphore_mem>>
    tpu.enqueue_dma source(%269 : memref<1x128xf32, #tpu.memory_space<any>>) target(%270 : memref<1x128xf32, #tpu.memory_space<vmem>>) target_semaphore(%272 : memref<!tpu.dma_semaphore, #tpu.memory_space<semaphore_mem>>)
    %c5_i32_160 = arith.constant 5 : i32
    %c0_i32_161 = arith.constant 0 : i32
    %273 = tpu.memref_slice %arg6[%51, %c0_i32_161] : memref<8x128xf32, #tpu.memory_space<any>> -> memref<1x128xf32, #tpu.memory_space<any>>
    %c5_i32_162 = arith.constant 5 : i32
    %c0_i32_163 = arith.constant 0 : i32
    %274 = tpu.memref_slice %arg11[%c5_i32_162, %c0_i32_163] : memref<16x128xf32, #tpu.memory_space<vmem>> -> memref<1x128xf32, #tpu.memory_space<vmem>>
    %275 = tpu.memref_slice %arg15[%c5_i32_160] : memref<16x!tpu.dma_semaphore, #tpu.memory_space<semaphore_mem>> -> memref<1x!tpu.dma_semaphore, #tpu.memory_space<semaphore_mem>>
    %276 = tpu.memref_squeeze %275 : memref<1x!tpu.dma_semaphore, #tpu.memory_space<semaphore_mem>> -> memref<!tpu.dma_semaphore, #tpu.memory_space<semaphore_mem>>
    tpu.enqueue_dma source(%273 : memref<1x128xf32, #tpu.memory_space<any>>) target(%274 : memref<1x128xf32, #tpu.memory_space<vmem>>) target_semaphore(%276 : memref<!tpu.dma_semaphore, #tpu.memory_space<semaphore_mem>>)
    %c5_i32_164 = arith.constant 5 : i32
    %c0_i32_165 = arith.constant 0 : i32
    %277 = tpu.memref_slice %arg7[%51, %c0_i32_165] : memref<8x128xf32, #tpu.memory_space<any>> -> memref<1x128xf32, #tpu.memory_space<any>>
    %c5_i32_166 = arith.constant 5 : i32
    %c0_i32_167 = arith.constant 0 : i32
    %278 = tpu.memref_slice %arg12[%c5_i32_166, %c0_i32_167] : memref<16x128xf32, #tpu.memory_space<vmem>> -> memref<1x128xf32, #tpu.memory_space<vmem>>
    %279 = tpu.memref_slice %arg15[%c5_i32_164] : memref<16x!tpu.dma_semaphore, #tpu.memory_space<semaphore_mem>> -> memref<1x!tpu.dma_semaphore, #tpu.memory_space<semaphore_mem>>
    %280 = tpu.memref_squeeze %279 : memref<1x!tpu.dma_semaphore, #tpu.memory_space<semaphore_mem>> -> memref<!tpu.dma_semaphore, #tpu.memory_space<semaphore_mem>>
    tpu.enqueue_dma source(%277 : memref<1x128xf32, #tpu.memory_space<any>>) target(%278 : memref<1x128xf32, #tpu.memory_space<vmem>>) target_semaphore(%280 : memref<!tpu.dma_semaphore, #tpu.memory_space<semaphore_mem>>)
    %c5_i32_168 = arith.constant 5 : i32
    %c0_i32_169 = arith.constant 0 : i32
    %281 = tpu.memref_slice %arg4[%54, %c0_i32_169] : memref<64x128xf32, #tpu.memory_space<any>> -> memref<1x128xf32, #tpu.memory_space<any>>
    %c5_i32_170 = arith.constant 5 : i32
    %c0_i32_171 = arith.constant 0 : i32
    %282 = tpu.memref_slice %arg13[%c5_i32_170, %c0_i32_171] : memref<16x128xf32, #tpu.memory_space<vmem>> -> memref<1x128xf32, #tpu.memory_space<vmem>>
    %283 = tpu.memref_slice %arg15[%c5_i32_168] : memref<16x!tpu.dma_semaphore, #tpu.memory_space<semaphore_mem>> -> memref<1x!tpu.dma_semaphore, #tpu.memory_space<semaphore_mem>>
    %284 = tpu.memref_squeeze %283 : memref<1x!tpu.dma_semaphore, #tpu.memory_space<semaphore_mem>> -> memref<!tpu.dma_semaphore, #tpu.memory_space<semaphore_mem>>
    tpu.enqueue_dma source(%281 : memref<1x128xf32, #tpu.memory_space<any>>) target(%282 : memref<1x128xf32, #tpu.memory_space<vmem>>) target_semaphore(%284 : memref<!tpu.dma_semaphore, #tpu.memory_space<semaphore_mem>>)
    %c5_i32_172 = arith.constant 5 : i32
    %c0_i32_173 = arith.constant 0 : i32
    %285 = tpu.memref_slice %arg5[%54, %c0_i32_173] : memref<64x128xf32, #tpu.memory_space<any>> -> memref<1x128xf32, #tpu.memory_space<any>>
    %c5_i32_174 = arith.constant 5 : i32
    %c0_i32_175 = arith.constant 0 : i32
    %286 = tpu.memref_slice %arg14[%c5_i32_174, %c0_i32_175] : memref<16x128xf32, #tpu.memory_space<vmem>> -> memref<1x128xf32, #tpu.memory_space<vmem>>
    %287 = tpu.memref_slice %arg15[%c5_i32_172] : memref<16x!tpu.dma_semaphore, #tpu.memory_space<semaphore_mem>> -> memref<1x!tpu.dma_semaphore, #tpu.memory_space<semaphore_mem>>
    %288 = tpu.memref_squeeze %287 : memref<1x!tpu.dma_semaphore, #tpu.memory_space<semaphore_mem>> -> memref<!tpu.dma_semaphore, #tpu.memory_space<semaphore_mem>>
    tpu.enqueue_dma source(%285 : memref<1x128xf32, #tpu.memory_space<any>>) target(%286 : memref<1x128xf32, #tpu.memory_space<vmem>>) target_semaphore(%288 : memref<!tpu.dma_semaphore, #tpu.memory_space<semaphore_mem>>)
    %c6_i32_176 = arith.constant 6 : i32
    %c0_i32_177 = arith.constant 0 : i32
    %289 = tpu.memref_slice %arg4[%57, %c0_i32_177] : memref<64x128xf32, #tpu.memory_space<any>> -> memref<1x128xf32, #tpu.memory_space<any>>
    %c6_i32_178 = arith.constant 6 : i32
    %c0_i32_179 = arith.constant 0 : i32
    %290 = tpu.memref_slice %arg9[%c6_i32_178, %c0_i32_179] : memref<16x128xf32, #tpu.memory_space<vmem>> -> memref<1x128xf32, #tpu.memory_space<vmem>>
    %291 = tpu.memref_slice %arg15[%c6_i32_176] : memref<16x!tpu.dma_semaphore, #tpu.memory_space<semaphore_mem>> -> memref<1x!tpu.dma_semaphore, #tpu.memory_space<semaphore_mem>>
    %292 = tpu.memref_squeeze %291 : memref<1x!tpu.dma_semaphore, #tpu.memory_space<semaphore_mem>> -> memref<!tpu.dma_semaphore, #tpu.memory_space<semaphore_mem>>
    tpu.enqueue_dma source(%289 : memref<1x128xf32, #tpu.memory_space<any>>) target(%290 : memref<1x128xf32, #tpu.memory_space<vmem>>) target_semaphore(%292 : memref<!tpu.dma_semaphore, #tpu.memory_space<semaphore_mem>>)
    %c6_i32_180 = arith.constant 6 : i32
    %c0_i32_181 = arith.constant 0 : i32
    %293 = tpu.memref_slice %arg5[%57, %c0_i32_181] : memref<64x128xf32, #tpu.memory_space<any>> -> memref<1x128xf32, #tpu.memory_space<any>>
    %c6_i32_182 = arith.constant 6 : i32
    %c0_i32_183 = arith.constant 0 : i32
    %294 = tpu.memref_slice %arg10[%c6_i32_182, %c0_i32_183] : memref<16x128xf32, #tpu.memory_space<vmem>> -> memref<1x128xf32, #tpu.memory_space<vmem>>
    %295 = tpu.memref_slice %arg15[%c6_i32_180] : memref<16x!tpu.dma_semaphore, #tpu.memory_space<semaphore_mem>> -> memref<1x!tpu.dma_semaphore, #tpu.memory_space<semaphore_mem>>
    %296 = tpu.memref_squeeze %295 : memref<1x!tpu.dma_semaphore, #tpu.memory_space<semaphore_mem>> -> memref<!tpu.dma_semaphore, #tpu.memory_space<semaphore_mem>>
    tpu.enqueue_dma source(%293 : memref<1x128xf32, #tpu.memory_space<any>>) target(%294 : memref<1x128xf32, #tpu.memory_space<vmem>>) target_semaphore(%296 : memref<!tpu.dma_semaphore, #tpu.memory_space<semaphore_mem>>)
    %c6_i32_184 = arith.constant 6 : i32
    %c0_i32_185 = arith.constant 0 : i32
    %297 = tpu.memref_slice %arg6[%60, %c0_i32_185] : memref<8x128xf32, #tpu.memory_space<any>> -> memref<1x128xf32, #tpu.memory_space<any>>
    %c6_i32_186 = arith.constant 6 : i32
    %c0_i32_187 = arith.constant 0 : i32
    %298 = tpu.memref_slice %arg11[%c6_i32_186, %c0_i32_187] : memref<16x128xf32, #tpu.memory_space<vmem>> -> memref<1x128xf32, #tpu.memory_space<vmem>>
    %299 = tpu.memref_slice %arg15[%c6_i32_184] : memref<16x!tpu.dma_semaphore, #tpu.memory_space<semaphore_mem>> -> memref<1x!tpu.dma_semaphore, #tpu.memory_space<semaphore_mem>>
    %300 = tpu.memref_squeeze %299 : memref<1x!tpu.dma_semaphore, #tpu.memory_space<semaphore_mem>> -> memref<!tpu.dma_semaphore, #tpu.memory_space<semaphore_mem>>
    tpu.enqueue_dma source(%297 : memref<1x128xf32, #tpu.memory_space<any>>) target(%298 : memref<1x128xf32, #tpu.memory_space<vmem>>) target_semaphore(%300 : memref<!tpu.dma_semaphore, #tpu.memory_space<semaphore_mem>>)
    %c6_i32_188 = arith.constant 6 : i32
    %c0_i32_189 = arith.constant 0 : i32
    %301 = tpu.memref_slice %arg7[%60, %c0_i32_189] : memref<8x128xf32, #tpu.memory_space<any>> -> memref<1x128xf32, #tpu.memory_space<any>>
    %c6_i32_190 = arith.constant 6 : i32
    %c0_i32_191 = arith.constant 0 : i32
    %302 = tpu.memref_slice %arg12[%c6_i32_190, %c0_i32_191] : memref<16x128xf32, #tpu.memory_space<vmem>> -> memref<1x128xf32, #tpu.memory_space<vmem>>
    %303 = tpu.memref_slice %arg15[%c6_i32_188] : memref<16x!tpu.dma_semaphore, #tpu.memory_space<semaphore_mem>> -> memref<1x!tpu.dma_semaphore, #tpu.memory_space<semaphore_mem>>
    %304 = tpu.memref_squeeze %303 : memref<1x!tpu.dma_semaphore, #tpu.memory_space<semaphore_mem>> -> memref<!tpu.dma_semaphore, #tpu.memory_space<semaphore_mem>>
    tpu.enqueue_dma source(%301 : memref<1x128xf32, #tpu.memory_space<any>>) target(%302 : memref<1x128xf32, #tpu.memory_space<vmem>>) target_semaphore(%304 : memref<!tpu.dma_semaphore, #tpu.memory_space<semaphore_mem>>)
    %c6_i32_192 = arith.constant 6 : i32
    %c0_i32_193 = arith.constant 0 : i32
    %305 = tpu.memref_slice %arg4[%63, %c0_i32_193] : memref<64x128xf32, #tpu.memory_space<any>> -> memref<1x128xf32, #tpu.memory_space<any>>
    %c6_i32_194 = arith.constant 6 : i32
    %c0_i32_195 = arith.constant 0 : i32
    %306 = tpu.memref_slice %arg13[%c6_i32_194, %c0_i32_195] : memref<16x128xf32, #tpu.memory_space<vmem>> -> memref<1x128xf32, #tpu.memory_space<vmem>>
    %307 = tpu.memref_slice %arg15[%c6_i32_192] : memref<16x!tpu.dma_semaphore, #tpu.memory_space<semaphore_mem>> -> memref<1x!tpu.dma_semaphore, #tpu.memory_space<semaphore_mem>>
    %308 = tpu.memref_squeeze %307 : memref<1x!tpu.dma_semaphore, #tpu.memory_space<semaphore_mem>> -> memref<!tpu.dma_semaphore, #tpu.memory_space<semaphore_mem>>
    tpu.enqueue_dma source(%305 : memref<1x128xf32, #tpu.memory_space<any>>) target(%306 : memref<1x128xf32, #tpu.memory_space<vmem>>) target_semaphore(%308 : memref<!tpu.dma_semaphore, #tpu.memory_space<semaphore_mem>>)
    %c6_i32_196 = arith.constant 6 : i32
    %c0_i32_197 = arith.constant 0 : i32
    %309 = tpu.memref_slice %arg5[%63, %c0_i32_197] : memref<64x128xf32, #tpu.memory_space<any>> -> memref<1x128xf32, #tpu.memory_space<any>>
    %c6_i32_198 = arith.constant 6 : i32
    %c0_i32_199 = arith.constant 0 : i32
    %310 = tpu.memref_slice %arg14[%c6_i32_198, %c0_i32_199] : memref<16x128xf32, #tpu.memory_space<vmem>> -> memref<1x128xf32, #tpu.memory_space<vmem>>
    %311 = tpu.memref_slice %arg15[%c6_i32_196] : memref<16x!tpu.dma_semaphore, #tpu.memory_space<semaphore_mem>> -> memref<1x!tpu.dma_semaphore, #tpu.memory_space<semaphore_mem>>
    %312 = tpu.memref_squeeze %311 : memref<1x!tpu.dma_semaphore, #tpu.memory_space<semaphore_mem>> -> memref<!tpu.dma_semaphore, #tpu.memory_space<semaphore_mem>>
    tpu.enqueue_dma source(%309 : memref<1x128xf32, #tpu.memory_space<any>>) target(%310 : memref<1x128xf32, #tpu.memory_space<vmem>>) target_semaphore(%312 : memref<!tpu.dma_semaphore, #tpu.memory_space<semaphore_mem>>)
    %c7_i32_200 = arith.constant 7 : i32
    %c0_i32_201 = arith.constant 0 : i32
    %313 = tpu.memref_slice %arg4[%66, %c0_i32_201] : memref<64x128xf32, #tpu.memory_space<any>> -> memref<1x128xf32, #tpu.memory_space<any>>
    %c7_i32_202 = arith.constant 7 : i32
    %c0_i32_203 = arith.constant 0 : i32
    %314 = tpu.memref_slice %arg9[%c7_i32_202, %c0_i32_203] : memref<16x128xf32, #tpu.memory_space<vmem>> -> memref<1x128xf32, #tpu.memory_space<vmem>>
    %315 = tpu.memref_slice %arg15[%c7_i32_200] : memref<16x!tpu.dma_semaphore, #tpu.memory_space<semaphore_mem>> -> memref<1x!tpu.dma_semaphore, #tpu.memory_space<semaphore_mem>>
    %316 = tpu.memref_squeeze %315 : memref<1x!tpu.dma_semaphore, #tpu.memory_space<semaphore_mem>> -> memref<!tpu.dma_semaphore, #tpu.memory_space<semaphore_mem>>
    tpu.enqueue_dma source(%313 : memref<1x128xf32, #tpu.memory_space<any>>) target(%314 : memref<1x128xf32, #tpu.memory_space<vmem>>) target_semaphore(%316 : memref<!tpu.dma_semaphore, #tpu.memory_space<semaphore_mem>>)
    %c7_i32_204 = arith.constant 7 : i32
    %c0_i32_205 = arith.constant 0 : i32
    %317 = tpu.memref_slice %arg5[%66, %c0_i32_205] : memref<64x128xf32, #tpu.memory_space<any>> -> memref<1x128xf32, #tpu.memory_space<any>>
    %c7_i32_206 = arith.constant 7 : i32
    %c0_i32_207 = arith.constant 0 : i32
    %318 = tpu.memref_slice %arg10[%c7_i32_206, %c0_i32_207] : memref<16x128xf32, #tpu.memory_space<vmem>> -> memref<1x128xf32, #tpu.memory_space<vmem>>
    %319 = tpu.memref_slice %arg15[%c7_i32_204] : memref<16x!tpu.dma_semaphore, #tpu.memory_space<semaphore_mem>> -> memref<1x!tpu.dma_semaphore, #tpu.memory_space<semaphore_mem>>
    %320 = tpu.memref_squeeze %319 : memref<1x!tpu.dma_semaphore, #tpu.memory_space<semaphore_mem>> -> memref<!tpu.dma_semaphore, #tpu.memory_space<semaphore_mem>>
    tpu.enqueue_dma source(%317 : memref<1x128xf32, #tpu.memory_space<any>>) target(%318 : memref<1x128xf32, #tpu.memory_space<vmem>>) target_semaphore(%320 : memref<!tpu.dma_semaphore, #tpu.memory_space<semaphore_mem>>)
    %c7_i32_208 = arith.constant 7 : i32
    %c0_i32_209 = arith.constant 0 : i32
    %321 = tpu.memref_slice %arg6[%69, %c0_i32_209] : memref<8x128xf32, #tpu.memory_space<any>> -> memref<1x128xf32, #tpu.memory_space<any>>
    %c7_i32_210 = arith.constant 7 : i32
    %c0_i32_211 = arith.constant 0 : i32
    %322 = tpu.memref_slice %arg11[%c7_i32_210, %c0_i32_211] : memref<16x128xf32, #tpu.memory_space<vmem>> -> memref<1x128xf32, #tpu.memory_space<vmem>>
    %323 = tpu.memref_slice %arg15[%c7_i32_208] : memref<16x!tpu.dma_semaphore, #tpu.memory_space<semaphore_mem>> -> memref<1x!tpu.dma_semaphore, #tpu.memory_space<semaphore_mem>>
    %324 = tpu.memref_squeeze %323 : memref<1x!tpu.dma_semaphore, #tpu.memory_space<semaphore_mem>> -> memref<!tpu.dma_semaphore, #tpu.memory_space<semaphore_mem>>
    tpu.enqueue_dma source(%321 : memref<1x128xf32, #tpu.memory_space<any>>) target(%322 : memref<1x128xf32, #tpu.memory_space<vmem>>) target_semaphore(%324 : memref<!tpu.dma_semaphore, #tpu.memory_space<semaphore_mem>>)
    %c7_i32_212 = arith.constant 7 : i32
    %c0_i32_213 = arith.constant 0 : i32
    %325 = tpu.memref_slice %arg7[%69, %c0_i32_213] : memref<8x128xf32, #tpu.memory_space<any>> -> memref<1x128xf32, #tpu.memory_space<any>>
    %c7_i32_214 = arith.constant 7 : i32
    %c0_i32_215 = arith.constant 0 : i32
    %326 = tpu.memref_slice %arg12[%c7_i32_214, %c0_i32_215] : memref<16x128xf32, #tpu.memory_space<vmem>> -> memref<1x128xf32, #tpu.memory_space<vmem>>
    %327 = tpu.memref_slice %arg15[%c7_i32_212] : memref<16x!tpu.dma_semaphore, #tpu.memory_space<semaphore_mem>> -> memref<1x!tpu.dma_semaphore, #tpu.memory_space<semaphore_mem>>
    %328 = tpu.memref_squeeze %327 : memref<1x!tpu.dma_semaphore, #tpu.memory_space<semaphore_mem>> -> memref<!tpu.dma_semaphore, #tpu.memory_space<semaphore_mem>>
    tpu.enqueue_dma source(%325 : memref<1x128xf32, #tpu.memory_space<any>>) target(%326 : memref<1x128xf32, #tpu.memory_space<vmem>>) target_semaphore(%328 : memref<!tpu.dma_semaphore, #tpu.memory_space<semaphore_mem>>)
    %c7_i32_216 = arith.constant 7 : i32
    %c0_i32_217 = arith.constant 0 : i32
    %329 = tpu.memref_slice %arg4[%72, %c0_i32_217] : memref<64x128xf32, #tpu.memory_space<any>> -> memref<1x128xf32, #tpu.memory_space<any>>
    %c7_i32_218 = arith.constant 7 : i32
    %c0_i32_219 = arith.constant 0 : i32
    %330 = tpu.memref_slice %arg13[%c7_i32_218, %c0_i32_219] : memref<16x128xf32, #tpu.memory_space<vmem>> -> memref<1x128xf32, #tpu.memory_space<vmem>>
    %331 = tpu.memref_slice %arg15[%c7_i32_216] : memref<16x!tpu.dma_semaphore, #tpu.memory_space<semaphore_mem>> -> memref<1x!tpu.dma_semaphore, #tpu.memory_space<semaphore_mem>>
    %332 = tpu.memref_squeeze %331 : memref<1x!tpu.dma_semaphore, #tpu.memory_space<semaphore_mem>> -> memref<!tpu.dma_semaphore, #tpu.memory_space<semaphore_mem>>
    tpu.enqueue_dma source(%329 : memref<1x128xf32, #tpu.memory_space<any>>) target(%330 : memref<1x128xf32, #tpu.memory_space<vmem>>) target_semaphore(%332 : memref<!tpu.dma_semaphore, #tpu.memory_space<semaphore_mem>>)
    %c7_i32_220 = arith.constant 7 : i32
    %c0_i32_221 = arith.constant 0 : i32
    %333 = tpu.memref_slice %arg5[%72, %c0_i32_221] : memref<64x128xf32, #tpu.memory_space<any>> -> memref<1x128xf32, #tpu.memory_space<any>>
    %c7_i32_222 = arith.constant 7 : i32
    %c0_i32_223 = arith.constant 0 : i32
    %334 = tpu.memref_slice %arg14[%c7_i32_222, %c0_i32_223] : memref<16x128xf32, #tpu.memory_space<vmem>> -> memref<1x128xf32, #tpu.memory_space<vmem>>
    %335 = tpu.memref_slice %arg15[%c7_i32_220] : memref<16x!tpu.dma_semaphore, #tpu.memory_space<semaphore_mem>> -> memref<1x!tpu.dma_semaphore, #tpu.memory_space<semaphore_mem>>
    %336 = tpu.memref_squeeze %335 : memref<1x!tpu.dma_semaphore, #tpu.memory_space<semaphore_mem>> -> memref<!tpu.dma_semaphore, #tpu.memory_space<semaphore_mem>>
    tpu.enqueue_dma source(%333 : memref<1x128xf32, #tpu.memory_space<any>>) target(%334 : memref<1x128xf32, #tpu.memory_space<vmem>>) target_semaphore(%336 : memref<!tpu.dma_semaphore, #tpu.memory_space<semaphore_mem>>)
    %c8_i32_224 = arith.constant 8 : i32
    %c0_i32_225 = arith.constant 0 : i32
    %337 = tpu.memref_slice %arg4[%75, %c0_i32_225] : memref<64x128xf32, #tpu.memory_space<any>> -> memref<1x128xf32, #tpu.memory_space<any>>
    %c8_i32_226 = arith.constant 8 : i32
    %c0_i32_227 = arith.constant 0 : i32
    %338 = tpu.memref_slice %arg9[%c8_i32_226, %c0_i32_227] : memref<16x128xf32, #tpu.memory_space<vmem>> -> memref<1x128xf32, #tpu.memory_space<vmem>>
    %339 = tpu.memref_slice %arg15[%c8_i32_224] : memref<16x!tpu.dma_semaphore, #tpu.memory_space<semaphore_mem>> -> memref<1x!tpu.dma_semaphore, #tpu.memory_space<semaphore_mem>>
    %340 = tpu.memref_squeeze %339 : memref<1x!tpu.dma_semaphore, #tpu.memory_space<semaphore_mem>> -> memref<!tpu.dma_semaphore, #tpu.memory_space<semaphore_mem>>
    tpu.enqueue_dma source(%337 : memref<1x128xf32, #tpu.memory_space<any>>) target(%338 : memref<1x128xf32, #tpu.memory_space<vmem>>) target_semaphore(%340 : memref<!tpu.dma_semaphore, #tpu.memory_space<semaphore_mem>>)
    %c8_i32_228 = arith.constant 8 : i32
    %c0_i32_229 = arith.constant 0 : i32
    %341 = tpu.memref_slice %arg5[%75, %c0_i32_229] : memref<64x128xf32, #tpu.memory_space<any>> -> memref<1x128xf32, #tpu.memory_space<any>>
    %c8_i32_230 = arith.constant 8 : i32
    %c0_i32_231 = arith.constant 0 : i32
    %342 = tpu.memref_slice %arg10[%c8_i32_230, %c0_i32_231] : memref<16x128xf32, #tpu.memory_space<vmem>> -> memref<1x128xf32, #tpu.memory_space<vmem>>
    %343 = tpu.memref_slice %arg15[%c8_i32_228] : memref<16x!tpu.dma_semaphore, #tpu.memory_space<semaphore_mem>> -> memref<1x!tpu.dma_semaphore, #tpu.memory_space<semaphore_mem>>
    %344 = tpu.memref_squeeze %343 : memref<1x!tpu.dma_semaphore, #tpu.memory_space<semaphore_mem>> -> memref<!tpu.dma_semaphore, #tpu.memory_space<semaphore_mem>>
    tpu.enqueue_dma source(%341 : memref<1x128xf32, #tpu.memory_space<any>>) target(%342 : memref<1x128xf32, #tpu.memory_space<vmem>>) target_semaphore(%344 : memref<!tpu.dma_semaphore, #tpu.memory_space<semaphore_mem>>)
    %c8_i32_232 = arith.constant 8 : i32
    %c0_i32_233 = arith.constant 0 : i32
    %345 = tpu.memref_slice %arg6[%78, %c0_i32_233] : memref<8x128xf32, #tpu.memory_space<any>> -> memref<1x128xf32, #tpu.memory_space<any>>
    %c8_i32_234 = arith.constant 8 : i32
    %c0_i32_235 = arith.constant 0 : i32
    %346 = tpu.memref_slice %arg11[%c8_i32_234, %c0_i32_235] : memref<16x128xf32, #tpu.memory_space<vmem>> -> memref<1x128xf32, #tpu.memory_space<vmem>>
    %347 = tpu.memref_slice %arg15[%c8_i32_232] : memref<16x!tpu.dma_semaphore, #tpu.memory_space<semaphore_mem>> -> memref<1x!tpu.dma_semaphore, #tpu.memory_space<semaphore_mem>>
    %348 = tpu.memref_squeeze %347 : memref<1x!tpu.dma_semaphore, #tpu.memory_space<semaphore_mem>> -> memref<!tpu.dma_semaphore, #tpu.memory_space<semaphore_mem>>
    tpu.enqueue_dma source(%345 : memref<1x128xf32, #tpu.memory_space<any>>) target(%346 : memref<1x128xf32, #tpu.memory_space<vmem>>) target_semaphore(%348 : memref<!tpu.dma_semaphore, #tpu.memory_space<semaphore_mem>>)
    %c8_i32_236 = arith.constant 8 : i32
    %c0_i32_237 = arith.constant 0 : i32
    %349 = tpu.memref_slice %arg7[%78, %c0_i32_237] : memref<8x128xf32, #tpu.memory_space<any>> -> memref<1x128xf32, #tpu.memory_space<any>>
    %c8_i32_238 = arith.constant 8 : i32
    %c0_i32_239 = arith.constant 0 : i32
    %350 = tpu.memref_slice %arg12[%c8_i32_238, %c0_i32_239] : memref<16x128xf32, #tpu.memory_space<vmem>> -> memref<1x128xf32, #tpu.memory_space<vmem>>
    %351 = tpu.memref_slice %arg15[%c8_i32_236] : memref<16x!tpu.dma_semaphore, #tpu.memory_space<semaphore_mem>> -> memref<1x!tpu.dma_semaphore, #tpu.memory_space<semaphore_mem>>
    %352 = tpu.memref_squeeze %351 : memref<1x!tpu.dma_semaphore, #tpu.memory_space<semaphore_mem>> -> memref<!tpu.dma_semaphore, #tpu.memory_space<semaphore_mem>>
    tpu.enqueue_dma source(%349 : memref<1x128xf32, #tpu.memory_space<any>>) target(%350 : memref<1x128xf32, #tpu.memory_space<vmem>>) target_semaphore(%352 : memref<!tpu.dma_semaphore, #tpu.memory_space<semaphore_mem>>)
    %c8_i32_240 = arith.constant 8 : i32
    %c0_i32_241 = arith.constant 0 : i32
    %353 = tpu.memref_slice %arg4[%81, %c0_i32_241] : memref<64x128xf32, #tpu.memory_space<any>> -> memref<1x128xf32, #tpu.memory_space<any>>
    %c8_i32_242 = arith.constant 8 : i32
    %c0_i32_243 = arith.constant 0 : i32
    %354 = tpu.memref_slice %arg13[%c8_i32_242, %c0_i32_243] : memref<16x128xf32, #tpu.memory_space<vmem>> -> memref<1x128xf32, #tpu.memory_space<vmem>>
    %355 = tpu.memref_slice %arg15[%c8_i32_240] : memref<16x!tpu.dma_semaphore, #tpu.memory_space<semaphore_mem>> -> memref<1x!tpu.dma_semaphore, #tpu.memory_space<semaphore_mem>>
    %356 = tpu.memref_squeeze %355 : memref<1x!tpu.dma_semaphore, #tpu.memory_space<semaphore_mem>> -> memref<!tpu.dma_semaphore, #tpu.memory_space<semaphore_mem>>
    tpu.enqueue_dma source(%353 : memref<1x128xf32, #tpu.memory_space<any>>) target(%354 : memref<1x128xf32, #tpu.memory_space<vmem>>) target_semaphore(%356 : memref<!tpu.dma_semaphore, #tpu.memory_space<semaphore_mem>>)
    %c8_i32_244 = arith.constant 8 : i32
    %c0_i32_245 = arith.constant 0 : i32
    %357 = tpu.memref_slice %arg5[%81, %c0_i32_245] : memref<64x128xf32, #tpu.memory_space<any>> -> memref<1x128xf32, #tpu.memory_space<any>>
    %c8_i32_246 = arith.constant 8 : i32
    %c0_i32_247 = arith.constant 0 : i32
    %358 = tpu.memref_slice %arg14[%c8_i32_246, %c0_i32_247] : memref<16x128xf32, #tpu.memory_space<vmem>> -> memref<1x128xf32, #tpu.memory_space<vmem>>
    %359 = tpu.memref_slice %arg15[%c8_i32_244] : memref<16x!tpu.dma_semaphore, #tpu.memory_space<semaphore_mem>> -> memref<1x!tpu.dma_semaphore, #tpu.memory_space<semaphore_mem>>
    %360 = tpu.memref_squeeze %359 : memref<1x!tpu.dma_semaphore, #tpu.memory_space<semaphore_mem>> -> memref<!tpu.dma_semaphore, #tpu.memory_space<semaphore_mem>>
    tpu.enqueue_dma source(%357 : memref<1x128xf32, #tpu.memory_space<any>>) target(%358 : memref<1x128xf32, #tpu.memory_space<vmem>>) target_semaphore(%360 : memref<!tpu.dma_semaphore, #tpu.memory_space<semaphore_mem>>)
    %c9_i32_248 = arith.constant 9 : i32
    %c0_i32_249 = arith.constant 0 : i32
    %361 = tpu.memref_slice %arg4[%84, %c0_i32_249] : memref<64x128xf32, #tpu.memory_space<any>> -> memref<1x128xf32, #tpu.memory_space<any>>
    %c9_i32_250 = arith.constant 9 : i32
    %c0_i32_251 = arith.constant 0 : i32
    %362 = tpu.memref_slice %arg9[%c9_i32_250, %c0_i32_251] : memref<16x128xf32, #tpu.memory_space<vmem>> -> memref<1x128xf32, #tpu.memory_space<vmem>>
    %363 = tpu.memref_slice %arg15[%c9_i32_248] : memref<16x!tpu.dma_semaphore, #tpu.memory_space<semaphore_mem>> -> memref<1x!tpu.dma_semaphore, #tpu.memory_space<semaphore_mem>>
    %364 = tpu.memref_squeeze %363 : memref<1x!tpu.dma_semaphore, #tpu.memory_space<semaphore_mem>> -> memref<!tpu.dma_semaphore, #tpu.memory_space<semaphore_mem>>
    tpu.enqueue_dma source(%361 : memref<1x128xf32, #tpu.memory_space<any>>) target(%362 : memref<1x128xf32, #tpu.memory_space<vmem>>) target_semaphore(%364 : memref<!tpu.dma_semaphore, #tpu.memory_space<semaphore_mem>>)
    %c9_i32_252 = arith.constant 9 : i32
    %c0_i32_253 = arith.constant 0 : i32
    %365 = tpu.memref_slice %arg5[%84, %c0_i32_253] : memref<64x128xf32, #tpu.memory_space<any>> -> memref<1x128xf32, #tpu.memory_space<any>>
    %c9_i32_254 = arith.constant 9 : i32
    %c0_i32_255 = arith.constant 0 : i32
    %366 = tpu.memref_slice %arg10[%c9_i32_254, %c0_i32_255] : memref<16x128xf32, #tpu.memory_space<vmem>> -> memref<1x128xf32, #tpu.memory_space<vmem>>
    %367 = tpu.memref_slice %arg15[%c9_i32_252] : memref<16x!tpu.dma_semaphore, #tpu.memory_space<semaphore_mem>> -> memref<1x!tpu.dma_semaphore, #tpu.memory_space<semaphore_mem>>
    %368 = tpu.memref_squeeze %367 : memref<1x!tpu.dma_semaphore, #tpu.memory_space<semaphore_mem>> -> memref<!tpu.dma_semaphore, #tpu.memory_space<semaphore_mem>>
    tpu.enqueue_dma source(%365 : memref<1x128xf32, #tpu.memory_space<any>>) target(%366 : memref<1x128xf32, #tpu.memory_space<vmem>>) target_semaphore(%368 : memref<!tpu.dma_semaphore, #tpu.memory_space<semaphore_mem>>)
    %c9_i32_256 = arith.constant 9 : i32
    %c0_i32_257 = arith.constant 0 : i32
    %369 = tpu.memref_slice %arg6[%87, %c0_i32_257] : memref<8x128xf32, #tpu.memory_space<any>> -> memref<1x128xf32, #tpu.memory_space<any>>
    %c9_i32_258 = arith.constant 9 : i32
    %c0_i32_259 = arith.constant 0 : i32
    %370 = tpu.memref_slice %arg11[%c9_i32_258, %c0_i32_259] : memref<16x128xf32, #tpu.memory_space<vmem>> -> memref<1x128xf32, #tpu.memory_space<vmem>>
    %371 = tpu.memref_slice %arg15[%c9_i32_256] : memref<16x!tpu.dma_semaphore, #tpu.memory_space<semaphore_mem>> -> memref<1x!tpu.dma_semaphore, #tpu.memory_space<semaphore_mem>>
    %372 = tpu.memref_squeeze %371 : memref<1x!tpu.dma_semaphore, #tpu.memory_space<semaphore_mem>> -> memref<!tpu.dma_semaphore, #tpu.memory_space<semaphore_mem>>
    tpu.enqueue_dma source(%369 : memref<1x128xf32, #tpu.memory_space<any>>) target(%370 : memref<1x128xf32, #tpu.memory_space<vmem>>) target_semaphore(%372 : memref<!tpu.dma_semaphore, #tpu.memory_space<semaphore_mem>>)
    %c9_i32_260 = arith.constant 9 : i32
    %c0_i32_261 = arith.constant 0 : i32
    %373 = tpu.memref_slice %arg7[%87, %c0_i32_261] : memref<8x128xf32, #tpu.memory_space<any>> -> memref<1x128xf32, #tpu.memory_space<any>>
    %c9_i32_262 = arith.constant 9 : i32
    %c0_i32_263 = arith.constant 0 : i32
    %374 = tpu.memref_slice %arg12[%c9_i32_262, %c0_i32_263] : memref<16x128xf32, #tpu.memory_space<vmem>> -> memref<1x128xf32, #tpu.memory_space<vmem>>
    %375 = tpu.memref_slice %arg15[%c9_i32_260] : memref<16x!tpu.dma_semaphore, #tpu.memory_space<semaphore_mem>> -> memref<1x!tpu.dma_semaphore, #tpu.memory_space<semaphore_mem>>
    %376 = tpu.memref_squeeze %375 : memref<1x!tpu.dma_semaphore, #tpu.memory_space<semaphore_mem>> -> memref<!tpu.dma_semaphore, #tpu.memory_space<semaphore_mem>>
    tpu.enqueue_dma source(%373 : memref<1x128xf32, #tpu.memory_space<any>>) target(%374 : memref<1x128xf32, #tpu.memory_space<vmem>>) target_semaphore(%376 : memref<!tpu.dma_semaphore, #tpu.memory_space<semaphore_mem>>)
    %c9_i32_264 = arith.constant 9 : i32
    %c0_i32_265 = arith.constant 0 : i32
    %377 = tpu.memref_slice %arg4[%90, %c0_i32_265] : memref<64x128xf32, #tpu.memory_space<any>> -> memref<1x128xf32, #tpu.memory_space<any>>
    %c9_i32_266 = arith.constant 9 : i32
    %c0_i32_267 = arith.constant 0 : i32
    %378 = tpu.memref_slice %arg13[%c9_i32_266, %c0_i32_267] : memref<16x128xf32, #tpu.memory_space<vmem>> -> memref<1x128xf32, #tpu.memory_space<vmem>>
    %379 = tpu.memref_slice %arg15[%c9_i32_264] : memref<16x!tpu.dma_semaphore, #tpu.memory_space<semaphore_mem>> -> memref<1x!tpu.dma_semaphore, #tpu.memory_space<semaphore_mem>>
    %380 = tpu.memref_squeeze %379 : memref<1x!tpu.dma_semaphore, #tpu.memory_space<semaphore_mem>> -> memref<!tpu.dma_semaphore, #tpu.memory_space<semaphore_mem>>
    tpu.enqueue_dma source(%377 : memref<1x128xf32, #tpu.memory_space<any>>) target(%378 : memref<1x128xf32, #tpu.memory_space<vmem>>) target_semaphore(%380 : memref<!tpu.dma_semaphore, #tpu.memory_space<semaphore_mem>>)
    %c9_i32_268 = arith.constant 9 : i32
    %c0_i32_269 = arith.constant 0 : i32
    %381 = tpu.memref_slice %arg5[%90, %c0_i32_269] : memref<64x128xf32, #tpu.memory_space<any>> -> memref<1x128xf32, #tpu.memory_space<any>>
    %c9_i32_270 = arith.constant 9 : i32
    %c0_i32_271 = arith.constant 0 : i32
    %382 = tpu.memref_slice %arg14[%c9_i32_270, %c0_i32_271] : memref<16x128xf32, #tpu.memory_space<vmem>> -> memref<1x128xf32, #tpu.memory_space<vmem>>
    %383 = tpu.memref_slice %arg15[%c9_i32_268] : memref<16x!tpu.dma_semaphore, #tpu.memory_space<semaphore_mem>> -> memref<1x!tpu.dma_semaphore, #tpu.memory_space<semaphore_mem>>
    %384 = tpu.memref_squeeze %383 : memref<1x!tpu.dma_semaphore, #tpu.memory_space<semaphore_mem>> -> memref<!tpu.dma_semaphore, #tpu.memory_space<semaphore_mem>>
    tpu.enqueue_dma source(%381 : memref<1x128xf32, #tpu.memory_space<any>>) target(%382 : memref<1x128xf32, #tpu.memory_space<vmem>>) target_semaphore(%384 : memref<!tpu.dma_semaphore, #tpu.memory_space<semaphore_mem>>)
    %c10_i32_272 = arith.constant 10 : i32
    %c0_i32_273 = arith.constant 0 : i32
    %385 = tpu.memref_slice %arg4[%93, %c0_i32_273] : memref<64x128xf32, #tpu.memory_space<any>> -> memref<1x128xf32, #tpu.memory_space<any>>
    %c10_i32_274 = arith.constant 10 : i32
    %c0_i32_275 = arith.constant 0 : i32
    %386 = tpu.memref_slice %arg9[%c10_i32_274, %c0_i32_275] : memref<16x128xf32, #tpu.memory_space<vmem>> -> memref<1x128xf32, #tpu.memory_space<vmem>>
    %387 = tpu.memref_slice %arg15[%c10_i32_272] : memref<16x!tpu.dma_semaphore, #tpu.memory_space<semaphore_mem>> -> memref<1x!tpu.dma_semaphore, #tpu.memory_space<semaphore_mem>>
    %388 = tpu.memref_squeeze %387 : memref<1x!tpu.dma_semaphore, #tpu.memory_space<semaphore_mem>> -> memref<!tpu.dma_semaphore, #tpu.memory_space<semaphore_mem>>
    tpu.enqueue_dma source(%385 : memref<1x128xf32, #tpu.memory_space<any>>) target(%386 : memref<1x128xf32, #tpu.memory_space<vmem>>) target_semaphore(%388 : memref<!tpu.dma_semaphore, #tpu.memory_space<semaphore_mem>>)
    %c10_i32_276 = arith.constant 10 : i32
    %c0_i32_277 = arith.constant 0 : i32
    %389 = tpu.memref_slice %arg5[%93, %c0_i32_277] : memref<64x128xf32, #tpu.memory_space<any>> -> memref<1x128xf32, #tpu.memory_space<any>>
    %c10_i32_278 = arith.constant 10 : i32
    %c0_i32_279 = arith.constant 0 : i32
    %390 = tpu.memref_slice %arg10[%c10_i32_278, %c0_i32_279] : memref<16x128xf32, #tpu.memory_space<vmem>> -> memref<1x128xf32, #tpu.memory_space<vmem>>
    %391 = tpu.memref_slice %arg15[%c10_i32_276] : memref<16x!tpu.dma_semaphore, #tpu.memory_space<semaphore_mem>> -> memref<1x!tpu.dma_semaphore, #tpu.memory_space<semaphore_mem>>
    %392 = tpu.memref_squeeze %391 : memref<1x!tpu.dma_semaphore, #tpu.memory_space<semaphore_mem>> -> memref<!tpu.dma_semaphore, #tpu.memory_space<semaphore_mem>>
    tpu.enqueue_dma source(%389 : memref<1x128xf32, #tpu.memory_space<any>>) target(%390 : memref<1x128xf32, #tpu.memory_space<vmem>>) target_semaphore(%392 : memref<!tpu.dma_semaphore, #tpu.memory_space<semaphore_mem>>)
    %c10_i32_280 = arith.constant 10 : i32
    %c0_i32_281 = arith.constant 0 : i32
    %393 = tpu.memref_slice %arg6[%96, %c0_i32_281] : memref<8x128xf32, #tpu.memory_space<any>> -> memref<1x128xf32, #tpu.memory_space<any>>
    %c10_i32_282 = arith.constant 10 : i32
    %c0_i32_283 = arith.constant 0 : i32
    %394 = tpu.memref_slice %arg11[%c10_i32_282, %c0_i32_283] : memref<16x128xf32, #tpu.memory_space<vmem>> -> memref<1x128xf32, #tpu.memory_space<vmem>>
    %395 = tpu.memref_slice %arg15[%c10_i32_280] : memref<16x!tpu.dma_semaphore, #tpu.memory_space<semaphore_mem>> -> memref<1x!tpu.dma_semaphore, #tpu.memory_space<semaphore_mem>>
    %396 = tpu.memref_squeeze %395 : memref<1x!tpu.dma_semaphore, #tpu.memory_space<semaphore_mem>> -> memref<!tpu.dma_semaphore, #tpu.memory_space<semaphore_mem>>
    tpu.enqueue_dma source(%393 : memref<1x128xf32, #tpu.memory_space<any>>) target(%394 : memref<1x128xf32, #tpu.memory_space<vmem>>) target_semaphore(%396 : memref<!tpu.dma_semaphore, #tpu.memory_space<semaphore_mem>>)
    %c10_i32_284 = arith.constant 10 : i32
    %c0_i32_285 = arith.constant 0 : i32
    %397 = tpu.memref_slice %arg7[%96, %c0_i32_285] : memref<8x128xf32, #tpu.memory_space<any>> -> memref<1x128xf32, #tpu.memory_space<any>>
    %c10_i32_286 = arith.constant 10 : i32
    %c0_i32_287 = arith.constant 0 : i32
    %398 = tpu.memref_slice %arg12[%c10_i32_286, %c0_i32_287] : memref<16x128xf32, #tpu.memory_space<vmem>> -> memref<1x128xf32, #tpu.memory_space<vmem>>
    %399 = tpu.memref_slice %arg15[%c10_i32_284] : memref<16x!tpu.dma_semaphore, #tpu.memory_space<semaphore_mem>> -> memref<1x!tpu.dma_semaphore, #tpu.memory_space<semaphore_mem>>
    %400 = tpu.memref_squeeze %399 : memref<1x!tpu.dma_semaphore, #tpu.memory_space<semaphore_mem>> -> memref<!tpu.dma_semaphore, #tpu.memory_space<semaphore_mem>>
    tpu.enqueue_dma source(%397 : memref<1x128xf32, #tpu.memory_space<any>>) target(%398 : memref<1x128xf32, #tpu.memory_space<vmem>>) target_semaphore(%400 : memref<!tpu.dma_semaphore, #tpu.memory_space<semaphore_mem>>)
    %c10_i32_288 = arith.constant 10 : i32
    %c0_i32_289 = arith.constant 0 : i32
    %401 = tpu.memref_slice %arg4[%99, %c0_i32_289] : memref<64x128xf32, #tpu.memory_space<any>> -> memref<1x128xf32, #tpu.memory_space<any>>
    %c10_i32_290 = arith.constant 10 : i32
    %c0_i32_291 = arith.constant 0 : i32
    %402 = tpu.memref_slice %arg13[%c10_i32_290, %c0_i32_291] : memref<16x128xf32, #tpu.memory_space<vmem>> -> memref<1x128xf32, #tpu.memory_space<vmem>>
    %403 = tpu.memref_slice %arg15[%c10_i32_288] : memref<16x!tpu.dma_semaphore, #tpu.memory_space<semaphore_mem>> -> memref<1x!tpu.dma_semaphore, #tpu.memory_space<semaphore_mem>>
    %404 = tpu.memref_squeeze %403 : memref<1x!tpu.dma_semaphore, #tpu.memory_space<semaphore_mem>> -> memref<!tpu.dma_semaphore, #tpu.memory_space<semaphore_mem>>
    tpu.enqueue_dma source(%401 : memref<1x128xf32, #tpu.memory_space<any>>) target(%402 : memref<1x128xf32, #tpu.memory_space<vmem>>) target_semaphore(%404 : memref<!tpu.dma_semaphore, #tpu.memory_space<semaphore_mem>>)
    %c10_i32_292 = arith.constant 10 : i32
    %c0_i32_293 = arith.constant 0 : i32
    %405 = tpu.memref_slice %arg5[%99, %c0_i32_293] : memref<64x128xf32, #tpu.memory_space<any>> -> memref<1x128xf32, #tpu.memory_space<any>>
    %c10_i32_294 = arith.constant 10 : i32
    %c0_i32_295 = arith.constant 0 : i32
    %406 = tpu.memref_slice %arg14[%c10_i32_294, %c0_i32_295] : memref<16x128xf32, #tpu.memory_space<vmem>> -> memref<1x128xf32, #tpu.memory_space<vmem>>
    %407 = tpu.memref_slice %arg15[%c10_i32_292] : memref<16x!tpu.dma_semaphore, #tpu.memory_space<semaphore_mem>> -> memref<1x!tpu.dma_semaphore, #tpu.memory_space<semaphore_mem>>
    %408 = tpu.memref_squeeze %407 : memref<1x!tpu.dma_semaphore, #tpu.memory_space<semaphore_mem>> -> memref<!tpu.dma_semaphore, #tpu.memory_space<semaphore_mem>>
    tpu.enqueue_dma source(%405 : memref<1x128xf32, #tpu.memory_space<any>>) target(%406 : memref<1x128xf32, #tpu.memory_space<vmem>>) target_semaphore(%408 : memref<!tpu.dma_semaphore, #tpu.memory_space<semaphore_mem>>)
    %c11_i32_296 = arith.constant 11 : i32
    %c0_i32_297 = arith.constant 0 : i32
    %409 = tpu.memref_slice %arg4[%102, %c0_i32_297] : memref<64x128xf32, #tpu.memory_space<any>> -> memref<1x128xf32, #tpu.memory_space<any>>
    %c11_i32_298 = arith.constant 11 : i32
    %c0_i32_299 = arith.constant 0 : i32
    %410 = tpu.memref_slice %arg9[%c11_i32_298, %c0_i32_299] : memref<16x128xf32, #tpu.memory_space<vmem>> -> memref<1x128xf32, #tpu.memory_space<vmem>>
    %411 = tpu.memref_slice %arg15[%c11_i32_296] : memref<16x!tpu.dma_semaphore, #tpu.memory_space<semaphore_mem>> -> memref<1x!tpu.dma_semaphore, #tpu.memory_space<semaphore_mem>>
    %412 = tpu.memref_squeeze %411 : memref<1x!tpu.dma_semaphore, #tpu.memory_space<semaphore_mem>> -> memref<!tpu.dma_semaphore, #tpu.memory_space<semaphore_mem>>
    tpu.enqueue_dma source(%409 : memref<1x128xf32, #tpu.memory_space<any>>) target(%410 : memref<1x128xf32, #tpu.memory_space<vmem>>) target_semaphore(%412 : memref<!tpu.dma_semaphore, #tpu.memory_space<semaphore_mem>>)
    %c11_i32_300 = arith.constant 11 : i32
    %c0_i32_301 = arith.constant 0 : i32
    %413 = tpu.memref_slice %arg5[%102, %c0_i32_301] : memref<64x128xf32, #tpu.memory_space<any>> -> memref<1x128xf32, #tpu.memory_space<any>>
    %c11_i32_302 = arith.constant 11 : i32
    %c0_i32_303 = arith.constant 0 : i32
    %414 = tpu.memref_slice %arg10[%c11_i32_302, %c0_i32_303] : memref<16x128xf32, #tpu.memory_space<vmem>> -> memref<1x128xf32, #tpu.memory_space<vmem>>
    %415 = tpu.memref_slice %arg15[%c11_i32_300] : memref<16x!tpu.dma_semaphore, #tpu.memory_space<semaphore_mem>> -> memref<1x!tpu.dma_semaphore, #tpu.memory_space<semaphore_mem>>
    %416 = tpu.memref_squeeze %415 : memref<1x!tpu.dma_semaphore, #tpu.memory_space<semaphore_mem>> -> memref<!tpu.dma_semaphore, #tpu.memory_space<semaphore_mem>>
    tpu.enqueue_dma source(%413 : memref<1x128xf32, #tpu.memory_space<any>>) target(%414 : memref<1x128xf32, #tpu.memory_space<vmem>>) target_semaphore(%416 : memref<!tpu.dma_semaphore, #tpu.memory_space<semaphore_mem>>)
    %c11_i32_304 = arith.constant 11 : i32
    %c0_i32_305 = arith.constant 0 : i32
    %417 = tpu.memref_slice %arg6[%105, %c0_i32_305] : memref<8x128xf32, #tpu.memory_space<any>> -> memref<1x128xf32, #tpu.memory_space<any>>
    %c11_i32_306 = arith.constant 11 : i32
    %c0_i32_307 = arith.constant 0 : i32
    %418 = tpu.memref_slice %arg11[%c11_i32_306, %c0_i32_307] : memref<16x128xf32, #tpu.memory_space<vmem>> -> memref<1x128xf32, #tpu.memory_space<vmem>>
    %419 = tpu.memref_slice %arg15[%c11_i32_304] : memref<16x!tpu.dma_semaphore, #tpu.memory_space<semaphore_mem>> -> memref<1x!tpu.dma_semaphore, #tpu.memory_space<semaphore_mem>>
    %420 = tpu.memref_squeeze %419 : memref<1x!tpu.dma_semaphore, #tpu.memory_space<semaphore_mem>> -> memref<!tpu.dma_semaphore, #tpu.memory_space<semaphore_mem>>
    tpu.enqueue_dma source(%417 : memref<1x128xf32, #tpu.memory_space<any>>) target(%418 : memref<1x128xf32, #tpu.memory_space<vmem>>) target_semaphore(%420 : memref<!tpu.dma_semaphore, #tpu.memory_space<semaphore_mem>>)
    %c11_i32_308 = arith.constant 11 : i32
    %c0_i32_309 = arith.constant 0 : i32
    %421 = tpu.memref_slice %arg7[%105, %c0_i32_309] : memref<8x128xf32, #tpu.memory_space<any>> -> memref<1x128xf32, #tpu.memory_space<any>>
    %c11_i32_310 = arith.constant 11 : i32
    %c0_i32_311 = arith.constant 0 : i32
    %422 = tpu.memref_slice %arg12[%c11_i32_310, %c0_i32_311] : memref<16x128xf32, #tpu.memory_space<vmem>> -> memref<1x128xf32, #tpu.memory_space<vmem>>
    %423 = tpu.memref_slice %arg15[%c11_i32_308] : memref<16x!tpu.dma_semaphore, #tpu.memory_space<semaphore_mem>> -> memref<1x!tpu.dma_semaphore, #tpu.memory_space<semaphore_mem>>
    %424 = tpu.memref_squeeze %423 : memref<1x!tpu.dma_semaphore, #tpu.memory_space<semaphore_mem>> -> memref<!tpu.dma_semaphore, #tpu.memory_space<semaphore_mem>>
    tpu.enqueue_dma source(%421 : memref<1x128xf32, #tpu.memory_space<any>>) target(%422 : memref<1x128xf32, #tpu.memory_space<vmem>>) target_semaphore(%424 : memref<!tpu.dma_semaphore, #tpu.memory_space<semaphore_mem>>)
    %c11_i32_312 = arith.constant 11 : i32
    %c0_i32_313 = arith.constant 0 : i32
    %425 = tpu.memref_slice %arg4[%108, %c0_i32_313] : memref<64x128xf32, #tpu.memory_space<any>> -> memref<1x128xf32, #tpu.memory_space<any>>
    %c11_i32_314 = arith.constant 11 : i32
    %c0_i32_315 = arith.constant 0 : i32
    %426 = tpu.memref_slice %arg13[%c11_i32_314, %c0_i32_315] : memref<16x128xf32, #tpu.memory_space<vmem>> -> memref<1x128xf32, #tpu.memory_space<vmem>>
    %427 = tpu.memref_slice %arg15[%c11_i32_312] : memref<16x!tpu.dma_semaphore, #tpu.memory_space<semaphore_mem>> -> memref<1x!tpu.dma_semaphore, #tpu.memory_space<semaphore_mem>>
    %428 = tpu.memref_squeeze %427 : memref<1x!tpu.dma_semaphore, #tpu.memory_space<semaphore_mem>> -> memref<!tpu.dma_semaphore, #tpu.memory_space<semaphore_mem>>
    tpu.enqueue_dma source(%425 : memref<1x128xf32, #tpu.memory_space<any>>) target(%426 : memref<1x128xf32, #tpu.memory_space<vmem>>) target_semaphore(%428 : memref<!tpu.dma_semaphore, #tpu.memory_space<semaphore_mem>>)
    %c11_i32_316 = arith.constant 11 : i32
    %c0_i32_317 = arith.constant 0 : i32
    %429 = tpu.memref_slice %arg5[%108, %c0_i32_317] : memref<64x128xf32, #tpu.memory_space<any>> -> memref<1x128xf32, #tpu.memory_space<any>>
    %c11_i32_318 = arith.constant 11 : i32
    %c0_i32_319 = arith.constant 0 : i32
    %430 = tpu.memref_slice %arg14[%c11_i32_318, %c0_i32_319] : memref<16x128xf32, #tpu.memory_space<vmem>> -> memref<1x128xf32, #tpu.memory_space<vmem>>
    %431 = tpu.memref_slice %arg15[%c11_i32_316] : memref<16x!tpu.dma_semaphore, #tpu.memory_space<semaphore_mem>> -> memref<1x!tpu.dma_semaphore, #tpu.memory_space<semaphore_mem>>
    %432 = tpu.memref_squeeze %431 : memref<1x!tpu.dma_semaphore, #tpu.memory_space<semaphore_mem>> -> memref<!tpu.dma_semaphore, #tpu.memory_space<semaphore_mem>>
    tpu.enqueue_dma source(%429 : memref<1x128xf32, #tpu.memory_space<any>>) target(%430 : memref<1x128xf32, #tpu.memory_space<vmem>>) target_semaphore(%432 : memref<!tpu.dma_semaphore, #tpu.memory_space<semaphore_mem>>)
    %c12_i32_320 = arith.constant 12 : i32
    %c0_i32_321 = arith.constant 0 : i32
    %433 = tpu.memref_slice %arg4[%111, %c0_i32_321] : memref<64x128xf32, #tpu.memory_space<any>> -> memref<1x128xf32, #tpu.memory_space<any>>
    %c12_i32_322 = arith.constant 12 : i32
    %c0_i32_323 = arith.constant 0 : i32
    %434 = tpu.memref_slice %arg9[%c12_i32_322, %c0_i32_323] : memref<16x128xf32, #tpu.memory_space<vmem>> -> memref<1x128xf32, #tpu.memory_space<vmem>>
    %435 = tpu.memref_slice %arg15[%c12_i32_320] : memref<16x!tpu.dma_semaphore, #tpu.memory_space<semaphore_mem>> -> memref<1x!tpu.dma_semaphore, #tpu.memory_space<semaphore_mem>>
    %436 = tpu.memref_squeeze %435 : memref<1x!tpu.dma_semaphore, #tpu.memory_space<semaphore_mem>> -> memref<!tpu.dma_semaphore, #tpu.memory_space<semaphore_mem>>
    tpu.enqueue_dma source(%433 : memref<1x128xf32, #tpu.memory_space<any>>) target(%434 : memref<1x128xf32, #tpu.memory_space<vmem>>) target_semaphore(%436 : memref<!tpu.dma_semaphore, #tpu.memory_space<semaphore_mem>>)
    %c12_i32_324 = arith.constant 12 : i32
    %c0_i32_325 = arith.constant 0 : i32
    %437 = tpu.memref_slice %arg5[%111, %c0_i32_325] : memref<64x128xf32, #tpu.memory_space<any>> -> memref<1x128xf32, #tpu.memory_space<any>>
    %c12_i32_326 = arith.constant 12 : i32
    %c0_i32_327 = arith.constant 0 : i32
    %438 = tpu.memref_slice %arg10[%c12_i32_326, %c0_i32_327] : memref<16x128xf32, #tpu.memory_space<vmem>> -> memref<1x128xf32, #tpu.memory_space<vmem>>
    %439 = tpu.memref_slice %arg15[%c12_i32_324] : memref<16x!tpu.dma_semaphore, #tpu.memory_space<semaphore_mem>> -> memref<1x!tpu.dma_semaphore, #tpu.memory_space<semaphore_mem>>
    %440 = tpu.memref_squeeze %439 : memref<1x!tpu.dma_semaphore, #tpu.memory_space<semaphore_mem>> -> memref<!tpu.dma_semaphore, #tpu.memory_space<semaphore_mem>>
    tpu.enqueue_dma source(%437 : memref<1x128xf32, #tpu.memory_space<any>>) target(%438 : memref<1x128xf32, #tpu.memory_space<vmem>>) target_semaphore(%440 : memref<!tpu.dma_semaphore, #tpu.memory_space<semaphore_mem>>)
    %c12_i32_328 = arith.constant 12 : i32
    %c0_i32_329 = arith.constant 0 : i32
    %441 = tpu.memref_slice %arg6[%114, %c0_i32_329] : memref<8x128xf32, #tpu.memory_space<any>> -> memref<1x128xf32, #tpu.memory_space<any>>
    %c12_i32_330 = arith.constant 12 : i32
    %c0_i32_331 = arith.constant 0 : i32
    %442 = tpu.memref_slice %arg11[%c12_i32_330, %c0_i32_331] : memref<16x128xf32, #tpu.memory_space<vmem>> -> memref<1x128xf32, #tpu.memory_space<vmem>>
    %443 = tpu.memref_slice %arg15[%c12_i32_328] : memref<16x!tpu.dma_semaphore, #tpu.memory_space<semaphore_mem>> -> memref<1x!tpu.dma_semaphore, #tpu.memory_space<semaphore_mem>>
    %444 = tpu.memref_squeeze %443 : memref<1x!tpu.dma_semaphore, #tpu.memory_space<semaphore_mem>> -> memref<!tpu.dma_semaphore, #tpu.memory_space<semaphore_mem>>
    tpu.enqueue_dma source(%441 : memref<1x128xf32, #tpu.memory_space<any>>) target(%442 : memref<1x128xf32, #tpu.memory_space<vmem>>) target_semaphore(%444 : memref<!tpu.dma_semaphore, #tpu.memory_space<semaphore_mem>>)
    %c12_i32_332 = arith.constant 12 : i32
    %c0_i32_333 = arith.constant 0 : i32
    %445 = tpu.memref_slice %arg7[%114, %c0_i32_333] : memref<8x128xf32, #tpu.memory_space<any>> -> memref<1x128xf32, #tpu.memory_space<any>>
    %c12_i32_334 = arith.constant 12 : i32
    %c0_i32_335 = arith.constant 0 : i32
    %446 = tpu.memref_slice %arg12[%c12_i32_334, %c0_i32_335] : memref<16x128xf32, #tpu.memory_space<vmem>> -> memref<1x128xf32, #tpu.memory_space<vmem>>
    %447 = tpu.memref_slice %arg15[%c12_i32_332] : memref<16x!tpu.dma_semaphore, #tpu.memory_space<semaphore_mem>> -> memref<1x!tpu.dma_semaphore, #tpu.memory_space<semaphore_mem>>
    %448 = tpu.memref_squeeze %447 : memref<1x!tpu.dma_semaphore, #tpu.memory_space<semaphore_mem>> -> memref<!tpu.dma_semaphore, #tpu.memory_space<semaphore_mem>>
    tpu.enqueue_dma source(%445 : memref<1x128xf32, #tpu.memory_space<any>>) target(%446 : memref<1x128xf32, #tpu.memory_space<vmem>>) target_semaphore(%448 : memref<!tpu.dma_semaphore, #tpu.memory_space<semaphore_mem>>)
    %c12_i32_336 = arith.constant 12 : i32
    %c0_i32_337 = arith.constant 0 : i32
    %449 = tpu.memref_slice %arg4[%117, %c0_i32_337] : memref<64x128xf32, #tpu.memory_space<any>> -> memref<1x128xf32, #tpu.memory_space<any>>
    %c12_i32_338 = arith.constant 12 : i32
    %c0_i32_339 = arith.constant 0 : i32
    %450 = tpu.memref_slice %arg13[%c12_i32_338, %c0_i32_339] : memref<16x128xf32, #tpu.memory_space<vmem>> -> memref<1x128xf32, #tpu.memory_space<vmem>>
    %451 = tpu.memref_slice %arg15[%c12_i32_336] : memref<16x!tpu.dma_semaphore, #tpu.memory_space<semaphore_mem>> -> memref<1x!tpu.dma_semaphore, #tpu.memory_space<semaphore_mem>>
    %452 = tpu.memref_squeeze %451 : memref<1x!tpu.dma_semaphore, #tpu.memory_space<semaphore_mem>> -> memref<!tpu.dma_semaphore, #tpu.memory_space<semaphore_mem>>
    tpu.enqueue_dma source(%449 : memref<1x128xf32, #tpu.memory_space<any>>) target(%450 : memref<1x128xf32, #tpu.memory_space<vmem>>) target_semaphore(%452 : memref<!tpu.dma_semaphore, #tpu.memory_space<semaphore_mem>>)
    %c12_i32_340 = arith.constant 12 : i32
    %c0_i32_341 = arith.constant 0 : i32
    %453 = tpu.memref_slice %arg5[%117, %c0_i32_341] : memref<64x128xf32, #tpu.memory_space<any>> -> memref<1x128xf32, #tpu.memory_space<any>>
    %c12_i32_342 = arith.constant 12 : i32
    %c0_i32_343 = arith.constant 0 : i32
    %454 = tpu.memref_slice %arg14[%c12_i32_342, %c0_i32_343] : memref<16x128xf32, #tpu.memory_space<vmem>> -> memref<1x128xf32, #tpu.memory_space<vmem>>
    %455 = tpu.memref_slice %arg15[%c12_i32_340] : memref<16x!tpu.dma_semaphore, #tpu.memory_space<semaphore_mem>> -> memref<1x!tpu.dma_semaphore, #tpu.memory_space<semaphore_mem>>
    %456 = tpu.memref_squeeze %455 : memref<1x!tpu.dma_semaphore, #tpu.memory_space<semaphore_mem>> -> memref<!tpu.dma_semaphore, #tpu.memory_space<semaphore_mem>>
    tpu.enqueue_dma source(%453 : memref<1x128xf32, #tpu.memory_space<any>>) target(%454 : memref<1x128xf32, #tpu.memory_space<vmem>>) target_semaphore(%456 : memref<!tpu.dma_semaphore, #tpu.memory_space<semaphore_mem>>)
    %c13_i32_344 = arith.constant 13 : i32
    %c0_i32_345 = arith.constant 0 : i32
    %457 = tpu.memref_slice %arg4[%120, %c0_i32_345] : memref<64x128xf32, #tpu.memory_space<any>> -> memref<1x128xf32, #tpu.memory_space<any>>
    %c13_i32_346 = arith.constant 13 : i32
    %c0_i32_347 = arith.constant 0 : i32
    %458 = tpu.memref_slice %arg9[%c13_i32_346, %c0_i32_347] : memref<16x128xf32, #tpu.memory_space<vmem>> -> memref<1x128xf32, #tpu.memory_space<vmem>>
    %459 = tpu.memref_slice %arg15[%c13_i32_344] : memref<16x!tpu.dma_semaphore, #tpu.memory_space<semaphore_mem>> -> memref<1x!tpu.dma_semaphore, #tpu.memory_space<semaphore_mem>>
    %460 = tpu.memref_squeeze %459 : memref<1x!tpu.dma_semaphore, #tpu.memory_space<semaphore_mem>> -> memref<!tpu.dma_semaphore, #tpu.memory_space<semaphore_mem>>
    tpu.enqueue_dma source(%457 : memref<1x128xf32, #tpu.memory_space<any>>) target(%458 : memref<1x128xf32, #tpu.memory_space<vmem>>) target_semaphore(%460 : memref<!tpu.dma_semaphore, #tpu.memory_space<semaphore_mem>>)
    %c13_i32_348 = arith.constant 13 : i32
    %c0_i32_349 = arith.constant 0 : i32
    %461 = tpu.memref_slice %arg5[%120, %c0_i32_349] : memref<64x128xf32, #tpu.memory_space<any>> -> memref<1x128xf32, #tpu.memory_space<any>>
    %c13_i32_350 = arith.constant 13 : i32
    %c0_i32_351 = arith.constant 0 : i32
    %462 = tpu.memref_slice %arg10[%c13_i32_350, %c0_i32_351] : memref<16x128xf32, #tpu.memory_space<vmem>> -> memref<1x128xf32, #tpu.memory_space<vmem>>
    %463 = tpu.memref_slice %arg15[%c13_i32_348] : memref<16x!tpu.dma_semaphore, #tpu.memory_space<semaphore_mem>> -> memref<1x!tpu.dma_semaphore, #tpu.memory_space<semaphore_mem>>
    %464 = tpu.memref_squeeze %463 : memref<1x!tpu.dma_semaphore, #tpu.memory_space<semaphore_mem>> -> memref<!tpu.dma_semaphore, #tpu.memory_space<semaphore_mem>>
    tpu.enqueue_dma source(%461 : memref<1x128xf32, #tpu.memory_space<any>>) target(%462 : memref<1x128xf32, #tpu.memory_space<vmem>>) target_semaphore(%464 : memref<!tpu.dma_semaphore, #tpu.memory_space<semaphore_mem>>)
    %c13_i32_352 = arith.constant 13 : i32
    %c0_i32_353 = arith.constant 0 : i32
    %465 = tpu.memref_slice %arg6[%123, %c0_i32_353] : memref<8x128xf32, #tpu.memory_space<any>> -> memref<1x128xf32, #tpu.memory_space<any>>
    %c13_i32_354 = arith.constant 13 : i32
    %c0_i32_355 = arith.constant 0 : i32
    %466 = tpu.memref_slice %arg11[%c13_i32_354, %c0_i32_355] : memref<16x128xf32, #tpu.memory_space<vmem>> -> memref<1x128xf32, #tpu.memory_space<vmem>>
    %467 = tpu.memref_slice %arg15[%c13_i32_352] : memref<16x!tpu.dma_semaphore, #tpu.memory_space<semaphore_mem>> -> memref<1x!tpu.dma_semaphore, #tpu.memory_space<semaphore_mem>>
    %468 = tpu.memref_squeeze %467 : memref<1x!tpu.dma_semaphore, #tpu.memory_space<semaphore_mem>> -> memref<!tpu.dma_semaphore, #tpu.memory_space<semaphore_mem>>
    tpu.enqueue_dma source(%465 : memref<1x128xf32, #tpu.memory_space<any>>) target(%466 : memref<1x128xf32, #tpu.memory_space<vmem>>) target_semaphore(%468 : memref<!tpu.dma_semaphore, #tpu.memory_space<semaphore_mem>>)
    %c13_i32_356 = arith.constant 13 : i32
    %c0_i32_357 = arith.constant 0 : i32
    %469 = tpu.memref_slice %arg7[%123, %c0_i32_357] : memref<8x128xf32, #tpu.memory_space<any>> -> memref<1x128xf32, #tpu.memory_space<any>>
    %c13_i32_358 = arith.constant 13 : i32
    %c0_i32_359 = arith.constant 0 : i32
    %470 = tpu.memref_slice %arg12[%c13_i32_358, %c0_i32_359] : memref<16x128xf32, #tpu.memory_space<vmem>> -> memref<1x128xf32, #tpu.memory_space<vmem>>
    %471 = tpu.memref_slice %arg15[%c13_i32_356] : memref<16x!tpu.dma_semaphore, #tpu.memory_space<semaphore_mem>> -> memref<1x!tpu.dma_semaphore, #tpu.memory_space<semaphore_mem>>
    %472 = tpu.memref_squeeze %471 : memref<1x!tpu.dma_semaphore, #tpu.memory_space<semaphore_mem>> -> memref<!tpu.dma_semaphore, #tpu.memory_space<semaphore_mem>>
    tpu.enqueue_dma source(%469 : memref<1x128xf32, #tpu.memory_space<any>>) target(%470 : memref<1x128xf32, #tpu.memory_space<vmem>>) target_semaphore(%472 : memref<!tpu.dma_semaphore, #tpu.memory_space<semaphore_mem>>)
    %c13_i32_360 = arith.constant 13 : i32
    %c0_i32_361 = arith.constant 0 : i32
    %473 = tpu.memref_slice %arg4[%126, %c0_i32_361] : memref<64x128xf32, #tpu.memory_space<any>> -> memref<1x128xf32, #tpu.memory_space<any>>
    %c13_i32_362 = arith.constant 13 : i32
    %c0_i32_363 = arith.constant 0 : i32
    %474 = tpu.memref_slice %arg13[%c13_i32_362, %c0_i32_363] : memref<16x128xf32, #tpu.memory_space<vmem>> -> memref<1x128xf32, #tpu.memory_space<vmem>>
    %475 = tpu.memref_slice %arg15[%c13_i32_360] : memref<16x!tpu.dma_semaphore, #tpu.memory_space<semaphore_mem>> -> memref<1x!tpu.dma_semaphore, #tpu.memory_space<semaphore_mem>>
    %476 = tpu.memref_squeeze %475 : memref<1x!tpu.dma_semaphore, #tpu.memory_space<semaphore_mem>> -> memref<!tpu.dma_semaphore, #tpu.memory_space<semaphore_mem>>
    tpu.enqueue_dma source(%473 : memref<1x128xf32, #tpu.memory_space<any>>) target(%474 : memref<1x128xf32, #tpu.memory_space<vmem>>) target_semaphore(%476 : memref<!tpu.dma_semaphore, #tpu.memory_space<semaphore_mem>>)
    %c13_i32_364 = arith.constant 13 : i32
    %c0_i32_365 = arith.constant 0 : i32
    %477 = tpu.memref_slice %arg5[%126, %c0_i32_365] : memref<64x128xf32, #tpu.memory_space<any>> -> memref<1x128xf32, #tpu.memory_space<any>>
    %c13_i32_366 = arith.constant 13 : i32
    %c0_i32_367 = arith.constant 0 : i32
    %478 = tpu.memref_slice %arg14[%c13_i32_366, %c0_i32_367] : memref<16x128xf32, #tpu.memory_space<vmem>> -> memref<1x128xf32, #tpu.memory_space<vmem>>
    %479 = tpu.memref_slice %arg15[%c13_i32_364] : memref<16x!tpu.dma_semaphore, #tpu.memory_space<semaphore_mem>> -> memref<1x!tpu.dma_semaphore, #tpu.memory_space<semaphore_mem>>
    %480 = tpu.memref_squeeze %479 : memref<1x!tpu.dma_semaphore, #tpu.memory_space<semaphore_mem>> -> memref<!tpu.dma_semaphore, #tpu.memory_space<semaphore_mem>>
    tpu.enqueue_dma source(%477 : memref<1x128xf32, #tpu.memory_space<any>>) target(%478 : memref<1x128xf32, #tpu.memory_space<vmem>>) target_semaphore(%480 : memref<!tpu.dma_semaphore, #tpu.memory_space<semaphore_mem>>)
    %c14_i32_368 = arith.constant 14 : i32
    %c0_i32_369 = arith.constant 0 : i32
    %481 = tpu.memref_slice %arg4[%129, %c0_i32_369] : memref<64x128xf32, #tpu.memory_space<any>> -> memref<1x128xf32, #tpu.memory_space<any>>
    %c14_i32_370 = arith.constant 14 : i32
    %c0_i32_371 = arith.constant 0 : i32
    %482 = tpu.memref_slice %arg9[%c14_i32_370, %c0_i32_371] : memref<16x128xf32, #tpu.memory_space<vmem>> -> memref<1x128xf32, #tpu.memory_space<vmem>>
    %483 = tpu.memref_slice %arg15[%c14_i32_368] : memref<16x!tpu.dma_semaphore, #tpu.memory_space<semaphore_mem>> -> memref<1x!tpu.dma_semaphore, #tpu.memory_space<semaphore_mem>>
    %484 = tpu.memref_squeeze %483 : memref<1x!tpu.dma_semaphore, #tpu.memory_space<semaphore_mem>> -> memref<!tpu.dma_semaphore, #tpu.memory_space<semaphore_mem>>
    tpu.enqueue_dma source(%481 : memref<1x128xf32, #tpu.memory_space<any>>) target(%482 : memref<1x128xf32, #tpu.memory_space<vmem>>) target_semaphore(%484 : memref<!tpu.dma_semaphore, #tpu.memory_space<semaphore_mem>>)
    %c14_i32_372 = arith.constant 14 : i32
    %c0_i32_373 = arith.constant 0 : i32
    %485 = tpu.memref_slice %arg5[%129, %c0_i32_373] : memref<64x128xf32, #tpu.memory_space<any>> -> memref<1x128xf32, #tpu.memory_space<any>>
    %c14_i32_374 = arith.constant 14 : i32
    %c0_i32_375 = arith.constant 0 : i32
    %486 = tpu.memref_slice %arg10[%c14_i32_374, %c0_i32_375] : memref<16x128xf32, #tpu.memory_space<vmem>> -> memref<1x128xf32, #tpu.memory_space<vmem>>
    %487 = tpu.memref_slice %arg15[%c14_i32_372] : memref<16x!tpu.dma_semaphore, #tpu.memory_space<semaphore_mem>> -> memref<1x!tpu.dma_semaphore, #tpu.memory_space<semaphore_mem>>
    %488 = tpu.memref_squeeze %487 : memref<1x!tpu.dma_semaphore, #tpu.memory_space<semaphore_mem>> -> memref<!tpu.dma_semaphore, #tpu.memory_space<semaphore_mem>>
    tpu.enqueue_dma source(%485 : memref<1x128xf32, #tpu.memory_space<any>>) target(%486 : memref<1x128xf32, #tpu.memory_space<vmem>>) target_semaphore(%488 : memref<!tpu.dma_semaphore, #tpu.memory_space<semaphore_mem>>)
    %c14_i32_376 = arith.constant 14 : i32
    %c0_i32_377 = arith.constant 0 : i32
    %489 = tpu.memref_slice %arg6[%132, %c0_i32_377] : memref<8x128xf32, #tpu.memory_space<any>> -> memref<1x128xf32, #tpu.memory_space<any>>
    %c14_i32_378 = arith.constant 14 : i32
    %c0_i32_379 = arith.constant 0 : i32
    %490 = tpu.memref_slice %arg11[%c14_i32_378, %c0_i32_379] : memref<16x128xf32, #tpu.memory_space<vmem>> -> memref<1x128xf32, #tpu.memory_space<vmem>>
    %491 = tpu.memref_slice %arg15[%c14_i32_376] : memref<16x!tpu.dma_semaphore, #tpu.memory_space<semaphore_mem>> -> memref<1x!tpu.dma_semaphore, #tpu.memory_space<semaphore_mem>>
    %492 = tpu.memref_squeeze %491 : memref<1x!tpu.dma_semaphore, #tpu.memory_space<semaphore_mem>> -> memref<!tpu.dma_semaphore, #tpu.memory_space<semaphore_mem>>
    tpu.enqueue_dma source(%489 : memref<1x128xf32, #tpu.memory_space<any>>) target(%490 : memref<1x128xf32, #tpu.memory_space<vmem>>) target_semaphore(%492 : memref<!tpu.dma_semaphore, #tpu.memory_space<semaphore_mem>>)
    %c14_i32_380 = arith.constant 14 : i32
    %c0_i32_381 = arith.constant 0 : i32
    %493 = tpu.memref_slice %arg7[%132, %c0_i32_381] : memref<8x128xf32, #tpu.memory_space<any>> -> memref<1x128xf32, #tpu.memory_space<any>>
    %c14_i32_382 = arith.constant 14 : i32
    %c0_i32_383 = arith.constant 0 : i32
    %494 = tpu.memref_slice %arg12[%c14_i32_382, %c0_i32_383] : memref<16x128xf32, #tpu.memory_space<vmem>> -> memref<1x128xf32, #tpu.memory_space<vmem>>
    %495 = tpu.memref_slice %arg15[%c14_i32_380] : memref<16x!tpu.dma_semaphore, #tpu.memory_space<semaphore_mem>> -> memref<1x!tpu.dma_semaphore, #tpu.memory_space<semaphore_mem>>
    %496 = tpu.memref_squeeze %495 : memref<1x!tpu.dma_semaphore, #tpu.memory_space<semaphore_mem>> -> memref<!tpu.dma_semaphore, #tpu.memory_space<semaphore_mem>>
    tpu.enqueue_dma source(%493 : memref<1x128xf32, #tpu.memory_space<any>>) target(%494 : memref<1x128xf32, #tpu.memory_space<vmem>>) target_semaphore(%496 : memref<!tpu.dma_semaphore, #tpu.memory_space<semaphore_mem>>)
    %c14_i32_384 = arith.constant 14 : i32
    %c0_i32_385 = arith.constant 0 : i32
    %497 = tpu.memref_slice %arg4[%135, %c0_i32_385] : memref<64x128xf32, #tpu.memory_space<any>> -> memref<1x128xf32, #tpu.memory_space<any>>
    %c14_i32_386 = arith.constant 14 : i32
    %c0_i32_387 = arith.constant 0 : i32
    %498 = tpu.memref_slice %arg13[%c14_i32_386, %c0_i32_387] : memref<16x128xf32, #tpu.memory_space<vmem>> -> memref<1x128xf32, #tpu.memory_space<vmem>>
    %499 = tpu.memref_slice %arg15[%c14_i32_384] : memref<16x!tpu.dma_semaphore, #tpu.memory_space<semaphore_mem>> -> memref<1x!tpu.dma_semaphore, #tpu.memory_space<semaphore_mem>>
    %500 = tpu.memref_squeeze %499 : memref<1x!tpu.dma_semaphore, #tpu.memory_space<semaphore_mem>> -> memref<!tpu.dma_semaphore, #tpu.memory_space<semaphore_mem>>
    tpu.enqueue_dma source(%497 : memref<1x128xf32, #tpu.memory_space<any>>) target(%498 : memref<1x128xf32, #tpu.memory_space<vmem>>) target_semaphore(%500 : memref<!tpu.dma_semaphore, #tpu.memory_space<semaphore_mem>>)
    %c14_i32_388 = arith.constant 14 : i32
    %c0_i32_389 = arith.constant 0 : i32
    %501 = tpu.memref_slice %arg5[%135, %c0_i32_389] : memref<64x128xf32, #tpu.memory_space<any>> -> memref<1x128xf32, #tpu.memory_space<any>>
    %c14_i32_390 = arith.constant 14 : i32
    %c0_i32_391 = arith.constant 0 : i32
    %502 = tpu.memref_slice %arg14[%c14_i32_390, %c0_i32_391] : memref<16x128xf32, #tpu.memory_space<vmem>> -> memref<1x128xf32, #tpu.memory_space<vmem>>
    %503 = tpu.memref_slice %arg15[%c14_i32_388] : memref<16x!tpu.dma_semaphore, #tpu.memory_space<semaphore_mem>> -> memref<1x!tpu.dma_semaphore, #tpu.memory_space<semaphore_mem>>
    %504 = tpu.memref_squeeze %503 : memref<1x!tpu.dma_semaphore, #tpu.memory_space<semaphore_mem>> -> memref<!tpu.dma_semaphore, #tpu.memory_space<semaphore_mem>>
    tpu.enqueue_dma source(%501 : memref<1x128xf32, #tpu.memory_space<any>>) target(%502 : memref<1x128xf32, #tpu.memory_space<vmem>>) target_semaphore(%504 : memref<!tpu.dma_semaphore, #tpu.memory_space<semaphore_mem>>)
    %c15_i32_392 = arith.constant 15 : i32
    %c0_i32_393 = arith.constant 0 : i32
    %505 = tpu.memref_slice %arg4[%138, %c0_i32_393] : memref<64x128xf32, #tpu.memory_space<any>> -> memref<1x128xf32, #tpu.memory_space<any>>
    %c15_i32_394 = arith.constant 15 : i32
    %c0_i32_395 = arith.constant 0 : i32
    %506 = tpu.memref_slice %arg9[%c15_i32_394, %c0_i32_395] : memref<16x128xf32, #tpu.memory_space<vmem>> -> memref<1x128xf32, #tpu.memory_space<vmem>>
    %507 = tpu.memref_slice %arg15[%c15_i32_392] : memref<16x!tpu.dma_semaphore, #tpu.memory_space<semaphore_mem>> -> memref<1x!tpu.dma_semaphore, #tpu.memory_space<semaphore_mem>>
    %508 = tpu.memref_squeeze %507 : memref<1x!tpu.dma_semaphore, #tpu.memory_space<semaphore_mem>> -> memref<!tpu.dma_semaphore, #tpu.memory_space<semaphore_mem>>
    tpu.enqueue_dma source(%505 : memref<1x128xf32, #tpu.memory_space<any>>) target(%506 : memref<1x128xf32, #tpu.memory_space<vmem>>) target_semaphore(%508 : memref<!tpu.dma_semaphore, #tpu.memory_space<semaphore_mem>>)
    %c15_i32_396 = arith.constant 15 : i32
    %c0_i32_397 = arith.constant 0 : i32
    %509 = tpu.memref_slice %arg5[%138, %c0_i32_397] : memref<64x128xf32, #tpu.memory_space<any>> -> memref<1x128xf32, #tpu.memory_space<any>>
    %c15_i32_398 = arith.constant 15 : i32
    %c0_i32_399 = arith.constant 0 : i32
    %510 = tpu.memref_slice %arg10[%c15_i32_398, %c0_i32_399] : memref<16x128xf32, #tpu.memory_space<vmem>> -> memref<1x128xf32, #tpu.memory_space<vmem>>
    %511 = tpu.memref_slice %arg15[%c15_i32_396] : memref<16x!tpu.dma_semaphore, #tpu.memory_space<semaphore_mem>> -> memref<1x!tpu.dma_semaphore, #tpu.memory_space<semaphore_mem>>
    %512 = tpu.memref_squeeze %511 : memref<1x!tpu.dma_semaphore, #tpu.memory_space<semaphore_mem>> -> memref<!tpu.dma_semaphore, #tpu.memory_space<semaphore_mem>>
    tpu.enqueue_dma source(%509 : memref<1x128xf32, #tpu.memory_space<any>>) target(%510 : memref<1x128xf32, #tpu.memory_space<vmem>>) target_semaphore(%512 : memref<!tpu.dma_semaphore, #tpu.memory_space<semaphore_mem>>)
    %c15_i32_400 = arith.constant 15 : i32
    %c0_i32_401 = arith.constant 0 : i32
    %513 = tpu.memref_slice %arg6[%141, %c0_i32_401] : memref<8x128xf32, #tpu.memory_space<any>> -> memref<1x128xf32, #tpu.memory_space<any>>
    %c15_i32_402 = arith.constant 15 : i32
    %c0_i32_403 = arith.constant 0 : i32
    %514 = tpu.memref_slice %arg11[%c15_i32_402, %c0_i32_403] : memref<16x128xf32, #tpu.memory_space<vmem>> -> memref<1x128xf32, #tpu.memory_space<vmem>>
    %515 = tpu.memref_slice %arg15[%c15_i32_400] : memref<16x!tpu.dma_semaphore, #tpu.memory_space<semaphore_mem>> -> memref<1x!tpu.dma_semaphore, #tpu.memory_space<semaphore_mem>>
    %516 = tpu.memref_squeeze %515 : memref<1x!tpu.dma_semaphore, #tpu.memory_space<semaphore_mem>> -> memref<!tpu.dma_semaphore, #tpu.memory_space<semaphore_mem>>
    tpu.enqueue_dma source(%513 : memref<1x128xf32, #tpu.memory_space<any>>) target(%514 : memref<1x128xf32, #tpu.memory_space<vmem>>) target_semaphore(%516 : memref<!tpu.dma_semaphore, #tpu.memory_space<semaphore_mem>>)
    %c15_i32_404 = arith.constant 15 : i32
    %c0_i32_405 = arith.constant 0 : i32
    %517 = tpu.memref_slice %arg7[%141, %c0_i32_405] : memref<8x128xf32, #tpu.memory_space<any>> -> memref<1x128xf32, #tpu.memory_space<any>>
    %c15_i32_406 = arith.constant 15 : i32
    %c0_i32_407 = arith.constant 0 : i32
    %518 = tpu.memref_slice %arg12[%c15_i32_406, %c0_i32_407] : memref<16x128xf32, #tpu.memory_space<vmem>> -> memref<1x128xf32, #tpu.memory_space<vmem>>
    %519 = tpu.memref_slice %arg15[%c15_i32_404] : memref<16x!tpu.dma_semaphore, #tpu.memory_space<semaphore_mem>> -> memref<1x!tpu.dma_semaphore, #tpu.memory_space<semaphore_mem>>
    %520 = tpu.memref_squeeze %519 : memref<1x!tpu.dma_semaphore, #tpu.memory_space<semaphore_mem>> -> memref<!tpu.dma_semaphore, #tpu.memory_space<semaphore_mem>>
    tpu.enqueue_dma source(%517 : memref<1x128xf32, #tpu.memory_space<any>>) target(%518 : memref<1x128xf32, #tpu.memory_space<vmem>>) target_semaphore(%520 : memref<!tpu.dma_semaphore, #tpu.memory_space<semaphore_mem>>)
    %c15_i32_408 = arith.constant 15 : i32
    %c0_i32_409 = arith.constant 0 : i32
    %521 = tpu.memref_slice %arg4[%144, %c0_i32_409] : memref<64x128xf32, #tpu.memory_space<any>> -> memref<1x128xf32, #tpu.memory_space<any>>
    %c15_i32_410 = arith.constant 15 : i32
    %c0_i32_411 = arith.constant 0 : i32
    %522 = tpu.memref_slice %arg13[%c15_i32_410, %c0_i32_411] : memref<16x128xf32, #tpu.memory_space<vmem>> -> memref<1x128xf32, #tpu.memory_space<vmem>>
    %523 = tpu.memref_slice %arg15[%c15_i32_408] : memref<16x!tpu.dma_semaphore, #tpu.memory_space<semaphore_mem>> -> memref<1x!tpu.dma_semaphore, #tpu.memory_space<semaphore_mem>>
    %524 = tpu.memref_squeeze %523 : memref<1x!tpu.dma_semaphore, #tpu.memory_space<semaphore_mem>> -> memref<!tpu.dma_semaphore, #tpu.memory_space<semaphore_mem>>
    tpu.enqueue_dma source(%521 : memref<1x128xf32, #tpu.memory_space<any>>) target(%522 : memref<1x128xf32, #tpu.memory_space<vmem>>) target_semaphore(%524 : memref<!tpu.dma_semaphore, #tpu.memory_space<semaphore_mem>>)
    %c15_i32_412 = arith.constant 15 : i32
    %c0_i32_413 = arith.constant 0 : i32
    %525 = tpu.memref_slice %arg5[%144, %c0_i32_413] : memref<64x128xf32, #tpu.memory_space<any>> -> memref<1x128xf32, #tpu.memory_space<any>>
    %c15_i32_414 = arith.constant 15 : i32
    %c0_i32_415 = arith.constant 0 : i32
    %526 = tpu.memref_slice %arg14[%c15_i32_414, %c0_i32_415] : memref<16x128xf32, #tpu.memory_space<vmem>> -> memref<1x128xf32, #tpu.memory_space<vmem>>
    %527 = tpu.memref_slice %arg15[%c15_i32_412] : memref<16x!tpu.dma_semaphore, #tpu.memory_space<semaphore_mem>> -> memref<1x!tpu.dma_semaphore, #tpu.memory_space<semaphore_mem>>
    %528 = tpu.memref_squeeze %527 : memref<1x!tpu.dma_semaphore, #tpu.memory_space<semaphore_mem>> -> memref<!tpu.dma_semaphore, #tpu.memory_space<semaphore_mem>>
    tpu.enqueue_dma source(%525 : memref<1x128xf32, #tpu.memory_space<any>>) target(%526 : memref<1x128xf32, #tpu.memory_space<vmem>>) target_semaphore(%528 : memref<!tpu.dma_semaphore, #tpu.memory_space<semaphore_mem>>)
    %c0_i32_416 = arith.constant 0 : i32
    %c0_i32_417 = arith.constant 0 : i32
    %529 = tpu.memref_slice %arg4[%3, %c0_i32_417] : memref<64x128xf32, #tpu.memory_space<any>> -> memref<1x128xf32, #tpu.memory_space<any>>
    %c0_i32_418 = arith.constant 0 : i32
    %c0_i32_419 = arith.constant 0 : i32
    %530 = tpu.memref_slice %arg9[%c0_i32_418, %c0_i32_419] : memref<16x128xf32, #tpu.memory_space<vmem>> -> memref<1x128xf32, #tpu.memory_space<vmem>>
    %531 = tpu.memref_slice %arg15[%c0_i32_416] : memref<16x!tpu.dma_semaphore, #tpu.memory_space<semaphore_mem>> -> memref<1x!tpu.dma_semaphore, #tpu.memory_space<semaphore_mem>>
    %532 = tpu.memref_squeeze %531 : memref<1x!tpu.dma_semaphore, #tpu.memory_space<semaphore_mem>> -> memref<!tpu.dma_semaphore, #tpu.memory_space<semaphore_mem>>
    tpu.wait_dma2 semaphore(%532 : memref<!tpu.dma_semaphore, #tpu.memory_space<semaphore_mem>>) src(%529 : memref<1x128xf32, #tpu.memory_space<any>>) dst(%530 : memref<1x128xf32, #tpu.memory_space<vmem>>)
    %c0_i32_420 = arith.constant 0 : i32
    %c0_i32_421 = arith.constant 0 : i32
    %533 = tpu.memref_slice %arg5[%3, %c0_i32_421] : memref<64x128xf32, #tpu.memory_space<any>> -> memref<1x128xf32, #tpu.memory_space<any>>
    %c0_i32_422 = arith.constant 0 : i32
    %c0_i32_423 = arith.constant 0 : i32
    %534 = tpu.memref_slice %arg10[%c0_i32_422, %c0_i32_423] : memref<16x128xf32, #tpu.memory_space<vmem>> -> memref<1x128xf32, #tpu.memory_space<vmem>>
    %535 = tpu.memref_slice %arg15[%c0_i32_420] : memref<16x!tpu.dma_semaphore, #tpu.memory_space<semaphore_mem>> -> memref<1x!tpu.dma_semaphore, #tpu.memory_space<semaphore_mem>>
    %536 = tpu.memref_squeeze %535 : memref<1x!tpu.dma_semaphore, #tpu.memory_space<semaphore_mem>> -> memref<!tpu.dma_semaphore, #tpu.memory_space<semaphore_mem>>
    tpu.wait_dma2 semaphore(%536 : memref<!tpu.dma_semaphore, #tpu.memory_space<semaphore_mem>>) src(%533 : memref<1x128xf32, #tpu.memory_space<any>>) dst(%534 : memref<1x128xf32, #tpu.memory_space<vmem>>)
    %c0_i32_424 = arith.constant 0 : i32
    %c0_i32_425 = arith.constant 0 : i32
    %537 = tpu.memref_slice %arg6[%6, %c0_i32_425] : memref<8x128xf32, #tpu.memory_space<any>> -> memref<1x128xf32, #tpu.memory_space<any>>
    %c0_i32_426 = arith.constant 0 : i32
    %c0_i32_427 = arith.constant 0 : i32
    %538 = tpu.memref_slice %arg11[%c0_i32_426, %c0_i32_427] : memref<16x128xf32, #tpu.memory_space<vmem>> -> memref<1x128xf32, #tpu.memory_space<vmem>>
    %539 = tpu.memref_slice %arg15[%c0_i32_424] : memref<16x!tpu.dma_semaphore, #tpu.memory_space<semaphore_mem>> -> memref<1x!tpu.dma_semaphore, #tpu.memory_space<semaphore_mem>>
    %540 = tpu.memref_squeeze %539 : memref<1x!tpu.dma_semaphore, #tpu.memory_space<semaphore_mem>> -> memref<!tpu.dma_semaphore, #tpu.memory_space<semaphore_mem>>
    tpu.wait_dma2 semaphore(%540 : memref<!tpu.dma_semaphore, #tpu.memory_space<semaphore_mem>>) src(%537 : memref<1x128xf32, #tpu.memory_space<any>>) dst(%538 : memref<1x128xf32, #tpu.memory_space<vmem>>)
    %c0_i32_428 = arith.constant 0 : i32
    %c0_i32_429 = arith.constant 0 : i32
    %541 = tpu.memref_slice %arg7[%6, %c0_i32_429] : memref<8x128xf32, #tpu.memory_space<any>> -> memref<1x128xf32, #tpu.memory_space<any>>
    %c0_i32_430 = arith.constant 0 : i32
    %c0_i32_431 = arith.constant 0 : i32
    %542 = tpu.memref_slice %arg12[%c0_i32_430, %c0_i32_431] : memref<16x128xf32, #tpu.memory_space<vmem>> -> memref<1x128xf32, #tpu.memory_space<vmem>>
    %543 = tpu.memref_slice %arg15[%c0_i32_428] : memref<16x!tpu.dma_semaphore, #tpu.memory_space<semaphore_mem>> -> memref<1x!tpu.dma_semaphore, #tpu.memory_space<semaphore_mem>>
    %544 = tpu.memref_squeeze %543 : memref<1x!tpu.dma_semaphore, #tpu.memory_space<semaphore_mem>> -> memref<!tpu.dma_semaphore, #tpu.memory_space<semaphore_mem>>
    tpu.wait_dma2 semaphore(%544 : memref<!tpu.dma_semaphore, #tpu.memory_space<semaphore_mem>>) src(%541 : memref<1x128xf32, #tpu.memory_space<any>>) dst(%542 : memref<1x128xf32, #tpu.memory_space<vmem>>)
    %c0_i32_432 = arith.constant 0 : i32
    %c0_i32_433 = arith.constant 0 : i32
    %545 = tpu.memref_slice %arg4[%9, %c0_i32_433] : memref<64x128xf32, #tpu.memory_space<any>> -> memref<1x128xf32, #tpu.memory_space<any>>
    %c0_i32_434 = arith.constant 0 : i32
    %c0_i32_435 = arith.constant 0 : i32
    %546 = tpu.memref_slice %arg13[%c0_i32_434, %c0_i32_435] : memref<16x128xf32, #tpu.memory_space<vmem>> -> memref<1x128xf32, #tpu.memory_space<vmem>>
    %547 = tpu.memref_slice %arg15[%c0_i32_432] : memref<16x!tpu.dma_semaphore, #tpu.memory_space<semaphore_mem>> -> memref<1x!tpu.dma_semaphore, #tpu.memory_space<semaphore_mem>>
    %548 = tpu.memref_squeeze %547 : memref<1x!tpu.dma_semaphore, #tpu.memory_space<semaphore_mem>> -> memref<!tpu.dma_semaphore, #tpu.memory_space<semaphore_mem>>
    tpu.wait_dma2 semaphore(%548 : memref<!tpu.dma_semaphore, #tpu.memory_space<semaphore_mem>>) src(%545 : memref<1x128xf32, #tpu.memory_space<any>>) dst(%546 : memref<1x128xf32, #tpu.memory_space<vmem>>)
    %c0_i32_436 = arith.constant 0 : i32
    %c0_i32_437 = arith.constant 0 : i32
    %549 = tpu.memref_slice %arg5[%9, %c0_i32_437] : memref<64x128xf32, #tpu.memory_space<any>> -> memref<1x128xf32, #tpu.memory_space<any>>
    %c0_i32_438 = arith.constant 0 : i32
    %c0_i32_439 = arith.constant 0 : i32
    %550 = tpu.memref_slice %arg14[%c0_i32_438, %c0_i32_439] : memref<16x128xf32, #tpu.memory_space<vmem>> -> memref<1x128xf32, #tpu.memory_space<vmem>>
    %551 = tpu.memref_slice %arg15[%c0_i32_436] : memref<16x!tpu.dma_semaphore, #tpu.memory_space<semaphore_mem>> -> memref<1x!tpu.dma_semaphore, #tpu.memory_space<semaphore_mem>>
    %552 = tpu.memref_squeeze %551 : memref<1x!tpu.dma_semaphore, #tpu.memory_space<semaphore_mem>> -> memref<!tpu.dma_semaphore, #tpu.memory_space<semaphore_mem>>
    tpu.wait_dma2 semaphore(%552 : memref<!tpu.dma_semaphore, #tpu.memory_space<semaphore_mem>>) src(%549 : memref<1x128xf32, #tpu.memory_space<any>>) dst(%550 : memref<1x128xf32, #tpu.memory_space<vmem>>)
    %c1_i32_440 = arith.constant 1 : i32
    %c0_i32_441 = arith.constant 0 : i32
    %553 = tpu.memref_slice %arg4[%12, %c0_i32_441] : memref<64x128xf32, #tpu.memory_space<any>> -> memref<1x128xf32, #tpu.memory_space<any>>
    %c1_i32_442 = arith.constant 1 : i32
    %c0_i32_443 = arith.constant 0 : i32
    %554 = tpu.memref_slice %arg9[%c1_i32_442, %c0_i32_443] : memref<16x128xf32, #tpu.memory_space<vmem>> -> memref<1x128xf32, #tpu.memory_space<vmem>>
    %555 = tpu.memref_slice %arg15[%c1_i32_440] : memref<16x!tpu.dma_semaphore, #tpu.memory_space<semaphore_mem>> -> memref<1x!tpu.dma_semaphore, #tpu.memory_space<semaphore_mem>>
    %556 = tpu.memref_squeeze %555 : memref<1x!tpu.dma_semaphore, #tpu.memory_space<semaphore_mem>> -> memref<!tpu.dma_semaphore, #tpu.memory_space<semaphore_mem>>
    tpu.wait_dma2 semaphore(%556 : memref<!tpu.dma_semaphore, #tpu.memory_space<semaphore_mem>>) src(%553 : memref<1x128xf32, #tpu.memory_space<any>>) dst(%554 : memref<1x128xf32, #tpu.memory_space<vmem>>)
    %c1_i32_444 = arith.constant 1 : i32
    %c0_i32_445 = arith.constant 0 : i32
    %557 = tpu.memref_slice %arg5[%12, %c0_i32_445] : memref<64x128xf32, #tpu.memory_space<any>> -> memref<1x128xf32, #tpu.memory_space<any>>
    %c1_i32_446 = arith.constant 1 : i32
    %c0_i32_447 = arith.constant 0 : i32
    %558 = tpu.memref_slice %arg10[%c1_i32_446, %c0_i32_447] : memref<16x128xf32, #tpu.memory_space<vmem>> -> memref<1x128xf32, #tpu.memory_space<vmem>>
    %559 = tpu.memref_slice %arg15[%c1_i32_444] : memref<16x!tpu.dma_semaphore, #tpu.memory_space<semaphore_mem>> -> memref<1x!tpu.dma_semaphore, #tpu.memory_space<semaphore_mem>>
    %560 = tpu.memref_squeeze %559 : memref<1x!tpu.dma_semaphore, #tpu.memory_space<semaphore_mem>> -> memref<!tpu.dma_semaphore, #tpu.memory_space<semaphore_mem>>
    tpu.wait_dma2 semaphore(%560 : memref<!tpu.dma_semaphore, #tpu.memory_space<semaphore_mem>>) src(%557 : memref<1x128xf32, #tpu.memory_space<any>>) dst(%558 : memref<1x128xf32, #tpu.memory_space<vmem>>)
    %c1_i32_448 = arith.constant 1 : i32
    %c0_i32_449 = arith.constant 0 : i32
    %561 = tpu.memref_slice %arg6[%15, %c0_i32_449] : memref<8x128xf32, #tpu.memory_space<any>> -> memref<1x128xf32, #tpu.memory_space<any>>
    %c1_i32_450 = arith.constant 1 : i32
    %c0_i32_451 = arith.constant 0 : i32
    %562 = tpu.memref_slice %arg11[%c1_i32_450, %c0_i32_451] : memref<16x128xf32, #tpu.memory_space<vmem>> -> memref<1x128xf32, #tpu.memory_space<vmem>>
    %563 = tpu.memref_slice %arg15[%c1_i32_448] : memref<16x!tpu.dma_semaphore, #tpu.memory_space<semaphore_mem>> -> memref<1x!tpu.dma_semaphore, #tpu.memory_space<semaphore_mem>>
    %564 = tpu.memref_squeeze %563 : memref<1x!tpu.dma_semaphore, #tpu.memory_space<semaphore_mem>> -> memref<!tpu.dma_semaphore, #tpu.memory_space<semaphore_mem>>
    tpu.wait_dma2 semaphore(%564 : memref<!tpu.dma_semaphore, #tpu.memory_space<semaphore_mem>>) src(%561 : memref<1x128xf32, #tpu.memory_space<any>>) dst(%562 : memref<1x128xf32, #tpu.memory_space<vmem>>)
    %c1_i32_452 = arith.constant 1 : i32
    %c0_i32_453 = arith.constant 0 : i32
    %565 = tpu.memref_slice %arg7[%15, %c0_i32_453] : memref<8x128xf32, #tpu.memory_space<any>> -> memref<1x128xf32, #tpu.memory_space<any>>
    %c1_i32_454 = arith.constant 1 : i32
    %c0_i32_455 = arith.constant 0 : i32
    %566 = tpu.memref_slice %arg12[%c1_i32_454, %c0_i32_455] : memref<16x128xf32, #tpu.memory_space<vmem>> -> memref<1x128xf32, #tpu.memory_space<vmem>>
    %567 = tpu.memref_slice %arg15[%c1_i32_452] : memref<16x!tpu.dma_semaphore, #tpu.memory_space<semaphore_mem>> -> memref<1x!tpu.dma_semaphore, #tpu.memory_space<semaphore_mem>>
    %568 = tpu.memref_squeeze %567 : memref<1x!tpu.dma_semaphore, #tpu.memory_space<semaphore_mem>> -> memref<!tpu.dma_semaphore, #tpu.memory_space<semaphore_mem>>
    tpu.wait_dma2 semaphore(%568 : memref<!tpu.dma_semaphore, #tpu.memory_space<semaphore_mem>>) src(%565 : memref<1x128xf32, #tpu.memory_space<any>>) dst(%566 : memref<1x128xf32, #tpu.memory_space<vmem>>)
    %c1_i32_456 = arith.constant 1 : i32
    %c0_i32_457 = arith.constant 0 : i32
    %569 = tpu.memref_slice %arg4[%18, %c0_i32_457] : memref<64x128xf32, #tpu.memory_space<any>> -> memref<1x128xf32, #tpu.memory_space<any>>
    %c1_i32_458 = arith.constant 1 : i32
    %c0_i32_459 = arith.constant 0 : i32
    %570 = tpu.memref_slice %arg13[%c1_i32_458, %c0_i32_459] : memref<16x128xf32, #tpu.memory_space<vmem>> -> memref<1x128xf32, #tpu.memory_space<vmem>>
    %571 = tpu.memref_slice %arg15[%c1_i32_456] : memref<16x!tpu.dma_semaphore, #tpu.memory_space<semaphore_mem>> -> memref<1x!tpu.dma_semaphore, #tpu.memory_space<semaphore_mem>>
    %572 = tpu.memref_squeeze %571 : memref<1x!tpu.dma_semaphore, #tpu.memory_space<semaphore_mem>> -> memref<!tpu.dma_semaphore, #tpu.memory_space<semaphore_mem>>
    tpu.wait_dma2 semaphore(%572 : memref<!tpu.dma_semaphore, #tpu.memory_space<semaphore_mem>>) src(%569 : memref<1x128xf32, #tpu.memory_space<any>>) dst(%570 : memref<1x128xf32, #tpu.memory_space<vmem>>)
    %c1_i32_460 = arith.constant 1 : i32
    %c0_i32_461 = arith.constant 0 : i32
    %573 = tpu.memref_slice %arg5[%18, %c0_i32_461] : memref<64x128xf32, #tpu.memory_space<any>> -> memref<1x128xf32, #tpu.memory_space<any>>
    %c1_i32_462 = arith.constant 1 : i32
    %c0_i32_463 = arith.constant 0 : i32
    %574 = tpu.memref_slice %arg14[%c1_i32_462, %c0_i32_463] : memref<16x128xf32, #tpu.memory_space<vmem>> -> memref<1x128xf32, #tpu.memory_space<vmem>>
    %575 = tpu.memref_slice %arg15[%c1_i32_460] : memref<16x!tpu.dma_semaphore, #tpu.memory_space<semaphore_mem>> -> memref<1x!tpu.dma_semaphore, #tpu.memory_space<semaphore_mem>>
    %576 = tpu.memref_squeeze %575 : memref<1x!tpu.dma_semaphore, #tpu.memory_space<semaphore_mem>> -> memref<!tpu.dma_semaphore, #tpu.memory_space<semaphore_mem>>
    tpu.wait_dma2 semaphore(%576 : memref<!tpu.dma_semaphore, #tpu.memory_space<semaphore_mem>>) src(%573 : memref<1x128xf32, #tpu.memory_space<any>>) dst(%574 : memref<1x128xf32, #tpu.memory_space<vmem>>)
    %c2_i32_464 = arith.constant 2 : i32
    %c0_i32_465 = arith.constant 0 : i32
    %577 = tpu.memref_slice %arg4[%21, %c0_i32_465] : memref<64x128xf32, #tpu.memory_space<any>> -> memref<1x128xf32, #tpu.memory_space<any>>
    %c2_i32_466 = arith.constant 2 : i32
    %c0_i32_467 = arith.constant 0 : i32
    %578 = tpu.memref_slice %arg9[%c2_i32_466, %c0_i32_467] : memref<16x128xf32, #tpu.memory_space<vmem>> -> memref<1x128xf32, #tpu.memory_space<vmem>>
    %579 = tpu.memref_slice %arg15[%c2_i32_464] : memref<16x!tpu.dma_semaphore, #tpu.memory_space<semaphore_mem>> -> memref<1x!tpu.dma_semaphore, #tpu.memory_space<semaphore_mem>>
    %580 = tpu.memref_squeeze %579 : memref<1x!tpu.dma_semaphore, #tpu.memory_space<semaphore_mem>> -> memref<!tpu.dma_semaphore, #tpu.memory_space<semaphore_mem>>
    tpu.wait_dma2 semaphore(%580 : memref<!tpu.dma_semaphore, #tpu.memory_space<semaphore_mem>>) src(%577 : memref<1x128xf32, #tpu.memory_space<any>>) dst(%578 : memref<1x128xf32, #tpu.memory_space<vmem>>)
    %c2_i32_468 = arith.constant 2 : i32
    %c0_i32_469 = arith.constant 0 : i32
    %581 = tpu.memref_slice %arg5[%21, %c0_i32_469] : memref<64x128xf32, #tpu.memory_space<any>> -> memref<1x128xf32, #tpu.memory_space<any>>
    %c2_i32_470 = arith.constant 2 : i32
    %c0_i32_471 = arith.constant 0 : i32
    %582 = tpu.memref_slice %arg10[%c2_i32_470, %c0_i32_471] : memref<16x128xf32, #tpu.memory_space<vmem>> -> memref<1x128xf32, #tpu.memory_space<vmem>>
    %583 = tpu.memref_slice %arg15[%c2_i32_468] : memref<16x!tpu.dma_semaphore, #tpu.memory_space<semaphore_mem>> -> memref<1x!tpu.dma_semaphore, #tpu.memory_space<semaphore_mem>>
    %584 = tpu.memref_squeeze %583 : memref<1x!tpu.dma_semaphore, #tpu.memory_space<semaphore_mem>> -> memref<!tpu.dma_semaphore, #tpu.memory_space<semaphore_mem>>
    tpu.wait_dma2 semaphore(%584 : memref<!tpu.dma_semaphore, #tpu.memory_space<semaphore_mem>>) src(%581 : memref<1x128xf32, #tpu.memory_space<any>>) dst(%582 : memref<1x128xf32, #tpu.memory_space<vmem>>)
    %c2_i32_472 = arith.constant 2 : i32
    %c0_i32_473 = arith.constant 0 : i32
    %585 = tpu.memref_slice %arg6[%24, %c0_i32_473] : memref<8x128xf32, #tpu.memory_space<any>> -> memref<1x128xf32, #tpu.memory_space<any>>
    %c2_i32_474 = arith.constant 2 : i32
    %c0_i32_475 = arith.constant 0 : i32
    %586 = tpu.memref_slice %arg11[%c2_i32_474, %c0_i32_475] : memref<16x128xf32, #tpu.memory_space<vmem>> -> memref<1x128xf32, #tpu.memory_space<vmem>>
    %587 = tpu.memref_slice %arg15[%c2_i32_472] : memref<16x!tpu.dma_semaphore, #tpu.memory_space<semaphore_mem>> -> memref<1x!tpu.dma_semaphore, #tpu.memory_space<semaphore_mem>>
    %588 = tpu.memref_squeeze %587 : memref<1x!tpu.dma_semaphore, #tpu.memory_space<semaphore_mem>> -> memref<!tpu.dma_semaphore, #tpu.memory_space<semaphore_mem>>
    tpu.wait_dma2 semaphore(%588 : memref<!tpu.dma_semaphore, #tpu.memory_space<semaphore_mem>>) src(%585 : memref<1x128xf32, #tpu.memory_space<any>>) dst(%586 : memref<1x128xf32, #tpu.memory_space<vmem>>)
    %c2_i32_476 = arith.constant 2 : i32
    %c0_i32_477 = arith.constant 0 : i32
    %589 = tpu.memref_slice %arg7[%24, %c0_i32_477] : memref<8x128xf32, #tpu.memory_space<any>> -> memref<1x128xf32, #tpu.memory_space<any>>
    %c2_i32_478 = arith.constant 2 : i32
    %c0_i32_479 = arith.constant 0 : i32
    %590 = tpu.memref_slice %arg12[%c2_i32_478, %c0_i32_479] : memref<16x128xf32, #tpu.memory_space<vmem>> -> memref<1x128xf32, #tpu.memory_space<vmem>>
    %591 = tpu.memref_slice %arg15[%c2_i32_476] : memref<16x!tpu.dma_semaphore, #tpu.memory_space<semaphore_mem>> -> memref<1x!tpu.dma_semaphore, #tpu.memory_space<semaphore_mem>>
    %592 = tpu.memref_squeeze %591 : memref<1x!tpu.dma_semaphore, #tpu.memory_space<semaphore_mem>> -> memref<!tpu.dma_semaphore, #tpu.memory_space<semaphore_mem>>
    tpu.wait_dma2 semaphore(%592 : memref<!tpu.dma_semaphore, #tpu.memory_space<semaphore_mem>>) src(%589 : memref<1x128xf32, #tpu.memory_space<any>>) dst(%590 : memref<1x128xf32, #tpu.memory_space<vmem>>)
    %c2_i32_480 = arith.constant 2 : i32
    %c0_i32_481 = arith.constant 0 : i32
    %593 = tpu.memref_slice %arg4[%27, %c0_i32_481] : memref<64x128xf32, #tpu.memory_space<any>> -> memref<1x128xf32, #tpu.memory_space<any>>
    %c2_i32_482 = arith.constant 2 : i32
    %c0_i32_483 = arith.constant 0 : i32
    %594 = tpu.memref_slice %arg13[%c2_i32_482, %c0_i32_483] : memref<16x128xf32, #tpu.memory_space<vmem>> -> memref<1x128xf32, #tpu.memory_space<vmem>>
    %595 = tpu.memref_slice %arg15[%c2_i32_480] : memref<16x!tpu.dma_semaphore, #tpu.memory_space<semaphore_mem>> -> memref<1x!tpu.dma_semaphore, #tpu.memory_space<semaphore_mem>>
    %596 = tpu.memref_squeeze %595 : memref<1x!tpu.dma_semaphore, #tpu.memory_space<semaphore_mem>> -> memref<!tpu.dma_semaphore, #tpu.memory_space<semaphore_mem>>
    tpu.wait_dma2 semaphore(%596 : memref<!tpu.dma_semaphore, #tpu.memory_space<semaphore_mem>>) src(%593 : memref<1x128xf32, #tpu.memory_space<any>>) dst(%594 : memref<1x128xf32, #tpu.memory_space<vmem>>)
    %c2_i32_484 = arith.constant 2 : i32
    %c0_i32_485 = arith.constant 0 : i32
    %597 = tpu.memref_slice %arg5[%27, %c0_i32_485] : memref<64x128xf32, #tpu.memory_space<any>> -> memref<1x128xf32, #tpu.memory_space<any>>
    %c2_i32_486 = arith.constant 2 : i32
    %c0_i32_487 = arith.constant 0 : i32
    %598 = tpu.memref_slice %arg14[%c2_i32_486, %c0_i32_487] : memref<16x128xf32, #tpu.memory_space<vmem>> -> memref<1x128xf32, #tpu.memory_space<vmem>>
    %599 = tpu.memref_slice %arg15[%c2_i32_484] : memref<16x!tpu.dma_semaphore, #tpu.memory_space<semaphore_mem>> -> memref<1x!tpu.dma_semaphore, #tpu.memory_space<semaphore_mem>>
    %600 = tpu.memref_squeeze %599 : memref<1x!tpu.dma_semaphore, #tpu.memory_space<semaphore_mem>> -> memref<!tpu.dma_semaphore, #tpu.memory_space<semaphore_mem>>
    tpu.wait_dma2 semaphore(%600 : memref<!tpu.dma_semaphore, #tpu.memory_space<semaphore_mem>>) src(%597 : memref<1x128xf32, #tpu.memory_space<any>>) dst(%598 : memref<1x128xf32, #tpu.memory_space<vmem>>)
    %c3_i32_488 = arith.constant 3 : i32
    %c0_i32_489 = arith.constant 0 : i32
    %601 = tpu.memref_slice %arg4[%30, %c0_i32_489] : memref<64x128xf32, #tpu.memory_space<any>> -> memref<1x128xf32, #tpu.memory_space<any>>
    %c3_i32_490 = arith.constant 3 : i32
    %c0_i32_491 = arith.constant 0 : i32
    %602 = tpu.memref_slice %arg9[%c3_i32_490, %c0_i32_491] : memref<16x128xf32, #tpu.memory_space<vmem>> -> memref<1x128xf32, #tpu.memory_space<vmem>>
    %603 = tpu.memref_slice %arg15[%c3_i32_488] : memref<16x!tpu.dma_semaphore, #tpu.memory_space<semaphore_mem>> -> memref<1x!tpu.dma_semaphore, #tpu.memory_space<semaphore_mem>>
    %604 = tpu.memref_squeeze %603 : memref<1x!tpu.dma_semaphore, #tpu.memory_space<semaphore_mem>> -> memref<!tpu.dma_semaphore, #tpu.memory_space<semaphore_mem>>
    tpu.wait_dma2 semaphore(%604 : memref<!tpu.dma_semaphore, #tpu.memory_space<semaphore_mem>>) src(%601 : memref<1x128xf32, #tpu.memory_space<any>>) dst(%602 : memref<1x128xf32, #tpu.memory_space<vmem>>)
    %c3_i32_492 = arith.constant 3 : i32
    %c0_i32_493 = arith.constant 0 : i32
    %605 = tpu.memref_slice %arg5[%30, %c0_i32_493] : memref<64x128xf32, #tpu.memory_space<any>> -> memref<1x128xf32, #tpu.memory_space<any>>
    %c3_i32_494 = arith.constant 3 : i32
    %c0_i32_495 = arith.constant 0 : i32
    %606 = tpu.memref_slice %arg10[%c3_i32_494, %c0_i32_495] : memref<16x128xf32, #tpu.memory_space<vmem>> -> memref<1x128xf32, #tpu.memory_space<vmem>>
    %607 = tpu.memref_slice %arg15[%c3_i32_492] : memref<16x!tpu.dma_semaphore, #tpu.memory_space<semaphore_mem>> -> memref<1x!tpu.dma_semaphore, #tpu.memory_space<semaphore_mem>>
    %608 = tpu.memref_squeeze %607 : memref<1x!tpu.dma_semaphore, #tpu.memory_space<semaphore_mem>> -> memref<!tpu.dma_semaphore, #tpu.memory_space<semaphore_mem>>
    tpu.wait_dma2 semaphore(%608 : memref<!tpu.dma_semaphore, #tpu.memory_space<semaphore_mem>>) src(%605 : memref<1x128xf32, #tpu.memory_space<any>>) dst(%606 : memref<1x128xf32, #tpu.memory_space<vmem>>)
    %c3_i32_496 = arith.constant 3 : i32
    %c0_i32_497 = arith.constant 0 : i32
    %609 = tpu.memref_slice %arg6[%33, %c0_i32_497] : memref<8x128xf32, #tpu.memory_space<any>> -> memref<1x128xf32, #tpu.memory_space<any>>
    %c3_i32_498 = arith.constant 3 : i32
    %c0_i32_499 = arith.constant 0 : i32
    %610 = tpu.memref_slice %arg11[%c3_i32_498, %c0_i32_499] : memref<16x128xf32, #tpu.memory_space<vmem>> -> memref<1x128xf32, #tpu.memory_space<vmem>>
    %611 = tpu.memref_slice %arg15[%c3_i32_496] : memref<16x!tpu.dma_semaphore, #tpu.memory_space<semaphore_mem>> -> memref<1x!tpu.dma_semaphore, #tpu.memory_space<semaphore_mem>>
    %612 = tpu.memref_squeeze %611 : memref<1x!tpu.dma_semaphore, #tpu.memory_space<semaphore_mem>> -> memref<!tpu.dma_semaphore, #tpu.memory_space<semaphore_mem>>
    tpu.wait_dma2 semaphore(%612 : memref<!tpu.dma_semaphore, #tpu.memory_space<semaphore_mem>>) src(%609 : memref<1x128xf32, #tpu.memory_space<any>>) dst(%610 : memref<1x128xf32, #tpu.memory_space<vmem>>)
    %c3_i32_500 = arith.constant 3 : i32
    %c0_i32_501 = arith.constant 0 : i32
    %613 = tpu.memref_slice %arg7[%33, %c0_i32_501] : memref<8x128xf32, #tpu.memory_space<any>> -> memref<1x128xf32, #tpu.memory_space<any>>
    %c3_i32_502 = arith.constant 3 : i32
    %c0_i32_503 = arith.constant 0 : i32
    %614 = tpu.memref_slice %arg12[%c3_i32_502, %c0_i32_503] : memref<16x128xf32, #tpu.memory_space<vmem>> -> memref<1x128xf32, #tpu.memory_space<vmem>>
    %615 = tpu.memref_slice %arg15[%c3_i32_500] : memref<16x!tpu.dma_semaphore, #tpu.memory_space<semaphore_mem>> -> memref<1x!tpu.dma_semaphore, #tpu.memory_space<semaphore_mem>>
    %616 = tpu.memref_squeeze %615 : memref<1x!tpu.dma_semaphore, #tpu.memory_space<semaphore_mem>> -> memref<!tpu.dma_semaphore, #tpu.memory_space<semaphore_mem>>
    tpu.wait_dma2 semaphore(%616 : memref<!tpu.dma_semaphore, #tpu.memory_space<semaphore_mem>>) src(%613 : memref<1x128xf32, #tpu.memory_space<any>>) dst(%614 : memref<1x128xf32, #tpu.memory_space<vmem>>)
    %c3_i32_504 = arith.constant 3 : i32
    %c0_i32_505 = arith.constant 0 : i32
    %617 = tpu.memref_slice %arg4[%36, %c0_i32_505] : memref<64x128xf32, #tpu.memory_space<any>> -> memref<1x128xf32, #tpu.memory_space<any>>
    %c3_i32_506 = arith.constant 3 : i32
    %c0_i32_507 = arith.constant 0 : i32
    %618 = tpu.memref_slice %arg13[%c3_i32_506, %c0_i32_507] : memref<16x128xf32, #tpu.memory_space<vmem>> -> memref<1x128xf32, #tpu.memory_space<vmem>>
    %619 = tpu.memref_slice %arg15[%c3_i32_504] : memref<16x!tpu.dma_semaphore, #tpu.memory_space<semaphore_mem>> -> memref<1x!tpu.dma_semaphore, #tpu.memory_space<semaphore_mem>>
    %620 = tpu.memref_squeeze %619 : memref<1x!tpu.dma_semaphore, #tpu.memory_space<semaphore_mem>> -> memref<!tpu.dma_semaphore, #tpu.memory_space<semaphore_mem>>
    tpu.wait_dma2 semaphore(%620 : memref<!tpu.dma_semaphore, #tpu.memory_space<semaphore_mem>>) src(%617 : memref<1x128xf32, #tpu.memory_space<any>>) dst(%618 : memref<1x128xf32, #tpu.memory_space<vmem>>)
    %c3_i32_508 = arith.constant 3 : i32
    %c0_i32_509 = arith.constant 0 : i32
    %621 = tpu.memref_slice %arg5[%36, %c0_i32_509] : memref<64x128xf32, #tpu.memory_space<any>> -> memref<1x128xf32, #tpu.memory_space<any>>
    %c3_i32_510 = arith.constant 3 : i32
    %c0_i32_511 = arith.constant 0 : i32
    %622 = tpu.memref_slice %arg14[%c3_i32_510, %c0_i32_511] : memref<16x128xf32, #tpu.memory_space<vmem>> -> memref<1x128xf32, #tpu.memory_space<vmem>>
    %623 = tpu.memref_slice %arg15[%c3_i32_508] : memref<16x!tpu.dma_semaphore, #tpu.memory_space<semaphore_mem>> -> memref<1x!tpu.dma_semaphore, #tpu.memory_space<semaphore_mem>>
    %624 = tpu.memref_squeeze %623 : memref<1x!tpu.dma_semaphore, #tpu.memory_space<semaphore_mem>> -> memref<!tpu.dma_semaphore, #tpu.memory_space<semaphore_mem>>
    tpu.wait_dma2 semaphore(%624 : memref<!tpu.dma_semaphore, #tpu.memory_space<semaphore_mem>>) src(%621 : memref<1x128xf32, #tpu.memory_space<any>>) dst(%622 : memref<1x128xf32, #tpu.memory_space<vmem>>)
    %c4_i32_512 = arith.constant 4 : i32
    %c0_i32_513 = arith.constant 0 : i32
    %625 = tpu.memref_slice %arg4[%39, %c0_i32_513] : memref<64x128xf32, #tpu.memory_space<any>> -> memref<1x128xf32, #tpu.memory_space<any>>
    %c4_i32_514 = arith.constant 4 : i32
    %c0_i32_515 = arith.constant 0 : i32
    %626 = tpu.memref_slice %arg9[%c4_i32_514, %c0_i32_515] : memref<16x128xf32, #tpu.memory_space<vmem>> -> memref<1x128xf32, #tpu.memory_space<vmem>>
    %627 = tpu.memref_slice %arg15[%c4_i32_512] : memref<16x!tpu.dma_semaphore, #tpu.memory_space<semaphore_mem>> -> memref<1x!tpu.dma_semaphore, #tpu.memory_space<semaphore_mem>>
    %628 = tpu.memref_squeeze %627 : memref<1x!tpu.dma_semaphore, #tpu.memory_space<semaphore_mem>> -> memref<!tpu.dma_semaphore, #tpu.memory_space<semaphore_mem>>
    tpu.wait_dma2 semaphore(%628 : memref<!tpu.dma_semaphore, #tpu.memory_space<semaphore_mem>>) src(%625 : memref<1x128xf32, #tpu.memory_space<any>>) dst(%626 : memref<1x128xf32, #tpu.memory_space<vmem>>)
    %c4_i32_516 = arith.constant 4 : i32
    %c0_i32_517 = arith.constant 0 : i32
    %629 = tpu.memref_slice %arg5[%39, %c0_i32_517] : memref<64x128xf32, #tpu.memory_space<any>> -> memref<1x128xf32, #tpu.memory_space<any>>
    %c4_i32_518 = arith.constant 4 : i32
    %c0_i32_519 = arith.constant 0 : i32
    %630 = tpu.memref_slice %arg10[%c4_i32_518, %c0_i32_519] : memref<16x128xf32, #tpu.memory_space<vmem>> -> memref<1x128xf32, #tpu.memory_space<vmem>>
    %631 = tpu.memref_slice %arg15[%c4_i32_516] : memref<16x!tpu.dma_semaphore, #tpu.memory_space<semaphore_mem>> -> memref<1x!tpu.dma_semaphore, #tpu.memory_space<semaphore_mem>>
    %632 = tpu.memref_squeeze %631 : memref<1x!tpu.dma_semaphore, #tpu.memory_space<semaphore_mem>> -> memref<!tpu.dma_semaphore, #tpu.memory_space<semaphore_mem>>
    tpu.wait_dma2 semaphore(%632 : memref<!tpu.dma_semaphore, #tpu.memory_space<semaphore_mem>>) src(%629 : memref<1x128xf32, #tpu.memory_space<any>>) dst(%630 : memref<1x128xf32, #tpu.memory_space<vmem>>)
    %c4_i32_520 = arith.constant 4 : i32
    %c0_i32_521 = arith.constant 0 : i32
    %633 = tpu.memref_slice %arg6[%42, %c0_i32_521] : memref<8x128xf32, #tpu.memory_space<any>> -> memref<1x128xf32, #tpu.memory_space<any>>
    %c4_i32_522 = arith.constant 4 : i32
    %c0_i32_523 = arith.constant 0 : i32
    %634 = tpu.memref_slice %arg11[%c4_i32_522, %c0_i32_523] : memref<16x128xf32, #tpu.memory_space<vmem>> -> memref<1x128xf32, #tpu.memory_space<vmem>>
    %635 = tpu.memref_slice %arg15[%c4_i32_520] : memref<16x!tpu.dma_semaphore, #tpu.memory_space<semaphore_mem>> -> memref<1x!tpu.dma_semaphore, #tpu.memory_space<semaphore_mem>>
    %636 = tpu.memref_squeeze %635 : memref<1x!tpu.dma_semaphore, #tpu.memory_space<semaphore_mem>> -> memref<!tpu.dma_semaphore, #tpu.memory_space<semaphore_mem>>
    tpu.wait_dma2 semaphore(%636 : memref<!tpu.dma_semaphore, #tpu.memory_space<semaphore_mem>>) src(%633 : memref<1x128xf32, #tpu.memory_space<any>>) dst(%634 : memref<1x128xf32, #tpu.memory_space<vmem>>)
    %c4_i32_524 = arith.constant 4 : i32
    %c0_i32_525 = arith.constant 0 : i32
    %637 = tpu.memref_slice %arg7[%42, %c0_i32_525] : memref<8x128xf32, #tpu.memory_space<any>> -> memref<1x128xf32, #tpu.memory_space<any>>
    %c4_i32_526 = arith.constant 4 : i32
    %c0_i32_527 = arith.constant 0 : i32
    %638 = tpu.memref_slice %arg12[%c4_i32_526, %c0_i32_527] : memref<16x128xf32, #tpu.memory_space<vmem>> -> memref<1x128xf32, #tpu.memory_space<vmem>>
    %639 = tpu.memref_slice %arg15[%c4_i32_524] : memref<16x!tpu.dma_semaphore, #tpu.memory_space<semaphore_mem>> -> memref<1x!tpu.dma_semaphore, #tpu.memory_space<semaphore_mem>>
    %640 = tpu.memref_squeeze %639 : memref<1x!tpu.dma_semaphore, #tpu.memory_space<semaphore_mem>> -> memref<!tpu.dma_semaphore, #tpu.memory_space<semaphore_mem>>
    tpu.wait_dma2 semaphore(%640 : memref<!tpu.dma_semaphore, #tpu.memory_space<semaphore_mem>>) src(%637 : memref<1x128xf32, #tpu.memory_space<any>>) dst(%638 : memref<1x128xf32, #tpu.memory_space<vmem>>)
    %c4_i32_528 = arith.constant 4 : i32
    %c0_i32_529 = arith.constant 0 : i32
    %641 = tpu.memref_slice %arg4[%45, %c0_i32_529] : memref<64x128xf32, #tpu.memory_space<any>> -> memref<1x128xf32, #tpu.memory_space<any>>
    %c4_i32_530 = arith.constant 4 : i32
    %c0_i32_531 = arith.constant 0 : i32
    %642 = tpu.memref_slice %arg13[%c4_i32_530, %c0_i32_531] : memref<16x128xf32, #tpu.memory_space<vmem>> -> memref<1x128xf32, #tpu.memory_space<vmem>>
    %643 = tpu.memref_slice %arg15[%c4_i32_528] : memref<16x!tpu.dma_semaphore, #tpu.memory_space<semaphore_mem>> -> memref<1x!tpu.dma_semaphore, #tpu.memory_space<semaphore_mem>>
    %644 = tpu.memref_squeeze %643 : memref<1x!tpu.dma_semaphore, #tpu.memory_space<semaphore_mem>> -> memref<!tpu.dma_semaphore, #tpu.memory_space<semaphore_mem>>
    tpu.wait_dma2 semaphore(%644 : memref<!tpu.dma_semaphore, #tpu.memory_space<semaphore_mem>>) src(%641 : memref<1x128xf32, #tpu.memory_space<any>>) dst(%642 : memref<1x128xf32, #tpu.memory_space<vmem>>)
    %c4_i32_532 = arith.constant 4 : i32
    %c0_i32_533 = arith.constant 0 : i32
    %645 = tpu.memref_slice %arg5[%45, %c0_i32_533] : memref<64x128xf32, #tpu.memory_space<any>> -> memref<1x128xf32, #tpu.memory_space<any>>
    %c4_i32_534 = arith.constant 4 : i32
    %c0_i32_535 = arith.constant 0 : i32
    %646 = tpu.memref_slice %arg14[%c4_i32_534, %c0_i32_535] : memref<16x128xf32, #tpu.memory_space<vmem>> -> memref<1x128xf32, #tpu.memory_space<vmem>>
    %647 = tpu.memref_slice %arg15[%c4_i32_532] : memref<16x!tpu.dma_semaphore, #tpu.memory_space<semaphore_mem>> -> memref<1x!tpu.dma_semaphore, #tpu.memory_space<semaphore_mem>>
    %648 = tpu.memref_squeeze %647 : memref<1x!tpu.dma_semaphore, #tpu.memory_space<semaphore_mem>> -> memref<!tpu.dma_semaphore, #tpu.memory_space<semaphore_mem>>
    tpu.wait_dma2 semaphore(%648 : memref<!tpu.dma_semaphore, #tpu.memory_space<semaphore_mem>>) src(%645 : memref<1x128xf32, #tpu.memory_space<any>>) dst(%646 : memref<1x128xf32, #tpu.memory_space<vmem>>)
    %c5_i32_536 = arith.constant 5 : i32
    %c0_i32_537 = arith.constant 0 : i32
    %649 = tpu.memref_slice %arg4[%48, %c0_i32_537] : memref<64x128xf32, #tpu.memory_space<any>> -> memref<1x128xf32, #tpu.memory_space<any>>
    %c5_i32_538 = arith.constant 5 : i32
    %c0_i32_539 = arith.constant 0 : i32
    %650 = tpu.memref_slice %arg9[%c5_i32_538, %c0_i32_539] : memref<16x128xf32, #tpu.memory_space<vmem>> -> memref<1x128xf32, #tpu.memory_space<vmem>>
    %651 = tpu.memref_slice %arg15[%c5_i32_536] : memref<16x!tpu.dma_semaphore, #tpu.memory_space<semaphore_mem>> -> memref<1x!tpu.dma_semaphore, #tpu.memory_space<semaphore_mem>>
    %652 = tpu.memref_squeeze %651 : memref<1x!tpu.dma_semaphore, #tpu.memory_space<semaphore_mem>> -> memref<!tpu.dma_semaphore, #tpu.memory_space<semaphore_mem>>
    tpu.wait_dma2 semaphore(%652 : memref<!tpu.dma_semaphore, #tpu.memory_space<semaphore_mem>>) src(%649 : memref<1x128xf32, #tpu.memory_space<any>>) dst(%650 : memref<1x128xf32, #tpu.memory_space<vmem>>)
    %c5_i32_540 = arith.constant 5 : i32
    %c0_i32_541 = arith.constant 0 : i32
    %653 = tpu.memref_slice %arg5[%48, %c0_i32_541] : memref<64x128xf32, #tpu.memory_space<any>> -> memref<1x128xf32, #tpu.memory_space<any>>
    %c5_i32_542 = arith.constant 5 : i32
    %c0_i32_543 = arith.constant 0 : i32
    %654 = tpu.memref_slice %arg10[%c5_i32_542, %c0_i32_543] : memref<16x128xf32, #tpu.memory_space<vmem>> -> memref<1x128xf32, #tpu.memory_space<vmem>>
    %655 = tpu.memref_slice %arg15[%c5_i32_540] : memref<16x!tpu.dma_semaphore, #tpu.memory_space<semaphore_mem>> -> memref<1x!tpu.dma_semaphore, #tpu.memory_space<semaphore_mem>>
    %656 = tpu.memref_squeeze %655 : memref<1x!tpu.dma_semaphore, #tpu.memory_space<semaphore_mem>> -> memref<!tpu.dma_semaphore, #tpu.memory_space<semaphore_mem>>
    tpu.wait_dma2 semaphore(%656 : memref<!tpu.dma_semaphore, #tpu.memory_space<semaphore_mem>>) src(%653 : memref<1x128xf32, #tpu.memory_space<any>>) dst(%654 : memref<1x128xf32, #tpu.memory_space<vmem>>)
    %c5_i32_544 = arith.constant 5 : i32
    %c0_i32_545 = arith.constant 0 : i32
    %657 = tpu.memref_slice %arg6[%51, %c0_i32_545] : memref<8x128xf32, #tpu.memory_space<any>> -> memref<1x128xf32, #tpu.memory_space<any>>
    %c5_i32_546 = arith.constant 5 : i32
    %c0_i32_547 = arith.constant 0 : i32
    %658 = tpu.memref_slice %arg11[%c5_i32_546, %c0_i32_547] : memref<16x128xf32, #tpu.memory_space<vmem>> -> memref<1x128xf32, #tpu.memory_space<vmem>>
    %659 = tpu.memref_slice %arg15[%c5_i32_544] : memref<16x!tpu.dma_semaphore, #tpu.memory_space<semaphore_mem>> -> memref<1x!tpu.dma_semaphore, #tpu.memory_space<semaphore_mem>>
    %660 = tpu.memref_squeeze %659 : memref<1x!tpu.dma_semaphore, #tpu.memory_space<semaphore_mem>> -> memref<!tpu.dma_semaphore, #tpu.memory_space<semaphore_mem>>
    tpu.wait_dma2 semaphore(%660 : memref<!tpu.dma_semaphore, #tpu.memory_space<semaphore_mem>>) src(%657 : memref<1x128xf32, #tpu.memory_space<any>>) dst(%658 : memref<1x128xf32, #tpu.memory_space<vmem>>)
    %c5_i32_548 = arith.constant 5 : i32
    %c0_i32_549 = arith.constant 0 : i32
    %661 = tpu.memref_slice %arg7[%51, %c0_i32_549] : memref<8x128xf32, #tpu.memory_space<any>> -> memref<1x128xf32, #tpu.memory_space<any>>
    %c5_i32_550 = arith.constant 5 : i32
    %c0_i32_551 = arith.constant 0 : i32
    %662 = tpu.memref_slice %arg12[%c5_i32_550, %c0_i32_551] : memref<16x128xf32, #tpu.memory_space<vmem>> -> memref<1x128xf32, #tpu.memory_space<vmem>>
    %663 = tpu.memref_slice %arg15[%c5_i32_548] : memref<16x!tpu.dma_semaphore, #tpu.memory_space<semaphore_mem>> -> memref<1x!tpu.dma_semaphore, #tpu.memory_space<semaphore_mem>>
    %664 = tpu.memref_squeeze %663 : memref<1x!tpu.dma_semaphore, #tpu.memory_space<semaphore_mem>> -> memref<!tpu.dma_semaphore, #tpu.memory_space<semaphore_mem>>
    tpu.wait_dma2 semaphore(%664 : memref<!tpu.dma_semaphore, #tpu.memory_space<semaphore_mem>>) src(%661 : memref<1x128xf32, #tpu.memory_space<any>>) dst(%662 : memref<1x128xf32, #tpu.memory_space<vmem>>)
    %c5_i32_552 = arith.constant 5 : i32
    %c0_i32_553 = arith.constant 0 : i32
    %665 = tpu.memref_slice %arg4[%54, %c0_i32_553] : memref<64x128xf32, #tpu.memory_space<any>> -> memref<1x128xf32, #tpu.memory_space<any>>
    %c5_i32_554 = arith.constant 5 : i32
    %c0_i32_555 = arith.constant 0 : i32
    %666 = tpu.memref_slice %arg13[%c5_i32_554, %c0_i32_555] : memref<16x128xf32, #tpu.memory_space<vmem>> -> memref<1x128xf32, #tpu.memory_space<vmem>>
    %667 = tpu.memref_slice %arg15[%c5_i32_552] : memref<16x!tpu.dma_semaphore, #tpu.memory_space<semaphore_mem>> -> memref<1x!tpu.dma_semaphore, #tpu.memory_space<semaphore_mem>>
    %668 = tpu.memref_squeeze %667 : memref<1x!tpu.dma_semaphore, #tpu.memory_space<semaphore_mem>> -> memref<!tpu.dma_semaphore, #tpu.memory_space<semaphore_mem>>
    tpu.wait_dma2 semaphore(%668 : memref<!tpu.dma_semaphore, #tpu.memory_space<semaphore_mem>>) src(%665 : memref<1x128xf32, #tpu.memory_space<any>>) dst(%666 : memref<1x128xf32, #tpu.memory_space<vmem>>)
    %c5_i32_556 = arith.constant 5 : i32
    %c0_i32_557 = arith.constant 0 : i32
    %669 = tpu.memref_slice %arg5[%54, %c0_i32_557] : memref<64x128xf32, #tpu.memory_space<any>> -> memref<1x128xf32, #tpu.memory_space<any>>
    %c5_i32_558 = arith.constant 5 : i32
    %c0_i32_559 = arith.constant 0 : i32
    %670 = tpu.memref_slice %arg14[%c5_i32_558, %c0_i32_559] : memref<16x128xf32, #tpu.memory_space<vmem>> -> memref<1x128xf32, #tpu.memory_space<vmem>>
    %671 = tpu.memref_slice %arg15[%c5_i32_556] : memref<16x!tpu.dma_semaphore, #tpu.memory_space<semaphore_mem>> -> memref<1x!tpu.dma_semaphore, #tpu.memory_space<semaphore_mem>>
    %672 = tpu.memref_squeeze %671 : memref<1x!tpu.dma_semaphore, #tpu.memory_space<semaphore_mem>> -> memref<!tpu.dma_semaphore, #tpu.memory_space<semaphore_mem>>
    tpu.wait_dma2 semaphore(%672 : memref<!tpu.dma_semaphore, #tpu.memory_space<semaphore_mem>>) src(%669 : memref<1x128xf32, #tpu.memory_space<any>>) dst(%670 : memref<1x128xf32, #tpu.memory_space<vmem>>)
    %c6_i32_560 = arith.constant 6 : i32
    %c0_i32_561 = arith.constant 0 : i32
    %673 = tpu.memref_slice %arg4[%57, %c0_i32_561] : memref<64x128xf32, #tpu.memory_space<any>> -> memref<1x128xf32, #tpu.memory_space<any>>
    %c6_i32_562 = arith.constant 6 : i32
    %c0_i32_563 = arith.constant 0 : i32
    %674 = tpu.memref_slice %arg9[%c6_i32_562, %c0_i32_563] : memref<16x128xf32, #tpu.memory_space<vmem>> -> memref<1x128xf32, #tpu.memory_space<vmem>>
    %675 = tpu.memref_slice %arg15[%c6_i32_560] : memref<16x!tpu.dma_semaphore, #tpu.memory_space<semaphore_mem>> -> memref<1x!tpu.dma_semaphore, #tpu.memory_space<semaphore_mem>>
    %676 = tpu.memref_squeeze %675 : memref<1x!tpu.dma_semaphore, #tpu.memory_space<semaphore_mem>> -> memref<!tpu.dma_semaphore, #tpu.memory_space<semaphore_mem>>
    tpu.wait_dma2 semaphore(%676 : memref<!tpu.dma_semaphore, #tpu.memory_space<semaphore_mem>>) src(%673 : memref<1x128xf32, #tpu.memory_space<any>>) dst(%674 : memref<1x128xf32, #tpu.memory_space<vmem>>)
    %c6_i32_564 = arith.constant 6 : i32
    %c0_i32_565 = arith.constant 0 : i32
    %677 = tpu.memref_slice %arg5[%57, %c0_i32_565] : memref<64x128xf32, #tpu.memory_space<any>> -> memref<1x128xf32, #tpu.memory_space<any>>
    %c6_i32_566 = arith.constant 6 : i32
    %c0_i32_567 = arith.constant 0 : i32
    %678 = tpu.memref_slice %arg10[%c6_i32_566, %c0_i32_567] : memref<16x128xf32, #tpu.memory_space<vmem>> -> memref<1x128xf32, #tpu.memory_space<vmem>>
    %679 = tpu.memref_slice %arg15[%c6_i32_564] : memref<16x!tpu.dma_semaphore, #tpu.memory_space<semaphore_mem>> -> memref<1x!tpu.dma_semaphore, #tpu.memory_space<semaphore_mem>>
    %680 = tpu.memref_squeeze %679 : memref<1x!tpu.dma_semaphore, #tpu.memory_space<semaphore_mem>> -> memref<!tpu.dma_semaphore, #tpu.memory_space<semaphore_mem>>
    tpu.wait_dma2 semaphore(%680 : memref<!tpu.dma_semaphore, #tpu.memory_space<semaphore_mem>>) src(%677 : memref<1x128xf32, #tpu.memory_space<any>>) dst(%678 : memref<1x128xf32, #tpu.memory_space<vmem>>)
    %c6_i32_568 = arith.constant 6 : i32
    %c0_i32_569 = arith.constant 0 : i32
    %681 = tpu.memref_slice %arg6[%60, %c0_i32_569] : memref<8x128xf32, #tpu.memory_space<any>> -> memref<1x128xf32, #tpu.memory_space<any>>
    %c6_i32_570 = arith.constant 6 : i32
    %c0_i32_571 = arith.constant 0 : i32
    %682 = tpu.memref_slice %arg11[%c6_i32_570, %c0_i32_571] : memref<16x128xf32, #tpu.memory_space<vmem>> -> memref<1x128xf32, #tpu.memory_space<vmem>>
    %683 = tpu.memref_slice %arg15[%c6_i32_568] : memref<16x!tpu.dma_semaphore, #tpu.memory_space<semaphore_mem>> -> memref<1x!tpu.dma_semaphore, #tpu.memory_space<semaphore_mem>>
    %684 = tpu.memref_squeeze %683 : memref<1x!tpu.dma_semaphore, #tpu.memory_space<semaphore_mem>> -> memref<!tpu.dma_semaphore, #tpu.memory_space<semaphore_mem>>
    tpu.wait_dma2 semaphore(%684 : memref<!tpu.dma_semaphore, #tpu.memory_space<semaphore_mem>>) src(%681 : memref<1x128xf32, #tpu.memory_space<any>>) dst(%682 : memref<1x128xf32, #tpu.memory_space<vmem>>)
    %c6_i32_572 = arith.constant 6 : i32
    %c0_i32_573 = arith.constant 0 : i32
    %685 = tpu.memref_slice %arg7[%60, %c0_i32_573] : memref<8x128xf32, #tpu.memory_space<any>> -> memref<1x128xf32, #tpu.memory_space<any>>
    %c6_i32_574 = arith.constant 6 : i32
    %c0_i32_575 = arith.constant 0 : i32
    %686 = tpu.memref_slice %arg12[%c6_i32_574, %c0_i32_575] : memref<16x128xf32, #tpu.memory_space<vmem>> -> memref<1x128xf32, #tpu.memory_space<vmem>>
    %687 = tpu.memref_slice %arg15[%c6_i32_572] : memref<16x!tpu.dma_semaphore, #tpu.memory_space<semaphore_mem>> -> memref<1x!tpu.dma_semaphore, #tpu.memory_space<semaphore_mem>>
    %688 = tpu.memref_squeeze %687 : memref<1x!tpu.dma_semaphore, #tpu.memory_space<semaphore_mem>> -> memref<!tpu.dma_semaphore, #tpu.memory_space<semaphore_mem>>
    tpu.wait_dma2 semaphore(%688 : memref<!tpu.dma_semaphore, #tpu.memory_space<semaphore_mem>>) src(%685 : memref<1x128xf32, #tpu.memory_space<any>>) dst(%686 : memref<1x128xf32, #tpu.memory_space<vmem>>)
    %c6_i32_576 = arith.constant 6 : i32
    %c0_i32_577 = arith.constant 0 : i32
    %689 = tpu.memref_slice %arg4[%63, %c0_i32_577] : memref<64x128xf32, #tpu.memory_space<any>> -> memref<1x128xf32, #tpu.memory_space<any>>
    %c6_i32_578 = arith.constant 6 : i32
    %c0_i32_579 = arith.constant 0 : i32
    %690 = tpu.memref_slice %arg13[%c6_i32_578, %c0_i32_579] : memref<16x128xf32, #tpu.memory_space<vmem>> -> memref<1x128xf32, #tpu.memory_space<vmem>>
    %691 = tpu.memref_slice %arg15[%c6_i32_576] : memref<16x!tpu.dma_semaphore, #tpu.memory_space<semaphore_mem>> -> memref<1x!tpu.dma_semaphore, #tpu.memory_space<semaphore_mem>>
    %692 = tpu.memref_squeeze %691 : memref<1x!tpu.dma_semaphore, #tpu.memory_space<semaphore_mem>> -> memref<!tpu.dma_semaphore, #tpu.memory_space<semaphore_mem>>
    tpu.wait_dma2 semaphore(%692 : memref<!tpu.dma_semaphore, #tpu.memory_space<semaphore_mem>>) src(%689 : memref<1x128xf32, #tpu.memory_space<any>>) dst(%690 : memref<1x128xf32, #tpu.memory_space<vmem>>)
    %c6_i32_580 = arith.constant 6 : i32
    %c0_i32_581 = arith.constant 0 : i32
    %693 = tpu.memref_slice %arg5[%63, %c0_i32_581] : memref<64x128xf32, #tpu.memory_space<any>> -> memref<1x128xf32, #tpu.memory_space<any>>
    %c6_i32_582 = arith.constant 6 : i32
    %c0_i32_583 = arith.constant 0 : i32
    %694 = tpu.memref_slice %arg14[%c6_i32_582, %c0_i32_583] : memref<16x128xf32, #tpu.memory_space<vmem>> -> memref<1x128xf32, #tpu.memory_space<vmem>>
    %695 = tpu.memref_slice %arg15[%c6_i32_580] : memref<16x!tpu.dma_semaphore, #tpu.memory_space<semaphore_mem>> -> memref<1x!tpu.dma_semaphore, #tpu.memory_space<semaphore_mem>>
    %696 = tpu.memref_squeeze %695 : memref<1x!tpu.dma_semaphore, #tpu.memory_space<semaphore_mem>> -> memref<!tpu.dma_semaphore, #tpu.memory_space<semaphore_mem>>
    tpu.wait_dma2 semaphore(%696 : memref<!tpu.dma_semaphore, #tpu.memory_space<semaphore_mem>>) src(%693 : memref<1x128xf32, #tpu.memory_space<any>>) dst(%694 : memref<1x128xf32, #tpu.memory_space<vmem>>)
    %c7_i32_584 = arith.constant 7 : i32
    %c0_i32_585 = arith.constant 0 : i32
    %697 = tpu.memref_slice %arg4[%66, %c0_i32_585] : memref<64x128xf32, #tpu.memory_space<any>> -> memref<1x128xf32, #tpu.memory_space<any>>
    %c7_i32_586 = arith.constant 7 : i32
    %c0_i32_587 = arith.constant 0 : i32
    %698 = tpu.memref_slice %arg9[%c7_i32_586, %c0_i32_587] : memref<16x128xf32, #tpu.memory_space<vmem>> -> memref<1x128xf32, #tpu.memory_space<vmem>>
    %699 = tpu.memref_slice %arg15[%c7_i32_584] : memref<16x!tpu.dma_semaphore, #tpu.memory_space<semaphore_mem>> -> memref<1x!tpu.dma_semaphore, #tpu.memory_space<semaphore_mem>>
    %700 = tpu.memref_squeeze %699 : memref<1x!tpu.dma_semaphore, #tpu.memory_space<semaphore_mem>> -> memref<!tpu.dma_semaphore, #tpu.memory_space<semaphore_mem>>
    tpu.wait_dma2 semaphore(%700 : memref<!tpu.dma_semaphore, #tpu.memory_space<semaphore_mem>>) src(%697 : memref<1x128xf32, #tpu.memory_space<any>>) dst(%698 : memref<1x128xf32, #tpu.memory_space<vmem>>)
    %c7_i32_588 = arith.constant 7 : i32
    %c0_i32_589 = arith.constant 0 : i32
    %701 = tpu.memref_slice %arg5[%66, %c0_i32_589] : memref<64x128xf32, #tpu.memory_space<any>> -> memref<1x128xf32, #tpu.memory_space<any>>
    %c7_i32_590 = arith.constant 7 : i32
    %c0_i32_591 = arith.constant 0 : i32
    %702 = tpu.memref_slice %arg10[%c7_i32_590, %c0_i32_591] : memref<16x128xf32, #tpu.memory_space<vmem>> -> memref<1x128xf32, #tpu.memory_space<vmem>>
    %703 = tpu.memref_slice %arg15[%c7_i32_588] : memref<16x!tpu.dma_semaphore, #tpu.memory_space<semaphore_mem>> -> memref<1x!tpu.dma_semaphore, #tpu.memory_space<semaphore_mem>>
    %704 = tpu.memref_squeeze %703 : memref<1x!tpu.dma_semaphore, #tpu.memory_space<semaphore_mem>> -> memref<!tpu.dma_semaphore, #tpu.memory_space<semaphore_mem>>
    tpu.wait_dma2 semaphore(%704 : memref<!tpu.dma_semaphore, #tpu.memory_space<semaphore_mem>>) src(%701 : memref<1x128xf32, #tpu.memory_space<any>>) dst(%702 : memref<1x128xf32, #tpu.memory_space<vmem>>)
    %c7_i32_592 = arith.constant 7 : i32
    %c0_i32_593 = arith.constant 0 : i32
    %705 = tpu.memref_slice %arg6[%69, %c0_i32_593] : memref<8x128xf32, #tpu.memory_space<any>> -> memref<1x128xf32, #tpu.memory_space<any>>
    %c7_i32_594 = arith.constant 7 : i32
    %c0_i32_595 = arith.constant 0 : i32
    %706 = tpu.memref_slice %arg11[%c7_i32_594, %c0_i32_595] : memref<16x128xf32, #tpu.memory_space<vmem>> -> memref<1x128xf32, #tpu.memory_space<vmem>>
    %707 = tpu.memref_slice %arg15[%c7_i32_592] : memref<16x!tpu.dma_semaphore, #tpu.memory_space<semaphore_mem>> -> memref<1x!tpu.dma_semaphore, #tpu.memory_space<semaphore_mem>>
    %708 = tpu.memref_squeeze %707 : memref<1x!tpu.dma_semaphore, #tpu.memory_space<semaphore_mem>> -> memref<!tpu.dma_semaphore, #tpu.memory_space<semaphore_mem>>
    tpu.wait_dma2 semaphore(%708 : memref<!tpu.dma_semaphore, #tpu.memory_space<semaphore_mem>>) src(%705 : memref<1x128xf32, #tpu.memory_space<any>>) dst(%706 : memref<1x128xf32, #tpu.memory_space<vmem>>)
    %c7_i32_596 = arith.constant 7 : i32
    %c0_i32_597 = arith.constant 0 : i32
    %709 = tpu.memref_slice %arg7[%69, %c0_i32_597] : memref<8x128xf32, #tpu.memory_space<any>> -> memref<1x128xf32, #tpu.memory_space<any>>
    %c7_i32_598 = arith.constant 7 : i32
    %c0_i32_599 = arith.constant 0 : i32
    %710 = tpu.memref_slice %arg12[%c7_i32_598, %c0_i32_599] : memref<16x128xf32, #tpu.memory_space<vmem>> -> memref<1x128xf32, #tpu.memory_space<vmem>>
    %711 = tpu.memref_slice %arg15[%c7_i32_596] : memref<16x!tpu.dma_semaphore, #tpu.memory_space<semaphore_mem>> -> memref<1x!tpu.dma_semaphore, #tpu.memory_space<semaphore_mem>>
    %712 = tpu.memref_squeeze %711 : memref<1x!tpu.dma_semaphore, #tpu.memory_space<semaphore_mem>> -> memref<!tpu.dma_semaphore, #tpu.memory_space<semaphore_mem>>
    tpu.wait_dma2 semaphore(%712 : memref<!tpu.dma_semaphore, #tpu.memory_space<semaphore_mem>>) src(%709 : memref<1x128xf32, #tpu.memory_space<any>>) dst(%710 : memref<1x128xf32, #tpu.memory_space<vmem>>)
    %c7_i32_600 = arith.constant 7 : i32
    %c0_i32_601 = arith.constant 0 : i32
    %713 = tpu.memref_slice %arg4[%72, %c0_i32_601] : memref<64x128xf32, #tpu.memory_space<any>> -> memref<1x128xf32, #tpu.memory_space<any>>
    %c7_i32_602 = arith.constant 7 : i32
    %c0_i32_603 = arith.constant 0 : i32
    %714 = tpu.memref_slice %arg13[%c7_i32_602, %c0_i32_603] : memref<16x128xf32, #tpu.memory_space<vmem>> -> memref<1x128xf32, #tpu.memory_space<vmem>>
    %715 = tpu.memref_slice %arg15[%c7_i32_600] : memref<16x!tpu.dma_semaphore, #tpu.memory_space<semaphore_mem>> -> memref<1x!tpu.dma_semaphore, #tpu.memory_space<semaphore_mem>>
    %716 = tpu.memref_squeeze %715 : memref<1x!tpu.dma_semaphore, #tpu.memory_space<semaphore_mem>> -> memref<!tpu.dma_semaphore, #tpu.memory_space<semaphore_mem>>
    tpu.wait_dma2 semaphore(%716 : memref<!tpu.dma_semaphore, #tpu.memory_space<semaphore_mem>>) src(%713 : memref<1x128xf32, #tpu.memory_space<any>>) dst(%714 : memref<1x128xf32, #tpu.memory_space<vmem>>)
    %c7_i32_604 = arith.constant 7 : i32
    %c0_i32_605 = arith.constant 0 : i32
    %717 = tpu.memref_slice %arg5[%72, %c0_i32_605] : memref<64x128xf32, #tpu.memory_space<any>> -> memref<1x128xf32, #tpu.memory_space<any>>
    %c7_i32_606 = arith.constant 7 : i32
    %c0_i32_607 = arith.constant 0 : i32
    %718 = tpu.memref_slice %arg14[%c7_i32_606, %c0_i32_607] : memref<16x128xf32, #tpu.memory_space<vmem>> -> memref<1x128xf32, #tpu.memory_space<vmem>>
    %719 = tpu.memref_slice %arg15[%c7_i32_604] : memref<16x!tpu.dma_semaphore, #tpu.memory_space<semaphore_mem>> -> memref<1x!tpu.dma_semaphore, #tpu.memory_space<semaphore_mem>>
    %720 = tpu.memref_squeeze %719 : memref<1x!tpu.dma_semaphore, #tpu.memory_space<semaphore_mem>> -> memref<!tpu.dma_semaphore, #tpu.memory_space<semaphore_mem>>
    tpu.wait_dma2 semaphore(%720 : memref<!tpu.dma_semaphore, #tpu.memory_space<semaphore_mem>>) src(%717 : memref<1x128xf32, #tpu.memory_space<any>>) dst(%718 : memref<1x128xf32, #tpu.memory_space<vmem>>)
    %c8_i32_608 = arith.constant 8 : i32
    %c0_i32_609 = arith.constant 0 : i32
    %721 = tpu.memref_slice %arg4[%75, %c0_i32_609] : memref<64x128xf32, #tpu.memory_space<any>> -> memref<1x128xf32, #tpu.memory_space<any>>
    %c8_i32_610 = arith.constant 8 : i32
    %c0_i32_611 = arith.constant 0 : i32
    %722 = tpu.memref_slice %arg9[%c8_i32_610, %c0_i32_611] : memref<16x128xf32, #tpu.memory_space<vmem>> -> memref<1x128xf32, #tpu.memory_space<vmem>>
    %723 = tpu.memref_slice %arg15[%c8_i32_608] : memref<16x!tpu.dma_semaphore, #tpu.memory_space<semaphore_mem>> -> memref<1x!tpu.dma_semaphore, #tpu.memory_space<semaphore_mem>>
    %724 = tpu.memref_squeeze %723 : memref<1x!tpu.dma_semaphore, #tpu.memory_space<semaphore_mem>> -> memref<!tpu.dma_semaphore, #tpu.memory_space<semaphore_mem>>
    tpu.wait_dma2 semaphore(%724 : memref<!tpu.dma_semaphore, #tpu.memory_space<semaphore_mem>>) src(%721 : memref<1x128xf32, #tpu.memory_space<any>>) dst(%722 : memref<1x128xf32, #tpu.memory_space<vmem>>)
    %c8_i32_612 = arith.constant 8 : i32
    %c0_i32_613 = arith.constant 0 : i32
    %725 = tpu.memref_slice %arg5[%75, %c0_i32_613] : memref<64x128xf32, #tpu.memory_space<any>> -> memref<1x128xf32, #tpu.memory_space<any>>
    %c8_i32_614 = arith.constant 8 : i32
    %c0_i32_615 = arith.constant 0 : i32
    %726 = tpu.memref_slice %arg10[%c8_i32_614, %c0_i32_615] : memref<16x128xf32, #tpu.memory_space<vmem>> -> memref<1x128xf32, #tpu.memory_space<vmem>>
    %727 = tpu.memref_slice %arg15[%c8_i32_612] : memref<16x!tpu.dma_semaphore, #tpu.memory_space<semaphore_mem>> -> memref<1x!tpu.dma_semaphore, #tpu.memory_space<semaphore_mem>>
    %728 = tpu.memref_squeeze %727 : memref<1x!tpu.dma_semaphore, #tpu.memory_space<semaphore_mem>> -> memref<!tpu.dma_semaphore, #tpu.memory_space<semaphore_mem>>
    tpu.wait_dma2 semaphore(%728 : memref<!tpu.dma_semaphore, #tpu.memory_space<semaphore_mem>>) src(%725 : memref<1x128xf32, #tpu.memory_space<any>>) dst(%726 : memref<1x128xf32, #tpu.memory_space<vmem>>)
    %c8_i32_616 = arith.constant 8 : i32
    %c0_i32_617 = arith.constant 0 : i32
    %729 = tpu.memref_slice %arg6[%78, %c0_i32_617] : memref<8x128xf32, #tpu.memory_space<any>> -> memref<1x128xf32, #tpu.memory_space<any>>
    %c8_i32_618 = arith.constant 8 : i32
    %c0_i32_619 = arith.constant 0 : i32
    %730 = tpu.memref_slice %arg11[%c8_i32_618, %c0_i32_619] : memref<16x128xf32, #tpu.memory_space<vmem>> -> memref<1x128xf32, #tpu.memory_space<vmem>>
    %731 = tpu.memref_slice %arg15[%c8_i32_616] : memref<16x!tpu.dma_semaphore, #tpu.memory_space<semaphore_mem>> -> memref<1x!tpu.dma_semaphore, #tpu.memory_space<semaphore_mem>>
    %732 = tpu.memref_squeeze %731 : memref<1x!tpu.dma_semaphore, #tpu.memory_space<semaphore_mem>> -> memref<!tpu.dma_semaphore, #tpu.memory_space<semaphore_mem>>
    tpu.wait_dma2 semaphore(%732 : memref<!tpu.dma_semaphore, #tpu.memory_space<semaphore_mem>>) src(%729 : memref<1x128xf32, #tpu.memory_space<any>>) dst(%730 : memref<1x128xf32, #tpu.memory_space<vmem>>)
    %c8_i32_620 = arith.constant 8 : i32
    %c0_i32_621 = arith.constant 0 : i32
    %733 = tpu.memref_slice %arg7[%78, %c0_i32_621] : memref<8x128xf32, #tpu.memory_space<any>> -> memref<1x128xf32, #tpu.memory_space<any>>
    %c8_i32_622 = arith.constant 8 : i32
    %c0_i32_623 = arith.constant 0 : i32
    %734 = tpu.memref_slice %arg12[%c8_i32_622, %c0_i32_623] : memref<16x128xf32, #tpu.memory_space<vmem>> -> memref<1x128xf32, #tpu.memory_space<vmem>>
    %735 = tpu.memref_slice %arg15[%c8_i32_620] : memref<16x!tpu.dma_semaphore, #tpu.memory_space<semaphore_mem>> -> memref<1x!tpu.dma_semaphore, #tpu.memory_space<semaphore_mem>>
    %736 = tpu.memref_squeeze %735 : memref<1x!tpu.dma_semaphore, #tpu.memory_space<semaphore_mem>> -> memref<!tpu.dma_semaphore, #tpu.memory_space<semaphore_mem>>
    tpu.wait_dma2 semaphore(%736 : memref<!tpu.dma_semaphore, #tpu.memory_space<semaphore_mem>>) src(%733 : memref<1x128xf32, #tpu.memory_space<any>>) dst(%734 : memref<1x128xf32, #tpu.memory_space<vmem>>)
    %c8_i32_624 = arith.constant 8 : i32
    %c0_i32_625 = arith.constant 0 : i32
    %737 = tpu.memref_slice %arg4[%81, %c0_i32_625] : memref<64x128xf32, #tpu.memory_space<any>> -> memref<1x128xf32, #tpu.memory_space<any>>
    %c8_i32_626 = arith.constant 8 : i32
    %c0_i32_627 = arith.constant 0 : i32
    %738 = tpu.memref_slice %arg13[%c8_i32_626, %c0_i32_627] : memref<16x128xf32, #tpu.memory_space<vmem>> -> memref<1x128xf32, #tpu.memory_space<vmem>>
    %739 = tpu.memref_slice %arg15[%c8_i32_624] : memref<16x!tpu.dma_semaphore, #tpu.memory_space<semaphore_mem>> -> memref<1x!tpu.dma_semaphore, #tpu.memory_space<semaphore_mem>>
    %740 = tpu.memref_squeeze %739 : memref<1x!tpu.dma_semaphore, #tpu.memory_space<semaphore_mem>> -> memref<!tpu.dma_semaphore, #tpu.memory_space<semaphore_mem>>
    tpu.wait_dma2 semaphore(%740 : memref<!tpu.dma_semaphore, #tpu.memory_space<semaphore_mem>>) src(%737 : memref<1x128xf32, #tpu.memory_space<any>>) dst(%738 : memref<1x128xf32, #tpu.memory_space<vmem>>)
    %c8_i32_628 = arith.constant 8 : i32
    %c0_i32_629 = arith.constant 0 : i32
    %741 = tpu.memref_slice %arg5[%81, %c0_i32_629] : memref<64x128xf32, #tpu.memory_space<any>> -> memref<1x128xf32, #tpu.memory_space<any>>
    %c8_i32_630 = arith.constant 8 : i32
    %c0_i32_631 = arith.constant 0 : i32
    %742 = tpu.memref_slice %arg14[%c8_i32_630, %c0_i32_631] : memref<16x128xf32, #tpu.memory_space<vmem>> -> memref<1x128xf32, #tpu.memory_space<vmem>>
    %743 = tpu.memref_slice %arg15[%c8_i32_628] : memref<16x!tpu.dma_semaphore, #tpu.memory_space<semaphore_mem>> -> memref<1x!tpu.dma_semaphore, #tpu.memory_space<semaphore_mem>>
    %744 = tpu.memref_squeeze %743 : memref<1x!tpu.dma_semaphore, #tpu.memory_space<semaphore_mem>> -> memref<!tpu.dma_semaphore, #tpu.memory_space<semaphore_mem>>
    tpu.wait_dma2 semaphore(%744 : memref<!tpu.dma_semaphore, #tpu.memory_space<semaphore_mem>>) src(%741 : memref<1x128xf32, #tpu.memory_space<any>>) dst(%742 : memref<1x128xf32, #tpu.memory_space<vmem>>)
    %c9_i32_632 = arith.constant 9 : i32
    %c0_i32_633 = arith.constant 0 : i32
    %745 = tpu.memref_slice %arg4[%84, %c0_i32_633] : memref<64x128xf32, #tpu.memory_space<any>> -> memref<1x128xf32, #tpu.memory_space<any>>
    %c9_i32_634 = arith.constant 9 : i32
    %c0_i32_635 = arith.constant 0 : i32
    %746 = tpu.memref_slice %arg9[%c9_i32_634, %c0_i32_635] : memref<16x128xf32, #tpu.memory_space<vmem>> -> memref<1x128xf32, #tpu.memory_space<vmem>>
    %747 = tpu.memref_slice %arg15[%c9_i32_632] : memref<16x!tpu.dma_semaphore, #tpu.memory_space<semaphore_mem>> -> memref<1x!tpu.dma_semaphore, #tpu.memory_space<semaphore_mem>>
    %748 = tpu.memref_squeeze %747 : memref<1x!tpu.dma_semaphore, #tpu.memory_space<semaphore_mem>> -> memref<!tpu.dma_semaphore, #tpu.memory_space<semaphore_mem>>
    tpu.wait_dma2 semaphore(%748 : memref<!tpu.dma_semaphore, #tpu.memory_space<semaphore_mem>>) src(%745 : memref<1x128xf32, #tpu.memory_space<any>>) dst(%746 : memref<1x128xf32, #tpu.memory_space<vmem>>)
    %c9_i32_636 = arith.constant 9 : i32
    %c0_i32_637 = arith.constant 0 : i32
    %749 = tpu.memref_slice %arg5[%84, %c0_i32_637] : memref<64x128xf32, #tpu.memory_space<any>> -> memref<1x128xf32, #tpu.memory_space<any>>
    %c9_i32_638 = arith.constant 9 : i32
    %c0_i32_639 = arith.constant 0 : i32
    %750 = tpu.memref_slice %arg10[%c9_i32_638, %c0_i32_639] : memref<16x128xf32, #tpu.memory_space<vmem>> -> memref<1x128xf32, #tpu.memory_space<vmem>>
    %751 = tpu.memref_slice %arg15[%c9_i32_636] : memref<16x!tpu.dma_semaphore, #tpu.memory_space<semaphore_mem>> -> memref<1x!tpu.dma_semaphore, #tpu.memory_space<semaphore_mem>>
    %752 = tpu.memref_squeeze %751 : memref<1x!tpu.dma_semaphore, #tpu.memory_space<semaphore_mem>> -> memref<!tpu.dma_semaphore, #tpu.memory_space<semaphore_mem>>
    tpu.wait_dma2 semaphore(%752 : memref<!tpu.dma_semaphore, #tpu.memory_space<semaphore_mem>>) src(%749 : memref<1x128xf32, #tpu.memory_space<any>>) dst(%750 : memref<1x128xf32, #tpu.memory_space<vmem>>)
    %c9_i32_640 = arith.constant 9 : i32
    %c0_i32_641 = arith.constant 0 : i32
    %753 = tpu.memref_slice %arg6[%87, %c0_i32_641] : memref<8x128xf32, #tpu.memory_space<any>> -> memref<1x128xf32, #tpu.memory_space<any>>
    %c9_i32_642 = arith.constant 9 : i32
    %c0_i32_643 = arith.constant 0 : i32
    %754 = tpu.memref_slice %arg11[%c9_i32_642, %c0_i32_643] : memref<16x128xf32, #tpu.memory_space<vmem>> -> memref<1x128xf32, #tpu.memory_space<vmem>>
    %755 = tpu.memref_slice %arg15[%c9_i32_640] : memref<16x!tpu.dma_semaphore, #tpu.memory_space<semaphore_mem>> -> memref<1x!tpu.dma_semaphore, #tpu.memory_space<semaphore_mem>>
    %756 = tpu.memref_squeeze %755 : memref<1x!tpu.dma_semaphore, #tpu.memory_space<semaphore_mem>> -> memref<!tpu.dma_semaphore, #tpu.memory_space<semaphore_mem>>
    tpu.wait_dma2 semaphore(%756 : memref<!tpu.dma_semaphore, #tpu.memory_space<semaphore_mem>>) src(%753 : memref<1x128xf32, #tpu.memory_space<any>>) dst(%754 : memref<1x128xf32, #tpu.memory_space<vmem>>)
    %c9_i32_644 = arith.constant 9 : i32
    %c0_i32_645 = arith.constant 0 : i32
    %757 = tpu.memref_slice %arg7[%87, %c0_i32_645] : memref<8x128xf32, #tpu.memory_space<any>> -> memref<1x128xf32, #tpu.memory_space<any>>
    %c9_i32_646 = arith.constant 9 : i32
    %c0_i32_647 = arith.constant 0 : i32
    %758 = tpu.memref_slice %arg12[%c9_i32_646, %c0_i32_647] : memref<16x128xf32, #tpu.memory_space<vmem>> -> memref<1x128xf32, #tpu.memory_space<vmem>>
    %759 = tpu.memref_slice %arg15[%c9_i32_644] : memref<16x!tpu.dma_semaphore, #tpu.memory_space<semaphore_mem>> -> memref<1x!tpu.dma_semaphore, #tpu.memory_space<semaphore_mem>>
    %760 = tpu.memref_squeeze %759 : memref<1x!tpu.dma_semaphore, #tpu.memory_space<semaphore_mem>> -> memref<!tpu.dma_semaphore, #tpu.memory_space<semaphore_mem>>
    tpu.wait_dma2 semaphore(%760 : memref<!tpu.dma_semaphore, #tpu.memory_space<semaphore_mem>>) src(%757 : memref<1x128xf32, #tpu.memory_space<any>>) dst(%758 : memref<1x128xf32, #tpu.memory_space<vmem>>)
    %c9_i32_648 = arith.constant 9 : i32
    %c0_i32_649 = arith.constant 0 : i32
    %761 = tpu.memref_slice %arg4[%90, %c0_i32_649] : memref<64x128xf32, #tpu.memory_space<any>> -> memref<1x128xf32, #tpu.memory_space<any>>
    %c9_i32_650 = arith.constant 9 : i32
    %c0_i32_651 = arith.constant 0 : i32
    %762 = tpu.memref_slice %arg13[%c9_i32_650, %c0_i32_651] : memref<16x128xf32, #tpu.memory_space<vmem>> -> memref<1x128xf32, #tpu.memory_space<vmem>>
    %763 = tpu.memref_slice %arg15[%c9_i32_648] : memref<16x!tpu.dma_semaphore, #tpu.memory_space<semaphore_mem>> -> memref<1x!tpu.dma_semaphore, #tpu.memory_space<semaphore_mem>>
    %764 = tpu.memref_squeeze %763 : memref<1x!tpu.dma_semaphore, #tpu.memory_space<semaphore_mem>> -> memref<!tpu.dma_semaphore, #tpu.memory_space<semaphore_mem>>
    tpu.wait_dma2 semaphore(%764 : memref<!tpu.dma_semaphore, #tpu.memory_space<semaphore_mem>>) src(%761 : memref<1x128xf32, #tpu.memory_space<any>>) dst(%762 : memref<1x128xf32, #tpu.memory_space<vmem>>)
    %c9_i32_652 = arith.constant 9 : i32
    %c0_i32_653 = arith.constant 0 : i32
    %765 = tpu.memref_slice %arg5[%90, %c0_i32_653] : memref<64x128xf32, #tpu.memory_space<any>> -> memref<1x128xf32, #tpu.memory_space<any>>
    %c9_i32_654 = arith.constant 9 : i32
    %c0_i32_655 = arith.constant 0 : i32
    %766 = tpu.memref_slice %arg14[%c9_i32_654, %c0_i32_655] : memref<16x128xf32, #tpu.memory_space<vmem>> -> memref<1x128xf32, #tpu.memory_space<vmem>>
    %767 = tpu.memref_slice %arg15[%c9_i32_652] : memref<16x!tpu.dma_semaphore, #tpu.memory_space<semaphore_mem>> -> memref<1x!tpu.dma_semaphore, #tpu.memory_space<semaphore_mem>>
    %768 = tpu.memref_squeeze %767 : memref<1x!tpu.dma_semaphore, #tpu.memory_space<semaphore_mem>> -> memref<!tpu.dma_semaphore, #tpu.memory_space<semaphore_mem>>
    tpu.wait_dma2 semaphore(%768 : memref<!tpu.dma_semaphore, #tpu.memory_space<semaphore_mem>>) src(%765 : memref<1x128xf32, #tpu.memory_space<any>>) dst(%766 : memref<1x128xf32, #tpu.memory_space<vmem>>)
    %c10_i32_656 = arith.constant 10 : i32
    %c0_i32_657 = arith.constant 0 : i32
    %769 = tpu.memref_slice %arg4[%93, %c0_i32_657] : memref<64x128xf32, #tpu.memory_space<any>> -> memref<1x128xf32, #tpu.memory_space<any>>
    %c10_i32_658 = arith.constant 10 : i32
    %c0_i32_659 = arith.constant 0 : i32
    %770 = tpu.memref_slice %arg9[%c10_i32_658, %c0_i32_659] : memref<16x128xf32, #tpu.memory_space<vmem>> -> memref<1x128xf32, #tpu.memory_space<vmem>>
    %771 = tpu.memref_slice %arg15[%c10_i32_656] : memref<16x!tpu.dma_semaphore, #tpu.memory_space<semaphore_mem>> -> memref<1x!tpu.dma_semaphore, #tpu.memory_space<semaphore_mem>>
    %772 = tpu.memref_squeeze %771 : memref<1x!tpu.dma_semaphore, #tpu.memory_space<semaphore_mem>> -> memref<!tpu.dma_semaphore, #tpu.memory_space<semaphore_mem>>
    tpu.wait_dma2 semaphore(%772 : memref<!tpu.dma_semaphore, #tpu.memory_space<semaphore_mem>>) src(%769 : memref<1x128xf32, #tpu.memory_space<any>>) dst(%770 : memref<1x128xf32, #tpu.memory_space<vmem>>)
    %c10_i32_660 = arith.constant 10 : i32
    %c0_i32_661 = arith.constant 0 : i32
    %773 = tpu.memref_slice %arg5[%93, %c0_i32_661] : memref<64x128xf32, #tpu.memory_space<any>> -> memref<1x128xf32, #tpu.memory_space<any>>
    %c10_i32_662 = arith.constant 10 : i32
    %c0_i32_663 = arith.constant 0 : i32
    %774 = tpu.memref_slice %arg10[%c10_i32_662, %c0_i32_663] : memref<16x128xf32, #tpu.memory_space<vmem>> -> memref<1x128xf32, #tpu.memory_space<vmem>>
    %775 = tpu.memref_slice %arg15[%c10_i32_660] : memref<16x!tpu.dma_semaphore, #tpu.memory_space<semaphore_mem>> -> memref<1x!tpu.dma_semaphore, #tpu.memory_space<semaphore_mem>>
    %776 = tpu.memref_squeeze %775 : memref<1x!tpu.dma_semaphore, #tpu.memory_space<semaphore_mem>> -> memref<!tpu.dma_semaphore, #tpu.memory_space<semaphore_mem>>
    tpu.wait_dma2 semaphore(%776 : memref<!tpu.dma_semaphore, #tpu.memory_space<semaphore_mem>>) src(%773 : memref<1x128xf32, #tpu.memory_space<any>>) dst(%774 : memref<1x128xf32, #tpu.memory_space<vmem>>)
    %c10_i32_664 = arith.constant 10 : i32
    %c0_i32_665 = arith.constant 0 : i32
    %777 = tpu.memref_slice %arg6[%96, %c0_i32_665] : memref<8x128xf32, #tpu.memory_space<any>> -> memref<1x128xf32, #tpu.memory_space<any>>
    %c10_i32_666 = arith.constant 10 : i32
    %c0_i32_667 = arith.constant 0 : i32
    %778 = tpu.memref_slice %arg11[%c10_i32_666, %c0_i32_667] : memref<16x128xf32, #tpu.memory_space<vmem>> -> memref<1x128xf32, #tpu.memory_space<vmem>>
    %779 = tpu.memref_slice %arg15[%c10_i32_664] : memref<16x!tpu.dma_semaphore, #tpu.memory_space<semaphore_mem>> -> memref<1x!tpu.dma_semaphore, #tpu.memory_space<semaphore_mem>>
    %780 = tpu.memref_squeeze %779 : memref<1x!tpu.dma_semaphore, #tpu.memory_space<semaphore_mem>> -> memref<!tpu.dma_semaphore, #tpu.memory_space<semaphore_mem>>
    tpu.wait_dma2 semaphore(%780 : memref<!tpu.dma_semaphore, #tpu.memory_space<semaphore_mem>>) src(%777 : memref<1x128xf32, #tpu.memory_space<any>>) dst(%778 : memref<1x128xf32, #tpu.memory_space<vmem>>)
    %c10_i32_668 = arith.constant 10 : i32
    %c0_i32_669 = arith.constant 0 : i32
    %781 = tpu.memref_slice %arg7[%96, %c0_i32_669] : memref<8x128xf32, #tpu.memory_space<any>> -> memref<1x128xf32, #tpu.memory_space<any>>
    %c10_i32_670 = arith.constant 10 : i32
    %c0_i32_671 = arith.constant 0 : i32
    %782 = tpu.memref_slice %arg12[%c10_i32_670, %c0_i32_671] : memref<16x128xf32, #tpu.memory_space<vmem>> -> memref<1x128xf32, #tpu.memory_space<vmem>>
    %783 = tpu.memref_slice %arg15[%c10_i32_668] : memref<16x!tpu.dma_semaphore, #tpu.memory_space<semaphore_mem>> -> memref<1x!tpu.dma_semaphore, #tpu.memory_space<semaphore_mem>>
    %784 = tpu.memref_squeeze %783 : memref<1x!tpu.dma_semaphore, #tpu.memory_space<semaphore_mem>> -> memref<!tpu.dma_semaphore, #tpu.memory_space<semaphore_mem>>
    tpu.wait_dma2 semaphore(%784 : memref<!tpu.dma_semaphore, #tpu.memory_space<semaphore_mem>>) src(%781 : memref<1x128xf32, #tpu.memory_space<any>>) dst(%782 : memref<1x128xf32, #tpu.memory_space<vmem>>)
    %c10_i32_672 = arith.constant 10 : i32
    %c0_i32_673 = arith.constant 0 : i32
    %785 = tpu.memref_slice %arg4[%99, %c0_i32_673] : memref<64x128xf32, #tpu.memory_space<any>> -> memref<1x128xf32, #tpu.memory_space<any>>
    %c10_i32_674 = arith.constant 10 : i32
    %c0_i32_675 = arith.constant 0 : i32
    %786 = tpu.memref_slice %arg13[%c10_i32_674, %c0_i32_675] : memref<16x128xf32, #tpu.memory_space<vmem>> -> memref<1x128xf32, #tpu.memory_space<vmem>>
    %787 = tpu.memref_slice %arg15[%c10_i32_672] : memref<16x!tpu.dma_semaphore, #tpu.memory_space<semaphore_mem>> -> memref<1x!tpu.dma_semaphore, #tpu.memory_space<semaphore_mem>>
    %788 = tpu.memref_squeeze %787 : memref<1x!tpu.dma_semaphore, #tpu.memory_space<semaphore_mem>> -> memref<!tpu.dma_semaphore, #tpu.memory_space<semaphore_mem>>
    tpu.wait_dma2 semaphore(%788 : memref<!tpu.dma_semaphore, #tpu.memory_space<semaphore_mem>>) src(%785 : memref<1x128xf32, #tpu.memory_space<any>>) dst(%786 : memref<1x128xf32, #tpu.memory_space<vmem>>)
    %c10_i32_676 = arith.constant 10 : i32
    %c0_i32_677 = arith.constant 0 : i32
    %789 = tpu.memref_slice %arg5[%99, %c0_i32_677] : memref<64x128xf32, #tpu.memory_space<any>> -> memref<1x128xf32, #tpu.memory_space<any>>
    %c10_i32_678 = arith.constant 10 : i32
    %c0_i32_679 = arith.constant 0 : i32
    %790 = tpu.memref_slice %arg14[%c10_i32_678, %c0_i32_679] : memref<16x128xf32, #tpu.memory_space<vmem>> -> memref<1x128xf32, #tpu.memory_space<vmem>>
    %791 = tpu.memref_slice %arg15[%c10_i32_676] : memref<16x!tpu.dma_semaphore, #tpu.memory_space<semaphore_mem>> -> memref<1x!tpu.dma_semaphore, #tpu.memory_space<semaphore_mem>>
    %792 = tpu.memref_squeeze %791 : memref<1x!tpu.dma_semaphore, #tpu.memory_space<semaphore_mem>> -> memref<!tpu.dma_semaphore, #tpu.memory_space<semaphore_mem>>
    tpu.wait_dma2 semaphore(%792 : memref<!tpu.dma_semaphore, #tpu.memory_space<semaphore_mem>>) src(%789 : memref<1x128xf32, #tpu.memory_space<any>>) dst(%790 : memref<1x128xf32, #tpu.memory_space<vmem>>)
    %c11_i32_680 = arith.constant 11 : i32
    %c0_i32_681 = arith.constant 0 : i32
    %793 = tpu.memref_slice %arg4[%102, %c0_i32_681] : memref<64x128xf32, #tpu.memory_space<any>> -> memref<1x128xf32, #tpu.memory_space<any>>
    %c11_i32_682 = arith.constant 11 : i32
    %c0_i32_683 = arith.constant 0 : i32
    %794 = tpu.memref_slice %arg9[%c11_i32_682, %c0_i32_683] : memref<16x128xf32, #tpu.memory_space<vmem>> -> memref<1x128xf32, #tpu.memory_space<vmem>>
    %795 = tpu.memref_slice %arg15[%c11_i32_680] : memref<16x!tpu.dma_semaphore, #tpu.memory_space<semaphore_mem>> -> memref<1x!tpu.dma_semaphore, #tpu.memory_space<semaphore_mem>>
    %796 = tpu.memref_squeeze %795 : memref<1x!tpu.dma_semaphore, #tpu.memory_space<semaphore_mem>> -> memref<!tpu.dma_semaphore, #tpu.memory_space<semaphore_mem>>
    tpu.wait_dma2 semaphore(%796 : memref<!tpu.dma_semaphore, #tpu.memory_space<semaphore_mem>>) src(%793 : memref<1x128xf32, #tpu.memory_space<any>>) dst(%794 : memref<1x128xf32, #tpu.memory_space<vmem>>)
    %c11_i32_684 = arith.constant 11 : i32
    %c0_i32_685 = arith.constant 0 : i32
    %797 = tpu.memref_slice %arg5[%102, %c0_i32_685] : memref<64x128xf32, #tpu.memory_space<any>> -> memref<1x128xf32, #tpu.memory_space<any>>
    %c11_i32_686 = arith.constant 11 : i32
    %c0_i32_687 = arith.constant 0 : i32
    %798 = tpu.memref_slice %arg10[%c11_i32_686, %c0_i32_687] : memref<16x128xf32, #tpu.memory_space<vmem>> -> memref<1x128xf32, #tpu.memory_space<vmem>>
    %799 = tpu.memref_slice %arg15[%c11_i32_684] : memref<16x!tpu.dma_semaphore, #tpu.memory_space<semaphore_mem>> -> memref<1x!tpu.dma_semaphore, #tpu.memory_space<semaphore_mem>>
    %800 = tpu.memref_squeeze %799 : memref<1x!tpu.dma_semaphore, #tpu.memory_space<semaphore_mem>> -> memref<!tpu.dma_semaphore, #tpu.memory_space<semaphore_mem>>
    tpu.wait_dma2 semaphore(%800 : memref<!tpu.dma_semaphore, #tpu.memory_space<semaphore_mem>>) src(%797 : memref<1x128xf32, #tpu.memory_space<any>>) dst(%798 : memref<1x128xf32, #tpu.memory_space<vmem>>)
    %c11_i32_688 = arith.constant 11 : i32
    %c0_i32_689 = arith.constant 0 : i32
    %801 = tpu.memref_slice %arg6[%105, %c0_i32_689] : memref<8x128xf32, #tpu.memory_space<any>> -> memref<1x128xf32, #tpu.memory_space<any>>
    %c11_i32_690 = arith.constant 11 : i32
    %c0_i32_691 = arith.constant 0 : i32
    %802 = tpu.memref_slice %arg11[%c11_i32_690, %c0_i32_691] : memref<16x128xf32, #tpu.memory_space<vmem>> -> memref<1x128xf32, #tpu.memory_space<vmem>>
    %803 = tpu.memref_slice %arg15[%c11_i32_688] : memref<16x!tpu.dma_semaphore, #tpu.memory_space<semaphore_mem>> -> memref<1x!tpu.dma_semaphore, #tpu.memory_space<semaphore_mem>>
    %804 = tpu.memref_squeeze %803 : memref<1x!tpu.dma_semaphore, #tpu.memory_space<semaphore_mem>> -> memref<!tpu.dma_semaphore, #tpu.memory_space<semaphore_mem>>
    tpu.wait_dma2 semaphore(%804 : memref<!tpu.dma_semaphore, #tpu.memory_space<semaphore_mem>>) src(%801 : memref<1x128xf32, #tpu.memory_space<any>>) dst(%802 : memref<1x128xf32, #tpu.memory_space<vmem>>)
    %c11_i32_692 = arith.constant 11 : i32
    %c0_i32_693 = arith.constant 0 : i32
    %805 = tpu.memref_slice %arg7[%105, %c0_i32_693] : memref<8x128xf32, #tpu.memory_space<any>> -> memref<1x128xf32, #tpu.memory_space<any>>
    %c11_i32_694 = arith.constant 11 : i32
    %c0_i32_695 = arith.constant 0 : i32
    %806 = tpu.memref_slice %arg12[%c11_i32_694, %c0_i32_695] : memref<16x128xf32, #tpu.memory_space<vmem>> -> memref<1x128xf32, #tpu.memory_space<vmem>>
    %807 = tpu.memref_slice %arg15[%c11_i32_692] : memref<16x!tpu.dma_semaphore, #tpu.memory_space<semaphore_mem>> -> memref<1x!tpu.dma_semaphore, #tpu.memory_space<semaphore_mem>>
    %808 = tpu.memref_squeeze %807 : memref<1x!tpu.dma_semaphore, #tpu.memory_space<semaphore_mem>> -> memref<!tpu.dma_semaphore, #tpu.memory_space<semaphore_mem>>
    tpu.wait_dma2 semaphore(%808 : memref<!tpu.dma_semaphore, #tpu.memory_space<semaphore_mem>>) src(%805 : memref<1x128xf32, #tpu.memory_space<any>>) dst(%806 : memref<1x128xf32, #tpu.memory_space<vmem>>)
    %c11_i32_696 = arith.constant 11 : i32
    %c0_i32_697 = arith.constant 0 : i32
    %809 = tpu.memref_slice %arg4[%108, %c0_i32_697] : memref<64x128xf32, #tpu.memory_space<any>> -> memref<1x128xf32, #tpu.memory_space<any>>
    %c11_i32_698 = arith.constant 11 : i32
    %c0_i32_699 = arith.constant 0 : i32
    %810 = tpu.memref_slice %arg13[%c11_i32_698, %c0_i32_699] : memref<16x128xf32, #tpu.memory_space<vmem>> -> memref<1x128xf32, #tpu.memory_space<vmem>>
    %811 = tpu.memref_slice %arg15[%c11_i32_696] : memref<16x!tpu.dma_semaphore, #tpu.memory_space<semaphore_mem>> -> memref<1x!tpu.dma_semaphore, #tpu.memory_space<semaphore_mem>>
    %812 = tpu.memref_squeeze %811 : memref<1x!tpu.dma_semaphore, #tpu.memory_space<semaphore_mem>> -> memref<!tpu.dma_semaphore, #tpu.memory_space<semaphore_mem>>
    tpu.wait_dma2 semaphore(%812 : memref<!tpu.dma_semaphore, #tpu.memory_space<semaphore_mem>>) src(%809 : memref<1x128xf32, #tpu.memory_space<any>>) dst(%810 : memref<1x128xf32, #tpu.memory_space<vmem>>)
    %c11_i32_700 = arith.constant 11 : i32
    %c0_i32_701 = arith.constant 0 : i32
    %813 = tpu.memref_slice %arg5[%108, %c0_i32_701] : memref<64x128xf32, #tpu.memory_space<any>> -> memref<1x128xf32, #tpu.memory_space<any>>
    %c11_i32_702 = arith.constant 11 : i32
    %c0_i32_703 = arith.constant 0 : i32
    %814 = tpu.memref_slice %arg14[%c11_i32_702, %c0_i32_703] : memref<16x128xf32, #tpu.memory_space<vmem>> -> memref<1x128xf32, #tpu.memory_space<vmem>>
    %815 = tpu.memref_slice %arg15[%c11_i32_700] : memref<16x!tpu.dma_semaphore, #tpu.memory_space<semaphore_mem>> -> memref<1x!tpu.dma_semaphore, #tpu.memory_space<semaphore_mem>>
    %816 = tpu.memref_squeeze %815 : memref<1x!tpu.dma_semaphore, #tpu.memory_space<semaphore_mem>> -> memref<!tpu.dma_semaphore, #tpu.memory_space<semaphore_mem>>
    tpu.wait_dma2 semaphore(%816 : memref<!tpu.dma_semaphore, #tpu.memory_space<semaphore_mem>>) src(%813 : memref<1x128xf32, #tpu.memory_space<any>>) dst(%814 : memref<1x128xf32, #tpu.memory_space<vmem>>)
    %c12_i32_704 = arith.constant 12 : i32
    %c0_i32_705 = arith.constant 0 : i32
    %817 = tpu.memref_slice %arg4[%111, %c0_i32_705] : memref<64x128xf32, #tpu.memory_space<any>> -> memref<1x128xf32, #tpu.memory_space<any>>
    %c12_i32_706 = arith.constant 12 : i32
    %c0_i32_707 = arith.constant 0 : i32
    %818 = tpu.memref_slice %arg9[%c12_i32_706, %c0_i32_707] : memref<16x128xf32, #tpu.memory_space<vmem>> -> memref<1x128xf32, #tpu.memory_space<vmem>>
    %819 = tpu.memref_slice %arg15[%c12_i32_704] : memref<16x!tpu.dma_semaphore, #tpu.memory_space<semaphore_mem>> -> memref<1x!tpu.dma_semaphore, #tpu.memory_space<semaphore_mem>>
    %820 = tpu.memref_squeeze %819 : memref<1x!tpu.dma_semaphore, #tpu.memory_space<semaphore_mem>> -> memref<!tpu.dma_semaphore, #tpu.memory_space<semaphore_mem>>
    tpu.wait_dma2 semaphore(%820 : memref<!tpu.dma_semaphore, #tpu.memory_space<semaphore_mem>>) src(%817 : memref<1x128xf32, #tpu.memory_space<any>>) dst(%818 : memref<1x128xf32, #tpu.memory_space<vmem>>)
    %c12_i32_708 = arith.constant 12 : i32
    %c0_i32_709 = arith.constant 0 : i32
    %821 = tpu.memref_slice %arg5[%111, %c0_i32_709] : memref<64x128xf32, #tpu.memory_space<any>> -> memref<1x128xf32, #tpu.memory_space<any>>
    %c12_i32_710 = arith.constant 12 : i32
    %c0_i32_711 = arith.constant 0 : i32
    %822 = tpu.memref_slice %arg10[%c12_i32_710, %c0_i32_711] : memref<16x128xf32, #tpu.memory_space<vmem>> -> memref<1x128xf32, #tpu.memory_space<vmem>>
    %823 = tpu.memref_slice %arg15[%c12_i32_708] : memref<16x!tpu.dma_semaphore, #tpu.memory_space<semaphore_mem>> -> memref<1x!tpu.dma_semaphore, #tpu.memory_space<semaphore_mem>>
    %824 = tpu.memref_squeeze %823 : memref<1x!tpu.dma_semaphore, #tpu.memory_space<semaphore_mem>> -> memref<!tpu.dma_semaphore, #tpu.memory_space<semaphore_mem>>
    tpu.wait_dma2 semaphore(%824 : memref<!tpu.dma_semaphore, #tpu.memory_space<semaphore_mem>>) src(%821 : memref<1x128xf32, #tpu.memory_space<any>>) dst(%822 : memref<1x128xf32, #tpu.memory_space<vmem>>)
    %c12_i32_712 = arith.constant 12 : i32
    %c0_i32_713 = arith.constant 0 : i32
    %825 = tpu.memref_slice %arg6[%114, %c0_i32_713] : memref<8x128xf32, #tpu.memory_space<any>> -> memref<1x128xf32, #tpu.memory_space<any>>
    %c12_i32_714 = arith.constant 12 : i32
    %c0_i32_715 = arith.constant 0 : i32
    %826 = tpu.memref_slice %arg11[%c12_i32_714, %c0_i32_715] : memref<16x128xf32, #tpu.memory_space<vmem>> -> memref<1x128xf32, #tpu.memory_space<vmem>>
    %827 = tpu.memref_slice %arg15[%c12_i32_712] : memref<16x!tpu.dma_semaphore, #tpu.memory_space<semaphore_mem>> -> memref<1x!tpu.dma_semaphore, #tpu.memory_space<semaphore_mem>>
    %828 = tpu.memref_squeeze %827 : memref<1x!tpu.dma_semaphore, #tpu.memory_space<semaphore_mem>> -> memref<!tpu.dma_semaphore, #tpu.memory_space<semaphore_mem>>
    tpu.wait_dma2 semaphore(%828 : memref<!tpu.dma_semaphore, #tpu.memory_space<semaphore_mem>>) src(%825 : memref<1x128xf32, #tpu.memory_space<any>>) dst(%826 : memref<1x128xf32, #tpu.memory_space<vmem>>)
    %c12_i32_716 = arith.constant 12 : i32
    %c0_i32_717 = arith.constant 0 : i32
    %829 = tpu.memref_slice %arg7[%114, %c0_i32_717] : memref<8x128xf32, #tpu.memory_space<any>> -> memref<1x128xf32, #tpu.memory_space<any>>
    %c12_i32_718 = arith.constant 12 : i32
    %c0_i32_719 = arith.constant 0 : i32
    %830 = tpu.memref_slice %arg12[%c12_i32_718, %c0_i32_719] : memref<16x128xf32, #tpu.memory_space<vmem>> -> memref<1x128xf32, #tpu.memory_space<vmem>>
    %831 = tpu.memref_slice %arg15[%c12_i32_716] : memref<16x!tpu.dma_semaphore, #tpu.memory_space<semaphore_mem>> -> memref<1x!tpu.dma_semaphore, #tpu.memory_space<semaphore_mem>>
    %832 = tpu.memref_squeeze %831 : memref<1x!tpu.dma_semaphore, #tpu.memory_space<semaphore_mem>> -> memref<!tpu.dma_semaphore, #tpu.memory_space<semaphore_mem>>
    tpu.wait_dma2 semaphore(%832 : memref<!tpu.dma_semaphore, #tpu.memory_space<semaphore_mem>>) src(%829 : memref<1x128xf32, #tpu.memory_space<any>>) dst(%830 : memref<1x128xf32, #tpu.memory_space<vmem>>)
    %c12_i32_720 = arith.constant 12 : i32
    %c0_i32_721 = arith.constant 0 : i32
    %833 = tpu.memref_slice %arg4[%117, %c0_i32_721] : memref<64x128xf32, #tpu.memory_space<any>> -> memref<1x128xf32, #tpu.memory_space<any>>
    %c12_i32_722 = arith.constant 12 : i32
    %c0_i32_723 = arith.constant 0 : i32
    %834 = tpu.memref_slice %arg13[%c12_i32_722, %c0_i32_723] : memref<16x128xf32, #tpu.memory_space<vmem>> -> memref<1x128xf32, #tpu.memory_space<vmem>>
    %835 = tpu.memref_slice %arg15[%c12_i32_720] : memref<16x!tpu.dma_semaphore, #tpu.memory_space<semaphore_mem>> -> memref<1x!tpu.dma_semaphore, #tpu.memory_space<semaphore_mem>>
    %836 = tpu.memref_squeeze %835 : memref<1x!tpu.dma_semaphore, #tpu.memory_space<semaphore_mem>> -> memref<!tpu.dma_semaphore, #tpu.memory_space<semaphore_mem>>
    tpu.wait_dma2 semaphore(%836 : memref<!tpu.dma_semaphore, #tpu.memory_space<semaphore_mem>>) src(%833 : memref<1x128xf32, #tpu.memory_space<any>>) dst(%834 : memref<1x128xf32, #tpu.memory_space<vmem>>)
    %c12_i32_724 = arith.constant 12 : i32
    %c0_i32_725 = arith.constant 0 : i32
    %837 = tpu.memref_slice %arg5[%117, %c0_i32_725] : memref<64x128xf32, #tpu.memory_space<any>> -> memref<1x128xf32, #tpu.memory_space<any>>
    %c12_i32_726 = arith.constant 12 : i32
    %c0_i32_727 = arith.constant 0 : i32
    %838 = tpu.memref_slice %arg14[%c12_i32_726, %c0_i32_727] : memref<16x128xf32, #tpu.memory_space<vmem>> -> memref<1x128xf32, #tpu.memory_space<vmem>>
    %839 = tpu.memref_slice %arg15[%c12_i32_724] : memref<16x!tpu.dma_semaphore, #tpu.memory_space<semaphore_mem>> -> memref<1x!tpu.dma_semaphore, #tpu.memory_space<semaphore_mem>>
    %840 = tpu.memref_squeeze %839 : memref<1x!tpu.dma_semaphore, #tpu.memory_space<semaphore_mem>> -> memref<!tpu.dma_semaphore, #tpu.memory_space<semaphore_mem>>
    tpu.wait_dma2 semaphore(%840 : memref<!tpu.dma_semaphore, #tpu.memory_space<semaphore_mem>>) src(%837 : memref<1x128xf32, #tpu.memory_space<any>>) dst(%838 : memref<1x128xf32, #tpu.memory_space<vmem>>)
    %c13_i32_728 = arith.constant 13 : i32
    %c0_i32_729 = arith.constant 0 : i32
    %841 = tpu.memref_slice %arg4[%120, %c0_i32_729] : memref<64x128xf32, #tpu.memory_space<any>> -> memref<1x128xf32, #tpu.memory_space<any>>
    %c13_i32_730 = arith.constant 13 : i32
    %c0_i32_731 = arith.constant 0 : i32
    %842 = tpu.memref_slice %arg9[%c13_i32_730, %c0_i32_731] : memref<16x128xf32, #tpu.memory_space<vmem>> -> memref<1x128xf32, #tpu.memory_space<vmem>>
    %843 = tpu.memref_slice %arg15[%c13_i32_728] : memref<16x!tpu.dma_semaphore, #tpu.memory_space<semaphore_mem>> -> memref<1x!tpu.dma_semaphore, #tpu.memory_space<semaphore_mem>>
    %844 = tpu.memref_squeeze %843 : memref<1x!tpu.dma_semaphore, #tpu.memory_space<semaphore_mem>> -> memref<!tpu.dma_semaphore, #tpu.memory_space<semaphore_mem>>
    tpu.wait_dma2 semaphore(%844 : memref<!tpu.dma_semaphore, #tpu.memory_space<semaphore_mem>>) src(%841 : memref<1x128xf32, #tpu.memory_space<any>>) dst(%842 : memref<1x128xf32, #tpu.memory_space<vmem>>)
    %c13_i32_732 = arith.constant 13 : i32
    %c0_i32_733 = arith.constant 0 : i32
    %845 = tpu.memref_slice %arg5[%120, %c0_i32_733] : memref<64x128xf32, #tpu.memory_space<any>> -> memref<1x128xf32, #tpu.memory_space<any>>
    %c13_i32_734 = arith.constant 13 : i32
    %c0_i32_735 = arith.constant 0 : i32
    %846 = tpu.memref_slice %arg10[%c13_i32_734, %c0_i32_735] : memref<16x128xf32, #tpu.memory_space<vmem>> -> memref<1x128xf32, #tpu.memory_space<vmem>>
    %847 = tpu.memref_slice %arg15[%c13_i32_732] : memref<16x!tpu.dma_semaphore, #tpu.memory_space<semaphore_mem>> -> memref<1x!tpu.dma_semaphore, #tpu.memory_space<semaphore_mem>>
    %848 = tpu.memref_squeeze %847 : memref<1x!tpu.dma_semaphore, #tpu.memory_space<semaphore_mem>> -> memref<!tpu.dma_semaphore, #tpu.memory_space<semaphore_mem>>
    tpu.wait_dma2 semaphore(%848 : memref<!tpu.dma_semaphore, #tpu.memory_space<semaphore_mem>>) src(%845 : memref<1x128xf32, #tpu.memory_space<any>>) dst(%846 : memref<1x128xf32, #tpu.memory_space<vmem>>)
    %c13_i32_736 = arith.constant 13 : i32
    %c0_i32_737 = arith.constant 0 : i32
    %849 = tpu.memref_slice %arg6[%123, %c0_i32_737] : memref<8x128xf32, #tpu.memory_space<any>> -> memref<1x128xf32, #tpu.memory_space<any>>
    %c13_i32_738 = arith.constant 13 : i32
    %c0_i32_739 = arith.constant 0 : i32
    %850 = tpu.memref_slice %arg11[%c13_i32_738, %c0_i32_739] : memref<16x128xf32, #tpu.memory_space<vmem>> -> memref<1x128xf32, #tpu.memory_space<vmem>>
    %851 = tpu.memref_slice %arg15[%c13_i32_736] : memref<16x!tpu.dma_semaphore, #tpu.memory_space<semaphore_mem>> -> memref<1x!tpu.dma_semaphore, #tpu.memory_space<semaphore_mem>>
    %852 = tpu.memref_squeeze %851 : memref<1x!tpu.dma_semaphore, #tpu.memory_space<semaphore_mem>> -> memref<!tpu.dma_semaphore, #tpu.memory_space<semaphore_mem>>
    tpu.wait_dma2 semaphore(%852 : memref<!tpu.dma_semaphore, #tpu.memory_space<semaphore_mem>>) src(%849 : memref<1x128xf32, #tpu.memory_space<any>>) dst(%850 : memref<1x128xf32, #tpu.memory_space<vmem>>)
    %c13_i32_740 = arith.constant 13 : i32
    %c0_i32_741 = arith.constant 0 : i32
    %853 = tpu.memref_slice %arg7[%123, %c0_i32_741] : memref<8x128xf32, #tpu.memory_space<any>> -> memref<1x128xf32, #tpu.memory_space<any>>
    %c13_i32_742 = arith.constant 13 : i32
    %c0_i32_743 = arith.constant 0 : i32
    %854 = tpu.memref_slice %arg12[%c13_i32_742, %c0_i32_743] : memref<16x128xf32, #tpu.memory_space<vmem>> -> memref<1x128xf32, #tpu.memory_space<vmem>>
    %855 = tpu.memref_slice %arg15[%c13_i32_740] : memref<16x!tpu.dma_semaphore, #tpu.memory_space<semaphore_mem>> -> memref<1x!tpu.dma_semaphore, #tpu.memory_space<semaphore_mem>>
    %856 = tpu.memref_squeeze %855 : memref<1x!tpu.dma_semaphore, #tpu.memory_space<semaphore_mem>> -> memref<!tpu.dma_semaphore, #tpu.memory_space<semaphore_mem>>
    tpu.wait_dma2 semaphore(%856 : memref<!tpu.dma_semaphore, #tpu.memory_space<semaphore_mem>>) src(%853 : memref<1x128xf32, #tpu.memory_space<any>>) dst(%854 : memref<1x128xf32, #tpu.memory_space<vmem>>)
    %c13_i32_744 = arith.constant 13 : i32
    %c0_i32_745 = arith.constant 0 : i32
    %857 = tpu.memref_slice %arg4[%126, %c0_i32_745] : memref<64x128xf32, #tpu.memory_space<any>> -> memref<1x128xf32, #tpu.memory_space<any>>
    %c13_i32_746 = arith.constant 13 : i32
    %c0_i32_747 = arith.constant 0 : i32
    %858 = tpu.memref_slice %arg13[%c13_i32_746, %c0_i32_747] : memref<16x128xf32, #tpu.memory_space<vmem>> -> memref<1x128xf32, #tpu.memory_space<vmem>>
    %859 = tpu.memref_slice %arg15[%c13_i32_744] : memref<16x!tpu.dma_semaphore, #tpu.memory_space<semaphore_mem>> -> memref<1x!tpu.dma_semaphore, #tpu.memory_space<semaphore_mem>>
    %860 = tpu.memref_squeeze %859 : memref<1x!tpu.dma_semaphore, #tpu.memory_space<semaphore_mem>> -> memref<!tpu.dma_semaphore, #tpu.memory_space<semaphore_mem>>
    tpu.wait_dma2 semaphore(%860 : memref<!tpu.dma_semaphore, #tpu.memory_space<semaphore_mem>>) src(%857 : memref<1x128xf32, #tpu.memory_space<any>>) dst(%858 : memref<1x128xf32, #tpu.memory_space<vmem>>)
    %c13_i32_748 = arith.constant 13 : i32
    %c0_i32_749 = arith.constant 0 : i32
    %861 = tpu.memref_slice %arg5[%126, %c0_i32_749] : memref<64x128xf32, #tpu.memory_space<any>> -> memref<1x128xf32, #tpu.memory_space<any>>
    %c13_i32_750 = arith.constant 13 : i32
    %c0_i32_751 = arith.constant 0 : i32
    %862 = tpu.memref_slice %arg14[%c13_i32_750, %c0_i32_751] : memref<16x128xf32, #tpu.memory_space<vmem>> -> memref<1x128xf32, #tpu.memory_space<vmem>>
    %863 = tpu.memref_slice %arg15[%c13_i32_748] : memref<16x!tpu.dma_semaphore, #tpu.memory_space<semaphore_mem>> -> memref<1x!tpu.dma_semaphore, #tpu.memory_space<semaphore_mem>>
    %864 = tpu.memref_squeeze %863 : memref<1x!tpu.dma_semaphore, #tpu.memory_space<semaphore_mem>> -> memref<!tpu.dma_semaphore, #tpu.memory_space<semaphore_mem>>
    tpu.wait_dma2 semaphore(%864 : memref<!tpu.dma_semaphore, #tpu.memory_space<semaphore_mem>>) src(%861 : memref<1x128xf32, #tpu.memory_space<any>>) dst(%862 : memref<1x128xf32, #tpu.memory_space<vmem>>)
    %c14_i32_752 = arith.constant 14 : i32
    %c0_i32_753 = arith.constant 0 : i32
    %865 = tpu.memref_slice %arg4[%129, %c0_i32_753] : memref<64x128xf32, #tpu.memory_space<any>> -> memref<1x128xf32, #tpu.memory_space<any>>
    %c14_i32_754 = arith.constant 14 : i32
    %c0_i32_755 = arith.constant 0 : i32
    %866 = tpu.memref_slice %arg9[%c14_i32_754, %c0_i32_755] : memref<16x128xf32, #tpu.memory_space<vmem>> -> memref<1x128xf32, #tpu.memory_space<vmem>>
    %867 = tpu.memref_slice %arg15[%c14_i32_752] : memref<16x!tpu.dma_semaphore, #tpu.memory_space<semaphore_mem>> -> memref<1x!tpu.dma_semaphore, #tpu.memory_space<semaphore_mem>>
    %868 = tpu.memref_squeeze %867 : memref<1x!tpu.dma_semaphore, #tpu.memory_space<semaphore_mem>> -> memref<!tpu.dma_semaphore, #tpu.memory_space<semaphore_mem>>
    tpu.wait_dma2 semaphore(%868 : memref<!tpu.dma_semaphore, #tpu.memory_space<semaphore_mem>>) src(%865 : memref<1x128xf32, #tpu.memory_space<any>>) dst(%866 : memref<1x128xf32, #tpu.memory_space<vmem>>)
    %c14_i32_756 = arith.constant 14 : i32
    %c0_i32_757 = arith.constant 0 : i32
    %869 = tpu.memref_slice %arg5[%129, %c0_i32_757] : memref<64x128xf32, #tpu.memory_space<any>> -> memref<1x128xf32, #tpu.memory_space<any>>
    %c14_i32_758 = arith.constant 14 : i32
    %c0_i32_759 = arith.constant 0 : i32
    %870 = tpu.memref_slice %arg10[%c14_i32_758, %c0_i32_759] : memref<16x128xf32, #tpu.memory_space<vmem>> -> memref<1x128xf32, #tpu.memory_space<vmem>>
    %871 = tpu.memref_slice %arg15[%c14_i32_756] : memref<16x!tpu.dma_semaphore, #tpu.memory_space<semaphore_mem>> -> memref<1x!tpu.dma_semaphore, #tpu.memory_space<semaphore_mem>>
    %872 = tpu.memref_squeeze %871 : memref<1x!tpu.dma_semaphore, #tpu.memory_space<semaphore_mem>> -> memref<!tpu.dma_semaphore, #tpu.memory_space<semaphore_mem>>
    tpu.wait_dma2 semaphore(%872 : memref<!tpu.dma_semaphore, #tpu.memory_space<semaphore_mem>>) src(%869 : memref<1x128xf32, #tpu.memory_space<any>>) dst(%870 : memref<1x128xf32, #tpu.memory_space<vmem>>)
    %c14_i32_760 = arith.constant 14 : i32
    %c0_i32_761 = arith.constant 0 : i32
    %873 = tpu.memref_slice %arg6[%132, %c0_i32_761] : memref<8x128xf32, #tpu.memory_space<any>> -> memref<1x128xf32, #tpu.memory_space<any>>
    %c14_i32_762 = arith.constant 14 : i32
    %c0_i32_763 = arith.constant 0 : i32
    %874 = tpu.memref_slice %arg11[%c14_i32_762, %c0_i32_763] : memref<16x128xf32, #tpu.memory_space<vmem>> -> memref<1x128xf32, #tpu.memory_space<vmem>>
    %875 = tpu.memref_slice %arg15[%c14_i32_760] : memref<16x!tpu.dma_semaphore, #tpu.memory_space<semaphore_mem>> -> memref<1x!tpu.dma_semaphore, #tpu.memory_space<semaphore_mem>>
    %876 = tpu.memref_squeeze %875 : memref<1x!tpu.dma_semaphore, #tpu.memory_space<semaphore_mem>> -> memref<!tpu.dma_semaphore, #tpu.memory_space<semaphore_mem>>
    tpu.wait_dma2 semaphore(%876 : memref<!tpu.dma_semaphore, #tpu.memory_space<semaphore_mem>>) src(%873 : memref<1x128xf32, #tpu.memory_space<any>>) dst(%874 : memref<1x128xf32, #tpu.memory_space<vmem>>)
    %c14_i32_764 = arith.constant 14 : i32
    %c0_i32_765 = arith.constant 0 : i32
    %877 = tpu.memref_slice %arg7[%132, %c0_i32_765] : memref<8x128xf32, #tpu.memory_space<any>> -> memref<1x128xf32, #tpu.memory_space<any>>
    %c14_i32_766 = arith.constant 14 : i32
    %c0_i32_767 = arith.constant 0 : i32
    %878 = tpu.memref_slice %arg12[%c14_i32_766, %c0_i32_767] : memref<16x128xf32, #tpu.memory_space<vmem>> -> memref<1x128xf32, #tpu.memory_space<vmem>>
    %879 = tpu.memref_slice %arg15[%c14_i32_764] : memref<16x!tpu.dma_semaphore, #tpu.memory_space<semaphore_mem>> -> memref<1x!tpu.dma_semaphore, #tpu.memory_space<semaphore_mem>>
    %880 = tpu.memref_squeeze %879 : memref<1x!tpu.dma_semaphore, #tpu.memory_space<semaphore_mem>> -> memref<!tpu.dma_semaphore, #tpu.memory_space<semaphore_mem>>
    tpu.wait_dma2 semaphore(%880 : memref<!tpu.dma_semaphore, #tpu.memory_space<semaphore_mem>>) src(%877 : memref<1x128xf32, #tpu.memory_space<any>>) dst(%878 : memref<1x128xf32, #tpu.memory_space<vmem>>)
    %c14_i32_768 = arith.constant 14 : i32
    %c0_i32_769 = arith.constant 0 : i32
    %881 = tpu.memref_slice %arg4[%135, %c0_i32_769] : memref<64x128xf32, #tpu.memory_space<any>> -> memref<1x128xf32, #tpu.memory_space<any>>
    %c14_i32_770 = arith.constant 14 : i32
    %c0_i32_771 = arith.constant 0 : i32
    %882 = tpu.memref_slice %arg13[%c14_i32_770, %c0_i32_771] : memref<16x128xf32, #tpu.memory_space<vmem>> -> memref<1x128xf32, #tpu.memory_space<vmem>>
    %883 = tpu.memref_slice %arg15[%c14_i32_768] : memref<16x!tpu.dma_semaphore, #tpu.memory_space<semaphore_mem>> -> memref<1x!tpu.dma_semaphore, #tpu.memory_space<semaphore_mem>>
    %884 = tpu.memref_squeeze %883 : memref<1x!tpu.dma_semaphore, #tpu.memory_space<semaphore_mem>> -> memref<!tpu.dma_semaphore, #tpu.memory_space<semaphore_mem>>
    tpu.wait_dma2 semaphore(%884 : memref<!tpu.dma_semaphore, #tpu.memory_space<semaphore_mem>>) src(%881 : memref<1x128xf32, #tpu.memory_space<any>>) dst(%882 : memref<1x128xf32, #tpu.memory_space<vmem>>)
    %c14_i32_772 = arith.constant 14 : i32
    %c0_i32_773 = arith.constant 0 : i32
    %885 = tpu.memref_slice %arg5[%135, %c0_i32_773] : memref<64x128xf32, #tpu.memory_space<any>> -> memref<1x128xf32, #tpu.memory_space<any>>
    %c14_i32_774 = arith.constant 14 : i32
    %c0_i32_775 = arith.constant 0 : i32
    %886 = tpu.memref_slice %arg14[%c14_i32_774, %c0_i32_775] : memref<16x128xf32, #tpu.memory_space<vmem>> -> memref<1x128xf32, #tpu.memory_space<vmem>>
    %887 = tpu.memref_slice %arg15[%c14_i32_772] : memref<16x!tpu.dma_semaphore, #tpu.memory_space<semaphore_mem>> -> memref<1x!tpu.dma_semaphore, #tpu.memory_space<semaphore_mem>>
    %888 = tpu.memref_squeeze %887 : memref<1x!tpu.dma_semaphore, #tpu.memory_space<semaphore_mem>> -> memref<!tpu.dma_semaphore, #tpu.memory_space<semaphore_mem>>
    tpu.wait_dma2 semaphore(%888 : memref<!tpu.dma_semaphore, #tpu.memory_space<semaphore_mem>>) src(%885 : memref<1x128xf32, #tpu.memory_space<any>>) dst(%886 : memref<1x128xf32, #tpu.memory_space<vmem>>)
    %c15_i32_776 = arith.constant 15 : i32
    %c0_i32_777 = arith.constant 0 : i32
    %889 = tpu.memref_slice %arg4[%138, %c0_i32_777] : memref<64x128xf32, #tpu.memory_space<any>> -> memref<1x128xf32, #tpu.memory_space<any>>
    %c15_i32_778 = arith.constant 15 : i32
    %c0_i32_779 = arith.constant 0 : i32
    %890 = tpu.memref_slice %arg9[%c15_i32_778, %c0_i32_779] : memref<16x128xf32, #tpu.memory_space<vmem>> -> memref<1x128xf32, #tpu.memory_space<vmem>>
    %891 = tpu.memref_slice %arg15[%c15_i32_776] : memref<16x!tpu.dma_semaphore, #tpu.memory_space<semaphore_mem>> -> memref<1x!tpu.dma_semaphore, #tpu.memory_space<semaphore_mem>>
    %892 = tpu.memref_squeeze %891 : memref<1x!tpu.dma_semaphore, #tpu.memory_space<semaphore_mem>> -> memref<!tpu.dma_semaphore, #tpu.memory_space<semaphore_mem>>
    tpu.wait_dma2 semaphore(%892 : memref<!tpu.dma_semaphore, #tpu.memory_space<semaphore_mem>>) src(%889 : memref<1x128xf32, #tpu.memory_space<any>>) dst(%890 : memref<1x128xf32, #tpu.memory_space<vmem>>)
    %c15_i32_780 = arith.constant 15 : i32
    %c0_i32_781 = arith.constant 0 : i32
    %893 = tpu.memref_slice %arg5[%138, %c0_i32_781] : memref<64x128xf32, #tpu.memory_space<any>> -> memref<1x128xf32, #tpu.memory_space<any>>
    %c15_i32_782 = arith.constant 15 : i32
    %c0_i32_783 = arith.constant 0 : i32
    %894 = tpu.memref_slice %arg10[%c15_i32_782, %c0_i32_783] : memref<16x128xf32, #tpu.memory_space<vmem>> -> memref<1x128xf32, #tpu.memory_space<vmem>>
    %895 = tpu.memref_slice %arg15[%c15_i32_780] : memref<16x!tpu.dma_semaphore, #tpu.memory_space<semaphore_mem>> -> memref<1x!tpu.dma_semaphore, #tpu.memory_space<semaphore_mem>>
    %896 = tpu.memref_squeeze %895 : memref<1x!tpu.dma_semaphore, #tpu.memory_space<semaphore_mem>> -> memref<!tpu.dma_semaphore, #tpu.memory_space<semaphore_mem>>
    tpu.wait_dma2 semaphore(%896 : memref<!tpu.dma_semaphore, #tpu.memory_space<semaphore_mem>>) src(%893 : memref<1x128xf32, #tpu.memory_space<any>>) dst(%894 : memref<1x128xf32, #tpu.memory_space<vmem>>)
    %c15_i32_784 = arith.constant 15 : i32
    %c0_i32_785 = arith.constant 0 : i32
    %897 = tpu.memref_slice %arg6[%141, %c0_i32_785] : memref<8x128xf32, #tpu.memory_space<any>> -> memref<1x128xf32, #tpu.memory_space<any>>
    %c15_i32_786 = arith.constant 15 : i32
    %c0_i32_787 = arith.constant 0 : i32
    %898 = tpu.memref_slice %arg11[%c15_i32_786, %c0_i32_787] : memref<16x128xf32, #tpu.memory_space<vmem>> -> memref<1x128xf32, #tpu.memory_space<vmem>>
    %899 = tpu.memref_slice %arg15[%c15_i32_784] : memref<16x!tpu.dma_semaphore, #tpu.memory_space<semaphore_mem>> -> memref<1x!tpu.dma_semaphore, #tpu.memory_space<semaphore_mem>>
    %900 = tpu.memref_squeeze %899 : memref<1x!tpu.dma_semaphore, #tpu.memory_space<semaphore_mem>> -> memref<!tpu.dma_semaphore, #tpu.memory_space<semaphore_mem>>
    tpu.wait_dma2 semaphore(%900 : memref<!tpu.dma_semaphore, #tpu.memory_space<semaphore_mem>>) src(%897 : memref<1x128xf32, #tpu.memory_space<any>>) dst(%898 : memref<1x128xf32, #tpu.memory_space<vmem>>)
    %c15_i32_788 = arith.constant 15 : i32
    %c0_i32_789 = arith.constant 0 : i32
    %901 = tpu.memref_slice %arg7[%141, %c0_i32_789] : memref<8x128xf32, #tpu.memory_space<any>> -> memref<1x128xf32, #tpu.memory_space<any>>
    %c15_i32_790 = arith.constant 15 : i32
    %c0_i32_791 = arith.constant 0 : i32
    %902 = tpu.memref_slice %arg12[%c15_i32_790, %c0_i32_791] : memref<16x128xf32, #tpu.memory_space<vmem>> -> memref<1x128xf32, #tpu.memory_space<vmem>>
    %903 = tpu.memref_slice %arg15[%c15_i32_788] : memref<16x!tpu.dma_semaphore, #tpu.memory_space<semaphore_mem>> -> memref<1x!tpu.dma_semaphore, #tpu.memory_space<semaphore_mem>>
    %904 = tpu.memref_squeeze %903 : memref<1x!tpu.dma_semaphore, #tpu.memory_space<semaphore_mem>> -> memref<!tpu.dma_semaphore, #tpu.memory_space<semaphore_mem>>
    tpu.wait_dma2 semaphore(%904 : memref<!tpu.dma_semaphore, #tpu.memory_space<semaphore_mem>>) src(%901 : memref<1x128xf32, #tpu.memory_space<any>>) dst(%902 : memref<1x128xf32, #tpu.memory_space<vmem>>)
    %c15_i32_792 = arith.constant 15 : i32
    %c0_i32_793 = arith.constant 0 : i32
    %905 = tpu.memref_slice %arg4[%144, %c0_i32_793] : memref<64x128xf32, #tpu.memory_space<any>> -> memref<1x128xf32, #tpu.memory_space<any>>
    %c15_i32_794 = arith.constant 15 : i32
    %c0_i32_795 = arith.constant 0 : i32
    %906 = tpu.memref_slice %arg13[%c15_i32_794, %c0_i32_795] : memref<16x128xf32, #tpu.memory_space<vmem>> -> memref<1x128xf32, #tpu.memory_space<vmem>>
    %907 = tpu.memref_slice %arg15[%c15_i32_792] : memref<16x!tpu.dma_semaphore, #tpu.memory_space<semaphore_mem>> -> memref<1x!tpu.dma_semaphore, #tpu.memory_space<semaphore_mem>>
    %908 = tpu.memref_squeeze %907 : memref<1x!tpu.dma_semaphore, #tpu.memory_space<semaphore_mem>> -> memref<!tpu.dma_semaphore, #tpu.memory_space<semaphore_mem>>
    tpu.wait_dma2 semaphore(%908 : memref<!tpu.dma_semaphore, #tpu.memory_space<semaphore_mem>>) src(%905 : memref<1x128xf32, #tpu.memory_space<any>>) dst(%906 : memref<1x128xf32, #tpu.memory_space<vmem>>)
    %c15_i32_796 = arith.constant 15 : i32
    %c0_i32_797 = arith.constant 0 : i32
    %909 = tpu.memref_slice %arg5[%144, %c0_i32_797] : memref<64x128xf32, #tpu.memory_space<any>> -> memref<1x128xf32, #tpu.memory_space<any>>
    %c15_i32_798 = arith.constant 15 : i32
    %c0_i32_799 = arith.constant 0 : i32
    %910 = tpu.memref_slice %arg14[%c15_i32_798, %c0_i32_799] : memref<16x128xf32, #tpu.memory_space<vmem>> -> memref<1x128xf32, #tpu.memory_space<vmem>>
    %911 = tpu.memref_slice %arg15[%c15_i32_796] : memref<16x!tpu.dma_semaphore, #tpu.memory_space<semaphore_mem>> -> memref<1x!tpu.dma_semaphore, #tpu.memory_space<semaphore_mem>>
    %912 = tpu.memref_squeeze %911 : memref<1x!tpu.dma_semaphore, #tpu.memory_space<semaphore_mem>> -> memref<!tpu.dma_semaphore, #tpu.memory_space<semaphore_mem>>
    tpu.wait_dma2 semaphore(%912 : memref<!tpu.dma_semaphore, #tpu.memory_space<semaphore_mem>>) src(%909 : memref<1x128xf32, #tpu.memory_space<any>>) dst(%910 : memref<1x128xf32, #tpu.memory_space<vmem>>)
    %c0 = arith.constant 0 : index
    %c0_800 = arith.constant 0 : index
    %913 = vector.load %arg9[%c0, %c0_800] : memref<16x128xf32, #tpu.memory_space<vmem>>, vector<16x128xf32>
    %c0_801 = arith.constant 0 : index
    %c0_802 = arith.constant 0 : index
    %914 = vector.load %arg10[%c0_801, %c0_802] : memref<16x128xf32, #tpu.memory_space<vmem>>, vector<16x128xf32>
    %c0_803 = arith.constant 0 : index
    %c0_804 = arith.constant 0 : index
    %915 = vector.load %arg11[%c0_803, %c0_804] : memref<16x128xf32, #tpu.memory_space<vmem>>, vector<16x128xf32>
    %c0_805 = arith.constant 0 : index
    %c0_806 = arith.constant 0 : index
    %916 = vector.load %arg12[%c0_805, %c0_806] : memref<16x128xf32, #tpu.memory_space<vmem>>, vector<16x128xf32>
    %c0_807 = arith.constant 0 : index
    %c0_808 = arith.constant 0 : index
    %917 = vector.load %arg13[%c0_807, %c0_808] : memref<16x128xf32, #tpu.memory_space<vmem>>, vector<16x128xf32>
    %c0_809 = arith.constant 0 : index
    %c0_810 = arith.constant 0 : index
    %918 = vector.load %arg14[%c0_809, %c0_810] : memref<16x128xf32, #tpu.memory_space<vmem>>, vector<16x128xf32>
    %919 = arith.mulf %913, %917 : vector<16x128xf32>
    %920 = arith.mulf %914, %918 : vector<16x128xf32>
    %921 = arith.addf %919, %920 : vector<16x128xf32>
    %922 = arith.mulf %915, %921 : vector<16x128xf32>
    %923 = arith.mulf %913, %918 : vector<16x128xf32>
    %924 = arith.mulf %914, %917 : vector<16x128xf32>
    %925 = arith.subf %923, %924 : vector<16x128xf32>
    %926 = arith.mulf %916, %925 : vector<16x128xf32>
    %927 = arith.addf %922, %926 : vector<16x128xf32>
    %cst = arith.constant dense<0.000000e+00> : vector<16xf32>
    %928 = vector.multi_reduction <add>, %927, %cst [1] : vector<16x128xf32> to vector<16xf32>
    %929 = vector.shape_cast %928 : vector<16xf32> to vector<1x1x16xf32>
    %c0_811 = arith.constant 0 : index
    %c0_812 = arith.constant 0 : index
    %c0_813 = arith.constant 0 : index
    %930 = vector.load %arg8[%c0_811, %c0_812, %c0_813] : memref<1x1x16xf32, #tpu.memory_space<vmem>>, vector<1x1x16xf32>
    tpu.vector_store %arg8[%c0_811, %c0_812, %c0_813], %929 {strides = array<i32>} : memref<1x1x16xf32, #tpu.memory_space<vmem>>, vector<1x1x16xf32>,
    return
  }
  func.func @transform_4(%arg0: i32, %arg1: memref<32xi32, #tpu.memory_space<smem>>, %arg2: memref<32xi32, #tpu.memory_space<smem>>, %arg3: memref<32xi32, #tpu.memory_space<smem>>) -> (i32, i32, i32) {
    %c0_i32 = arith.constant 0 : i32
    %c0_i32_0 = arith.constant 0 : i32
    %c0_i32_1 = arith.constant 0 : i32
    return %arg0, %c0_i32, %c0_i32_0 : i32, i32, i32
  }
}

</mosaic_0001>

<llo_original>
// kernel: tpu_custom_call.1
$region0: #{tpu_custom_call.1}
  #allocation0 [shape = 'u32[]', space=smem, size = 0x4, offset = 0x4, fixed_abs, tag = 'smem constant byte address 0x4 - core index']
  #allocation1 [shape = 'u32[144,128]{1,0:T(1,128)}', space=vmem, size = 0x12000, scoped, tag = 'internal scratch']
  #allocation2 [shape = 'f32[16,128]{1,0:T(8,128)}', space=vmem, size = 0x2000, scoped, tag = 'scratch operand']
  #allocation3 [shape = 'f32[16,128]{1,0:T(8,128)}', space=vmem, size = 0x2000, scoped, tag = 'scratch operand']
  #allocation4 [shape = 'f32[16,128]{1,0:T(8,128)}', space=vmem, size = 0x2000, scoped, tag = 'scratch operand']
  #allocation5 [shape = 'f32[16,128]{1,0:T(8,128)}', space=vmem, size = 0x2000, scoped, tag = 'scratch operand']
  #allocation6 [shape = 'f32[16,128]{1,0:T(8,128)}', space=vmem, size = 0x2000, scoped, tag = 'scratch operand']
  #allocation7 [shape = 'f32[16,128]{1,0:T(8,128)}', space=vmem, size = 0x2000, scoped, tag = 'scratch operand']
  #allocation8 [shape = 's32[16]{0}', space=sflag, size = 0x40, scoped, tag = 'scratch operand']
  #allocation9 [shape = 's32[1]{0}', space=sflag, size = 0x4, scoped, tag = 'scoped memory for tpu_custom_call.1']
  #allocation10 [shape = 'u8[512]{0}', space=smem, size = 0x200, scoped, tag = 'prefetched SMEM operand 0']
  #allocation11 [shape = 'u8[512]{0}', space=smem, size = 0x200, scoped, tag = 'prefetched SMEM operand 1']
  #allocation12 [shape = 'u8[512]{0}', space=smem, size = 0x200, scoped, tag = 'prefetched SMEM operand 2']
  #allocation15 [shape = 's32[]', space=sflag, size = 0x4, offset = 0, fixed_abs, tag = 'sflag constant byte address 0x0 - dummy sync flag']
  #allocation16 [shape = 's32[]', space=sflag, size = 0x4, offset = 0, fixed_abs, tag = 'sflag constant byte address 0x0 - dummy sync flag']
  #allocation17 [shape = 'u32[]', space=smem, size = 0x4, offset = 0x44, fixed_abs, tag = 'smem constant byte address 0x44 - assertion arg 0']
  #allocation18 [shape = 'u32[]', space=smem, size = 0x4, offset = 0x48, fixed_abs, tag = 'smem constant byte address 0x48 - assertion arg 1']
  #allocation19 [shape = 's32[]', space=sflag, size = 0x4, offset = 0, fixed_abs, tag = 'sflag constant byte address 0x0 - dummy sync flag']
  #allocation20 [shape = 's32[]', space=sflag, size = 0x4, offset = 0, fixed_abs, tag = 'sflag constant byte address 0x0 - dummy sync flag']
  #allocation21 [shape = 's32[]', space=sflag, size = 0x4, offset = 0, fixed_abs, tag = 'sflag constant byte address 0x0 - dummy sync flag']
  #allocation22 [shape = 's32[]', space=sflag, size = 0x4, offset = 0, fixed_abs, tag = 'sflag constant byte address 0x0 - dummy sync flag']
  #allocation23 [shape = 's32[]', space=sflag, size = 0x4, offset = 0, fixed_abs, tag = 'sflag constant byte address 0x0 - dummy sync flag']
  #allocation24 [shape = 's32[]', space=sflag, size = 0x4, offset = 0, fixed_abs, tag = 'sflag constant byte address 0x0 - dummy sync flag']
  #allocation25 [shape = 's32[]', space=sflag, size = 0x4, offset = 0, fixed_abs, tag = 'sflag constant byte address 0x0 - dummy sync flag']
  #allocation26 [shape = 's32[]', space=sflag, size = 0x4, offset = 0, fixed_abs, tag = 'sflag constant byte address 0x0 - dummy sync flag']
  #allocation27 [shape = 's32[]', space=sflag, size = 0x4, offset = 0, fixed_abs, tag = 'sflag constant byte address 0x0 - dummy sync flag']
  #allocation28 [shape = 's32[]', space=sflag, size = 0x4, offset = 0, fixed_abs, tag = 'sflag constant byte address 0x0 - dummy sync flag']
  #allocation29 [shape = 's32[]', space=sflag, size = 0x4, offset = 0, fixed_abs, tag = 'sflag constant byte address 0x0 - dummy sync flag']
  #allocation30 [shape = 's32[]', space=sflag, size = 0x4, offset = 0, fixed_abs, tag = 'sflag constant byte address 0x0 - dummy sync flag']
  #allocation31 [shape = 's32[]', space=sflag, size = 0x4, offset = 0, fixed_abs, tag = 'sflag constant byte address 0x0 - dummy sync flag']
  #allocation32 [shape = 's32[]', space=sflag, size = 0x4, offset = 0, fixed_abs, tag = 'sflag constant byte address 0x0 - dummy sync flag']
  #allocation33 [shape = 's32[]', space=sflag, size = 0x4, offset = 0, fixed_abs, tag = 'sflag constant byte address 0x0 - dummy sync flag']
  #allocation34 [shape = 's32[]', space=sflag, size = 0x4, offset = 0, fixed_abs, tag = 'sflag constant byte address 0x0 - dummy sync flag']
  #allocation35 [shape = 's32[]', space=sflag, size = 0x4, offset = 0, fixed_abs, tag = 'sflag constant byte address 0x0 - dummy sync flag']
  #allocation36 [shape = 's32[]', space=sflag, size = 0x4, offset = 0, fixed_abs, tag = 'sflag constant byte address 0x0 - dummy sync flag']
  #allocation37 [shape = 's32[]', space=sflag, size = 0x4, offset = 0, fixed_abs, tag = 'sflag constant byte address 0x0 - dummy sync flag']
  #allocation38 [shape = 's32[]', space=sflag, size = 0x4, offset = 0, fixed_abs, tag = 'sflag constant byte address 0x0 - dummy sync flag']
  #allocation39 [shape = 's32[]', space=sflag, size = 0x4, offset = 0, fixed_abs, tag = 'sflag constant byte address 0x0 - dummy sync flag']
  #allocation40 [shape = 's32[]', space=sflag, size = 0x4, offset = 0, fixed_abs, tag = 'sflag constant byte address 0x0 - dummy sync flag']
  #allocation41 [shape = 's32[]', space=sflag, size = 0x4, offset = 0, fixed_abs, tag = 'sflag constant byte address 0x0 - dummy sync flag']
  #allocation42 [shape = 's32[]', space=sflag, size = 0x4, offset = 0, fixed_abs, tag = 'sflag constant byte address 0x0 - dummy sync flag']
  #allocation43 [shape = 's32[]', space=sflag, size = 0x4, offset = 0, fixed_abs, tag = 'sflag constant byte address 0x0 - dummy sync flag']
  #allocation44 [shape = 's32[]', space=sflag, size = 0x4, offset = 0, fixed_abs, tag = 'sflag constant byte address 0x0 - dummy sync flag']
  #allocation45 [shape = 's32[]', space=sflag, size = 0x4, offset = 0, fixed_abs, tag = 'sflag constant byte address 0x0 - dummy sync flag']
  #allocation46 [shape = 's32[]', space=sflag, size = 0x4, offset = 0, fixed_abs, tag = 'sflag constant byte address 0x0 - dummy sync flag']
  #allocation47 [shape = 's32[]', space=sflag, size = 0x4, offset = 0, fixed_abs, tag = 'sflag constant byte address 0x0 - dummy sync flag']
  #allocation48 [shape = 's32[]', space=sflag, size = 0x4, offset = 0, fixed_abs, tag = 'sflag constant byte address 0x0 - dummy sync flag']
  #allocation49 [shape = 's32[]', space=sflag, size = 0x4, offset = 0, fixed_abs, tag = 'sflag constant byte address 0x0 - dummy sync flag']
  #allocation50 [shape = 's32[]', space=sflag, size = 0x4, offset = 0, fixed_abs, tag = 'sflag constant byte address 0x0 - dummy sync flag']
  #allocation51 [shape = 's32[]', space=sflag, size = 0x4, offset = 0, fixed_abs, tag = 'sflag constant byte address 0x0 - dummy sync flag']
  #allocation52 [shape = 's32[]', space=sflag, size = 0x4, offset = 0, fixed_abs, tag = 'sflag constant byte address 0x0 - dummy sync flag']
  #allocation53 [shape = 's32[]', space=sflag, size = 0x4, offset = 0, fixed_abs, tag = 'sflag constant byte address 0x0 - dummy sync flag']
  #allocation54 [shape = 's32[]', space=sflag, size = 0x4, offset = 0, fixed_abs, tag = 'sflag constant byte address 0x0 - dummy sync flag']
  #allocation55 [shape = 's32[]', space=sflag, size = 0x4, offset = 0, fixed_abs, tag = 'sflag constant byte address 0x0 - dummy sync flag']
  #allocation56 [shape = 's32[]', space=sflag, size = 0x4, offset = 0, fixed_abs, tag = 'sflag constant byte address 0x0 - dummy sync flag']
  #allocation57 [shape = 's32[]', space=sflag, size = 0x4, offset = 0, fixed_abs, tag = 'sflag constant byte address 0x0 - dummy sync flag']
  #allocation58 [shape = 's32[]', space=sflag, size = 0x4, offset = 0, fixed_abs, tag = 'sflag constant byte address 0x0 - dummy sync flag']
  #allocation59 [shape = 's32[]', space=sflag, size = 0x4, offset = 0, fixed_abs, tag = 'sflag constant byte address 0x0 - dummy sync flag']
  #allocation60 [shape = 's32[]', space=sflag, size = 0x4, offset = 0, fixed_abs, tag = 'sflag constant byte address 0x0 - dummy sync flag']
  #allocation61 [shape = 's32[]', space=sflag, size = 0x4, offset = 0, fixed_abs, tag = 'sflag constant byte address 0x0 - dummy sync flag']
  #allocation62 [shape = 's32[]', space=sflag, size = 0x4, offset = 0, fixed_abs, tag = 'sflag constant byte address 0x0 - dummy sync flag']
  #allocation63 [shape = 's32[]', space=sflag, size = 0x4, offset = 0, fixed_abs, tag = 'sflag constant byte address 0x0 - dummy sync flag']
  #allocation64 [shape = 's32[]', space=sflag, size = 0x4, offset = 0, fixed_abs, tag = 'sflag constant byte address 0x0 - dummy sync flag']
  #allocation65 [shape = 's32[]', space=sflag, size = 0x4, offset = 0, fixed_abs, tag = 'sflag constant byte address 0x0 - dummy sync flag']
  #allocation66 [shape = 's32[]', space=sflag, size = 0x4, offset = 0, fixed_abs, tag = 'sflag constant byte address 0x0 - dummy sync flag']
  #allocation67 [shape = 's32[]', space=sflag, size = 0x4, offset = 0, fixed_abs, tag = 'sflag constant byte address 0x0 - dummy sync flag']
  #allocation68 [shape = 's32[]', space=sflag, size = 0x4, offset = 0, fixed_abs, tag = 'sflag constant byte address 0x0 - dummy sync flag']
  #allocation69 [shape = 's32[]', space=sflag, size = 0x4, offset = 0, fixed_abs, tag = 'sflag constant byte address 0x0 - dummy sync flag']
  #allocation70 [shape = 's32[]', space=sflag, size = 0x4, offset = 0, fixed_abs, tag = 'sflag constant byte address 0x0 - dummy sync flag']
  #allocation71 [shape = 's32[]', space=sflag, size = 0x4, offset = 0, fixed_abs, tag = 'sflag constant byte address 0x0 - dummy sync flag']
  #allocation72 [shape = 's32[]', space=sflag, size = 0x4, offset = 0, fixed_abs, tag = 'sflag constant byte address 0x0 - dummy sync flag']
  #allocation73 [shape = 's32[]', space=sflag, size = 0x4, offset = 0, fixed_abs, tag = 'sflag constant byte address 0x0 - dummy sync flag']
  #allocation74 [shape = 's32[]', space=sflag, size = 0x4, offset = 0, fixed_abs, tag = 'sflag constant byte address 0x0 - dummy sync flag']
  #allocation75 [shape = 's32[]', space=sflag, size = 0x4, offset = 0, fixed_abs, tag = 'sflag constant byte address 0x0 - dummy sync flag']
  #allocation76 [shape = 's32[]', space=sflag, size = 0x4, offset = 0, fixed_abs, tag = 'sflag constant byte address 0x0 - dummy sync flag']
  #allocation77 [shape = 's32[]', space=sflag, size = 0x4, offset = 0, fixed_abs, tag = 'sflag constant byte address 0x0 - dummy sync flag']
  #allocation78 [shape = 's32[]', space=sflag, size = 0x4, offset = 0, fixed_abs, tag = 'sflag constant byte address 0x0 - dummy sync flag']
  #allocation79 [shape = 's32[]', space=sflag, size = 0x4, offset = 0, fixed_abs, tag = 'sflag constant byte address 0x0 - dummy sync flag']
  #allocation80 [shape = 's32[]', space=sflag, size = 0x4, offset = 0, fixed_abs, tag = 'sflag constant byte address 0x0 - dummy sync flag']
  #allocation81 [shape = 's32[]', space=sflag, size = 0x4, offset = 0, fixed_abs, tag = 'sflag constant byte address 0x0 - dummy sync flag']
  #allocation82 [shape = 's32[]', space=sflag, size = 0x4, offset = 0, fixed_abs, tag = 'sflag constant byte address 0x0 - dummy sync flag']
  #allocation83 [shape = 's32[]', space=sflag, size = 0x4, offset = 0, fixed_abs, tag = 'sflag constant byte address 0x0 - dummy sync flag']
  #allocation84 [shape = 's32[]', space=sflag, size = 0x4, offset = 0, fixed_abs, tag = 'sflag constant byte address 0x0 - dummy sync flag']
  #allocation85 [shape = 's32[]', space=sflag, size = 0x4, offset = 0, fixed_abs, tag = 'sflag constant byte address 0x0 - dummy sync flag']
  #allocation86 [shape = 's32[]', space=sflag, size = 0x4, offset = 0, fixed_abs, tag = 'sflag constant byte address 0x0 - dummy sync flag']
  #allocation87 [shape = 's32[]', space=sflag, size = 0x4, offset = 0, fixed_abs, tag = 'sflag constant byte address 0x0 - dummy sync flag']
  #allocation88 [shape = 's32[]', space=sflag, size = 0x4, offset = 0, fixed_abs, tag = 'sflag constant byte address 0x0 - dummy sync flag']
  #allocation89 [shape = 's32[]', space=sflag, size = 0x4, offset = 0, fixed_abs, tag = 'sflag constant byte address 0x0 - dummy sync flag']
  #allocation90 [shape = 's32[]', space=sflag, size = 0x4, offset = 0, fixed_abs, tag = 'sflag constant byte address 0x0 - dummy sync flag']
  #allocation91 [shape = 's32[]', space=sflag, size = 0x4, offset = 0, fixed_abs, tag = 'sflag constant byte address 0x0 - dummy sync flag']
  #allocation92 [shape = 's32[]', space=sflag, size = 0x4, offset = 0, fixed_abs, tag = 'sflag constant byte address 0x0 - dummy sync flag']
  #allocation93 [shape = 's32[]', space=sflag, size = 0x4, offset = 0, fixed_abs, tag = 'sflag constant byte address 0x0 - dummy sync flag']
  #allocation94 [shape = 's32[]', space=sflag, size = 0x4, offset = 0, fixed_abs, tag = 'sflag constant byte address 0x0 - dummy sync flag']
  #allocation95 [shape = 's32[]', space=sflag, size = 0x4, offset = 0, fixed_abs, tag = 'sflag constant byte address 0x0 - dummy sync flag']
  #allocation96 [shape = 's32[]', space=sflag, size = 0x4, offset = 0, fixed_abs, tag = 'sflag constant byte address 0x0 - dummy sync flag']
  #allocation97 [shape = 's32[]', space=sflag, size = 0x4, offset = 0, fixed_abs, tag = 'sflag constant byte address 0x0 - dummy sync flag']
  #allocation98 [shape = 's32[]', space=sflag, size = 0x4, offset = 0, fixed_abs, tag = 'sflag constant byte address 0x0 - dummy sync flag']
  #allocation99 [shape = 's32[]', space=sflag, size = 0x4, offset = 0, fixed_abs, tag = 'sflag constant byte address 0x0 - dummy sync flag']
  #allocation100 [shape = 's32[]', space=sflag, size = 0x4, offset = 0, fixed_abs, tag = 'sflag constant byte address 0x0 - dummy sync flag']
  #allocation101 [shape = 's32[]', space=sflag, size = 0x4, offset = 0, fixed_abs, tag = 'sflag constant byte address 0x0 - dummy sync flag']
  #allocation102 [shape = 's32[]', space=sflag, size = 0x4, offset = 0, fixed_abs, tag = 'sflag constant byte address 0x0 - dummy sync flag']
  #allocation103 [shape = 's32[]', space=sflag, size = 0x4, offset = 0, fixed_abs, tag = 'sflag constant byte address 0x0 - dummy sync flag']
  #allocation104 [shape = 's32[]', space=sflag, size = 0x4, offset = 0, fixed_abs, tag = 'sflag constant byte address 0x0 - dummy sync flag']
  #allocation105 [shape = 's32[]', space=sflag, size = 0x4, offset = 0, fixed_abs, tag = 'sflag constant byte address 0x0 - dummy sync flag']
  #allocation106 [shape = 's32[]', space=sflag, size = 0x4, offset = 0, fixed_abs, tag = 'sflag constant byte address 0x0 - dummy sync flag']
  #allocation107 [shape = 's32[]', space=sflag, size = 0x4, offset = 0, fixed_abs, tag = 'sflag constant byte address 0x0 - dummy sync flag']
  #allocation108 [shape = 's32[]', space=sflag, size = 0x4, offset = 0, fixed_abs, tag = 'sflag constant byte address 0x0 - dummy sync flag']
  #allocation109 [shape = 's32[]', space=sflag, size = 0x4, offset = 0, fixed_abs, tag = 'sflag constant byte address 0x0 - dummy sync flag']
  #allocation110 [shape = 's32[]', space=sflag, size = 0x4, offset = 0, fixed_abs, tag = 'sflag constant byte address 0x0 - dummy sync flag']
  #allocation111 [shape = 's32[]', space=sflag, size = 0x4, offset = 0, fixed_abs, tag = 'sflag constant byte address 0x0 - dummy sync flag']
  #allocation112 [shape = 's32[]', space=sflag, size = 0x4, offset = 0, fixed_abs, tag = 'sflag constant byte address 0x0 - dummy sync flag']
  #allocation113 [shape = 's32[]', space=sflag, size = 0x4, offset = 0, fixed_abs, tag = 'sflag constant byte address 0x0 - dummy sync flag']
  #allocation114 [shape = 's32[]', space=sflag, size = 0x4, offset = 0, fixed_abs, tag = 'sflag constant byte address 0x0 - dummy sync flag']
  #allocation115 [shape = 's32[]', space=sflag, size = 0x4, offset = 0, fixed_abs, tag = 'sflag constant byte address 0x0 - dummy sync flag']
  #allocation116 [shape = 's32[]', space=sflag, size = 0x4, offset = 0, fixed_abs, tag = 'sflag constant byte address 0x0 - dummy sync flag']
  #allocation117 [shape = 's32[]', space=sflag, size = 0x4, offset = 0, fixed_abs, tag = 'sflag constant byte address 0x0 - dummy sync flag']
  #allocation118 [shape = 's32[]', space=sflag, size = 0x4, offset = 0, fixed_abs, tag = 'sflag constant byte address 0x0 - dummy sync flag']
  #allocation119 [shape = 's32[]', space=sflag, size = 0x4, offset = 0, fixed_abs, tag = 'sflag constant byte address 0x0 - dummy sync flag']
  #allocation120 [shape = 's32[]', space=sflag, size = 0x4, offset = 0, fixed_abs, tag = 'sflag constant byte address 0x0 - dummy sync flag']
  #allocation121 [shape = 's32[]', space=sflag, size = 0x4, offset = 0, fixed_abs, tag = 'sflag constant byte address 0x0 - dummy sync flag']
  #allocation122 [shape = 's32[]', space=sflag, size = 0x4, offset = 0, fixed_abs, tag = 'sflag constant byte address 0x0 - dummy sync flag']
  #allocation123 [shape = 's32[]', space=sflag, size = 0x4, offset = 0, fixed_abs, tag = 'sflag constant byte address 0x0 - dummy sync flag']
  #allocation124 [shape = 's32[]', space=sflag, size = 0x4, offset = 0, fixed_abs, tag = 'sflag constant byte address 0x0 - dummy sync flag']
  #allocation125 [shape = 's32[]', space=sflag, size = 0x4, offset = 0, fixed_abs, tag = 'sflag constant byte address 0x0 - dummy sync flag']
  #allocation126 [shape = 's32[]', space=sflag, size = 0x4, offset = 0, fixed_abs, tag = 'sflag constant byte address 0x0 - dummy sync flag']
  #allocation127 [shape = 's32[]', space=sflag, size = 0x4, offset = 0, fixed_abs, tag = 'sflag constant byte address 0x0 - dummy sync flag']
  #allocation128 [shape = 's32[]', space=sflag, size = 0x4, offset = 0, fixed_abs, tag = 'sflag constant byte address 0x0 - dummy sync flag']
  #allocation129 [shape = 's32[]', space=sflag, size = 0x4, offset = 0, fixed_abs, tag = 'sflag constant byte address 0x0 - dummy sync flag']
  #allocation130 [shape = 's32[]', space=sflag, size = 0x4, offset = 0, fixed_abs, tag = 'sflag constant byte address 0x0 - dummy sync flag']
  #allocation131 [shape = 's32[]', space=sflag, size = 0x4, offset = 0, fixed_abs, tag = 'sflag constant byte address 0x0 - dummy sync flag']
  #allocation132 [shape = 's32[]', space=sflag, size = 0x4, offset = 0, fixed_abs, tag = 'sflag constant byte address 0x0 - dummy sync flag']
  #allocation133 [shape = 's32[]', space=sflag, size = 0x4, offset = 0, fixed_abs, tag = 'sflag constant byte address 0x0 - dummy sync flag']
  #allocation134 [shape = 's32[]', space=sflag, size = 0x4, offset = 0, fixed_abs, tag = 'sflag constant byte address 0x0 - dummy sync flag']
  #allocation135 [shape = 's32[]', space=sflag, size = 0x4, offset = 0, fixed_abs, tag = 'sflag constant byte address 0x0 - dummy sync flag']
  #allocation136 [shape = 's32[]', space=sflag, size = 0x4, offset = 0, fixed_abs, tag = 'sflag constant byte address 0x0 - dummy sync flag']
  #allocation137 [shape = 's32[]', space=sflag, size = 0x4, offset = 0, fixed_abs, tag = 'sflag constant byte address 0x0 - dummy sync flag']
  #allocation138 [shape = 's32[]', space=sflag, size = 0x4, offset = 0, fixed_abs, tag = 'sflag constant byte address 0x0 - dummy sync flag']
  #allocation139 [shape = 's32[]', space=sflag, size = 0x4, offset = 0, fixed_abs, tag = 'sflag constant byte address 0x0 - dummy sync flag']
  #allocation140 [shape = 's32[]', space=sflag, size = 0x4, offset = 0, fixed_abs, tag = 'sflag constant byte address 0x0 - dummy sync flag']
  #allocation141 [shape = 's32[]', space=sflag, size = 0x4, offset = 0, fixed_abs, tag = 'sflag constant byte address 0x0 - dummy sync flag']
  #allocation142 [shape = 's32[]', space=sflag, size = 0x4, offset = 0, fixed_abs, tag = 'sflag constant byte address 0x0 - dummy sync flag']
  #allocation143 [shape = 's32[]', space=sflag, size = 0x4, offset = 0, fixed_abs, tag = 'sflag constant byte address 0x0 - dummy sync flag']
  #allocation144 [shape = 's32[]', space=sflag, size = 0x4, offset = 0, fixed_abs, tag = 'sflag constant byte address 0x0 - dummy sync flag']
  #allocation145 [shape = 's32[]', space=sflag, size = 0x4, offset = 0, fixed_abs, tag = 'sflag constant byte address 0x0 - dummy sync flag']
  #allocation146 [shape = 's32[]', space=sflag, size = 0x4, offset = 0, fixed_abs, tag = 'sflag constant byte address 0x0 - dummy sync flag']
  #allocation147 [shape = 's32[]', space=sflag, size = 0x4, offset = 0, fixed_abs, tag = 'sflag constant byte address 0x0 - dummy sync flag']
  #allocation148 [shape = 's32[]', space=sflag, size = 0x4, offset = 0, fixed_abs, tag = 'sflag constant byte address 0x0 - dummy sync flag']
  #allocation149 [shape = 's32[]', space=sflag, size = 0x4, offset = 0, fixed_abs, tag = 'sflag constant byte address 0x0 - dummy sync flag']
  #allocation150 [shape = 's32[]', space=sflag, size = 0x4, offset = 0, fixed_abs, tag = 'sflag constant byte address 0x0 - dummy sync flag']
  #allocation151 [shape = 's32[]', space=sflag, size = 0x4, offset = 0, fixed_abs, tag = 'sflag constant byte address 0x0 - dummy sync flag']
  #allocation152 [shape = 's32[]', space=sflag, size = 0x4, offset = 0, fixed_abs, tag = 'sflag constant byte address 0x0 - dummy sync flag']
  #allocation153 [shape = 's32[]', space=sflag, size = 0x4, offset = 0, fixed_abs, tag = 'sflag constant byte address 0x0 - dummy sync flag']
  #allocation154 [shape = 's32[]', space=sflag, size = 0x4, offset = 0, fixed_abs, tag = 'sflag constant byte address 0x0 - dummy sync flag']
  #allocation155 [shape = 's32[]', space=sflag, size = 0x4, offset = 0, fixed_abs, tag = 'sflag constant byte address 0x0 - dummy sync flag']
  #allocation156 [shape = 's32[]', space=sflag, size = 0x4, offset = 0, fixed_abs, tag = 'sflag constant byte address 0x0 - dummy sync flag']
  #allocation157 [shape = 's32[]', space=sflag, size = 0x4, offset = 0, fixed_abs, tag = 'sflag constant byte address 0x0 - dummy sync flag']
  #allocation158 [shape = 's32[]', space=sflag, size = 0x4, offset = 0, fixed_abs, tag = 'sflag constant byte address 0x0 - dummy sync flag']
  #allocation159 [shape = 's32[]', space=sflag, size = 0x4, offset = 0, fixed_abs, tag = 'sflag constant byte address 0x0 - dummy sync flag']
  #allocation160 [shape = 's32[]', space=sflag, size = 0x4, offset = 0, fixed_abs, tag = 'sflag constant byte address 0x0 - dummy sync flag']
  #allocation161 [shape = 's32[]', space=sflag, size = 0x4, offset = 0, fixed_abs, tag = 'sflag constant byte address 0x0 - dummy sync flag']
  #allocation162 [shape = 's32[]', space=sflag, size = 0x4, offset = 0, fixed_abs, tag = 'sflag constant byte address 0x0 - dummy sync flag']
  #allocation163 [shape = 's32[]', space=sflag, size = 0x4, offset = 0, fixed_abs, tag = 'sflag constant byte address 0x0 - dummy sync flag']
  #allocation164 [shape = 's32[]', space=sflag, size = 0x4, offset = 0, fixed_abs, tag = 'sflag constant byte address 0x0 - dummy sync flag']
  #allocation165 [shape = 's32[]', space=sflag, size = 0x4, offset = 0, fixed_abs, tag = 'sflag constant byte address 0x0 - dummy sync flag']
  #allocation166 [shape = 's32[]', space=sflag, size = 0x4, offset = 0, fixed_abs, tag = 'sflag constant byte address 0x0 - dummy sync flag']
  #allocation167 [shape = 's32[]', space=sflag, size = 0x4, offset = 0, fixed_abs, tag = 'sflag constant byte address 0x0 - dummy sync flag']
  #allocation168 [shape = 's32[]', space=sflag, size = 0x4, offset = 0, fixed_abs, tag = 'sflag constant byte address 0x0 - dummy sync flag']
  #allocation169 [shape = 's32[]', space=sflag, size = 0x4, offset = 0, fixed_abs, tag = 'sflag constant byte address 0x0 - dummy sync flag']
  #allocation170 [shape = 's32[]', space=sflag, size = 0x4, offset = 0, fixed_abs, tag = 'sflag constant byte address 0x0 - dummy sync flag']
  #allocation171 [shape = 's32[]', space=sflag, size = 0x4, offset = 0, fixed_abs, tag = 'sflag constant byte address 0x0 - dummy sync flag']
  #allocation172 [shape = 's32[]', space=sflag, size = 0x4, offset = 0, fixed_abs, tag = 'sflag constant byte address 0x0 - dummy sync flag']
  #allocation173 [shape = 's32[]', space=sflag, size = 0x4, offset = 0, fixed_abs, tag = 'sflag constant byte address 0x0 - dummy sync flag']
  #allocation174 [shape = 's32[]', space=sflag, size = 0x4, offset = 0, fixed_abs, tag = 'sflag constant byte address 0x0 - dummy sync flag']
  #allocation175 [shape = 's32[]', space=sflag, size = 0x4, offset = 0, fixed_abs, tag = 'sflag constant byte address 0x0 - dummy sync flag']
  #allocation176 [shape = 's32[]', space=sflag, size = 0x4, offset = 0, fixed_abs, tag = 'sflag constant byte address 0x0 - dummy sync flag']
  #allocation177 [shape = 's32[]', space=sflag, size = 0x4, offset = 0, fixed_abs, tag = 'sflag constant byte address 0x0 - dummy sync flag']
  #allocation178 [shape = 's32[]', space=sflag, size = 0x4, offset = 0, fixed_abs, tag = 'sflag constant byte address 0x0 - dummy sync flag']
  #allocation179 [shape = 's32[]', space=sflag, size = 0x4, offset = 0, fixed_abs, tag = 'sflag constant byte address 0x0 - dummy sync flag']
  #allocation180 [shape = 's32[]', space=sflag, size = 0x4, offset = 0, fixed_abs, tag = 'sflag constant byte address 0x0 - dummy sync flag']
  #allocation181 [shape = 's32[]', space=sflag, size = 0x4, offset = 0, fixed_abs, tag = 'sflag constant byte address 0x0 - dummy sync flag']
  #allocation182 [shape = 's32[]', space=sflag, size = 0x4, offset = 0, fixed_abs, tag = 'sflag constant byte address 0x0 - dummy sync flag']
  #allocation183 [shape = 's32[]', space=sflag, size = 0x4, offset = 0, fixed_abs, tag = 'sflag constant byte address 0x0 - dummy sync flag']
  #allocation184 [shape = 's32[]', space=sflag, size = 0x4, offset = 0, fixed_abs, tag = 'sflag constant byte address 0x0 - dummy sync flag']
  #allocation185 [shape = 's32[]', space=sflag, size = 0x4, offset = 0, fixed_abs, tag = 'sflag constant byte address 0x0 - dummy sync flag']
  #allocation186 [shape = 's32[]', space=sflag, size = 0x4, offset = 0, fixed_abs, tag = 'sflag constant byte address 0x0 - dummy sync flag']
  #allocation187 [shape = 's32[]', space=sflag, size = 0x4, offset = 0, fixed_abs, tag = 'sflag constant byte address 0x0 - dummy sync flag']
  #allocation188 [shape = 's32[]', space=sflag, size = 0x4, offset = 0, fixed_abs, tag = 'sflag constant byte address 0x0 - dummy sync flag']
  #allocation189 [shape = 's32[]', space=sflag, size = 0x4, offset = 0, fixed_abs, tag = 'sflag constant byte address 0x0 - dummy sync flag']
  #allocation190 [shape = 's32[]', space=sflag, size = 0x4, offset = 0, fixed_abs, tag = 'sflag constant byte address 0x0 - dummy sync flag']
  #allocation191 [shape = 's32[]', space=sflag, size = 0x4, offset = 0, fixed_abs, tag = 'sflag constant byte address 0x0 - dummy sync flag']
  #allocation192 [shape = 's32[]', space=sflag, size = 0x4, offset = 0, fixed_abs, tag = 'sflag constant byte address 0x0 - dummy sync flag']
  %s0 = inlined_call_operand.hbm [shape: s32[32], index: 0, kind: input, shape index: {}]
  %s1 = inlined_call_operand.vmem [shape: s32[32], index: 1, kind: input, shape index: {}]
  %s2 = inlined_call_operand.hbm [shape: s32[32], index: 2, kind: input, shape index: {}]
  %s3 = inlined_call_operand.hbm [shape: f32[64,128], index: 3, kind: input, shape index: {}]
  %s4 = inlined_call_operand.hbm [shape: f32[64,128], index: 4, kind: input, shape index: {}]
  %s5 = inlined_call_operand.vmem [shape: f32[8,128], index: 5, kind: input, shape index: {}]
  %s6 = inlined_call_operand.hbm [shape: f32[8,128], index: 6, kind: input, shape index: {}]
  %s7 = inlined_call_operand.hbm [shape: f32[2,1,16], index: 7, kind: output, shape index: {}]
  %s8 = sld [smem:[#allocation0]]
  $region825: #{tpu_custom_call.1} parent=0
    _
  %s10 = ssub.s32 1, %s8
  %s11 = scalar_select 0, %s10, %s8
  %13 = dma.hbm_to_smem %s0, 16, [#allocation10], [#allocation9]
  %s14 = sshll.u32 %s1, 4
  %s15 = int_to_ptr.vmem [resolvable:$true] %s14
  %17 = dma.vmem_to_smem %s15, 16, [#allocation11], [#allocation9]
  %19 = dma.hbm_to_smem %s2, 16, [#allocation12], [#allocation9]
  %20 = dma.done [#allocation9], 48
  %21 = sfence
  $region1: #{tpu_custom_call.1} parent=0
    #allocation13 [shape = 'u8[1024]{0}', space=vmem, size = 0x400, scoped, tag = 'output window, operand 0']
    #allocation14 [shape = 's32[2]{0}', space=sflag, size = 0x8, scoped, tag = 'scoped memory for tpu_custom_call.1']
    %22 = vsyncpa [#allocation14], 0
    %s23 = scalar_lea.sflag [#allocation14], 1
    %24 = vsyncpa %s23, 0
    loop: start=0, step=1, limit=3
    $region2: #{tpu_custom_call.1} parent=1 // loop_pre_header
      _
    $region3: #{tpu_custom_call.1} parent=1 // loop_header
      %s26 = sphi 0, %s30
      %p27 = scmp.ge.s32.totalorder %s26, 3
      %s35 = sphi 0, %s37
      %s38 = sphi 0, %s35
      %s48 = sphi 0, %s38
    $region4: #{tpu_custom_call.1} parent=1 // loop_header_branch
      %29 = sbr.rel (%p27) target = $region8
    $region5: #{tpu_custom_call.1} parent=1 // loop_body
      %s31 = ssub.s32 %s26, 1
      %s32 = sadd.s32 %s26, 1
      %s33 = ssub.s32 %s26, %s32
      %p34 = scmp.eq.s32.totalorder %s33, 0
      %s36 = sadd.s32 %s35, 1
      %s37 = scalar_select %p34, %s35, %s36
      %p39 = pneg %p34
      %p40 = scmp.eq.s32.totalorder %s26, 1
      %p41 = por %p39, %p40
      %p42 = scmp.ne.s32.totalorder %s35, %s38
      %p43 = scmp.eq.s32.totalorder %s26, 0
      %p44 = por %p42, %p43
      %p45 = scmp.ne.s32.totalorder %s35, %s38
      %p46 = scmp.eq.s32.totalorder %s31, 1
      %p47 = por %p45, %p46
      %p49 = scmp.ne.s32.totalorder %s38, %s48
      %p50 = scmp.eq.s32.totalorder %s31, 0
      %p51 = por %p49, %p50
      %p52 = scmp.lt.s32.totalorder %s26, 2
      // Predicated region
      $region9: #{tpu_custom_call.1} parent=5 // pred_check
        %p53 = pneg %p52
      $region10: #{tpu_custom_call.1} parent=5 // pred_check_branch
        %55 = sbr.rel (%p53) target = $region12
      $region11: #{tpu_custom_call.1} parent=5 // pred_region
        %p56 = pneg %p44
        %p57 = pneg %p41
        %s58 = sand.u32 %s35, 1
        %s59 = scalar_lea.sflag [#allocation14], %s58
        %s60 = sand.u32 %s35, 1
        %s61 = scalar_lea.vmem [#allocation13], %s60
        %s62 = smul.u32 %s26, 16
        %s63 = sld [smem:[#allocation10 + %s62]]
        %s64 = sld [smem:[#allocation11 + %s62]]
        %s65 = sld [smem:[#allocation12 + %s62]]
        %s66 = sadd.s32 %s62, 1
        %s67 = sld [smem:[#allocation10 + %s66]]
        %s68 = sld [smem:[#allocation11 + %s66]]
        %s69 = sld [smem:[#allocation12 + %s66]]
        %s70 = sadd.s32 %s62, 2
        %s71 = sld [smem:[#allocation10 + %s70]]
        %s72 = sld [smem:[#allocation11 + %s70]]
        %s73 = sld [smem:[#allocation12 + %s70]]
        %s74 = sadd.s32 %s62, 3
        %s75 = sld [smem:[#allocation10 + %s74]]
        %s76 = sld [smem:[#allocation11 + %s74]]
        %s77 = sld [smem:[#allocation12 + %s74]]
        %s78 = sadd.s32 %s62, 4
        %s79 = sld [smem:[#allocation10 + %s78]]
        %s80 = sld [smem:[#allocation11 + %s78]]
        %s81 = sld [smem:[#allocation12 + %s78]]
        %s82 = sadd.s32 %s62, 5
        %s83 = sld [smem:[#allocation10 + %s82]]
        %s84 = sld [smem:[#allocation11 + %s82]]
        %s85 = sld [smem:[#allocation12 + %s82]]
        %s86 = sadd.s32 %s62, 6
        %s87 = sld [smem:[#allocation10 + %s86]]
        %s88 = sld [smem:[#allocation11 + %s86]]
        %s89 = sld [smem:[#allocation12 + %s86]]
        %s90 = sadd.s32 %s62, 7
        %s91 = sld [smem:[#allocation10 + %s90]]
        %s92 = sld [smem:[#allocation11 + %s90]]
        %s93 = sld [smem:[#allocation12 + %s90]]
        %s94 = sadd.s32 %s62, 8
        %s95 = sld [smem:[#allocation10 + %s94]]
        %s96 = sld [smem:[#allocation11 + %s94]]
        %s97 = sld [smem:[#allocation12 + %s94]]
        %s98 = sadd.s32 %s62, 9
        %s99 = sld [smem:[#allocation10 + %s98]]
        %s100 = sld [smem:[#allocation11 + %s98]]
        %s101 = sld [smem:[#allocation12 + %s98]]
        %s102 = sadd.s32 %s62, 10
        %s103 = sld [smem:[#allocation10 + %s102]]
        %s104 = sld [smem:[#allocation11 + %s102]]
        %s105 = sld [smem:[#allocation12 + %s102]]
        %s106 = sadd.s32 %s62, 11
        %s107 = sld [smem:[#allocation10 + %s106]]
        %s108 = sld [smem:[#allocation11 + %s106]]
        %s109 = sld [smem:[#allocation12 + %s106]]
        %s110 = sadd.s32 %s62, 12
        %s111 = sld [smem:[#allocation10 + %s110]]
        %s112 = sld [smem:[#allocation11 + %s110]]
        %s113 = sld [smem:[#allocation12 + %s110]]
        %s114 = sadd.s32 %s62, 13
        %s115 = sld [smem:[#allocation10 + %s114]]
        %s116 = sld [smem:[#allocation11 + %s114]]
        %s117 = sld [smem:[#allocation12 + %s114]]
        %s118 = sadd.s32 %s62, 14
        %s119 = sld [smem:[#allocation10 + %s118]]
        %s120 = sld [smem:[#allocation11 + %s118]]
        %s121 = sld [smem:[#allocation12 + %s118]]
        %s122 = sadd.s32 %s62, 15
        %s123 = sld [smem:[#allocation10 + %s122]]
        %s124 = sld [smem:[#allocation11 + %s122]]
        %s125 = sld [smem:[#allocation12 + %s122]]
        %s126 = smul.addr %s63, 16
        %s127 = scalar_lea.hbm %s3, %s126
        // Predicated region
        $region13: #{tpu_custom_call.1} parent=11 // pred_check
          _
        $region14: #{tpu_custom_call.1} parent=11 // pred_check_branch
          %129 = sbr.rel target = $region16
        $region15: #{tpu_custom_call.1} parent=11 // pred_region
          %130 = sst [smem:[#allocation17]] [#allocation16]
          %131 = sst [smem:[#allocation18]] [#allocation15]
        $region16: #{tpu_custom_call.1} parent=11 // pred_fallthru
          _
        %133 = shalt.err (0)
        %s135 = sshll.u32 [#allocation2], 4
        %s136 = int_to_ptr.vmem [resolvable:$true] %s135
        %138 = dma.hbm_to_vmem [thread:$0]  %s127, 16, %s136, [#allocation8]
        %s139 = smul.addr %s63, 16
        %s140 = scalar_lea.hbm %s4, %s139
        // Predicated region
        $region17: #{tpu_custom_call.1} parent=11 // pred_check
          _
        $region18: #{tpu_custom_call.1} parent=11 // pred_check_branch
          %142 = sbr.rel target = $region20
        $region19: #{tpu_custom_call.1} parent=11 // pred_region
          %143 = sst [smem:[#allocation17]] [#allocation20]
          %144 = sst [smem:[#allocation18]] [#allocation19]
        $region20: #{tpu_custom_call.1} parent=11 // pred_fallthru
          _
        %146 = shalt.err (0)
        %s148 = sshll.u32 [#allocation3], 4
        %s149 = int_to_ptr.vmem [resolvable:$true] %s148
        %151 = dma.hbm_to_vmem [thread:$0]  %s140, 16, %s149, [#allocation8]
        %s152 = scalar_lea.vmem %s5, %s64
        %p154 = scmp.lt.u32.totalorder 1, 8
        %p155 = pneg %p154
        // Predicated region
        $region21: #{tpu_custom_call.1} parent=11 // pred_check
          _
        $region22: #{tpu_custom_call.1} parent=11 // pred_check_branch
          %157 = sbr.rel (%p154) target = $region24
        $region23: #{tpu_custom_call.1} parent=11 // pred_region
          %s173 = sand.u32 1, 7
          %p174 = scmp.eq.s32.totalorder %s173, 0
          %p175 = pneg %p174
          // Predicated region
          $region36: #{tpu_custom_call.1} parent=23 // pred_check
            _
          $region37: #{tpu_custom_call.1} parent=23 // pred_check_branch
            %177 = sbr.rel (%p174) target = $region39
          $region38: #{tpu_custom_call.1} parent=23 // pred_region
            %s178 = sand.u32 1, 7
            %s179 = ssub.s32 1, %s178
            %s180 = scalar_lea.vmem %s152, %s179
            %s181 = ssub.s32 1, %s178
            %s182 = scalar_lea.vmem [#allocation4], %s181
            %s183 = sshll.u32 1, %s178
            %s184 = ssub.s32 %s183, 1
            loop: start=0, step=1, limit=1
            $region40: #{tpu_custom_call.1} parent=38 // loop_pre_header
              _
            $region41: #{tpu_custom_call.1} parent=38 // loop_header
              %s186 = sphi 0, %s190
              %p187 = scmp.ge.s32.totalorder %s186, 1
              %s191 = sphi %s180, %s180
              %s192 = sphi %s182, %s182
            $region42: #{tpu_custom_call.1} parent=38 // loop_header_branch
              %189 = sbr.rel (%p187) target = $region46
            $region43: #{tpu_custom_call.1} parent=38 // loop_body
              %v193 = vld [vmem:[%s191] sm:%s184]
              %194 = vst [vmem:[%s192] sm:%s184] %v193
            $region44: #{tpu_custom_call.1} parent=38 // loop_footer
              %s190 = sadd.s32 1, %s186
            $region45: #{tpu_custom_call.1} parent=38 // loop_footer_branch
              %185 = sbr.rel target = $region41
            $region46: #{tpu_custom_call.1} parent=38 // loop_exit
              _
          $region39: #{tpu_custom_call.1} parent=23 // pred_fallthru
            _
        $region24: #{tpu_custom_call.1} parent=11 // pred_fallthru
          _
        // Predicated region
        $region25: #{tpu_custom_call.1} parent=11 // pred_check
          %p158 = pneg %p154
        $region26: #{tpu_custom_call.1} parent=11 // pred_check_branch
          %160 = sbr.rel (%p158) target = $region28
        $region27: #{tpu_custom_call.1} parent=11 // pred_region
          %s161 = sshll.u32 1, 1
          %s162 = ssub.s32 %s161, 1
          loop: start=0, step=1, limit=1
          $region29: #{tpu_custom_call.1} parent=27 // loop_pre_header
            _
          $region30: #{tpu_custom_call.1} parent=27 // loop_header
            %s164 = sphi 0, %s168
            %p165 = scmp.ge.s32.totalorder %s164, 1
            %s169 = sphi %s152, %s152
            %s170 = sphi [#allocation4], [#allocation4]
          $region31: #{tpu_custom_call.1} parent=27 // loop_header_branch
            %167 = sbr.rel (%p165) target = $region35
          $region32: #{tpu_custom_call.1} parent=27 // loop_body
            %v171 = vld [vmem:[%s169] sm:%s162]
            %172 = vst [vmem:[%s170] sm:%s162] %v171
          $region33: #{tpu_custom_call.1} parent=27 // loop_footer
            %s168 = sadd.s32 1, %s164
          $region34: #{tpu_custom_call.1} parent=27 // loop_footer_branch
            %163 = sbr.rel target = $region30
          $region35: #{tpu_custom_call.1} parent=27 // loop_exit
            _
        $region28: #{tpu_custom_call.1} parent=11 // pred_fallthru
          _
        // Predicated region
        $region47: #{tpu_custom_call.1} parent=11 // pred_check
          _
        $region48: #{tpu_custom_call.1} parent=11 // pred_check_branch
          %197 = sbr.rel (0) target = $region50
        $region49: #{tpu_custom_call.1} parent=11 // pred_region
          %198 = vsyncadd [#allocation8], 16
        $region50: #{tpu_custom_call.1} parent=11 // pred_fallthru
          _
        %s199 = smul.addr %s64, 16
        %s200 = scalar_lea.hbm %s6, %s199
        // Predicated region
        $region51: #{tpu_custom_call.1} parent=11 // pred_check
          _
        $region52: #{tpu_custom_call.1} parent=11 // pred_check_branch
          %202 = sbr.rel target = $region54
        $region53: #{tpu_custom_call.1} parent=11 // pred_region
          %203 = sst [smem:[#allocation17]] [#allocation23]
          %204 = sst [smem:[#allocation18]] [#allocation22]
        $region54: #{tpu_custom_call.1} parent=11 // pred_fallthru
          _
        %206 = shalt.err (0)
        %s208 = sshll.u32 [#allocation5], 4
        %s209 = int_to_ptr.vmem [resolvable:$true] %s208
        %211 = dma.hbm_to_vmem [thread:$0]  %s200, 16, %s209, [#allocation8]
        %s212 = smul.addr %s65, 16
        %s213 = scalar_lea.hbm %s3, %s212
        // Predicated region
        $region55: #{tpu_custom_call.1} parent=11 // pred_check
          _
        $region56: #{tpu_custom_call.1} parent=11 // pred_check_branch
          %215 = sbr.rel target = $region58
        $region57: #{tpu_custom_call.1} parent=11 // pred_region
          %216 = sst [smem:[#allocation17]] [#allocation25]
          %217 = sst [smem:[#allocation18]] [#allocation24]
        $region58: #{tpu_custom_call.1} parent=11 // pred_fallthru
          _
        %219 = shalt.err (0)
        %s221 = sshll.u32 [#allocation6], 4
        %s222 = int_to_ptr.vmem [resolvable:$true] %s221
        %224 = dma.hbm_to_vmem [thread:$0]  %s213, 16, %s222, [#allocation8]
        %s225 = smul.addr %s65, 16
        %s226 = scalar_lea.hbm %s4, %s225
        // Predicated region
        $region59: #{tpu_custom_call.1} parent=11 // pred_check
          _
        $region60: #{tpu_custom_call.1} parent=11 // pred_check_branch
          %228 = sbr.rel target = $region62
        $region61: #{tpu_custom_call.1} parent=11 // pred_region
          %229 = sst [smem:[#allocation17]] [#allocation27]
          %230 = sst [smem:[#allocation18]] [#allocation26]
        $region62: #{tpu_custom_call.1} parent=11 // pred_fallthru
          _
        %232 = shalt.err (0)
        %s234 = sshll.u32 [#allocation7], 4
        %s235 = int_to_ptr.vmem [resolvable:$true] %s234
        %237 = dma.hbm_to_vmem [thread:$0]  %s226, 16, %s235, [#allocation8]
        %s238 = smul.addr %s67, 16
        %s239 = scalar_lea.hbm %s3, %s238
        %s240 = scalar_lea.vmem [#allocation2], 1
        %s241 = scalar_lea.sflag [#allocation8], 1
        // Predicated region
        $region63: #{tpu_custom_call.1} parent=11 // pred_check
          _
        $region64: #{tpu_custom_call.1} parent=11 // pred_check_branch
          %243 = sbr.rel target = $region66
        $region65: #{tpu_custom_call.1} parent=11 // pred_region
          %244 = sst [smem:[#allocation17]] [#allocation29]
          %245 = sst [smem:[#allocation18]] [#allocation28]
        $region66: #{tpu_custom_call.1} parent=11 // pred_fallthru
          _
        %247 = shalt.err (0)
        %s249 = sshll.u32 %s240, 4
        %s250 = int_to_ptr.vmem [resolvable:$true] %s249
        %252 = dma.hbm_to_vmem [thread:$0]  %s239, 16, %s250, %s241
        %s253 = smul.addr %s67, 16
        %s254 = scalar_lea.hbm %s4, %s253
        %s255 = scalar_lea.vmem [#allocation3], 1
        // Predicated region
        $region67: #{tpu_custom_call.1} parent=11 // pred_check
          _
        $region68: #{tpu_custom_call.1} parent=11 // pred_check_branch
          %257 = sbr.rel target = $region70
        $region69: #{tpu_custom_call.1} parent=11 // pred_region
          %258 = sst [smem:[#allocation17]] [#allocation31]
          %259 = sst [smem:[#allocation18]] [#allocation30]
        $region70: #{tpu_custom_call.1} parent=11 // pred_fallthru
          _
        %261 = shalt.err (0)
        %s263 = sshll.u32 %s255, 4
        %s264 = int_to_ptr.vmem [resolvable:$true] %s263
        %266 = dma.hbm_to_vmem [thread:$0]  %s254, 16, %s264, %s241
        %s267 = scalar_lea.vmem %s5, %s68
        %s268 = scalar_lea.vmem [#allocation4], 1
        %p270 = scmp.lt.u32.totalorder 1, 8
        %p271 = pneg %p270
        // Predicated region
        $region71: #{tpu_custom_call.1} parent=11 // pred_check
          _
        $region72: #{tpu_custom_call.1} parent=11 // pred_check_branch
          %273 = sbr.rel (%p270) target = $region74
        $region73: #{tpu_custom_call.1} parent=11 // pred_region
          %s289 = sand.u32 1, 7
          %p290 = scmp.eq.s32.totalorder %s289, 0
          %p291 = pneg %p290
          // Predicated region
          $region86: #{tpu_custom_call.1} parent=73 // pred_check
            _
          $region87: #{tpu_custom_call.1} parent=73 // pred_check_branch
            %293 = sbr.rel (%p290) target = $region89
          $region88: #{tpu_custom_call.1} parent=73 // pred_region
            %s294 = sand.u32 1, 7
            %s295 = ssub.s32 1, %s294
            %s296 = scalar_lea.vmem %s267, %s295
            %s297 = ssub.s32 1, %s294
            %s298 = scalar_lea.vmem %s268, %s297 [#allocation4]
            %s299 = sshll.u32 1, %s294
            %s300 = ssub.s32 %s299, 1
            loop: start=0, step=1, limit=1
            $region90: #{tpu_custom_call.1} parent=88 // loop_pre_header
              _
            $region91: #{tpu_custom_call.1} parent=88 // loop_header
              %s302 = sphi 0, %s306
              %p303 = scmp.ge.s32.totalorder %s302, 1
              %s307 = sphi %s296, %s296
              %s308 = sphi %s298, %s298
            $region92: #{tpu_custom_call.1} parent=88 // loop_header_branch
              %305 = sbr.rel (%p303) target = $region96
            $region93: #{tpu_custom_call.1} parent=88 // loop_body
              %v309 = vld [vmem:[%s307] sm:%s300]
              %310 = vst [vmem:[%s308] sm:%s300] %v309
            $region94: #{tpu_custom_call.1} parent=88 // loop_footer
              %s306 = sadd.s32 1, %s302
            $region95: #{tpu_custom_call.1} parent=88 // loop_footer_branch
              %301 = sbr.rel target = $region91
            $region96: #{tpu_custom_call.1} parent=88 // loop_exit
              _
          $region89: #{tpu_custom_call.1} parent=73 // pred_fallthru
            _
        $region74: #{tpu_custom_call.1} parent=11 // pred_fallthru
          _
        // Predicated region
        $region75: #{tpu_custom_call.1} parent=11 // pred_check
          %p274 = pneg %p270
        $region76: #{tpu_custom_call.1} parent=11 // pred_check_branch
          %276 = sbr.rel (%p274) target = $region78
        $region77: #{tpu_custom_call.1} parent=11 // pred_region
          %s277 = sshll.u32 1, 1
          %s278 = ssub.s32 %s277, 1
          loop: start=0, step=1, limit=1
          $region79: #{tpu_custom_call.1} parent=77 // loop_pre_header
            _
          $region80: #{tpu_custom_call.1} parent=77 // loop_header
            %s280 = sphi 0, %s284
            %p281 = scmp.ge.s32.totalorder %s280, 1
            %s285 = sphi %s267, %s267
            %s286 = sphi %s268, %s268
          $region81: #{tpu_custom_call.1} parent=77 // loop_header_branch
            %283 = sbr.rel (%p281) target = $region85
          $region82: #{tpu_custom_call.1} parent=77 // loop_body
            %v287 = vld [vmem:[%s285] sm:%s278]
            %288 = vst [vmem:[%s286] sm:%s278] %v287
          $region83: #{tpu_custom_call.1} parent=77 // loop_footer
            %s284 = sadd.s32 1, %s280
          $region84: #{tpu_custom_call.1} parent=77 // loop_footer_branch
            %279 = sbr.rel target = $region80
          $region85: #{tpu_custom_call.1} parent=77 // loop_exit
            _
        $region78: #{tpu_custom_call.1} parent=11 // pred_fallthru
          _
        // Predicated region
        $region97: #{tpu_custom_call.1} parent=11 // pred_check
          _
        $region98: #{tpu_custom_call.1} parent=11 // pred_check_branch
          %313 = sbr.rel (0) target = $region100
        $region99: #{tpu_custom_call.1} parent=11 // pred_region
          %314 = vsyncadd %s241, 16
        $region100: #{tpu_custom_call.1} parent=11 // pred_fallthru
          _
        %s315 = smul.addr %s68, 16
        %s316 = scalar_lea.hbm %s6, %s315
        %s317 = scalar_lea.vmem [#allocation5], 1
        // Predicated region
        $region101: #{tpu_custom_call.1} parent=11 // pred_check
          _
        $region102: #{tpu_custom_call.1} parent=11 // pred_check_branch
          %319 = sbr.rel target = $region104
        $region103: #{tpu_custom_call.1} parent=11 // pred_region
          %320 = sst [smem:[#allocation17]] [#allocation34]
          %321 = sst [smem:[#allocation18]] [#allocation33]
        $region104: #{tpu_custom_call.1} parent=11 // pred_fallthru
          _
        %323 = shalt.err (0)
        %s325 = sshll.u32 %s317, 4
        %s326 = int_to_ptr.vmem [resolvable:$true] %s325
        %328 = dma.hbm_to_vmem [thread:$0]  %s316, 16, %s326, %s241
        %s329 = smul.addr %s69, 16
        %s330 = scalar_lea.hbm %s3, %s329
        %s331 = scalar_lea.vmem [#allocation6], 1
        // Predicated region
        $region105: #{tpu_custom_call.1} parent=11 // pred_check
          _
        $region106: #{tpu_custom_call.1} parent=11 // pred_check_branch
          %333 = sbr.rel target = $region108
        $region107: #{tpu_custom_call.1} parent=11 // pred_region
          %334 = sst [smem:[#allocation17]] [#allocation36]
          %335 = sst [smem:[#allocation18]] [#allocation35]
        $region108: #{tpu_custom_call.1} parent=11 // pred_fallthru
          _
        %337 = shalt.err (0)
        %s339 = sshll.u32 %s331, 4
        %s340 = int_to_ptr.vmem [resolvable:$true] %s339
        %342 = dma.hbm_to_vmem [thread:$0]  %s330, 16, %s340, %s241
        %s343 = smul.addr %s69, 16
        %s344 = scalar_lea.hbm %s4, %s343
        %s345 = scalar_lea.vmem [#allocation7], 1
        // Predicated region
        $region109: #{tpu_custom_call.1} parent=11 // pred_check
          _
        $region110: #{tpu_custom_call.1} parent=11 // pred_check_branch
          %347 = sbr.rel target = $region112
        $region111: #{tpu_custom_call.1} parent=11 // pred_region
          %348 = sst [smem:[#allocation17]] [#allocation38]
          %349 = sst [smem:[#allocation18]] [#allocation37]
        $region112: #{tpu_custom_call.1} parent=11 // pred_fallthru
          _
        %351 = shalt.err (0)
        %s353 = sshll.u32 %s345, 4
        %s354 = int_to_ptr.vmem [resolvable:$true] %s353
        %356 = dma.hbm_to_vmem [thread:$0]  %s344, 16, %s354, %s241
        %s357 = smul.addr %s71, 16
        %s358 = scalar_lea.hbm %s3, %s357
        %s359 = scalar_lea.vmem [#allocation2], 2
        %s360 = scalar_lea.sflag [#allocation8], 2
        // Predicated region
        $region113: #{tpu_custom_call.1} parent=11 // pred_check
          _
        $region114: #{tpu_custom_call.1} parent=11 // pred_check_branch
          %362 = sbr.rel target = $region116
        $region115: #{tpu_custom_call.1} parent=11 // pred_region
          %363 = sst [smem:[#allocation17]] [#allocation40]
          %364 = sst [smem:[#allocation18]] [#allocation39]
        $region116: #{tpu_custom_call.1} parent=11 // pred_fallthru
          _
        %366 = shalt.err (0)
        %s368 = sshll.u32 %s359, 4
        %s369 = int_to_ptr.vmem [resolvable:$true] %s368
        %371 = dma.hbm_to_vmem [thread:$0]  %s358, 16, %s369, %s360
        %s372 = smul.addr %s71, 16
        %s373 = scalar_lea.hbm %s4, %s372
        %s374 = scalar_lea.vmem [#allocation3], 2
        // Predicated region
        $region117: #{tpu_custom_call.1} parent=11 // pred_check
          _
        $region118: #{tpu_custom_call.1} parent=11 // pred_check_branch
          %376 = sbr.rel target = $region120
        $region119: #{tpu_custom_call.1} parent=11 // pred_region
          %377 = sst [smem:[#allocation17]] [#allocation42]
          %378 = sst [smem:[#allocation18]] [#allocation41]
        $region120: #{tpu_custom_call.1} parent=11 // pred_fallthru
          _
        %380 = shalt.err (0)
        %s382 = sshll.u32 %s374, 4
        %s383 = int_to_ptr.vmem [resolvable:$true] %s382
        %385 = dma.hbm_to_vmem [thread:$0]  %s373, 16, %s383, %s360
        %s386 = scalar_lea.vmem %s5, %s72
        %s387 = scalar_lea.vmem [#allocation4], 2
        %p389 = scmp.lt.u32.totalorder 1, 8
        %p390 = pneg %p389
        // Predicated region
        $region121: #{tpu_custom_call.1} parent=11 // pred_check
          _
        $region122: #{tpu_custom_call.1} parent=11 // pred_check_branch
          %392 = sbr.rel (%p389) target = $region124
        $region123: #{tpu_custom_call.1} parent=11 // pred_region
          %s408 = sand.u32 1, 7
          %p409 = scmp.eq.s32.totalorder %s408, 0
          %p410 = pneg %p409
          // Predicated region
          $region136: #{tpu_custom_call.1} parent=123 // pred_check
            _
          $region137: #{tpu_custom_call.1} parent=123 // pred_check_branch
            %412 = sbr.rel (%p409) target = $region139
          $region138: #{tpu_custom_call.1} parent=123 // pred_region
            %s413 = sand.u32 1, 7
            %s414 = ssub.s32 1, %s413
            %s415 = scalar_lea.vmem %s386, %s414
            %s416 = ssub.s32 1, %s413
            %s417 = scalar_lea.vmem %s387, %s416 [#allocation4]
            %s418 = sshll.u32 1, %s413
            %s419 = ssub.s32 %s418, 1
            loop: start=0, step=1, limit=1
            $region140: #{tpu_custom_call.1} parent=138 // loop_pre_header
              _
            $region141: #{tpu_custom_call.1} parent=138 // loop_header
              %s421 = sphi 0, %s425
              %p422 = scmp.ge.s32.totalorder %s421, 1
              %s426 = sphi %s415, %s415
              %s427 = sphi %s417, %s417
            $region142: #{tpu_custom_call.1} parent=138 // loop_header_branch
              %424 = sbr.rel (%p422) target = $region146
            $region143: #{tpu_custom_call.1} parent=138 // loop_body
              %v428 = vld [vmem:[%s426] sm:%s419]
              %429 = vst [vmem:[%s427] sm:%s419] %v428
            $region144: #{tpu_custom_call.1} parent=138 // loop_footer
              %s425 = sadd.s32 1, %s421
            $region145: #{tpu_custom_call.1} parent=138 // loop_footer_branch
              %420 = sbr.rel target = $region141
            $region146: #{tpu_custom_call.1} parent=138 // loop_exit
              _
          $region139: #{tpu_custom_call.1} parent=123 // pred_fallthru
            _
        $region124: #{tpu_custom_call.1} parent=11 // pred_fallthru
          _
        // Predicated region
        $region125: #{tpu_custom_call.1} parent=11 // pred_check
          %p393 = pneg %p389
        $region126: #{tpu_custom_call.1} parent=11 // pred_check_branch
          %395 = sbr.rel (%p393) target = $region128
        $region127: #{tpu_custom_call.1} parent=11 // pred_region
          %s396 = sshll.u32 1, 1
          %s397 = ssub.s32 %s396, 1
          loop: start=0, step=1, limit=1
          $region129: #{tpu_custom_call.1} parent=127 // loop_pre_header
            _
          $region130: #{tpu_custom_call.1} parent=127 // loop_header
            %s399 = sphi 0, %s403
            %p400 = scmp.ge.s32.totalorder %s399, 1
            %s404 = sphi %s386, %s386
            %s405 = sphi %s387, %s387
          $region131: #{tpu_custom_call.1} parent=127 // loop_header_branch
            %402 = sbr.rel (%p400) target = $region135
          $region132: #{tpu_custom_call.1} parent=127 // loop_body
            %v406 = vld [vmem:[%s404] sm:%s397]
            %407 = vst [vmem:[%s405] sm:%s397] %v406
          $region133: #{tpu_custom_call.1} parent=127 // loop_footer
            %s403 = sadd.s32 1, %s399
          $region134: #{tpu_custom_call.1} parent=127 // loop_footer_branch
            %398 = sbr.rel target = $region130
          $region135: #{tpu_custom_call.1} parent=127 // loop_exit
            _
        $region128: #{tpu_custom_call.1} parent=11 // pred_fallthru
          _
        // Predicated region
        $region147: #{tpu_custom_call.1} parent=11 // pred_check
          _
        $region148: #{tpu_custom_call.1} parent=11 // pred_check_branch
          %432 = sbr.rel (0) target = $region150
        $region149: #{tpu_custom_call.1} parent=11 // pred_region
          %433 = vsyncadd %s360, 16
        $region150: #{tpu_custom_call.1} parent=11 // pred_fallthru
          _
        %s434 = smul.addr %s72, 16
        %s435 = scalar_lea.hbm %s6, %s434
        %s436 = scalar_lea.vmem [#allocation5], 2
        // Predicated region
        $region151: #{tpu_custom_call.1} parent=11 // pred_check
          _
        $region152: #{tpu_custom_call.1} parent=11 // pred_check_branch
          %438 = sbr.rel target = $region154
        $region153: #{tpu_custom_call.1} parent=11 // pred_region
          %439 = sst [smem:[#allocation17]] [#allocation45]
          %440 = sst [smem:[#allocation18]] [#allocation44]
        $region154: #{tpu_custom_call.1} parent=11 // pred_fallthru
          _
        %442 = shalt.err (0)
        %s444 = sshll.u32 %s436, 4
        %s445 = int_to_ptr.vmem [resolvable:$true] %s444
        %447 = dma.hbm_to_vmem [thread:$0]  %s435, 16, %s445, %s360
        %s448 = smul.addr %s73, 16
        %s449 = scalar_lea.hbm %s3, %s448
        %s450 = scalar_lea.vmem [#allocation6], 2
        // Predicated region
        $region155: #{tpu_custom_call.1} parent=11 // pred_check
          _
        $region156: #{tpu_custom_call.1} parent=11 // pred_check_branch
          %452 = sbr.rel target = $region158
        $region157: #{tpu_custom_call.1} parent=11 // pred_region
          %453 = sst [smem:[#allocation17]] [#allocation47]
          %454 = sst [smem:[#allocation18]] [#allocation46]
        $region158: #{tpu_custom_call.1} parent=11 // pred_fallthru
          _
        %456 = shalt.err (0)
        %s458 = sshll.u32 %s450, 4
        %s459 = int_to_ptr.vmem [resolvable:$true] %s458
        %461 = dma.hbm_to_vmem [thread:$0]  %s449, 16, %s459, %s360
        %s462 = smul.addr %s73, 16
        %s463 = scalar_lea.hbm %s4, %s462
        %s464 = scalar_lea.vmem [#allocation7], 2
        // Predicated region
        $region159: #{tpu_custom_call.1} parent=11 // pred_check
          _
        $region160: #{tpu_custom_call.1} parent=11 // pred_check_branch
          %466 = sbr.rel target = $region162
        $region161: #{tpu_custom_call.1} parent=11 // pred_region
          %467 = sst [smem:[#allocation17]] [#allocation49]
          %468 = sst [smem:[#allocation18]] [#allocation48]
        $region162: #{tpu_custom_call.1} parent=11 // pred_fallthru
          _
        %470 = shalt.err (0)
        %s472 = sshll.u32 %s464, 4
        %s473 = int_to_ptr.vmem [resolvable:$true] %s472
        %475 = dma.hbm_to_vmem [thread:$0]  %s463, 16, %s473, %s360
        %s476 = smul.addr %s75, 16
        %s477 = scalar_lea.hbm %s3, %s476
        %s478 = scalar_lea.vmem [#allocation2], 3
        %s479 = scalar_lea.sflag [#allocation8], 3
        // Predicated region
        $region163: #{tpu_custom_call.1} parent=11 // pred_check
          _
        $region164: #{tpu_custom_call.1} parent=11 // pred_check_branch
          %481 = sbr.rel target = $region166
        $region165: #{tpu_custom_call.1} parent=11 // pred_region
          %482 = sst [smem:[#allocation17]] [#allocation51]
          %483 = sst [smem:[#allocation18]] [#allocation50]
        $region166: #{tpu_custom_call.1} parent=11 // pred_fallthru
          _
        %485 = shalt.err (0)
        %s487 = sshll.u32 %s478, 4
        %s488 = int_to_ptr.vmem [resolvable:$true] %s487
        %490 = dma.hbm_to_vmem [thread:$0]  %s477, 16, %s488, %s479
        %s491 = smul.addr %s75, 16
        %s492 = scalar_lea.hbm %s4, %s491
        %s493 = scalar_lea.vmem [#allocation3], 3
        // Predicated region
        $region167: #{tpu_custom_call.1} parent=11 // pred_check
          _
        $region168: #{tpu_custom_call.1} parent=11 // pred_check_branch
          %495 = sbr.rel target = $region170
        $region169: #{tpu_custom_call.1} parent=11 // pred_region
          %496 = sst [smem:[#allocation17]] [#allocation53]
          %497 = sst [smem:[#allocation18]] [#allocation52]
        $region170: #{tpu_custom_call.1} parent=11 // pred_fallthru
          _
        %499 = shalt.err (0)
        %s501 = sshll.u32 %s493, 4
        %s502 = int_to_ptr.vmem [resolvable:$true] %s501
        %504 = dma.hbm_to_vmem [thread:$0]  %s492, 16, %s502, %s479
        %s505 = scalar_lea.vmem %s5, %s76
        %s506 = scalar_lea.vmem [#allocation4], 3
        %p508 = scmp.lt.u32.totalorder 1, 8
        %p509 = pneg %p508
        // Predicated region
        $region171: #{tpu_custom_call.1} parent=11 // pred_check
          _
        $region172: #{tpu_custom_call.1} parent=11 // pred_check_branch
          %511 = sbr.rel (%p508) target = $region174
        $region173: #{tpu_custom_call.1} parent=11 // pred_region
          %s527 = sand.u32 1, 7
          %p528 = scmp.eq.s32.totalorder %s527, 0
          %p529 = pneg %p528
          // Predicated region
          $region186: #{tpu_custom_call.1} parent=173 // pred_check
            _
          $region187: #{tpu_custom_call.1} parent=173 // pred_check_branch
            %531 = sbr.rel (%p528) target = $region189
          $region188: #{tpu_custom_call.1} parent=173 // pred_region
            %s532 = sand.u32 1, 7
            %s533 = ssub.s32 1, %s532
            %s534 = scalar_lea.vmem %s505, %s533
            %s535 = ssub.s32 1, %s532
            %s536 = scalar_lea.vmem %s506, %s535 [#allocation4]
            %s537 = sshll.u32 1, %s532
            %s538 = ssub.s32 %s537, 1
            loop: start=0, step=1, limit=1
            $region190: #{tpu_custom_call.1} parent=188 // loop_pre_header
              _
            $region191: #{tpu_custom_call.1} parent=188 // loop_header
              %s540 = sphi 0, %s544
              %p541 = scmp.ge.s32.totalorder %s540, 1
              %s545 = sphi %s534, %s534
              %s546 = sphi %s536, %s536
            $region192: #{tpu_custom_call.1} parent=188 // loop_header_branch
              %543 = sbr.rel (%p541) target = $region196
            $region193: #{tpu_custom_call.1} parent=188 // loop_body
              %v547 = vld [vmem:[%s545] sm:%s538]
              %548 = vst [vmem:[%s546] sm:%s538] %v547
            $region194: #{tpu_custom_call.1} parent=188 // loop_footer
              %s544 = sadd.s32 1, %s540
            $region195: #{tpu_custom_call.1} parent=188 // loop_footer_branch
              %539 = sbr.rel target = $region191
            $region196: #{tpu_custom_call.1} parent=188 // loop_exit
              _
          $region189: #{tpu_custom_call.1} parent=173 // pred_fallthru
            _
        $region174: #{tpu_custom_call.1} parent=11 // pred_fallthru
          _
        // Predicated region
        $region175: #{tpu_custom_call.1} parent=11 // pred_check
          %p512 = pneg %p508
        $region176: #{tpu_custom_call.1} parent=11 // pred_check_branch
          %514 = sbr.rel (%p512) target = $region178
        $region177: #{tpu_custom_call.1} parent=11 // pred_region
          %s515 = sshll.u32 1, 1
          %s516 = ssub.s32 %s515, 1
          loop: start=0, step=1, limit=1
          $region179: #{tpu_custom_call.1} parent=177 // loop_pre_header
            _
          $region180: #{tpu_custom_call.1} parent=177 // loop_header
            %s518 = sphi 0, %s522
            %p519 = scmp.ge.s32.totalorder %s518, 1
            %s523 = sphi %s505, %s505
            %s524 = sphi %s506, %s506
          $region181: #{tpu_custom_call.1} parent=177 // loop_header_branch
            %521 = sbr.rel (%p519) target = $region185
          $region182: #{tpu_custom_call.1} parent=177 // loop_body
            %v525 = vld [vmem:[%s523] sm:%s516]
            %526 = vst [vmem:[%s524] sm:%s516] %v525
          $region183: #{tpu_custom_call.1} parent=177 // loop_footer
            %s522 = sadd.s32 1, %s518
          $region184: #{tpu_custom_call.1} parent=177 // loop_footer_branch
            %517 = sbr.rel target = $region180
          $region185: #{tpu_custom_call.1} parent=177 // loop_exit
            _
        $region178: #{tpu_custom_call.1} parent=11 // pred_fallthru
          _
        // Predicated region
        $region197: #{tpu_custom_call.1} parent=11 // pred_check
          _
        $region198: #{tpu_custom_call.1} parent=11 // pred_check_branch
          %551 = sbr.rel (0) target = $region200
        $region199: #{tpu_custom_call.1} parent=11 // pred_region
          %552 = vsyncadd %s479, 16
        $region200: #{tpu_custom_call.1} parent=11 // pred_fallthru
          _
        %s553 = smul.addr %s76, 16
        %s554 = scalar_lea.hbm %s6, %s553
        %s555 = scalar_lea.vmem [#allocation5], 3
        // Predicated region
        $region201: #{tpu_custom_call.1} parent=11 // pred_check
          _
        $region202: #{tpu_custom_call.1} parent=11 // pred_check_branch
          %557 = sbr.rel target = $region204
        $region203: #{tpu_custom_call.1} parent=11 // pred_region
          %558 = sst [smem:[#allocation17]] [#allocation56]
          %559 = sst [smem:[#allocation18]] [#allocation55]
        $region204: #{tpu_custom_call.1} parent=11 // pred_fallthru
          _
        %561 = shalt.err (0)
        %s563 = sshll.u32 %s555, 4
        %s564 = int_to_ptr.vmem [resolvable:$true] %s563
        %566 = dma.hbm_to_vmem [thread:$0]  %s554, 16, %s564, %s479
        %s567 = smul.addr %s77, 16
        %s568 = scalar_lea.hbm %s3, %s567
        %s569 = scalar_lea.vmem [#allocation6], 3
        // Predicated region
        $region205: #{tpu_custom_call.1} parent=11 // pred_check
          _
        $region206: #{tpu_custom_call.1} parent=11 // pred_check_branch
          %571 = sbr.rel target = $region208
        $region207: #{tpu_custom_call.1} parent=11 // pred_region
          %572 = sst [smem:[#allocation17]] [#allocation58]
          %573 = sst [smem:[#allocation18]] [#allocation57]
        $region208: #{tpu_custom_call.1} parent=11 // pred_fallthru
          _
        %575 = shalt.err (0)
        %s577 = sshll.u32 %s569, 4
        %s578 = int_to_ptr.vmem [resolvable:$true] %s577
        %580 = dma.hbm_to_vmem [thread:$0]  %s568, 16, %s578, %s479
        %s581 = smul.addr %s77, 16
        %s582 = scalar_lea.hbm %s4, %s581
        %s583 = scalar_lea.vmem [#allocation7], 3
        // Predicated region
        $region209: #{tpu_custom_call.1} parent=11 // pred_check
          _
        $region210: #{tpu_custom_call.1} parent=11 // pred_check_branch
          %585 = sbr.rel target = $region212
        $region211: #{tpu_custom_call.1} parent=11 // pred_region
          %586 = sst [smem:[#allocation17]] [#allocation60]
          %587 = sst [smem:[#allocation18]] [#allocation59]
        $region212: #{tpu_custom_call.1} parent=11 // pred_fallthru
          _
        %589 = shalt.err (0)
        %s591 = sshll.u32 %s583, 4
        %s592 = int_to_ptr.vmem [resolvable:$true] %s591
        %594 = dma.hbm_to_vmem [thread:$0]  %s582, 16, %s592, %s479
        %s595 = smul.addr %s79, 16
        %s596 = scalar_lea.hbm %s3, %s595
        %s597 = scalar_lea.vmem [#allocation2], 4
        %s598 = scalar_lea.sflag [#allocation8], 4
        // Predicated region
        $region213: #{tpu_custom_call.1} parent=11 // pred_check
          _
        $region214: #{tpu_custom_call.1} parent=11 // pred_check_branch
          %600 = sbr.rel target = $region216
        $region215: #{tpu_custom_call.1} parent=11 // pred_region
          %601 = sst [smem:[#allocation17]] [#allocation62]
          %602 = sst [smem:[#allocation18]] [#allocation61]
        $region216: #{tpu_custom_call.1} parent=11 // pred_fallthru
          _
        %604 = shalt.err (0)
        %s606 = sshll.u32 %s597, 4
        %s607 = int_to_ptr.vmem [resolvable:$true] %s606
        %609 = dma.hbm_to_vmem [thread:$0]  %s596, 16, %s607, %s598
        %s610 = smul.addr %s79, 16
        %s611 = scalar_lea.hbm %s4, %s610
        %s612 = scalar_lea.vmem [#allocation3], 4
        // Predicated region
        $region217: #{tpu_custom_call.1} parent=11 // pred_check
          _
        $region218: #{tpu_custom_call.1} parent=11 // pred_check_branch
          %614 = sbr.rel target = $region220
        $region219: #{tpu_custom_call.1} parent=11 // pred_region
          %615 = sst [smem:[#allocation17]] [#allocation64]
          %616 = sst [smem:[#allocation18]] [#allocation63]
        $region220: #{tpu_custom_call.1} parent=11 // pred_fallthru
          _
        %618 = shalt.err (0)
        %s620 = sshll.u32 %s612, 4
        %s621 = int_to_ptr.vmem [resolvable:$true] %s620
        %623 = dma.hbm_to_vmem [thread:$0]  %s611, 16, %s621, %s598
        %s624 = scalar_lea.vmem %s5, %s80
        %s625 = scalar_lea.vmem [#allocation4], 4
        %p627 = scmp.lt.u32.totalorder 1, 8
        %p628 = pneg %p627
        // Predicated region
        $region221: #{tpu_custom_call.1} parent=11 // pred_check
          _
        $region222: #{tpu_custom_call.1} parent=11 // pred_check_branch
          %630 = sbr.rel (%p627) target = $region224
        $region223: #{tpu_custom_call.1} parent=11 // pred_region
          %s646 = sand.u32 1, 7
          %p647 = scmp.eq.s32.totalorder %s646, 0
          %p648 = pneg %p647
          // Predicated region
          $region236: #{tpu_custom_call.1} parent=223 // pred_check
            _
          $region237: #{tpu_custom_call.1} parent=223 // pred_check_branch
            %650 = sbr.rel (%p647) target = $region239
          $region238: #{tpu_custom_call.1} parent=223 // pred_region
            %s651 = sand.u32 1, 7
            %s652 = ssub.s32 1, %s651
            %s653 = scalar_lea.vmem %s624, %s652
            %s654 = ssub.s32 1, %s651
            %s655 = scalar_lea.vmem %s625, %s654 [#allocation4]
            %s656 = sshll.u32 1, %s651
            %s657 = ssub.s32 %s656, 1
            loop: start=0, step=1, limit=1
            $region240: #{tpu_custom_call.1} parent=238 // loop_pre_header
              _
            $region241: #{tpu_custom_call.1} parent=238 // loop_header
              %s659 = sphi 0, %s663
              %p660 = scmp.ge.s32.totalorder %s659, 1
              %s664 = sphi %s653, %s653
              %s665 = sphi %s655, %s655
            $region242: #{tpu_custom_call.1} parent=238 // loop_header_branch
              %662 = sbr.rel (%p660) target = $region246
            $region243: #{tpu_custom_call.1} parent=238 // loop_body
              %v666 = vld [vmem:[%s664] sm:%s657]
              %667 = vst [vmem:[%s665] sm:%s657] %v666
            $region244: #{tpu_custom_call.1} parent=238 // loop_footer
              %s663 = sadd.s32 1, %s659
            $region245: #{tpu_custom_call.1} parent=238 // loop_footer_branch
              %658 = sbr.rel target = $region241
            $region246: #{tpu_custom_call.1} parent=238 // loop_exit
              _
          $region239: #{tpu_custom_call.1} parent=223 // pred_fallthru
            _
        $region224: #{tpu_custom_call.1} parent=11 // pred_fallthru
          _
        // Predicated region
        $region225: #{tpu_custom_call.1} parent=11 // pred_check
          %p631 = pneg %p627
        $region226: #{tpu_custom_call.1} parent=11 // pred_check_branch
          %633 = sbr.rel (%p631) target = $region228
        $region227: #{tpu_custom_call.1} parent=11 // pred_region
          %s634 = sshll.u32 1, 1
          %s635 = ssub.s32 %s634, 1
          loop: start=0, step=1, limit=1
          $region229: #{tpu_custom_call.1} parent=227 // loop_pre_header
            _
          $region230: #{tpu_custom_call.1} parent=227 // loop_header
            %s637 = sphi 0, %s641
            %p638 = scmp.ge.s32.totalorder %s637, 1
            %s642 = sphi %s624, %s624
            %s643 = sphi %s625, %s625
          $region231: #{tpu_custom_call.1} parent=227 // loop_header_branch
            %640 = sbr.rel (%p638) target = $region235
          $region232: #{tpu_custom_call.1} parent=227 // loop_body
            %v644 = vld [vmem:[%s642] sm:%s635]
            %645 = vst [vmem:[%s643] sm:%s635] %v644
          $region233: #{tpu_custom_call.1} parent=227 // loop_footer
            %s641 = sadd.s32 1, %s637
          $region234: #{tpu_custom_call.1} parent=227 // loop_footer_branch
            %636 = sbr.rel target = $region230
          $region235: #{tpu_custom_call.1} parent=227 // loop_exit
            _
        $region228: #{tpu_custom_call.1} parent=11 // pred_fallthru
          _
        // Predicated region
        $region247: #{tpu_custom_call.1} parent=11 // pred_check
          _
        $region248: #{tpu_custom_call.1} parent=11 // pred_check_branch
          %670 = sbr.rel (0) target = $region250
        $region249: #{tpu_custom_call.1} parent=11 // pred_region
          %671 = vsyncadd %s598, 16
        $region250: #{tpu_custom_call.1} parent=11 // pred_fallthru
          _
        %s672 = smul.addr %s80, 16
        %s673 = scalar_lea.hbm %s6, %s672
        %s674 = scalar_lea.vmem [#allocation5], 4
        // Predicated region
        $region251: #{tpu_custom_call.1} parent=11 // pred_check
          _
        $region252: #{tpu_custom_call.1} parent=11 // pred_check_branch
          %676 = sbr.rel target = $region254
        $region253: #{tpu_custom_call.1} parent=11 // pred_region
          %677 = sst [smem:[#allocation17]] [#allocation67]
          %678 = sst [smem:[#allocation18]] [#allocation66]
        $region254: #{tpu_custom_call.1} parent=11 // pred_fallthru
          _
        %680 = shalt.err (0)
        %s682 = sshll.u32 %s674, 4
        %s683 = int_to_ptr.vmem [resolvable:$true] %s682
        %685 = dma.hbm_to_vmem [thread:$0]  %s673, 16, %s683, %s598
        %s686 = smul.addr %s81, 16
        %s687 = scalar_lea.hbm %s3, %s686
        %s688 = scalar_lea.vmem [#allocation6], 4
        // Predicated region
        $region255: #{tpu_custom_call.1} parent=11 // pred_check
          _
        $region256: #{tpu_custom_call.1} parent=11 // pred_check_branch
          %690 = sbr.rel target = $region258
        $region257: #{tpu_custom_call.1} parent=11 // pred_region
          %691 = sst [smem:[#allocation17]] [#allocation69]
          %692 = sst [smem:[#allocation18]] [#allocation68]
        $region258: #{tpu_custom_call.1} parent=11 // pred_fallthru
          _
        %694 = shalt.err (0)
        %s696 = sshll.u32 %s688, 4
        %s697 = int_to_ptr.vmem [resolvable:$true] %s696
        %699 = dma.hbm_to_vmem [thread:$0]  %s687, 16, %s697, %s598
        %s700 = smul.addr %s81, 16
        %s701 = scalar_lea.hbm %s4, %s700
        %s702 = scalar_lea.vmem [#allocation7], 4
        // Predicated region
        $region259: #{tpu_custom_call.1} parent=11 // pred_check
          _
        $region260: #{tpu_custom_call.1} parent=11 // pred_check_branch
          %704 = sbr.rel target = $region262
        $region261: #{tpu_custom_call.1} parent=11 // pred_region
          %705 = sst [smem:[#allocation17]] [#allocation71]
          %706 = sst [smem:[#allocation18]] [#allocation70]
        $region262: #{tpu_custom_call.1} parent=11 // pred_fallthru
          _
        %708 = shalt.err (0)
        %s710 = sshll.u32 %s702, 4
        %s711 = int_to_ptr.vmem [resolvable:$true] %s710
        %713 = dma.hbm_to_vmem [thread:$0]  %s701, 16, %s711, %s598
        %s714 = smul.addr %s83, 16
        %s715 = scalar_lea.hbm %s3, %s714
        %s716 = scalar_lea.vmem [#allocation2], 5
        %s717 = scalar_lea.sflag [#allocation8], 5
        // Predicated region
        $region263: #{tpu_custom_call.1} parent=11 // pred_check
          _
        $region264: #{tpu_custom_call.1} parent=11 // pred_check_branch
          %719 = sbr.rel target = $region266
        $region265: #{tpu_custom_call.1} parent=11 // pred_region
          %720 = sst [smem:[#allocation17]] [#allocation73]
          %721 = sst [smem:[#allocation18]] [#allocation72]
        $region266: #{tpu_custom_call.1} parent=11 // pred_fallthru
          _
        %723 = shalt.err (0)
        %s725 = sshll.u32 %s716, 4
        %s726 = int_to_ptr.vmem [resolvable:$true] %s725
        %728 = dma.hbm_to_vmem [thread:$0]  %s715, 16, %s726, %s717
        %s729 = smul.addr %s83, 16
        %s730 = scalar_lea.hbm %s4, %s729
        %s731 = scalar_lea.vmem [#allocation3], 5
        // Predicated region
        $region267: #{tpu_custom_call.1} parent=11 // pred_check
          _
        $region268: #{tpu_custom_call.1} parent=11 // pred_check_branch
          %733 = sbr.rel target = $region270
        $region269: #{tpu_custom_call.1} parent=11 // pred_region
          %734 = sst [smem:[#allocation17]] [#allocation75]
          %735 = sst [smem:[#allocation18]] [#allocation74]
        $region270: #{tpu_custom_call.1} parent=11 // pred_fallthru
          _
        %737 = shalt.err (0)
        %s739 = sshll.u32 %s731, 4
        %s740 = int_to_ptr.vmem [resolvable:$true] %s739
        %742 = dma.hbm_to_vmem [thread:$0]  %s730, 16, %s740, %s717
        %s743 = scalar_lea.vmem %s5, %s84
        %s744 = scalar_lea.vmem [#allocation4], 5
        %p746 = scmp.lt.u32.totalorder 1, 8
        %p747 = pneg %p746
        // Predicated region
        $region271: #{tpu_custom_call.1} parent=11 // pred_check
          _
        $region272: #{tpu_custom_call.1} parent=11 // pred_check_branch
          %749 = sbr.rel (%p746) target = $region274
        $region273: #{tpu_custom_call.1} parent=11 // pred_region
          %s765 = sand.u32 1, 7
          %p766 = scmp.eq.s32.totalorder %s765, 0
          %p767 = pneg %p766
          // Predicated region
          $region286: #{tpu_custom_call.1} parent=273 // pred_check
            _
          $region287: #{tpu_custom_call.1} parent=273 // pred_check_branch
            %769 = sbr.rel (%p766) target = $region289
          $region288: #{tpu_custom_call.1} parent=273 // pred_region
            %s770 = sand.u32 1, 7
            %s771 = ssub.s32 1, %s770
            %s772 = scalar_lea.vmem %s743, %s771
            %s773 = ssub.s32 1, %s770
            %s774 = scalar_lea.vmem %s744, %s773 [#allocation4]
            %s775 = sshll.u32 1, %s770
            %s776 = ssub.s32 %s775, 1
            loop: start=0, step=1, limit=1
            $region290: #{tpu_custom_call.1} parent=288 // loop_pre_header
              _
            $region291: #{tpu_custom_call.1} parent=288 // loop_header
              %s778 = sphi 0, %s782
              %p779 = scmp.ge.s32.totalorder %s778, 1
              %s783 = sphi %s772, %s772
              %s784 = sphi %s774, %s774
            $region292: #{tpu_custom_call.1} parent=288 // loop_header_branch
              %781 = sbr.rel (%p779) target = $region296
            $region293: #{tpu_custom_call.1} parent=288 // loop_body
              %v785 = vld [vmem:[%s783] sm:%s776]
              %786 = vst [vmem:[%s784] sm:%s776] %v785
            $region294: #{tpu_custom_call.1} parent=288 // loop_footer
              %s782 = sadd.s32 1, %s778
            $region295: #{tpu_custom_call.1} parent=288 // loop_footer_branch
              %777 = sbr.rel target = $region291
            $region296: #{tpu_custom_call.1} parent=288 // loop_exit
              _
          $region289: #{tpu_custom_call.1} parent=273 // pred_fallthru
            _
        $region274: #{tpu_custom_call.1} parent=11 // pred_fallthru
          _
        // Predicated region
        $region275: #{tpu_custom_call.1} parent=11 // pred_check
          %p750 = pneg %p746
        $region276: #{tpu_custom_call.1} parent=11 // pred_check_branch
          %752 = sbr.rel (%p750) target = $region278
        $region277: #{tpu_custom_call.1} parent=11 // pred_region
          %s753 = sshll.u32 1, 1
          %s754 = ssub.s32 %s753, 1
          loop: start=0, step=1, limit=1
          $region279: #{tpu_custom_call.1} parent=277 // loop_pre_header
            _
          $region280: #{tpu_custom_call.1} parent=277 // loop_header
            %s756 = sphi 0, %s760
            %p757 = scmp.ge.s32.totalorder %s756, 1
            %s761 = sphi %s743, %s743
            %s762 = sphi %s744, %s744
          $region281: #{tpu_custom_call.1} parent=277 // loop_header_branch
            %759 = sbr.rel (%p757) target = $region285
          $region282: #{tpu_custom_call.1} parent=277 // loop_body
            %v763 = vld [vmem:[%s761] sm:%s754]
            %764 = vst [vmem:[%s762] sm:%s754] %v763
          $region283: #{tpu_custom_call.1} parent=277 // loop_footer
            %s760 = sadd.s32 1, %s756
          $region284: #{tpu_custom_call.1} parent=277 // loop_footer_branch
            %755 = sbr.rel target = $region280
          $region285: #{tpu_custom_call.1} parent=277 // loop_exit
            _
        $region278: #{tpu_custom_call.1} parent=11 // pred_fallthru
          _
        // Predicated region
        $region297: #{tpu_custom_call.1} parent=11 // pred_check
          _
        $region298: #{tpu_custom_call.1} parent=11 // pred_check_branch
          %789 = sbr.rel (0) target = $region300
        $region299: #{tpu_custom_call.1} parent=11 // pred_region
          %790 = vsyncadd %s717, 16
        $region300: #{tpu_custom_call.1} parent=11 // pred_fallthru
          _
        %s791 = smul.addr %s84, 16
        %s792 = scalar_lea.hbm %s6, %s791
        %s793 = scalar_lea.vmem [#allocation5], 5
        // Predicated region
        $region301: #{tpu_custom_call.1} parent=11 // pred_check
          _
        $region302: #{tpu_custom_call.1} parent=11 // pred_check_branch
          %795 = sbr.rel target = $region304
        $region303: #{tpu_custom_call.1} parent=11 // pred_region
          %796 = sst [smem:[#allocation17]] [#allocation78]
          %797 = sst [smem:[#allocation18]] [#allocation77]
        $region304: #{tpu_custom_call.1} parent=11 // pred_fallthru
          _
        %799 = shalt.err (0)
        %s801 = sshll.u32 %s793, 4
        %s802 = int_to_ptr.vmem [resolvable:$true] %s801
        %804 = dma.hbm_to_vmem [thread:$0]  %s792, 16, %s802, %s717
        %s805 = smul.addr %s85, 16
        %s806 = scalar_lea.hbm %s3, %s805
        %s807 = scalar_lea.vmem [#allocation6], 5
        // Predicated region
        $region305: #{tpu_custom_call.1} parent=11 // pred_check
          _
        $region306: #{tpu_custom_call.1} parent=11 // pred_check_branch
          %809 = sbr.rel target = $region308
        $region307: #{tpu_custom_call.1} parent=11 // pred_region
          %810 = sst [smem:[#allocation17]] [#allocation80]
          %811 = sst [smem:[#allocation18]] [#allocation79]
        $region308: #{tpu_custom_call.1} parent=11 // pred_fallthru
          _
        %813 = shalt.err (0)
        %s815 = sshll.u32 %s807, 4
        %s816 = int_to_ptr.vmem [resolvable:$true] %s815
        %818 = dma.hbm_to_vmem [thread:$0]  %s806, 16, %s816, %s717
        %s819 = smul.addr %s85, 16
        %s820 = scalar_lea.hbm %s4, %s819
        %s821 = scalar_lea.vmem [#allocation7], 5
        // Predicated region
        $region309: #{tpu_custom_call.1} parent=11 // pred_check
          _
        $region310: #{tpu_custom_call.1} parent=11 // pred_check_branch
          %823 = sbr.rel target = $region312
        $region311: #{tpu_custom_call.1} parent=11 // pred_region
          %824 = sst [smem:[#allocation17]] [#allocation82]
          %825 = sst [smem:[#allocation18]] [#allocation81]
        $region312: #{tpu_custom_call.1} parent=11 // pred_fallthru
          _
        %827 = shalt.err (0)
        %s829 = sshll.u32 %s821, 4
        %s830 = int_to_ptr.vmem [resolvable:$true] %s829
        %832 = dma.hbm_to_vmem [thread:$0]  %s820, 16, %s830, %s717
        %s833 = smul.addr %s87, 16
        %s834 = scalar_lea.hbm %s3, %s833
        %s835 = scalar_lea.vmem [#allocation2], 6
        %s836 = scalar_lea.sflag [#allocation8], 6
        // Predicated region
        $region313: #{tpu_custom_call.1} parent=11 // pred_check
          _
        $region314: #{tpu_custom_call.1} parent=11 // pred_check_branch
          %838 = sbr.rel target = $region316
        $region315: #{tpu_custom_call.1} parent=11 // pred_region
          %839 = sst [smem:[#allocation17]] [#allocation84]
          %840 = sst [smem:[#allocation18]] [#allocation83]
        $region316: #{tpu_custom_call.1} parent=11 // pred_fallthru
          _
        %842 = shalt.err (0)
        %s844 = sshll.u32 %s835, 4
        %s845 = int_to_ptr.vmem [resolvable:$true] %s844
        %847 = dma.hbm_to_vmem [thread:$0]  %s834, 16, %s845, %s836
        %s848 = smul.addr %s87, 16
        %s849 = scalar_lea.hbm %s4, %s848
        %s850 = scalar_lea.vmem [#allocation3], 6
        // Predicated region
        $region317: #{tpu_custom_call.1} parent=11 // pred_check
          _
        $region318: #{tpu_custom_call.1} parent=11 // pred_check_branch
          %852 = sbr.rel target = $region320
        $region319: #{tpu_custom_call.1} parent=11 // pred_region
          %853 = sst [smem:[#allocation17]] [#allocation86]
          %854 = sst [smem:[#allocation18]] [#allocation85]
        $region320: #{tpu_custom_call.1} parent=11 // pred_fallthru
          _
        %856 = shalt.err (0)
        %s858 = sshll.u32 %s850, 4
        %s859 = int_to_ptr.vmem [resolvable:$true] %s858
        %861 = dma.hbm_to_vmem [thread:$0]  %s849, 16, %s859, %s836
        %s862 = scalar_lea.vmem %s5, %s88
        %s863 = scalar_lea.vmem [#allocation4], 6
        %p865 = scmp.lt.u32.totalorder 1, 8
        %p866 = pneg %p865
        // Predicated region
        $region321: #{tpu_custom_call.1} parent=11 // pred_check
          _
        $region322: #{tpu_custom_call.1} parent=11 // pred_check_branch
          %868 = sbr.rel (%p865) target = $region324
        $region323: #{tpu_custom_call.1} parent=11 // pred_region
          %s884 = sand.u32 1, 7
          %p885 = scmp.eq.s32.totalorder %s884, 0
          %p886 = pneg %p885
          // Predicated region
          $region336: #{tpu_custom_call.1} parent=323 // pred_check
            _
          $region337: #{tpu_custom_call.1} parent=323 // pred_check_branch
            %888 = sbr.rel (%p885) target = $region339
          $region338: #{tpu_custom_call.1} parent=323 // pred_region
            %s889 = sand.u32 1, 7
            %s890 = ssub.s32 1, %s889
            %s891 = scalar_lea.vmem %s862, %s890
            %s892 = ssub.s32 1, %s889
            %s893 = scalar_lea.vmem %s863, %s892 [#allocation4]
            %s894 = sshll.u32 1, %s889
            %s895 = ssub.s32 %s894, 1
            loop: start=0, step=1, limit=1
            $region340: #{tpu_custom_call.1} parent=338 // loop_pre_header
              _
            $region341: #{tpu_custom_call.1} parent=338 // loop_header
              %s897 = sphi 0, %s901
              %p898 = scmp.ge.s32.totalorder %s897, 1
              %s902 = sphi %s891, %s891
              %s903 = sphi %s893, %s893
            $region342: #{tpu_custom_call.1} parent=338 // loop_header_branch
              %900 = sbr.rel (%p898) target = $region346
            $region343: #{tpu_custom_call.1} parent=338 // loop_body
              %v904 = vld [vmem:[%s902] sm:%s895]
              %905 = vst [vmem:[%s903] sm:%s895] %v904
            $region344: #{tpu_custom_call.1} parent=338 // loop_footer
              %s901 = sadd.s32 1, %s897
            $region345: #{tpu_custom_call.1} parent=338 // loop_footer_branch
              %896 = sbr.rel target = $region341
            $region346: #{tpu_custom_call.1} parent=338 // loop_exit
              _
          $region339: #{tpu_custom_call.1} parent=323 // pred_fallthru
            _
        $region324: #{tpu_custom_call.1} parent=11 // pred_fallthru
          _
        // Predicated region
        $region325: #{tpu_custom_call.1} parent=11 // pred_check
          %p869 = pneg %p865
        $region326: #{tpu_custom_call.1} parent=11 // pred_check_branch
          %871 = sbr.rel (%p869) target = $region328
        $region327: #{tpu_custom_call.1} parent=11 // pred_region
          %s872 = sshll.u32 1, 1
          %s873 = ssub.s32 %s872, 1
          loop: start=0, step=1, limit=1
          $region329: #{tpu_custom_call.1} parent=327 // loop_pre_header
            _
          $region330: #{tpu_custom_call.1} parent=327 // loop_header
            %s875 = sphi 0, %s879
            %p876 = scmp.ge.s32.totalorder %s875, 1
            %s880 = sphi %s862, %s862
            %s881 = sphi %s863, %s863
          $region331: #{tpu_custom_call.1} parent=327 // loop_header_branch
            %878 = sbr.rel (%p876) target = $region335
          $region332: #{tpu_custom_call.1} parent=327 // loop_body
            %v882 = vld [vmem:[%s880] sm:%s873]
            %883 = vst [vmem:[%s881] sm:%s873] %v882
          $region333: #{tpu_custom_call.1} parent=327 // loop_footer
            %s879 = sadd.s32 1, %s875
          $region334: #{tpu_custom_call.1} parent=327 // loop_footer_branch
            %874 = sbr.rel target = $region330
          $region335: #{tpu_custom_call.1} parent=327 // loop_exit
            _
        $region328: #{tpu_custom_call.1} parent=11 // pred_fallthru
          _
        // Predicated region
        $region347: #{tpu_custom_call.1} parent=11 // pred_check
          _
        $region348: #{tpu_custom_call.1} parent=11 // pred_check_branch
          %908 = sbr.rel (0) target = $region350
        $region349: #{tpu_custom_call.1} parent=11 // pred_region
          %909 = vsyncadd %s836, 16
        $region350: #{tpu_custom_call.1} parent=11 // pred_fallthru
          _
        %s910 = smul.addr %s88, 16
        %s911 = scalar_lea.hbm %s6, %s910
        %s912 = scalar_lea.vmem [#allocation5], 6
        // Predicated region
        $region351: #{tpu_custom_call.1} parent=11 // pred_check
          _
        $region352: #{tpu_custom_call.1} parent=11 // pred_check_branch
          %914 = sbr.rel target = $region354
        $region353: #{tpu_custom_call.1} parent=11 // pred_region
          %915 = sst [smem:[#allocation17]] [#allocation89]
          %916 = sst [smem:[#allocation18]] [#allocation88]
        $region354: #{tpu_custom_call.1} parent=11 // pred_fallthru
          _
        %918 = shalt.err (0)
        %s920 = sshll.u32 %s912, 4
        %s921 = int_to_ptr.vmem [resolvable:$true] %s920
        %923 = dma.hbm_to_vmem [thread:$0]  %s911, 16, %s921, %s836
        %s924 = smul.addr %s89, 16
        %s925 = scalar_lea.hbm %s3, %s924
        %s926 = scalar_lea.vmem [#allocation6], 6
        // Predicated region
        $region355: #{tpu_custom_call.1} parent=11 // pred_check
          _
        $region356: #{tpu_custom_call.1} parent=11 // pred_check_branch
          %928 = sbr.rel target = $region358
        $region357: #{tpu_custom_call.1} parent=11 // pred_region
          %929 = sst [smem:[#allocation17]] [#allocation91]
          %930 = sst [smem:[#allocation18]] [#allocation90]
        $region358: #{tpu_custom_call.1} parent=11 // pred_fallthru
          _
        %932 = shalt.err (0)
        %s934 = sshll.u32 %s926, 4
        %s935 = int_to_ptr.vmem [resolvable:$true] %s934
        %937 = dma.hbm_to_vmem [thread:$0]  %s925, 16, %s935, %s836
        %s938 = smul.addr %s89, 16
        %s939 = scalar_lea.hbm %s4, %s938
        %s940 = scalar_lea.vmem [#allocation7], 6
        // Predicated region
        $region359: #{tpu_custom_call.1} parent=11 // pred_check
          _
        $region360: #{tpu_custom_call.1} parent=11 // pred_check_branch
          %942 = sbr.rel target = $region362
        $region361: #{tpu_custom_call.1} parent=11 // pred_region
          %943 = sst [smem:[#allocation17]] [#allocation93]
          %944 = sst [smem:[#allocation18]] [#allocation92]
        $region362: #{tpu_custom_call.1} parent=11 // pred_fallthru
          _
        %946 = shalt.err (0)
        %s948 = sshll.u32 %s940, 4
        %s949 = int_to_ptr.vmem [resolvable:$true] %s948
        %951 = dma.hbm_to_vmem [thread:$0]  %s939, 16, %s949, %s836
        %s952 = smul.addr %s91, 16
        %s953 = scalar_lea.hbm %s3, %s952
        %s954 = scalar_lea.vmem [#allocation2], 7
        %s955 = scalar_lea.sflag [#allocation8], 7
        // Predicated region
        $region363: #{tpu_custom_call.1} parent=11 // pred_check
          _
        $region364: #{tpu_custom_call.1} parent=11 // pred_check_branch
          %957 = sbr.rel target = $region366
        $region365: #{tpu_custom_call.1} parent=11 // pred_region
          %958 = sst [smem:[#allocation17]] [#allocation95]
          %959 = sst [smem:[#allocation18]] [#allocation94]
        $region366: #{tpu_custom_call.1} parent=11 // pred_fallthru
          _
        %961 = shalt.err (0)
        %s963 = sshll.u32 %s954, 4
        %s964 = int_to_ptr.vmem [resolvable:$true] %s963
        %966 = dma.hbm_to_vmem [thread:$0]  %s953, 16, %s964, %s955
        %s967 = smul.addr %s91, 16
        %s968 = scalar_lea.hbm %s4, %s967
        %s969 = scalar_lea.vmem [#allocation3], 7
        // Predicated region
        $region367: #{tpu_custom_call.1} parent=11 // pred_check
          _
        $region368: #{tpu_custom_call.1} parent=11 // pred_check_branch
          %971 = sbr.rel target = $region370
        $region369: #{tpu_custom_call.1} parent=11 // pred_region
          %972 = sst [smem:[#allocation17]] [#allocation97]
          %973 = sst [smem:[#allocation18]] [#allocation96]
        $region370: #{tpu_custom_call.1} parent=11 // pred_fallthru
          _
        %975 = shalt.err (0)
        %s977 = sshll.u32 %s969, 4
        %s978 = int_to_ptr.vmem [resolvable:$true] %s977
        %980 = dma.hbm_to_vmem [thread:$0]  %s968, 16, %s978, %s955
        %s981 = scalar_lea.vmem %s5, %s92
        %s982 = scalar_lea.vmem [#allocation4], 7
        %p984 = scmp.lt.u32.totalorder 1, 8
        %p985 = pneg %p984
        // Predicated region
        $region371: #{tpu_custom_call.1} parent=11 // pred_check
          _
        $region372: #{tpu_custom_call.1} parent=11 // pred_check_branch
          %987 = sbr.rel (%p984) target = $region374
        $region373: #{tpu_custom_call.1} parent=11 // pred_region
          %s1003 = sand.u32 1, 7
          %p1004 = scmp.eq.s32.totalorder %s1003, 0
          %p1005 = pneg %p1004
          // Predicated region
          $region386: #{tpu_custom_call.1} parent=373 // pred_check
            _
          $region387: #{tpu_custom_call.1} parent=373 // pred_check_branch
            %1007 = sbr.rel (%p1004) target = $region389
          $region388: #{tpu_custom_call.1} parent=373 // pred_region
            %s1008 = sand.u32 1, 7
            %s1009 = ssub.s32 1, %s1008
            %s1010 = scalar_lea.vmem %s981, %s1009
            %s1011 = ssub.s32 1, %s1008
            %s1012 = scalar_lea.vmem %s982, %s1011 [#allocation4]
            %s1013 = sshll.u32 1, %s1008
            %s1014 = ssub.s32 %s1013, 1
            loop: start=0, step=1, limit=1
            $region390: #{tpu_custom_call.1} parent=388 // loop_pre_header
              _
            $region391: #{tpu_custom_call.1} parent=388 // loop_header
              %s1016 = sphi 0, %s1020
              %p1017 = scmp.ge.s32.totalorder %s1016, 1
              %s1021 = sphi %s1010, %s1010
              %s1022 = sphi %s1012, %s1012
            $region392: #{tpu_custom_call.1} parent=388 // loop_header_branch
              %1019 = sbr.rel (%p1017) target = $region396
            $region393: #{tpu_custom_call.1} parent=388 // loop_body
              %v1023 = vld [vmem:[%s1021] sm:%s1014]
              %1024 = vst [vmem:[%s1022] sm:%s1014] %v1023
            $region394: #{tpu_custom_call.1} parent=388 // loop_footer
              %s1020 = sadd.s32 1, %s1016
            $region395: #{tpu_custom_call.1} parent=388 // loop_footer_branch
              %1015 = sbr.rel target = $region391
            $region396: #{tpu_custom_call.1} parent=388 // loop_exit
              _
          $region389: #{tpu_custom_call.1} parent=373 // pred_fallthru
            _
        $region374: #{tpu_custom_call.1} parent=11 // pred_fallthru
          _
        // Predicated region
        $region375: #{tpu_custom_call.1} parent=11 // pred_check
          %p988 = pneg %p984
        $region376: #{tpu_custom_call.1} parent=11 // pred_check_branch
          %990 = sbr.rel (%p988) target = $region378
        $region377: #{tpu_custom_call.1} parent=11 // pred_region
          %s991 = sshll.u32 1, 1
          %s992 = ssub.s32 %s991, 1
          loop: start=0, step=1, limit=1
          $region379: #{tpu_custom_call.1} parent=377 // loop_pre_header
            _
          $region380: #{tpu_custom_call.1} parent=377 // loop_header
            %s994 = sphi 0, %s998
            %p995 = scmp.ge.s32.totalorder %s994, 1
            %s999 = sphi %s981, %s981
            %s1000 = sphi %s982, %s982
          $region381: #{tpu_custom_call.1} parent=377 // loop_header_branch
            %997 = sbr.rel (%p995) target = $region385
          $region382: #{tpu_custom_call.1} parent=377 // loop_body
            %v1001 = vld [vmem:[%s999] sm:%s992]
            %1002 = vst [vmem:[%s1000] sm:%s992] %v1001
          $region383: #{tpu_custom_call.1} parent=377 // loop_footer
            %s998 = sadd.s32 1, %s994
          $region384: #{tpu_custom_call.1} parent=377 // loop_footer_branch
            %993 = sbr.rel target = $region380
          $region385: #{tpu_custom_call.1} parent=377 // loop_exit
            _
        $region378: #{tpu_custom_call.1} parent=11 // pred_fallthru
          _
        // Predicated region
        $region397: #{tpu_custom_call.1} parent=11 // pred_check
          _
        $region398: #{tpu_custom_call.1} parent=11 // pred_check_branch
          %1027 = sbr.rel (0) target = $region400
        $region399: #{tpu_custom_call.1} parent=11 // pred_region
          %1028 = vsyncadd %s955, 16
        $region400: #{tpu_custom_call.1} parent=11 // pred_fallthru
          _
        %s1029 = smul.addr %s92, 16
        %s1030 = scalar_lea.hbm %s6, %s1029
        %s1031 = scalar_lea.vmem [#allocation5], 7
        // Predicated region
        $region401: #{tpu_custom_call.1} parent=11 // pred_check
          _
        $region402: #{tpu_custom_call.1} parent=11 // pred_check_branch
          %1033 = sbr.rel target = $region404
        $region403: #{tpu_custom_call.1} parent=11 // pred_region
          %1034 = sst [smem:[#allocation17]] [#allocation100]
          %1035 = sst [smem:[#allocation18]] [#allocation99]
        $region404: #{tpu_custom_call.1} parent=11 // pred_fallthru
          _
        %1037 = shalt.err (0)
        %s1039 = sshll.u32 %s1031, 4
        %s1040 = int_to_ptr.vmem [resolvable:$true] %s1039
        %1042 = dma.hbm_to_vmem [thread:$0]  %s1030, 16, %s1040, %s955
        %s1043 = smul.addr %s93, 16
        %s1044 = scalar_lea.hbm %s3, %s1043
        %s1045 = scalar_lea.vmem [#allocation6], 7
        // Predicated region
        $region405: #{tpu_custom_call.1} parent=11 // pred_check
          _
        $region406: #{tpu_custom_call.1} parent=11 // pred_check_branch
          %1047 = sbr.rel target = $region408
        $region407: #{tpu_custom_call.1} parent=11 // pred_region
          %1048 = sst [smem:[#allocation17]] [#allocation102]
          %1049 = sst [smem:[#allocation18]] [#allocation101]
        $region408: #{tpu_custom_call.1} parent=11 // pred_fallthru
          _
        %1051 = shalt.err (0)
        %s1053 = sshll.u32 %s1045, 4
        %s1054 = int_to_ptr.vmem [resolvable:$true] %s1053
        %1056 = dma.hbm_to_vmem [thread:$0]  %s1044, 16, %s1054, %s955
        %s1057 = smul.addr %s93, 16
        %s1058 = scalar_lea.hbm %s4, %s1057
        %s1059 = scalar_lea.vmem [#allocation7], 7
        // Predicated region
        $region409: #{tpu_custom_call.1} parent=11 // pred_check
          _
        $region410: #{tpu_custom_call.1} parent=11 // pred_check_branch
          %1061 = sbr.rel target = $region412
        $region411: #{tpu_custom_call.1} parent=11 // pred_region
          %1062 = sst [smem:[#allocation17]] [#allocation104]
          %1063 = sst [smem:[#allocation18]] [#allocation103]
        $region412: #{tpu_custom_call.1} parent=11 // pred_fallthru
          _
        %1065 = shalt.err (0)
        %s1067 = sshll.u32 %s1059, 4
        %s1068 = int_to_ptr.vmem [resolvable:$true] %s1067
        %1070 = dma.hbm_to_vmem [thread:$0]  %s1058, 16, %s1068, %s955
        %s1071 = smul.addr %s95, 16
        %s1072 = scalar_lea.hbm %s3, %s1071
        %s1073 = scalar_lea.vmem [#allocation2], 8
        %s1074 = scalar_lea.sflag [#allocation8], 8
        // Predicated region
        $region413: #{tpu_custom_call.1} parent=11 // pred_check
          _
        $region414: #{tpu_custom_call.1} parent=11 // pred_check_branch
          %1076 = sbr.rel target = $region416
        $region415: #{tpu_custom_call.1} parent=11 // pred_region
          %1077 = sst [smem:[#allocation17]] [#allocation106]
          %1078 = sst [smem:[#allocation18]] [#allocation105]
        $region416: #{tpu_custom_call.1} parent=11 // pred_fallthru
          _
        %1080 = shalt.err (0)
        %s1082 = sshll.u32 %s1073, 4
        %s1083 = int_to_ptr.vmem [resolvable:$true] %s1082
        %1085 = dma.hbm_to_vmem [thread:$0]  %s1072, 16, %s1083, %s1074
        %s1086 = smul.addr %s95, 16
        %s1087 = scalar_lea.hbm %s4, %s1086
        %s1088 = scalar_lea.vmem [#allocation3], 8
        // Predicated region
        $region417: #{tpu_custom_call.1} parent=11 // pred_check
          _
        $region418: #{tpu_custom_call.1} parent=11 // pred_check_branch
          %1090 = sbr.rel target = $region420
        $region419: #{tpu_custom_call.1} parent=11 // pred_region
          %1091 = sst [smem:[#allocation17]] [#allocation108]
          %1092 = sst [smem:[#allocation18]] [#allocation107]
        $region420: #{tpu_custom_call.1} parent=11 // pred_fallthru
          _
        %1094 = shalt.err (0)
        %s1096 = sshll.u32 %s1088, 4
        %s1097 = int_to_ptr.vmem [resolvable:$true] %s1096
        %1099 = dma.hbm_to_vmem [thread:$0]  %s1087, 16, %s1097, %s1074
        %s1100 = scalar_lea.vmem %s5, %s96
        %s1101 = scalar_lea.vmem [#allocation4], 8
        %p1103 = scmp.lt.u32.totalorder 1, 8
        %p1104 = pneg %p1103
        // Predicated region
        $region421: #{tpu_custom_call.1} parent=11 // pred_check
          _
        $region422: #{tpu_custom_call.1} parent=11 // pred_check_branch
          %1106 = sbr.rel (%p1103) target = $region424
        $region423: #{tpu_custom_call.1} parent=11 // pred_region
          %s1122 = sand.u32 1, 7
          %p1123 = scmp.eq.s32.totalorder %s1122, 0
          %p1124 = pneg %p1123
          // Predicated region
          $region436: #{tpu_custom_call.1} parent=423 // pred_check
            _
          $region437: #{tpu_custom_call.1} parent=423 // pred_check_branch
            %1126 = sbr.rel (%p1123) target = $region439
          $region438: #{tpu_custom_call.1} parent=423 // pred_region
            %s1127 = sand.u32 1, 7
            %s1128 = ssub.s32 1, %s1127
            %s1129 = scalar_lea.vmem %s1100, %s1128
            %s1130 = ssub.s32 1, %s1127
            %s1131 = scalar_lea.vmem %s1101, %s1130 [#allocation4]
            %s1132 = sshll.u32 1, %s1127
            %s1133 = ssub.s32 %s1132, 1
            loop: start=0, step=1, limit=1
            $region440: #{tpu_custom_call.1} parent=438 // loop_pre_header
              _
            $region441: #{tpu_custom_call.1} parent=438 // loop_header
              %s1135 = sphi 0, %s1139
              %p1136 = scmp.ge.s32.totalorder %s1135, 1
              %s1140 = sphi %s1129, %s1129
              %s1141 = sphi %s1131, %s1131
            $region442: #{tpu_custom_call.1} parent=438 // loop_header_branch
              %1138 = sbr.rel (%p1136) target = $region446
            $region443: #{tpu_custom_call.1} parent=438 // loop_body
              %v1142 = vld [vmem:[%s1140] sm:%s1133]
              %1143 = vst [vmem:[%s1141] sm:%s1133] %v1142
            $region444: #{tpu_custom_call.1} parent=438 // loop_footer
              %s1139 = sadd.s32 1, %s1135
            $region445: #{tpu_custom_call.1} parent=438 // loop_footer_branch
              %1134 = sbr.rel target = $region441
            $region446: #{tpu_custom_call.1} parent=438 // loop_exit
              _
          $region439: #{tpu_custom_call.1} parent=423 // pred_fallthru
            _
        $region424: #{tpu_custom_call.1} parent=11 // pred_fallthru
          _
        // Predicated region
        $region425: #{tpu_custom_call.1} parent=11 // pred_check
          %p1107 = pneg %p1103
        $region426: #{tpu_custom_call.1} parent=11 // pred_check_branch
          %1109 = sbr.rel (%p1107) target = $region428
        $region427: #{tpu_custom_call.1} parent=11 // pred_region
          %s1110 = sshll.u32 1, 1
          %s1111 = ssub.s32 %s1110, 1
          loop: start=0, step=1, limit=1
          $region429: #{tpu_custom_call.1} parent=427 // loop_pre_header
            _
          $region430: #{tpu_custom_call.1} parent=427 // loop_header
            %s1113 = sphi 0, %s1117
            %p1114 = scmp.ge.s32.totalorder %s1113, 1
            %s1118 = sphi %s1100, %s1100
            %s1119 = sphi %s1101, %s1101
          $region431: #{tpu_custom_call.1} parent=427 // loop_header_branch
            %1116 = sbr.rel (%p1114) target = $region435
          $region432: #{tpu_custom_call.1} parent=427 // loop_body
            %v1120 = vld [vmem:[%s1118] sm:%s1111]
            %1121 = vst [vmem:[%s1119] sm:%s1111] %v1120
          $region433: #{tpu_custom_call.1} parent=427 // loop_footer
            %s1117 = sadd.s32 1, %s1113
          $region434: #{tpu_custom_call.1} parent=427 // loop_footer_branch
            %1112 = sbr.rel target = $region430
          $region435: #{tpu_custom_call.1} parent=427 // loop_exit
            _
        $region428: #{tpu_custom_call.1} parent=11 // pred_fallthru
          _
        // Predicated region
        $region447: #{tpu_custom_call.1} parent=11 // pred_check
          _
        $region448: #{tpu_custom_call.1} parent=11 // pred_check_branch
          %1146 = sbr.rel (0) target = $region450
        $region449: #{tpu_custom_call.1} parent=11 // pred_region
          %1147 = vsyncadd %s1074, 16
        $region450: #{tpu_custom_call.1} parent=11 // pred_fallthru
          _
        %s1148 = smul.addr %s96, 16
        %s1149 = scalar_lea.hbm %s6, %s1148
        %s1150 = scalar_lea.vmem [#allocation5], 8
        // Predicated region
        $region451: #{tpu_custom_call.1} parent=11 // pred_check
          _
        $region452: #{tpu_custom_call.1} parent=11 // pred_check_branch
          %1152 = sbr.rel target = $region454
        $region453: #{tpu_custom_call.1} parent=11 // pred_region
          %1153 = sst [smem:[#allocation17]] [#allocation111]
          %1154 = sst [smem:[#allocation18]] [#allocation110]
        $region454: #{tpu_custom_call.1} parent=11 // pred_fallthru
          _
        %1156 = shalt.err (0)
        %s1158 = sshll.u32 %s1150, 4
        %s1159 = int_to_ptr.vmem [resolvable:$true] %s1158
        %1161 = dma.hbm_to_vmem [thread:$0]  %s1149, 16, %s1159, %s1074
        %s1162 = smul.addr %s97, 16
        %s1163 = scalar_lea.hbm %s3, %s1162
        %s1164 = scalar_lea.vmem [#allocation6], 8
        // Predicated region
        $region455: #{tpu_custom_call.1} parent=11 // pred_check
          _
        $region456: #{tpu_custom_call.1} parent=11 // pred_check_branch
          %1166 = sbr.rel target = $region458
        $region457: #{tpu_custom_call.1} parent=11 // pred_region
          %1167 = sst [smem:[#allocation17]] [#allocation113]
          %1168 = sst [smem:[#allocation18]] [#allocation112]
        $region458: #{tpu_custom_call.1} parent=11 // pred_fallthru
          _
        %1170 = shalt.err (0)
        %s1172 = sshll.u32 %s1164, 4
        %s1173 = int_to_ptr.vmem [resolvable:$true] %s1172
        %1175 = dma.hbm_to_vmem [thread:$0]  %s1163, 16, %s1173, %s1074
        %s1176 = smul.addr %s97, 16
        %s1177 = scalar_lea.hbm %s4, %s1176
        %s1178 = scalar_lea.vmem [#allocation7], 8
        // Predicated region
        $region459: #{tpu_custom_call.1} parent=11 // pred_check
          _
        $region460: #{tpu_custom_call.1} parent=11 // pred_check_branch
          %1180 = sbr.rel target = $region462
        $region461: #{tpu_custom_call.1} parent=11 // pred_region
          %1181 = sst [smem:[#allocation17]] [#allocation115]
          %1182 = sst [smem:[#allocation18]] [#allocation114]
        $region462: #{tpu_custom_call.1} parent=11 // pred_fallthru
          _
        %1184 = shalt.err (0)
        %s1186 = sshll.u32 %s1178, 4
        %s1187 = int_to_ptr.vmem [resolvable:$true] %s1186
        %1189 = dma.hbm_to_vmem [thread:$0]  %s1177, 16, %s1187, %s1074
        %s1190 = smul.addr %s99, 16
        %s1191 = scalar_lea.hbm %s3, %s1190
        %s1192 = scalar_lea.vmem [#allocation2], 9
        %s1193 = scalar_lea.sflag [#allocation8], 9
        // Predicated region
        $region463: #{tpu_custom_call.1} parent=11 // pred_check
          _
        $region464: #{tpu_custom_call.1} parent=11 // pred_check_branch
          %1195 = sbr.rel target = $region466
        $region465: #{tpu_custom_call.1} parent=11 // pred_region
          %1196 = sst [smem:[#allocation17]] [#allocation117]
          %1197 = sst [smem:[#allocation18]] [#allocation116]
        $region466: #{tpu_custom_call.1} parent=11 // pred_fallthru
          _
        %1199 = shalt.err (0)
        %s1201 = sshll.u32 %s1192, 4
        %s1202 = int_to_ptr.vmem [resolvable:$true] %s1201
        %1204 = dma.hbm_to_vmem [thread:$0]  %s1191, 16, %s1202, %s1193
        %s1205 = smul.addr %s99, 16
        %s1206 = scalar_lea.hbm %s4, %s1205
        %s1207 = scalar_lea.vmem [#allocation3], 9
        // Predicated region
        $region467: #{tpu_custom_call.1} parent=11 // pred_check
          _
        $region468: #{tpu_custom_call.1} parent=11 // pred_check_branch
          %1209 = sbr.rel target = $region470
        $region469: #{tpu_custom_call.1} parent=11 // pred_region
          %1210 = sst [smem:[#allocation17]] [#allocation119]
          %1211 = sst [smem:[#allocation18]] [#allocation118]
        $region470: #{tpu_custom_call.1} parent=11 // pred_fallthru
          _
        %1213 = shalt.err (0)
        %s1215 = sshll.u32 %s1207, 4
        %s1216 = int_to_ptr.vmem [resolvable:$true] %s1215
        %1218 = dma.hbm_to_vmem [thread:$0]  %s1206, 16, %s1216, %s1193
        %s1219 = scalar_lea.vmem %s5, %s100
        %s1220 = scalar_lea.vmem [#allocation4], 9
        %p1222 = scmp.lt.u32.totalorder 1, 8
        %p1223 = pneg %p1222
        // Predicated region
        $region471: #{tpu_custom_call.1} parent=11 // pred_check
          _
        $region472: #{tpu_custom_call.1} parent=11 // pred_check_branch
          %1225 = sbr.rel (%p1222) target = $region474
        $region473: #{tpu_custom_call.1} parent=11 // pred_region
          %s1241 = sand.u32 1, 7
          %p1242 = scmp.eq.s32.totalorder %s1241, 0
          %p1243 = pneg %p1242
          // Predicated region
          $region486: #{tpu_custom_call.1} parent=473 // pred_check
            _
          $region487: #{tpu_custom_call.1} parent=473 // pred_check_branch
            %1245 = sbr.rel (%p1242) target = $region489
          $region488: #{tpu_custom_call.1} parent=473 // pred_region
            %s1246 = sand.u32 1, 7
            %s1247 = ssub.s32 1, %s1246
            %s1248 = scalar_lea.vmem %s1219, %s1247
            %s1249 = ssub.s32 1, %s1246
            %s1250 = scalar_lea.vmem %s1220, %s1249 [#allocation4]
            %s1251 = sshll.u32 1, %s1246
            %s1252 = ssub.s32 %s1251, 1
            loop: start=0, step=1, limit=1
            $region490: #{tpu_custom_call.1} parent=488 // loop_pre_header
              _
            $region491: #{tpu_custom_call.1} parent=488 // loop_header
              %s1254 = sphi 0, %s1258
              %p1255 = scmp.ge.s32.totalorder %s1254, 1
              %s1259 = sphi %s1248, %s1248
              %s1260 = sphi %s1250, %s1250
            $region492: #{tpu_custom_call.1} parent=488 // loop_header_branch
              %1257 = sbr.rel (%p1255) target = $region496
            $region493: #{tpu_custom_call.1} parent=488 // loop_body
              %v1261 = vld [vmem:[%s1259] sm:%s1252]
              %1262 = vst [vmem:[%s1260] sm:%s1252] %v1261
            $region494: #{tpu_custom_call.1} parent=488 // loop_footer
              %s1258 = sadd.s32 1, %s1254
            $region495: #{tpu_custom_call.1} parent=488 // loop_footer_branch
              %1253 = sbr.rel target = $region491
            $region496: #{tpu_custom_call.1} parent=488 // loop_exit
              _
          $region489: #{tpu_custom_call.1} parent=473 // pred_fallthru
            _
        $region474: #{tpu_custom_call.1} parent=11 // pred_fallthru
          _
        // Predicated region
        $region475: #{tpu_custom_call.1} parent=11 // pred_check
          %p1226 = pneg %p1222
        $region476: #{tpu_custom_call.1} parent=11 // pred_check_branch
          %1228 = sbr.rel (%p1226) target = $region478
        $region477: #{tpu_custom_call.1} parent=11 // pred_region
          %s1229 = sshll.u32 1, 1
          %s1230 = ssub.s32 %s1229, 1
          loop: start=0, step=1, limit=1
          $region479: #{tpu_custom_call.1} parent=477 // loop_pre_header
            _
          $region480: #{tpu_custom_call.1} parent=477 // loop_header
            %s1232 = sphi 0, %s1236
            %p1233 = scmp.ge.s32.totalorder %s1232, 1
            %s1237 = sphi %s1219, %s1219
            %s1238 = sphi %s1220, %s1220
          $region481: #{tpu_custom_call.1} parent=477 // loop_header_branch
            %1235 = sbr.rel (%p1233) target = $region485
          $region482: #{tpu_custom_call.1} parent=477 // loop_body
            %v1239 = vld [vmem:[%s1237] sm:%s1230]
            %1240 = vst [vmem:[%s1238] sm:%s1230] %v1239
          $region483: #{tpu_custom_call.1} parent=477 // loop_footer
            %s1236 = sadd.s32 1, %s1232
          $region484: #{tpu_custom_call.1} parent=477 // loop_footer_branch
            %1231 = sbr.rel target = $region480
          $region485: #{tpu_custom_call.1} parent=477 // loop_exit
            _
        $region478: #{tpu_custom_call.1} parent=11 // pred_fallthru
          _
        // Predicated region
        $region497: #{tpu_custom_call.1} parent=11 // pred_check
          _
        $region498: #{tpu_custom_call.1} parent=11 // pred_check_branch
          %1265 = sbr.rel (0) target = $region500
        $region499: #{tpu_custom_call.1} parent=11 // pred_region
          %1266 = vsyncadd %s1193, 16
        $region500: #{tpu_custom_call.1} parent=11 // pred_fallthru
          _
        %s1267 = smul.addr %s100, 16
        %s1268 = scalar_lea.hbm %s6, %s1267
        %s1269 = scalar_lea.vmem [#allocation5], 9
        // Predicated region
        $region501: #{tpu_custom_call.1} parent=11 // pred_check
          _
        $region502: #{tpu_custom_call.1} parent=11 // pred_check_branch
          %1271 = sbr.rel target = $region504
        $region503: #{tpu_custom_call.1} parent=11 // pred_region
          %1272 = sst [smem:[#allocation17]] [#allocation122]
          %1273 = sst [smem:[#allocation18]] [#allocation121]
        $region504: #{tpu_custom_call.1} parent=11 // pred_fallthru
          _
        %1275 = shalt.err (0)
        %s1277 = sshll.u32 %s1269, 4
        %s1278 = int_to_ptr.vmem [resolvable:$true] %s1277
        %1280 = dma.hbm_to_vmem [thread:$0]  %s1268, 16, %s1278, %s1193
        %s1281 = smul.addr %s101, 16
        %s1282 = scalar_lea.hbm %s3, %s1281
        %s1283 = scalar_lea.vmem [#allocation6], 9
        // Predicated region
        $region505: #{tpu_custom_call.1} parent=11 // pred_check
          _
        $region506: #{tpu_custom_call.1} parent=11 // pred_check_branch
          %1285 = sbr.rel target = $region508
        $region507: #{tpu_custom_call.1} parent=11 // pred_region
          %1286 = sst [smem:[#allocation17]] [#allocation124]
          %1287 = sst [smem:[#allocation18]] [#allocation123]
        $region508: #{tpu_custom_call.1} parent=11 // pred_fallthru
          _
        %1289 = shalt.err (0)
        %s1291 = sshll.u32 %s1283, 4
        %s1292 = int_to_ptr.vmem [resolvable:$true] %s1291
        %1294 = dma.hbm_to_vmem [thread:$0]  %s1282, 16, %s1292, %s1193
        %s1295 = smul.addr %s101, 16
        %s1296 = scalar_lea.hbm %s4, %s1295
        %s1297 = scalar_lea.vmem [#allocation7], 9
        // Predicated region
        $region509: #{tpu_custom_call.1} parent=11 // pred_check
          _
        $region510: #{tpu_custom_call.1} parent=11 // pred_check_branch
          %1299 = sbr.rel target = $region512
        $region511: #{tpu_custom_call.1} parent=11 // pred_region
          %1300 = sst [smem:[#allocation17]] [#allocation126]
          %1301 = sst [smem:[#allocation18]] [#allocation125]
        $region512: #{tpu_custom_call.1} parent=11 // pred_fallthru
          _
        %1303 = shalt.err (0)
        %s1305 = sshll.u32 %s1297, 4
        %s1306 = int_to_ptr.vmem [resolvable:$true] %s1305
        %1308 = dma.hbm_to_vmem [thread:$0]  %s1296, 16, %s1306, %s1193
        %s1309 = smul.addr %s103, 16
        %s1310 = scalar_lea.hbm %s3, %s1309
        %s1311 = scalar_lea.vmem [#allocation2], 10
        %s1312 = scalar_lea.sflag [#allocation8], 10
        // Predicated region
        $region513: #{tpu_custom_call.1} parent=11 // pred_check
          _
        $region514: #{tpu_custom_call.1} parent=11 // pred_check_branch
          %1314 = sbr.rel target = $region516
        $region515: #{tpu_custom_call.1} parent=11 // pred_region
          %1315 = sst [smem:[#allocation17]] [#allocation128]
          %1316 = sst [smem:[#allocation18]] [#allocation127]
        $region516: #{tpu_custom_call.1} parent=11 // pred_fallthru
          _
        %1318 = shalt.err (0)
        %s1320 = sshll.u32 %s1311, 4
        %s1321 = int_to_ptr.vmem [resolvable:$true] %s1320
        %1323 = dma.hbm_to_vmem [thread:$0]  %s1310, 16, %s1321, %s1312
        %s1324 = smul.addr %s103, 16
        %s1325 = scalar_lea.hbm %s4, %s1324
        %s1326 = scalar_lea.vmem [#allocation3], 10
        // Predicated region
        $region517: #{tpu_custom_call.1} parent=11 // pred_check
          _
        $region518: #{tpu_custom_call.1} parent=11 // pred_check_branch
          %1328 = sbr.rel target = $region520
        $region519: #{tpu_custom_call.1} parent=11 // pred_region
          %1329 = sst [smem:[#allocation17]] [#allocation130]
          %1330 = sst [smem:[#allocation18]] [#allocation129]
        $region520: #{tpu_custom_call.1} parent=11 // pred_fallthru
          _
        %1332 = shalt.err (0)
        %s1334 = sshll.u32 %s1326, 4
        %s1335 = int_to_ptr.vmem [resolvable:$true] %s1334
        %1337 = dma.hbm_to_vmem [thread:$0]  %s1325, 16, %s1335, %s1312
        %s1338 = scalar_lea.vmem %s5, %s104
        %s1339 = scalar_lea.vmem [#allocation4], 10
        %p1341 = scmp.lt.u32.totalorder 1, 8
        %p1342 = pneg %p1341
        // Predicated region
        $region521: #{tpu_custom_call.1} parent=11 // pred_check
          _
        $region522: #{tpu_custom_call.1} parent=11 // pred_check_branch
          %1344 = sbr.rel (%p1341) target = $region524
        $region523: #{tpu_custom_call.1} parent=11 // pred_region
          %s1360 = sand.u32 1, 7
          %p1361 = scmp.eq.s32.totalorder %s1360, 0
          %p1362 = pneg %p1361
          // Predicated region
          $region536: #{tpu_custom_call.1} parent=523 // pred_check
            _
          $region537: #{tpu_custom_call.1} parent=523 // pred_check_branch
            %1364 = sbr.rel (%p1361) target = $region539
          $region538: #{tpu_custom_call.1} parent=523 // pred_region
            %s1365 = sand.u32 1, 7
            %s1366 = ssub.s32 1, %s1365
            %s1367 = scalar_lea.vmem %s1338, %s1366
            %s1368 = ssub.s32 1, %s1365
            %s1369 = scalar_lea.vmem %s1339, %s1368 [#allocation4]
            %s1370 = sshll.u32 1, %s1365
            %s1371 = ssub.s32 %s1370, 1
            loop: start=0, step=1, limit=1
            $region540: #{tpu_custom_call.1} parent=538 // loop_pre_header
              _
            $region541: #{tpu_custom_call.1} parent=538 // loop_header
              %s1373 = sphi 0, %s1377
              %p1374 = scmp.ge.s32.totalorder %s1373, 1
              %s1378 = sphi %s1367, %s1367
              %s1379 = sphi %s1369, %s1369
            $region542: #{tpu_custom_call.1} parent=538 // loop_header_branch
              %1376 = sbr.rel (%p1374) target = $region546
            $region543: #{tpu_custom_call.1} parent=538 // loop_body
              %v1380 = vld [vmem:[%s1378] sm:%s1371]
              %1381 = vst [vmem:[%s1379] sm:%s1371] %v1380
            $region544: #{tpu_custom_call.1} parent=538 // loop_footer
              %s1377 = sadd.s32 1, %s1373
            $region545: #{tpu_custom_call.1} parent=538 // loop_footer_branch
              %1372 = sbr.rel target = $region541
            $region546: #{tpu_custom_call.1} parent=538 // loop_exit
              _
          $region539: #{tpu_custom_call.1} parent=523 // pred_fallthru
            _
        $region524: #{tpu_custom_call.1} parent=11 // pred_fallthru
          _
        // Predicated region
        $region525: #{tpu_custom_call.1} parent=11 // pred_check
          %p1345 = pneg %p1341
        $region526: #{tpu_custom_call.1} parent=11 // pred_check_branch
          %1347 = sbr.rel (%p1345) target = $region528
        $region527: #{tpu_custom_call.1} parent=11 // pred_region
          %s1348 = sshll.u32 1, 1
          %s1349 = ssub.s32 %s1348, 1
          loop: start=0, step=1, limit=1
          $region529: #{tpu_custom_call.1} parent=527 // loop_pre_header
            _
          $region530: #{tpu_custom_call.1} parent=527 // loop_header
            %s1351 = sphi 0, %s1355
            %p1352 = scmp.ge.s32.totalorder %s1351, 1
            %s1356 = sphi %s1338, %s1338
            %s1357 = sphi %s1339, %s1339
          $region531: #{tpu_custom_call.1} parent=527 // loop_header_branch
            %1354 = sbr.rel (%p1352) target = $region535
          $region532: #{tpu_custom_call.1} parent=527 // loop_body
            %v1358 = vld [vmem:[%s1356] sm:%s1349]
            %1359 = vst [vmem:[%s1357] sm:%s1349] %v1358
          $region533: #{tpu_custom_call.1} parent=527 // loop_footer
            %s1355 = sadd.s32 1, %s1351
          $region534: #{tpu_custom_call.1} parent=527 // loop_footer_branch
            %1350 = sbr.rel target = $region530
          $region535: #{tpu_custom_call.1} parent=527 // loop_exit
            _
        $region528: #{tpu_custom_call.1} parent=11 // pred_fallthru
          _
        // Predicated region
        $region547: #{tpu_custom_call.1} parent=11 // pred_check
          _
        $region548: #{tpu_custom_call.1} parent=11 // pred_check_branch
          %1384 = sbr.rel (0) target = $region550
        $region549: #{tpu_custom_call.1} parent=11 // pred_region
          %1385 = vsyncadd %s1312, 16
        $region550: #{tpu_custom_call.1} parent=11 // pred_fallthru
          _
        %s1386 = smul.addr %s104, 16
        %s1387 = scalar_lea.hbm %s6, %s1386
        %s1388 = scalar_lea.vmem [#allocation5], 10
        // Predicated region
        $region551: #{tpu_custom_call.1} parent=11 // pred_check
          _
        $region552: #{tpu_custom_call.1} parent=11 // pred_check_branch
          %1390 = sbr.rel target = $region554
        $region553: #{tpu_custom_call.1} parent=11 // pred_region
          %1391 = sst [smem:[#allocation17]] [#allocation133]
          %1392 = sst [smem:[#allocation18]] [#allocation132]
        $region554: #{tpu_custom_call.1} parent=11 // pred_fallthru
          _
        %1394 = shalt.err (0)
        %s1396 = sshll.u32 %s1388, 4
        %s1397 = int_to_ptr.vmem [resolvable:$true] %s1396
        %1399 = dma.hbm_to_vmem [thread:$0]  %s1387, 16, %s1397, %s1312
        %s1400 = smul.addr %s105, 16
        %s1401 = scalar_lea.hbm %s3, %s1400
        %s1402 = scalar_lea.vmem [#allocation6], 10
        // Predicated region
        $region555: #{tpu_custom_call.1} parent=11 // pred_check
          _
        $region556: #{tpu_custom_call.1} parent=11 // pred_check_branch
          %1404 = sbr.rel target = $region558
        $region557: #{tpu_custom_call.1} parent=11 // pred_region
          %1405 = sst [smem:[#allocation17]] [#allocation135]
          %1406 = sst [smem:[#allocation18]] [#allocation134]
        $region558: #{tpu_custom_call.1} parent=11 // pred_fallthru
          _
        %1408 = shalt.err (0)
        %s1410 = sshll.u32 %s1402, 4
        %s1411 = int_to_ptr.vmem [resolvable:$true] %s1410
        %1413 = dma.hbm_to_vmem [thread:$0]  %s1401, 16, %s1411, %s1312
        %s1414 = smul.addr %s105, 16
        %s1415 = scalar_lea.hbm %s4, %s1414
        %s1416 = scalar_lea.vmem [#allocation7], 10
        // Predicated region
        $region559: #{tpu_custom_call.1} parent=11 // pred_check
          _
        $region560: #{tpu_custom_call.1} parent=11 // pred_check_branch
          %1418 = sbr.rel target = $region562
        $region561: #{tpu_custom_call.1} parent=11 // pred_region
          %1419 = sst [smem:[#allocation17]] [#allocation137]
          %1420 = sst [smem:[#allocation18]] [#allocation136]
        $region562: #{tpu_custom_call.1} parent=11 // pred_fallthru
          _
        %1422 = shalt.err (0)
        %s1424 = sshll.u32 %s1416, 4
        %s1425 = int_to_ptr.vmem [resolvable:$true] %s1424
        %1427 = dma.hbm_to_vmem [thread:$0]  %s1415, 16, %s1425, %s1312
        %s1428 = smul.addr %s107, 16
        %s1429 = scalar_lea.hbm %s3, %s1428
        %s1430 = scalar_lea.vmem [#allocation2], 11
        %s1431 = scalar_lea.sflag [#allocation8], 11
        // Predicated region
        $region563: #{tpu_custom_call.1} parent=11 // pred_check
          _
        $region564: #{tpu_custom_call.1} parent=11 // pred_check_branch
          %1433 = sbr.rel target = $region566
        $region565: #{tpu_custom_call.1} parent=11 // pred_region
          %1434 = sst [smem:[#allocation17]] [#allocation139]
          %1435 = sst [smem:[#allocation18]] [#allocation138]
        $region566: #{tpu_custom_call.1} parent=11 // pred_fallthru
          _
        %1437 = shalt.err (0)
        %s1439 = sshll.u32 %s1430, 4
        %s1440 = int_to_ptr.vmem [resolvable:$true] %s1439
        %1442 = dma.hbm_to_vmem [thread:$0]  %s1429, 16, %s1440, %s1431
        %s1443 = smul.addr %s107, 16
        %s1444 = scalar_lea.hbm %s4, %s1443
        %s1445 = scalar_lea.vmem [#allocation3], 11
        // Predicated region
        $region567: #{tpu_custom_call.1} parent=11 // pred_check
          _
        $region568: #{tpu_custom_call.1} parent=11 // pred_check_branch
          %1447 = sbr.rel target = $region570
        $region569: #{tpu_custom_call.1} parent=11 // pred_region
          %1448 = sst [smem:[#allocation17]] [#allocation141]
          %1449 = sst [smem:[#allocation18]] [#allocation140]
        $region570: #{tpu_custom_call.1} parent=11 // pred_fallthru
          _
        %1451 = shalt.err (0)
        %s1453 = sshll.u32 %s1445, 4
        %s1454 = int_to_ptr.vmem [resolvable:$true] %s1453
        %1456 = dma.hbm_to_vmem [thread:$0]  %s1444, 16, %s1454, %s1431
        %s1457 = scalar_lea.vmem %s5, %s108
        %s1458 = scalar_lea.vmem [#allocation4], 11
        %p1460 = scmp.lt.u32.totalorder 1, 8
        %p1461 = pneg %p1460
        // Predicated region
        $region571: #{tpu_custom_call.1} parent=11 // pred_check
          _
        $region572: #{tpu_custom_call.1} parent=11 // pred_check_branch
          %1463 = sbr.rel (%p1460) target = $region574
        $region573: #{tpu_custom_call.1} parent=11 // pred_region
          %s1479 = sand.u32 1, 7
          %p1480 = scmp.eq.s32.totalorder %s1479, 0
          %p1481 = pneg %p1480
          // Predicated region
          $region586: #{tpu_custom_call.1} parent=573 // pred_check
            _
          $region587: #{tpu_custom_call.1} parent=573 // pred_check_branch
            %1483 = sbr.rel (%p1480) target = $region589
          $region588: #{tpu_custom_call.1} parent=573 // pred_region
            %s1484 = sand.u32 1, 7
            %s1485 = ssub.s32 1, %s1484
            %s1486 = scalar_lea.vmem %s1457, %s1485
            %s1487 = ssub.s32 1, %s1484
            %s1488 = scalar_lea.vmem %s1458, %s1487 [#allocation4]
            %s1489 = sshll.u32 1, %s1484
            %s1490 = ssub.s32 %s1489, 1
            loop: start=0, step=1, limit=1
            $region590: #{tpu_custom_call.1} parent=588 // loop_pre_header
              _
            $region591: #{tpu_custom_call.1} parent=588 // loop_header
              %s1492 = sphi 0, %s1496
              %p1493 = scmp.ge.s32.totalorder %s1492, 1
              %s1497 = sphi %s1486, %s1486
              %s1498 = sphi %s1488, %s1488
            $region592: #{tpu_custom_call.1} parent=588 // loop_header_branch
              %1495 = sbr.rel (%p1493) target = $region596
            $region593: #{tpu_custom_call.1} parent=588 // loop_body
              %v1499 = vld [vmem:[%s1497] sm:%s1490]
              %1500 = vst [vmem:[%s1498] sm:%s1490] %v1499
            $region594: #{tpu_custom_call.1} parent=588 // loop_footer
              %s1496 = sadd.s32 1, %s1492
            $region595: #{tpu_custom_call.1} parent=588 // loop_footer_branch
              %1491 = sbr.rel target = $region591
            $region596: #{tpu_custom_call.1} parent=588 // loop_exit
              _
          $region589: #{tpu_custom_call.1} parent=573 // pred_fallthru
            _
        $region574: #{tpu_custom_call.1} parent=11 // pred_fallthru
          _
        // Predicated region
        $region575: #{tpu_custom_call.1} parent=11 // pred_check
          %p1464 = pneg %p1460
        $region576: #{tpu_custom_call.1} parent=11 // pred_check_branch
          %1466 = sbr.rel (%p1464) target = $region578
        $region577: #{tpu_custom_call.1} parent=11 // pred_region
          %s1467 = sshll.u32 1, 1
          %s1468 = ssub.s32 %s1467, 1
          loop: start=0, step=1, limit=1
          $region579: #{tpu_custom_call.1} parent=577 // loop_pre_header
            _
          $region580: #{tpu_custom_call.1} parent=577 // loop_header
            %s1470 = sphi 0, %s1474
            %p1471 = scmp.ge.s32.totalorder %s1470, 1
            %s1475 = sphi %s1457, %s1457
            %s1476 = sphi %s1458, %s1458
          $region581: #{tpu_custom_call.1} parent=577 // loop_header_branch
            %1473 = sbr.rel (%p1471) target = $region585
          $region582: #{tpu_custom_call.1} parent=577 // loop_body
            %v1477 = vld [vmem:[%s1475] sm:%s1468]
            %1478 = vst [vmem:[%s1476] sm:%s1468] %v1477
          $region583: #{tpu_custom_call.1} parent=577 // loop_footer
            %s1474 = sadd.s32 1, %s1470
          $region584: #{tpu_custom_call.1} parent=577 // loop_footer_branch
            %1469 = sbr.rel target = $region580
          $region585: #{tpu_custom_call.1} parent=577 // loop_exit
            _
        $region578: #{tpu_custom_call.1} parent=11 // pred_fallthru
          _
        // Predicated region
        $region597: #{tpu_custom_call.1} parent=11 // pred_check
          _
        $region598: #{tpu_custom_call.1} parent=11 // pred_check_branch
          %1503 = sbr.rel (0) target = $region600
        $region599: #{tpu_custom_call.1} parent=11 // pred_region
          %1504 = vsyncadd %s1431, 16
        $region600: #{tpu_custom_call.1} parent=11 // pred_fallthru
          _
        %s1505 = smul.addr %s108, 16
        %s1506 = scalar_lea.hbm %s6, %s1505
        %s1507 = scalar_lea.vmem [#allocation5], 11
        // Predicated region
        $region601: #{tpu_custom_call.1} parent=11 // pred_check
          _
        $region602: #{tpu_custom_call.1} parent=11 // pred_check_branch
          %1509 = sbr.rel target = $region604
        $region603: #{tpu_custom_call.1} parent=11 // pred_region
          %1510 = sst [smem:[#allocation17]] [#allocation144]
          %1511 = sst [smem:[#allocation18]] [#allocation143]
        $region604: #{tpu_custom_call.1} parent=11 // pred_fallthru
          _
        %1513 = shalt.err (0)
        %s1515 = sshll.u32 %s1507, 4
        %s1516 = int_to_ptr.vmem [resolvable:$true] %s1515
        %1518 = dma.hbm_to_vmem [thread:$0]  %s1506, 16, %s1516, %s1431
        %s1519 = smul.addr %s109, 16
        %s1520 = scalar_lea.hbm %s3, %s1519
        %s1521 = scalar_lea.vmem [#allocation6], 11
        // Predicated region
        $region605: #{tpu_custom_call.1} parent=11 // pred_check
          _
        $region606: #{tpu_custom_call.1} parent=11 // pred_check_branch
          %1523 = sbr.rel target = $region608
        $region607: #{tpu_custom_call.1} parent=11 // pred_region
          %1524 = sst [smem:[#allocation17]] [#allocation146]
          %1525 = sst [smem:[#allocation18]] [#allocation145]
        $region608: #{tpu_custom_call.1} parent=11 // pred_fallthru
          _
        %1527 = shalt.err (0)
        %s1529 = sshll.u32 %s1521, 4
        %s1530 = int_to_ptr.vmem [resolvable:$true] %s1529
        %1532 = dma.hbm_to_vmem [thread:$0]  %s1520, 16, %s1530, %s1431
        %s1533 = smul.addr %s109, 16
        %s1534 = scalar_lea.hbm %s4, %s1533
        %s1535 = scalar_lea.vmem [#allocation7], 11
        // Predicated region
        $region609: #{tpu_custom_call.1} parent=11 // pred_check
          _
        $region610: #{tpu_custom_call.1} parent=11 // pred_check_branch
          %1537 = sbr.rel target = $region612
        $region611: #{tpu_custom_call.1} parent=11 // pred_region
          %1538 = sst [smem:[#allocation17]] [#allocation148]
          %1539 = sst [smem:[#allocation18]] [#allocation147]
        $region612: #{tpu_custom_call.1} parent=11 // pred_fallthru
          _
        %1541 = shalt.err (0)
        %s1543 = sshll.u32 %s1535, 4
        %s1544 = int_to_ptr.vmem [resolvable:$true] %s1543
        %1546 = dma.hbm_to_vmem [thread:$0]  %s1534, 16, %s1544, %s1431
        %s1547 = smul.addr %s111, 16
        %s1548 = scalar_lea.hbm %s3, %s1547
        %s1549 = scalar_lea.vmem [#allocation2], 12
        %s1550 = scalar_lea.sflag [#allocation8], 12
        // Predicated region
        $region613: #{tpu_custom_call.1} parent=11 // pred_check
          _
        $region614: #{tpu_custom_call.1} parent=11 // pred_check_branch
          %1552 = sbr.rel target = $region616
        $region615: #{tpu_custom_call.1} parent=11 // pred_region
          %1553 = sst [smem:[#allocation17]] [#allocation150]
          %1554 = sst [smem:[#allocation18]] [#allocation149]
        $region616: #{tpu_custom_call.1} parent=11 // pred_fallthru
          _
        %1556 = shalt.err (0)
        %s1558 = sshll.u32 %s1549, 4
        %s1559 = int_to_ptr.vmem [resolvable:$true] %s1558
        %1561 = dma.hbm_to_vmem [thread:$0]  %s1548, 16, %s1559, %s1550
        %s1562 = smul.addr %s111, 16
        %s1563 = scalar_lea.hbm %s4, %s1562
        %s1564 = scalar_lea.vmem [#allocation3], 12
        // Predicated region
        $region617: #{tpu_custom_call.1} parent=11 // pred_check
          _
        $region618: #{tpu_custom_call.1} parent=11 // pred_check_branch
          %1566 = sbr.rel target = $region620
        $region619: #{tpu_custom_call.1} parent=11 // pred_region
          %1567 = sst [smem:[#allocation17]] [#allocation152]
          %1568 = sst [smem:[#allocation18]] [#allocation151]
        $region620: #{tpu_custom_call.1} parent=11 // pred_fallthru
          _
        %1570 = shalt.err (0)
        %s1572 = sshll.u32 %s1564, 4
        %s1573 = int_to_ptr.vmem [resolvable:$true] %s1572
        %1575 = dma.hbm_to_vmem [thread:$0]  %s1563, 16, %s1573, %s1550
        %s1576 = scalar_lea.vmem %s5, %s112
        %s1577 = scalar_lea.vmem [#allocation4], 12
        %p1579 = scmp.lt.u32.totalorder 1, 8
        %p1580 = pneg %p1579
        // Predicated region
        $region621: #{tpu_custom_call.1} parent=11 // pred_check
          _
        $region622: #{tpu_custom_call.1} parent=11 // pred_check_branch
          %1582 = sbr.rel (%p1579) target = $region624
        $region623: #{tpu_custom_call.1} parent=11 // pred_region
          %s1598 = sand.u32 1, 7
          %p1599 = scmp.eq.s32.totalorder %s1598, 0
          %p1600 = pneg %p1599
          // Predicated region
          $region636: #{tpu_custom_call.1} parent=623 // pred_check
            _
          $region637: #{tpu_custom_call.1} parent=623 // pred_check_branch
            %1602 = sbr.rel (%p1599) target = $region639
          $region638: #{tpu_custom_call.1} parent=623 // pred_region
            %s1603 = sand.u32 1, 7
            %s1604 = ssub.s32 1, %s1603
            %s1605 = scalar_lea.vmem %s1576, %s1604
            %s1606 = ssub.s32 1, %s1603
            %s1607 = scalar_lea.vmem %s1577, %s1606 [#allocation4]
            %s1608 = sshll.u32 1, %s1603
            %s1609 = ssub.s32 %s1608, 1
            loop: start=0, step=1, limit=1
            $region640: #{tpu_custom_call.1} parent=638 // loop_pre_header
              _
            $region641: #{tpu_custom_call.1} parent=638 // loop_header
              %s1611 = sphi 0, %s1615
              %p1612 = scmp.ge.s32.totalorder %s1611, 1
              %s1616 = sphi %s1605, %s1605
              %s1617 = sphi %s1607, %s1607
            $region642: #{tpu_custom_call.1} parent=638 // loop_header_branch
              %1614 = sbr.rel (%p1612) target = $region646
            $region643: #{tpu_custom_call.1} parent=638 // loop_body
              %v1618 = vld [vmem:[%s1616] sm:%s1609]
              %1619 = vst [vmem:[%s1617] sm:%s1609] %v1618
            $region644: #{tpu_custom_call.1} parent=638 // loop_footer
              %s1615 = sadd.s32 1, %s1611
            $region645: #{tpu_custom_call.1} parent=638 // loop_footer_branch
              %1610 = sbr.rel target = $region641
            $region646: #{tpu_custom_call.1} parent=638 // loop_exit
              _
          $region639: #{tpu_custom_call.1} parent=623 // pred_fallthru
            _
        $region624: #{tpu_custom_call.1} parent=11 // pred_fallthru
          _
        // Predicated region
        $region625: #{tpu_custom_call.1} parent=11 // pred_check
          %p1583 = pneg %p1579
        $region626: #{tpu_custom_call.1} parent=11 // pred_check_branch
          %1585 = sbr.rel (%p1583) target = $region628
        $region627: #{tpu_custom_call.1} parent=11 // pred_region
          %s1586 = sshll.u32 1, 1
          %s1587 = ssub.s32 %s1586, 1
          loop: start=0, step=1, limit=1
          $region629: #{tpu_custom_call.1} parent=627 // loop_pre_header
            _
          $region630: #{tpu_custom_call.1} parent=627 // loop_header
            %s1589 = sphi 0, %s1593
            %p1590 = scmp.ge.s32.totalorder %s1589, 1
            %s1594 = sphi %s1576, %s1576
            %s1595 = sphi %s1577, %s1577
          $region631: #{tpu_custom_call.1} parent=627 // loop_header_branch
            %1592 = sbr.rel (%p1590) target = $region635
          $region632: #{tpu_custom_call.1} parent=627 // loop_body
            %v1596 = vld [vmem:[%s1594] sm:%s1587]
            %1597 = vst [vmem:[%s1595] sm:%s1587] %v1596
          $region633: #{tpu_custom_call.1} parent=627 // loop_footer
            %s1593 = sadd.s32 1, %s1589
          $region634: #{tpu_custom_call.1} parent=627 // loop_footer_branch
            %1588 = sbr.rel target = $region630
          $region635: #{tpu_custom_call.1} parent=627 // loop_exit
            _
        $region628: #{tpu_custom_call.1} parent=11 // pred_fallthru
          _
        // Predicated region
        $region647: #{tpu_custom_call.1} parent=11 // pred_check
          _
        $region648: #{tpu_custom_call.1} parent=11 // pred_check_branch
          %1622 = sbr.rel (0) target = $region650
        $region649: #{tpu_custom_call.1} parent=11 // pred_region
          %1623 = vsyncadd %s1550, 16
        $region650: #{tpu_custom_call.1} parent=11 // pred_fallthru
          _
        %s1624 = smul.addr %s112, 16
        %s1625 = scalar_lea.hbm %s6, %s1624
        %s1626 = scalar_lea.vmem [#allocation5], 12
        // Predicated region
        $region651: #{tpu_custom_call.1} parent=11 // pred_check
          _
        $region652: #{tpu_custom_call.1} parent=11 // pred_check_branch
          %1628 = sbr.rel target = $region654
        $region653: #{tpu_custom_call.1} parent=11 // pred_region
          %1629 = sst [smem:[#allocation17]] [#allocation155]
          %1630 = sst [smem:[#allocation18]] [#allocation154]
        $region654: #{tpu_custom_call.1} parent=11 // pred_fallthru
          _
        %1632 = shalt.err (0)
        %s1634 = sshll.u32 %s1626, 4
        %s1635 = int_to_ptr.vmem [resolvable:$true] %s1634
        %1637 = dma.hbm_to_vmem [thread:$0]  %s1625, 16, %s1635, %s1550
        %s1638 = smul.addr %s113, 16
        %s1639 = scalar_lea.hbm %s3, %s1638
        %s1640 = scalar_lea.vmem [#allocation6], 12
        // Predicated region
        $region655: #{tpu_custom_call.1} parent=11 // pred_check
          _
        $region656: #{tpu_custom_call.1} parent=11 // pred_check_branch
          %1642 = sbr.rel target = $region658
        $region657: #{tpu_custom_call.1} parent=11 // pred_region
          %1643 = sst [smem:[#allocation17]] [#allocation157]
          %1644 = sst [smem:[#allocation18]] [#allocation156]
        $region658: #{tpu_custom_call.1} parent=11 // pred_fallthru
          _
        %1646 = shalt.err (0)
        %s1648 = sshll.u32 %s1640, 4
        %s1649 = int_to_ptr.vmem [resolvable:$true] %s1648
        %1651 = dma.hbm_to_vmem [thread:$0]  %s1639, 16, %s1649, %s1550
        %s1652 = smul.addr %s113, 16
        %s1653 = scalar_lea.hbm %s4, %s1652
        %s1654 = scalar_lea.vmem [#allocation7], 12
        // Predicated region
        $region659: #{tpu_custom_call.1} parent=11 // pred_check
          _
        $region660: #{tpu_custom_call.1} parent=11 // pred_check_branch
          %1656 = sbr.rel target = $region662
        $region661: #{tpu_custom_call.1} parent=11 // pred_region
          %1657 = sst [smem:[#allocation17]] [#allocation159]
          %1658 = sst [smem:[#allocation18]] [#allocation158]
        $region662: #{tpu_custom_call.1} parent=11 // pred_fallthru
          _
        %1660 = shalt.err (0)
        %s1662 = sshll.u32 %s1654, 4
        %s1663 = int_to_ptr.vmem [resolvable:$true] %s1662
        %1665 = dma.hbm_to_vmem [thread:$0]  %s1653, 16, %s1663, %s1550
        %s1666 = smul.addr %s115, 16
        %s1667 = scalar_lea.hbm %s3, %s1666
        %s1668 = scalar_lea.vmem [#allocation2], 13
        %s1669 = scalar_lea.sflag [#allocation8], 13
        // Predicated region
        $region663: #{tpu_custom_call.1} parent=11 // pred_check
          _
        $region664: #{tpu_custom_call.1} parent=11 // pred_check_branch
          %1671 = sbr.rel target = $region666
        $region665: #{tpu_custom_call.1} parent=11 // pred_region
          %1672 = sst [smem:[#allocation17]] [#allocation161]
          %1673 = sst [smem:[#allocation18]] [#allocation160]
        $region666: #{tpu_custom_call.1} parent=11 // pred_fallthru
          _
        %1675 = shalt.err (0)
        %s1677 = sshll.u32 %s1668, 4
        %s1678 = int_to_ptr.vmem [resolvable:$true] %s1677
        %1680 = dma.hbm_to_vmem [thread:$0]  %s1667, 16, %s1678, %s1669
        %s1681 = smul.addr %s115, 16
        %s1682 = scalar_lea.hbm %s4, %s1681
        %s1683 = scalar_lea.vmem [#allocation3], 13
        // Predicated region
        $region667: #{tpu_custom_call.1} parent=11 // pred_check
          _
        $region668: #{tpu_custom_call.1} parent=11 // pred_check_branch
          %1685 = sbr.rel target = $region670
        $region669: #{tpu_custom_call.1} parent=11 // pred_region
          %1686 = sst [smem:[#allocation17]] [#allocation163]
          %1687 = sst [smem:[#allocation18]] [#allocation162]
        $region670: #{tpu_custom_call.1} parent=11 // pred_fallthru
          _
        %1689 = shalt.err (0)
        %s1691 = sshll.u32 %s1683, 4
        %s1692 = int_to_ptr.vmem [resolvable:$true] %s1691
        %1694 = dma.hbm_to_vmem [thread:$0]  %s1682, 16, %s1692, %s1669
        %s1695 = scalar_lea.vmem %s5, %s116
        %s1696 = scalar_lea.vmem [#allocation4], 13
        %p1698 = scmp.lt.u32.totalorder 1, 8
        %p1699 = pneg %p1698
        // Predicated region
        $region671: #{tpu_custom_call.1} parent=11 // pred_check
          _
        $region672: #{tpu_custom_call.1} parent=11 // pred_check_branch
          %1701 = sbr.rel (%p1698) target = $region674
        $region673: #{tpu_custom_call.1} parent=11 // pred_region
          %s1717 = sand.u32 1, 7
          %p1718 = scmp.eq.s32.totalorder %s1717, 0
          %p1719 = pneg %p1718
          // Predicated region
          $region686: #{tpu_custom_call.1} parent=673 // pred_check
            _
          $region687: #{tpu_custom_call.1} parent=673 // pred_check_branch
            %1721 = sbr.rel (%p1718) target = $region689
          $region688: #{tpu_custom_call.1} parent=673 // pred_region
            %s1722 = sand.u32 1, 7
            %s1723 = ssub.s32 1, %s1722
            %s1724 = scalar_lea.vmem %s1695, %s1723
            %s1725 = ssub.s32 1, %s1722
            %s1726 = scalar_lea.vmem %s1696, %s1725 [#allocation4]
            %s1727 = sshll.u32 1, %s1722
            %s1728 = ssub.s32 %s1727, 1
            loop: start=0, step=1, limit=1
            $region690: #{tpu_custom_call.1} parent=688 // loop_pre_header
              _
            $region691: #{tpu_custom_call.1} parent=688 // loop_header
              %s1730 = sphi 0, %s1734
              %p1731 = scmp.ge.s32.totalorder %s1730, 1
              %s1735 = sphi %s1724, %s1724
              %s1736 = sphi %s1726, %s1726
            $region692: #{tpu_custom_call.1} parent=688 // loop_header_branch
              %1733 = sbr.rel (%p1731) target = $region696
            $region693: #{tpu_custom_call.1} parent=688 // loop_body
              %v1737 = vld [vmem:[%s1735] sm:%s1728]
              %1738 = vst [vmem:[%s1736] sm:%s1728] %v1737
            $region694: #{tpu_custom_call.1} parent=688 // loop_footer
              %s1734 = sadd.s32 1, %s1730
            $region695: #{tpu_custom_call.1} parent=688 // loop_footer_branch
              %1729 = sbr.rel target = $region691
            $region696: #{tpu_custom_call.1} parent=688 // loop_exit
              _
          $region689: #{tpu_custom_call.1} parent=673 // pred_fallthru
            _
        $region674: #{tpu_custom_call.1} parent=11 // pred_fallthru
          _
        // Predicated region
        $region675: #{tpu_custom_call.1} parent=11 // pred_check
          %p1702 = pneg %p1698
        $region676: #{tpu_custom_call.1} parent=11 // pred_check_branch
          %1704 = sbr.rel (%p1702) target = $region678
        $region677: #{tpu_custom_call.1} parent=11 // pred_region
          %s1705 = sshll.u32 1, 1
          %s1706 = ssub.s32 %s1705, 1
          loop: start=0, step=1, limit=1
          $region679: #{tpu_custom_call.1} parent=677 // loop_pre_header
            _
          $region680: #{tpu_custom_call.1} parent=677 // loop_header
            %s1708 = sphi 0, %s1712
            %p1709 = scmp.ge.s32.totalorder %s1708, 1
            %s1713 = sphi %s1695, %s1695
            %s1714 = sphi %s1696, %s1696
          $region681: #{tpu_custom_call.1} parent=677 // loop_header_branch
            %1711 = sbr.rel (%p1709) target = $region685
          $region682: #{tpu_custom_call.1} parent=677 // loop_body
            %v1715 = vld [vmem:[%s1713] sm:%s1706]
            %1716 = vst [vmem:[%s1714] sm:%s1706] %v1715
          $region683: #{tpu_custom_call.1} parent=677 // loop_footer
            %s1712 = sadd.s32 1, %s1708
          $region684: #{tpu_custom_call.1} parent=677 // loop_footer_branch
            %1707 = sbr.rel target = $region680
          $region685: #{tpu_custom_call.1} parent=677 // loop_exit
            _
        $region678: #{tpu_custom_call.1} parent=11 // pred_fallthru
          _
        // Predicated region
        $region697: #{tpu_custom_call.1} parent=11 // pred_check
          _
        $region698: #{tpu_custom_call.1} parent=11 // pred_check_branch
          %1741 = sbr.rel (0) target = $region700
        $region699: #{tpu_custom_call.1} parent=11 // pred_region
          %1742 = vsyncadd %s1669, 16
        $region700: #{tpu_custom_call.1} parent=11 // pred_fallthru
          _
        %s1743 = smul.addr %s116, 16
        %s1744 = scalar_lea.hbm %s6, %s1743
        %s1745 = scalar_lea.vmem [#allocation5], 13
        // Predicated region
        $region701: #{tpu_custom_call.1} parent=11 // pred_check
          _
        $region702: #{tpu_custom_call.1} parent=11 // pred_check_branch
          %1747 = sbr.rel target = $region704
        $region703: #{tpu_custom_call.1} parent=11 // pred_region
          %1748 = sst [smem:[#allocation17]] [#allocation166]
          %1749 = sst [smem:[#allocation18]] [#allocation165]
        $region704: #{tpu_custom_call.1} parent=11 // pred_fallthru
          _
        %1751 = shalt.err (0)
        %s1753 = sshll.u32 %s1745, 4
        %s1754 = int_to_ptr.vmem [resolvable:$true] %s1753
        %1756 = dma.hbm_to_vmem [thread:$0]  %s1744, 16, %s1754, %s1669
        %s1757 = smul.addr %s117, 16
        %s1758 = scalar_lea.hbm %s3, %s1757
        %s1759 = scalar_lea.vmem [#allocation6], 13
        // Predicated region
        $region705: #{tpu_custom_call.1} parent=11 // pred_check
          _
        $region706: #{tpu_custom_call.1} parent=11 // pred_check_branch
          %1761 = sbr.rel target = $region708
        $region707: #{tpu_custom_call.1} parent=11 // pred_region
          %1762 = sst [smem:[#allocation17]] [#allocation168]
          %1763 = sst [smem:[#allocation18]] [#allocation167]
        $region708: #{tpu_custom_call.1} parent=11 // pred_fallthru
          _
        %1765 = shalt.err (0)
        %s1767 = sshll.u32 %s1759, 4
        %s1768 = int_to_ptr.vmem [resolvable:$true] %s1767
        %1770 = dma.hbm_to_vmem [thread:$0]  %s1758, 16, %s1768, %s1669
        %s1771 = smul.addr %s117, 16
        %s1772 = scalar_lea.hbm %s4, %s1771
        %s1773 = scalar_lea.vmem [#allocation7], 13
        // Predicated region
        $region709: #{tpu_custom_call.1} parent=11 // pred_check
          _
        $region710: #{tpu_custom_call.1} parent=11 // pred_check_branch
          %1775 = sbr.rel target = $region712
        $region711: #{tpu_custom_call.1} parent=11 // pred_region
          %1776 = sst [smem:[#allocation17]] [#allocation170]
          %1777 = sst [smem:[#allocation18]] [#allocation169]
        $region712: #{tpu_custom_call.1} parent=11 // pred_fallthru
          _
        %1779 = shalt.err (0)
        %s1781 = sshll.u32 %s1773, 4
        %s1782 = int_to_ptr.vmem [resolvable:$true] %s1781
        %1784 = dma.hbm_to_vmem [thread:$0]  %s1772, 16, %s1782, %s1669
        %s1785 = smul.addr %s119, 16
        %s1786 = scalar_lea.hbm %s3, %s1785
        %s1787 = scalar_lea.vmem [#allocation2], 14
        %s1788 = scalar_lea.sflag [#allocation8], 14
        // Predicated region
        $region713: #{tpu_custom_call.1} parent=11 // pred_check
          _
        $region714: #{tpu_custom_call.1} parent=11 // pred_check_branch
          %1790 = sbr.rel target = $region716
        $region715: #{tpu_custom_call.1} parent=11 // pred_region
          %1791 = sst [smem:[#allocation17]] [#allocation172]
          %1792 = sst [smem:[#allocation18]] [#allocation171]
        $region716: #{tpu_custom_call.1} parent=11 // pred_fallthru
          _
        %1794 = shalt.err (0)
        %s1796 = sshll.u32 %s1787, 4
        %s1797 = int_to_ptr.vmem [resolvable:$true] %s1796
        %1799 = dma.hbm_to_vmem [thread:$0]  %s1786, 16, %s1797, %s1788
        %s1800 = smul.addr %s119, 16
        %s1801 = scalar_lea.hbm %s4, %s1800
        %s1802 = scalar_lea.vmem [#allocation3], 14
        // Predicated region
        $region717: #{tpu_custom_call.1} parent=11 // pred_check
          _
        $region718: #{tpu_custom_call.1} parent=11 // pred_check_branch
          %1804 = sbr.rel target = $region720
        $region719: #{tpu_custom_call.1} parent=11 // pred_region
          %1805 = sst [smem:[#allocation17]] [#allocation174]
          %1806 = sst [smem:[#allocation18]] [#allocation173]
        $region720: #{tpu_custom_call.1} parent=11 // pred_fallthru
          _
        %1808 = shalt.err (0)
        %s1810 = sshll.u32 %s1802, 4
        %s1811 = int_to_ptr.vmem [resolvable:$true] %s1810
        %1813 = dma.hbm_to_vmem [thread:$0]  %s1801, 16, %s1811, %s1788
        %s1814 = scalar_lea.vmem %s5, %s120
        %s1815 = scalar_lea.vmem [#allocation4], 14
        %p1817 = scmp.lt.u32.totalorder 1, 8
        %p1818 = pneg %p1817
        // Predicated region
        $region721: #{tpu_custom_call.1} parent=11 // pred_check
          _
        $region722: #{tpu_custom_call.1} parent=11 // pred_check_branch
          %1820 = sbr.rel (%p1817) target = $region724
        $region723: #{tpu_custom_call.1} parent=11 // pred_region
          %s1836 = sand.u32 1, 7
          %p1837 = scmp.eq.s32.totalorder %s1836, 0
          %p1838 = pneg %p1837
          // Predicated region
          $region736: #{tpu_custom_call.1} parent=723 // pred_check
            _
          $region737: #{tpu_custom_call.1} parent=723 // pred_check_branch
            %1840 = sbr.rel (%p1837) target = $region739
          $region738: #{tpu_custom_call.1} parent=723 // pred_region
            %s1841 = sand.u32 1, 7
            %s1842 = ssub.s32 1, %s1841
            %s1843 = scalar_lea.vmem %s1814, %s1842
            %s1844 = ssub.s32 1, %s1841
            %s1845 = scalar_lea.vmem %s1815, %s1844 [#allocation4]
            %s1846 = sshll.u32 1, %s1841
            %s1847 = ssub.s32 %s1846, 1
            loop: start=0, step=1, limit=1
            $region740: #{tpu_custom_call.1} parent=738 // loop_pre_header
              _
            $region741: #{tpu_custom_call.1} parent=738 // loop_header
              %s1849 = sphi 0, %s1853
              %p1850 = scmp.ge.s32.totalorder %s1849, 1
              %s1854 = sphi %s1843, %s1843
              %s1855 = sphi %s1845, %s1845
            $region742: #{tpu_custom_call.1} parent=738 // loop_header_branch
              %1852 = sbr.rel (%p1850) target = $region746
            $region743: #{tpu_custom_call.1} parent=738 // loop_body
              %v1856 = vld [vmem:[%s1854] sm:%s1847]
              %1857 = vst [vmem:[%s1855] sm:%s1847] %v1856
            $region744: #{tpu_custom_call.1} parent=738 // loop_footer
              %s1853 = sadd.s32 1, %s1849
            $region745: #{tpu_custom_call.1} parent=738 // loop_footer_branch
              %1848 = sbr.rel target = $region741
            $region746: #{tpu_custom_call.1} parent=738 // loop_exit
              _
          $region739: #{tpu_custom_call.1} parent=723 // pred_fallthru
            _
        $region724: #{tpu_custom_call.1} parent=11 // pred_fallthru
          _
        // Predicated region
        $region725: #{tpu_custom_call.1} parent=11 // pred_check
          %p1821 = pneg %p1817
        $region726: #{tpu_custom_call.1} parent=11 // pred_check_branch
          %1823 = sbr.rel (%p1821) target = $region728
        $region727: #{tpu_custom_call.1} parent=11 // pred_region
          %s1824 = sshll.u32 1, 1
          %s1825 = ssub.s32 %s1824, 1
          loop: start=0, step=1, limit=1
          $region729: #{tpu_custom_call.1} parent=727 // loop_pre_header
            _
          $region730: #{tpu_custom_call.1} parent=727 // loop_header
            %s1827 = sphi 0, %s1831
            %p1828 = scmp.ge.s32.totalorder %s1827, 1
            %s1832 = sphi %s1814, %s1814
            %s1833 = sphi %s1815, %s1815
          $region731: #{tpu_custom_call.1} parent=727 // loop_header_branch
            %1830 = sbr.rel (%p1828) target = $region735
          $region732: #{tpu_custom_call.1} parent=727 // loop_body
            %v1834 = vld [vmem:[%s1832] sm:%s1825]
            %1835 = vst [vmem:[%s1833] sm:%s1825] %v1834
          $region733: #{tpu_custom_call.1} parent=727 // loop_footer
            %s1831 = sadd.s32 1, %s1827
          $region734: #{tpu_custom_call.1} parent=727 // loop_footer_branch
            %1826 = sbr.rel target = $region730
          $region735: #{tpu_custom_call.1} parent=727 // loop_exit
            _
        $region728: #{tpu_custom_call.1} parent=11 // pred_fallthru
          _
        // Predicated region
        $region747: #{tpu_custom_call.1} parent=11 // pred_check
          _
        $region748: #{tpu_custom_call.1} parent=11 // pred_check_branch
          %1860 = sbr.rel (0) target = $region750
        $region749: #{tpu_custom_call.1} parent=11 // pred_region
          %1861 = vsyncadd %s1788, 16
        $region750: #{tpu_custom_call.1} parent=11 // pred_fallthru
          _
        %s1862 = smul.addr %s120, 16
        %s1863 = scalar_lea.hbm %s6, %s1862
        %s1864 = scalar_lea.vmem [#allocation5], 14
        // Predicated region
        $region751: #{tpu_custom_call.1} parent=11 // pred_check
          _
        $region752: #{tpu_custom_call.1} parent=11 // pred_check_branch
          %1866 = sbr.rel target = $region754
        $region753: #{tpu_custom_call.1} parent=11 // pred_region
          %1867 = sst [smem:[#allocation17]] [#allocation177]
          %1868 = sst [smem:[#allocation18]] [#allocation176]
        $region754: #{tpu_custom_call.1} parent=11 // pred_fallthru
          _
        %1870 = shalt.err (0)
        %s1872 = sshll.u32 %s1864, 4
        %s1873 = int_to_ptr.vmem [resolvable:$true] %s1872
        %1875 = dma.hbm_to_vmem [thread:$0]  %s1863, 16, %s1873, %s1788
        %s1876 = smul.addr %s121, 16
        %s1877 = scalar_lea.hbm %s3, %s1876
        %s1878 = scalar_lea.vmem [#allocation6], 14
        // Predicated region
        $region755: #{tpu_custom_call.1} parent=11 // pred_check
          _
        $region756: #{tpu_custom_call.1} parent=11 // pred_check_branch
          %1880 = sbr.rel target = $region758
        $region757: #{tpu_custom_call.1} parent=11 // pred_region
          %1881 = sst [smem:[#allocation17]] [#allocation179]
          %1882 = sst [smem:[#allocation18]] [#allocation178]
        $region758: #{tpu_custom_call.1} parent=11 // pred_fallthru
          _
        %1884 = shalt.err (0)
        %s1886 = sshll.u32 %s1878, 4
        %s1887 = int_to_ptr.vmem [resolvable:$true] %s1886
        %1889 = dma.hbm_to_vmem [thread:$0]  %s1877, 16, %s1887, %s1788
        %s1890 = smul.addr %s121, 16
        %s1891 = scalar_lea.hbm %s4, %s1890
        %s1892 = scalar_lea.vmem [#allocation7], 14
        // Predicated region
        $region759: #{tpu_custom_call.1} parent=11 // pred_check
          _
        $region760: #{tpu_custom_call.1} parent=11 // pred_check_branch
          %1894 = sbr.rel target = $region762
        $region761: #{tpu_custom_call.1} parent=11 // pred_region
          %1895 = sst [smem:[#allocation17]] [#allocation181]
          %1896 = sst [smem:[#allocation18]] [#allocation180]
        $region762: #{tpu_custom_call.1} parent=11 // pred_fallthru
          _
        %1898 = shalt.err (0)
        %s1900 = sshll.u32 %s1892, 4
        %s1901 = int_to_ptr.vmem [resolvable:$true] %s1900
        %1903 = dma.hbm_to_vmem [thread:$0]  %s1891, 16, %s1901, %s1788
        %s1904 = smul.addr %s123, 16
        %s1905 = scalar_lea.hbm %s3, %s1904
        %s1906 = scalar_lea.vmem [#allocation2], 15
        %s1907 = scalar_lea.sflag [#allocation8], 15
        // Predicated region
        $region763: #{tpu_custom_call.1} parent=11 // pred_check
          _
        $region764: #{tpu_custom_call.1} parent=11 // pred_check_branch
          %1909 = sbr.rel target = $region766
        $region765: #{tpu_custom_call.1} parent=11 // pred_region
          %1910 = sst [smem:[#allocation17]] [#allocation183]
          %1911 = sst [smem:[#allocation18]] [#allocation182]
        $region766: #{tpu_custom_call.1} parent=11 // pred_fallthru
          _
        %1913 = shalt.err (0)
        %s1915 = sshll.u32 %s1906, 4
        %s1916 = int_to_ptr.vmem [resolvable:$true] %s1915
        %1918 = dma.hbm_to_vmem [thread:$0]  %s1905, 16, %s1916, %s1907
        %s1919 = smul.addr %s123, 16
        %s1920 = scalar_lea.hbm %s4, %s1919
        %s1921 = scalar_lea.vmem [#allocation3], 15
        // Predicated region
        $region767: #{tpu_custom_call.1} parent=11 // pred_check
          _
        $region768: #{tpu_custom_call.1} parent=11 // pred_check_branch
          %1923 = sbr.rel target = $region770
        $region769: #{tpu_custom_call.1} parent=11 // pred_region
          %1924 = sst [smem:[#allocation17]] [#allocation185]
          %1925 = sst [smem:[#allocation18]] [#allocation184]
        $region770: #{tpu_custom_call.1} parent=11 // pred_fallthru
          _
        %1927 = shalt.err (0)
        %s1929 = sshll.u32 %s1921, 4
        %s1930 = int_to_ptr.vmem [resolvable:$true] %s1929
        %1932 = dma.hbm_to_vmem [thread:$0]  %s1920, 16, %s1930, %s1907
        %s1933 = scalar_lea.vmem %s5, %s124
        %s1934 = scalar_lea.vmem [#allocation4], 15
        %p1936 = scmp.lt.u32.totalorder 1, 8
        %p1937 = pneg %p1936
        // Predicated region
        $region771: #{tpu_custom_call.1} parent=11 // pred_check
          _
        $region772: #{tpu_custom_call.1} parent=11 // pred_check_branch
          %1939 = sbr.rel (%p1936) target = $region774
        $region773: #{tpu_custom_call.1} parent=11 // pred_region
          %s1955 = sand.u32 1, 7
          %p1956 = scmp.eq.s32.totalorder %s1955, 0
          %p1957 = pneg %p1956
          // Predicated region
          $region786: #{tpu_custom_call.1} parent=773 // pred_check
            _
          $region787: #{tpu_custom_call.1} parent=773 // pred_check_branch
            %1959 = sbr.rel (%p1956) target = $region789
          $region788: #{tpu_custom_call.1} parent=773 // pred_region
            %s1960 = sand.u32 1, 7
            %s1961 = ssub.s32 1, %s1960
            %s1962 = scalar_lea.vmem %s1933, %s1961
            %s1963 = ssub.s32 1, %s1960
            %s1964 = scalar_lea.vmem %s1934, %s1963 [#allocation4]
            %s1965 = sshll.u32 1, %s1960
            %s1966 = ssub.s32 %s1965, 1
            loop: start=0, step=1, limit=1
            $region790: #{tpu_custom_call.1} parent=788 // loop_pre_header
              _
            $region791: #{tpu_custom_call.1} parent=788 // loop_header
              %s1968 = sphi 0, %s1972
              %p1969 = scmp.ge.s32.totalorder %s1968, 1
              %s1973 = sphi %s1962, %s1962
              %s1974 = sphi %s1964, %s1964
            $region792: #{tpu_custom_call.1} parent=788 // loop_header_branch
              %1971 = sbr.rel (%p1969) target = $region796
            $region793: #{tpu_custom_call.1} parent=788 // loop_body
              %v1975 = vld [vmem:[%s1973] sm:%s1966]
              %1976 = vst [vmem:[%s1974] sm:%s1966] %v1975
            $region794: #{tpu_custom_call.1} parent=788 // loop_footer
              %s1972 = sadd.s32 1, %s1968
            $region795: #{tpu_custom_call.1} parent=788 // loop_footer_branch
              %1967 = sbr.rel target = $region791
            $region796: #{tpu_custom_call.1} parent=788 // loop_exit
              _
          $region789: #{tpu_custom_call.1} parent=773 // pred_fallthru
            _
        $region774: #{tpu_custom_call.1} parent=11 // pred_fallthru
          _
        // Predicated region
        $region775: #{tpu_custom_call.1} parent=11 // pred_check
          %p1940 = pneg %p1936
        $region776: #{tpu_custom_call.1} parent=11 // pred_check_branch
          %1942 = sbr.rel (%p1940) target = $region778
        $region777: #{tpu_custom_call.1} parent=11 // pred_region
          %s1943 = sshll.u32 1, 1
          %s1944 = ssub.s32 %s1943, 1
          loop: start=0, step=1, limit=1
          $region779: #{tpu_custom_call.1} parent=777 // loop_pre_header
            _
          $region780: #{tpu_custom_call.1} parent=777 // loop_header
            %s1946 = sphi 0, %s1950
            %p1947 = scmp.ge.s32.totalorder %s1946, 1
            %s1951 = sphi %s1933, %s1933
            %s1952 = sphi %s1934, %s1934
          $region781: #{tpu_custom_call.1} parent=777 // loop_header_branch
            %1949 = sbr.rel (%p1947) target = $region785
          $region782: #{tpu_custom_call.1} parent=777 // loop_body
            %v1953 = vld [vmem:[%s1951] sm:%s1944]
            %1954 = vst [vmem:[%s1952] sm:%s1944] %v1953
          $region783: #{tpu_custom_call.1} parent=777 // loop_footer
            %s1950 = sadd.s32 1, %s1946
          $region784: #{tpu_custom_call.1} parent=777 // loop_footer_branch
            %1945 = sbr.rel target = $region780
          $region785: #{tpu_custom_call.1} parent=777 // loop_exit
            _
        $region778: #{tpu_custom_call.1} parent=11 // pred_fallthru
          _
        // Predicated region
        $region797: #{tpu_custom_call.1} parent=11 // pred_check
          _
        $region798: #{tpu_custom_call.1} parent=11 // pred_check_branch
          %1979 = sbr.rel (0) target = $region800
        $region799: #{tpu_custom_call.1} parent=11 // pred_region
          %1980 = vsyncadd %s1907, 16
        $region800: #{tpu_custom_call.1} parent=11 // pred_fallthru
          _
        %s1981 = smul.addr %s124, 16
        %s1982 = scalar_lea.hbm %s6, %s1981
        %s1983 = scalar_lea.vmem [#allocation5], 15
        // Predicated region
        $region801: #{tpu_custom_call.1} parent=11 // pred_check
          _
        $region802: #{tpu_custom_call.1} parent=11 // pred_check_branch
          %1985 = sbr.rel target = $region804
        $region803: #{tpu_custom_call.1} parent=11 // pred_region
          %1986 = sst [smem:[#allocation17]] [#allocation188]
          %1987 = sst [smem:[#allocation18]] [#allocation187]
        $region804: #{tpu_custom_call.1} parent=11 // pred_fallthru
          _
        %1989 = shalt.err (0)
        %s1991 = sshll.u32 %s1983, 4
        %s1992 = int_to_ptr.vmem [resolvable:$true] %s1991
        %1994 = dma.hbm_to_vmem [thread:$0]  %s1982, 16, %s1992, %s1907
        %s1995 = smul.addr %s125, 16
        %s1996 = scalar_lea.hbm %s3, %s1995
        %s1997 = scalar_lea.vmem [#allocation6], 15
        // Predicated region
        $region805: #{tpu_custom_call.1} parent=11 // pred_check
          _
        $region806: #{tpu_custom_call.1} parent=11 // pred_check_branch
          %1999 = sbr.rel target = $region808
        $region807: #{tpu_custom_call.1} parent=11 // pred_region
          %2000 = sst [smem:[#allocation17]] [#allocation190]
          %2001 = sst [smem:[#allocation18]] [#allocation189]
        $region808: #{tpu_custom_call.1} parent=11 // pred_fallthru
          _
        %2003 = shalt.err (0)
        %s2005 = sshll.u32 %s1997, 4
        %s2006 = int_to_ptr.vmem [resolvable:$true] %s2005
        %2008 = dma.hbm_to_vmem [thread:$0]  %s1996, 16, %s2006, %s1907
        %s2009 = smul.addr %s125, 16
        %s2010 = scalar_lea.hbm %s4, %s2009
        %s2011 = scalar_lea.vmem [#allocation7], 15
        // Predicated region
        $region809: #{tpu_custom_call.1} parent=11 // pred_check
          _
        $region810: #{tpu_custom_call.1} parent=11 // pred_check_branch
          %2013 = sbr.rel target = $region812
        $region811: #{tpu_custom_call.1} parent=11 // pred_region
          %2014 = sst [smem:[#allocation17]] [#allocation192]
          %2015 = sst [smem:[#allocation18]] [#allocation191]
        $region812: #{tpu_custom_call.1} parent=11 // pred_fallthru
          _
        %2017 = shalt.err (0)
        %s2019 = sshll.u32 %s2011, 4
        %s2020 = int_to_ptr.vmem [resolvable:$true] %s2019
        %2022 = dma.hbm_to_vmem [thread:$0]  %s2010, 16, %s2020, %s1907
        %s2023 = smul.u32 1, 1
        %s2024 = sshll.u32 %s2023, 4
        %2025 = dma.done [#allocation8], %s2024
        %s2026 = sshll.u32 %s2023, 4
        %2027 = dma.done [#allocation8], %s2026
        %s2028 = sshll.u32 %s2023, 4
        %2029 = dma.done [#allocation8], %s2028
        %s2030 = sshll.u32 %s2023, 4
        %2031 = dma.done [#allocation8], %s2030
        %s2032 = sshll.u32 %s2023, 4
        %2033 = dma.done [#allocation8], %s2032
        %s2034 = sshll.u32 %s2023, 4
        %2035 = dma.done [#allocation8], %s2034
        %s2036 = sshll.u32 %s2023, 4
        %2037 = dma.done %s241, %s2036
        %s2038 = sshll.u32 %s2023, 4
        %2039 = dma.done %s241, %s2038
        %s2040 = sshll.u32 %s2023, 4
        %2041 = dma.done %s241, %s2040
        %s2042 = sshll.u32 %s2023, 4
        %2043 = dma.done %s241, %s2042
        %s2044 = sshll.u32 %s2023, 4
        %2045 = dma.done %s241, %s2044
        %s2046 = sshll.u32 %s2023, 4
        %2047 = dma.done %s241, %s2046
        %s2048 = sshll.u32 %s2023, 4
        %2049 = dma.done %s360, %s2048
        %s2050 = sshll.u32 %s2023, 4
        %2051 = dma.done %s360, %s2050
        %s2052 = sshll.u32 %s2023, 4
        %2053 = dma.done %s360, %s2052
        %s2054 = sshll.u32 %s2023, 4
        %2055 = dma.done %s360, %s2054
        %s2056 = sshll.u32 %s2023, 4
        %2057 = dma.done %s360, %s2056
        %s2058 = sshll.u32 %s2023, 4
        %2059 = dma.done %s360, %s2058
        %s2060 = sshll.u32 %s2023, 4
        %2061 = dma.done %s479, %s2060
        %s2062 = sshll.u32 %s2023, 4
        %2063 = dma.done %s479, %s2062
        %s2064 = sshll.u32 %s2023, 4
        %2065 = dma.done %s479, %s2064
        %s2066 = sshll.u32 %s2023, 4
        %2067 = dma.done %s479, %s2066
        %s2068 = sshll.u32 %s2023, 4
        %2069 = dma.done %s479, %s2068
        %s2070 = sshll.u32 %s2023, 4
        %2071 = dma.done %s479, %s2070
        %s2072 = sshll.u32 %s2023, 4
        %2073 = dma.done %s598, %s2072
        %s2074 = sshll.u32 %s2023, 4
        %2075 = dma.done %s598, %s2074
        %s2076 = sshll.u32 %s2023, 4
        %2077 = dma.done %s598, %s2076
        %s2078 = sshll.u32 %s2023, 4
        %2079 = dma.done %s598, %s2078
        %s2080 = sshll.u32 %s2023, 4
        %2081 = dma.done %s598, %s2080
        %s2082 = sshll.u32 %s2023, 4
        %2083 = dma.done %s598, %s2082
        %s2084 = sshll.u32 %s2023, 4
        %2085 = dma.done %s717, %s2084
        %s2086 = sshll.u32 %s2023, 4
        %2087 = dma.done %s717, %s2086
        %s2088 = sshll.u32 %s2023, 4
        %2089 = dma.done %s717, %s2088
        %s2090 = sshll.u32 %s2023, 4
        %2091 = dma.done %s717, %s2090
        %s2092 = sshll.u32 %s2023, 4
        %2093 = dma.done %s717, %s2092
        %s2094 = sshll.u32 %s2023, 4
        %2095 = dma.done %s717, %s2094
        %s2096 = sshll.u32 %s2023, 4
        %2097 = dma.done %s836, %s2096
        %s2098 = sshll.u32 %s2023, 4
        %2099 = dma.done %s836, %s2098
        %s2100 = sshll.u32 %s2023, 4
        %2101 = dma.done %s836, %s2100
        %s2102 = sshll.u32 %s2023, 4
        %2103 = dma.done %s836, %s2102
        %s2104 = sshll.u32 %s2023, 4
        %2105 = dma.done %s836, %s2104
        %s2106 = sshll.u32 %s2023, 4
        %2107 = dma.done %s836, %s2106
        %s2108 = sshll.u32 %s2023, 4
        %2109 = dma.done %s955, %s2108
        %s2110 = sshll.u32 %s2023, 4
        %2111 = dma.done %s955, %s2110
        %s2112 = sshll.u32 %s2023, 4
        %2113 = dma.done %s955, %s2112
        %s2114 = sshll.u32 %s2023, 4
        %2115 = dma.done %s955, %s2114
        %s2116 = sshll.u32 %s2023, 4
        %2117 = dma.done %s955, %s2116
        %s2118 = sshll.u32 %s2023, 4
        %2119 = dma.done %s955, %s2118
        %s2120 = sshll.u32 %s2023, 4
        %2121 = dma.done %s1074, %s2120
        %s2122 = sshll.u32 %s2023, 4
        %2123 = dma.done %s1074, %s2122
        %s2124 = sshll.u32 %s2023, 4
        %2125 = dma.done %s1074, %s2124
        %s2126 = sshll.u32 %s2023, 4
        %2127 = dma.done %s1074, %s2126
        %s2128 = sshll.u32 %s2023, 4
        %2129 = dma.done %s1074, %s2128
        %s2130 = sshll.u32 %s2023, 4
        %2131 = dma.done %s1074, %s2130
        %s2132 = sshll.u32 %s2023, 4
        %2133 = dma.done %s1193, %s2132
        %s2134 = sshll.u32 %s2023, 4
        %2135 = dma.done %s1193, %s2134
        %s2136 = sshll.u32 %s2023, 4
        %2137 = dma.done %s1193, %s2136
        %s2138 = sshll.u32 %s2023, 4
        %2139 = dma.done %s1193, %s2138
        %s2140 = sshll.u32 %s2023, 4
        %2141 = dma.done %s1193, %s2140
        %s2142 = sshll.u32 %s2023, 4
        %2143 = dma.done %s1193, %s2142
        %s2144 = sshll.u32 %s2023, 4
        %2145 = dma.done %s1312, %s2144
        %s2146 = sshll.u32 %s2023, 4
        %2147 = dma.done %s1312, %s2146
        %s2148 = sshll.u32 %s2023, 4
        %2149 = dma.done %s1312, %s2148
        %s2150 = sshll.u32 %s2023, 4
        %2151 = dma.done %s1312, %s2150
        %s2152 = sshll.u32 %s2023, 4
        %2153 = dma.done %s1312, %s2152
        %s2154 = sshll.u32 %s2023, 4
        %2155 = dma.done %s1312, %s2154
        %s2156 = sshll.u32 %s2023, 4
        %2157 = dma.done %s1431, %s2156
        %s2158 = sshll.u32 %s2023, 4
        %2159 = dma.done %s1431, %s2158
        %s2160 = sshll.u32 %s2023, 4
        %2161 = dma.done %s1431, %s2160
        %s2162 = sshll.u32 %s2023, 4
        %2163 = dma.done %s1431, %s2162
        %s2164 = sshll.u32 %s2023, 4
        %2165 = dma.done %s1431, %s2164
        %s2166 = sshll.u32 %s2023, 4
        %2167 = dma.done %s1431, %s2166
        %s2168 = sshll.u32 %s2023, 4
        %2169 = dma.done %s1550, %s2168
        %s2170 = sshll.u32 %s2023, 4
        %2171 = dma.done %s1550, %s2170
        %s2172 = sshll.u32 %s2023, 4
        %2173 = dma.done %s1550, %s2172
        %s2174 = sshll.u32 %s2023, 4
        %2175 = dma.done %s1550, %s2174
        %s2176 = sshll.u32 %s2023, 4
        %2177 = dma.done %s1550, %s2176
        %s2178 = sshll.u32 %s2023, 4
        %2179 = dma.done %s1550, %s2178
        %s2180 = sshll.u32 %s2023, 4
        %2181 = dma.done %s1669, %s2180
        %s2182 = sshll.u32 %s2023, 4
        %2183 = dma.done %s1669, %s2182
        %s2184 = sshll.u32 %s2023, 4
        %2185 = dma.done %s1669, %s2184
        %s2186 = sshll.u32 %s2023, 4
        %2187 = dma.done %s1669, %s2186
        %s2188 = sshll.u32 %s2023, 4
        %2189 = dma.done %s1669, %s2188
        %s2190 = sshll.u32 %s2023, 4
        %2191 = dma.done %s1669, %s2190
        %s2192 = sshll.u32 %s2023, 4
        %2193 = dma.done %s1788, %s2192
        %s2194 = sshll.u32 %s2023, 4
        %2195 = dma.done %s1788, %s2194
        %s2196 = sshll.u32 %s2023, 4
        %2197 = dma.done %s1788, %s2196
        %s2198 = sshll.u32 %s2023, 4
        %2199 = dma.done %s1788, %s2198
        %s2200 = sshll.u32 %s2023, 4
        %2201 = dma.done %s1788, %s2200
        %s2202 = sshll.u32 %s2023, 4
        %2203 = dma.done %s1788, %s2202
        %s2204 = sshll.u32 %s2023, 4
        %2205 = dma.done %s1907, %s2204
        %s2206 = sshll.u32 %s2023, 4
        %2207 = dma.done %s1907, %s2206
        %s2208 = sshll.u32 %s2023, 4
        %2209 = dma.done %s1907, %s2208
        %s2210 = sshll.u32 %s2023, 4
        %2211 = dma.done %s1907, %s2210
        %s2212 = sshll.u32 %s2023, 4
        %2213 = dma.done %s1907, %s2212
        %s2214 = sshll.u32 %s2023, 4
        %2215 = dma.done %s1907, %s2214
        %v2216 = vld [vmem:[#allocation2] sm:$0xff]
        %v2217 = vld [vmem:[#allocation2 + $0x8] sm:$0xff]
        %v2218 = vld [vmem:[#allocation3] sm:$0xff]
        %v2219 = vld [vmem:[#allocation3 + $0x8] sm:$0xff]
        %v2220 = vld [vmem:[#allocation4] sm:$0xff]
        %v2221 = vld [vmem:[#allocation4 + $0x8] sm:$0xff]
        %v2222 = vld [vmem:[#allocation5] sm:$0xff]
        %v2223 = vld [vmem:[#allocation5 + $0x8] sm:$0xff]
        %v2224 = vld [vmem:[#allocation6] sm:$0xff]
        %v2225 = vld [vmem:[#allocation6 + $0x8] sm:$0xff]
        %v2226 = vld [vmem:[#allocation7] sm:$0xff]
        %v2227 = vld [vmem:[#allocation7 + $0x8] sm:$0xff]
        %v2228 = vmul.f32 %v2216, %v2224
        %v2229 = vmul.f32 %v2217, %v2225
        %v2230 = vmul.f32 %v2218, %v2226
        %v2231 = vmul.f32 %v2219, %v2227
        %v2232 = vadd.f32 %v2228, %v2230
        %v2233 = vadd.f32 %v2229, %v2231
        %v2234 = vmul.f32 %v2220, %v2232
        %v2235 = vmul.f32 %v2221, %v2233
        %v2236 = vmul.f32 %v2216, %v2226
        %v2237 = vmul.f32 %v2217, %v2227
        %v2238 = vmul.f32 %v2218, %v2224
        %v2239 = vmul.f32 %v2219, %v2225
        %v2240 = vsub.f32 %v2236, %v2238
        %v2241 = vsub.f32 %v2237, %v2239
        %v2242 = vmul.f32 %v2222, %v2240
        %v2243 = vmul.f32 %v2223, %v2241
        %v2244 = vadd.f32 %v2234, %v2242
        %v2245 = vadd.f32 %v2235, %v2243
        %2246 = vadd.xlane.f32.xlu0 %v2244
        %v2247 = vpop.xlane.xlu0 %2246
        %2248 = vadd.xlane.f32.xlu0 %v2245
        %v2249 = vpop.xlane.xlu0 %2248
        %v2252 = vlaneseq
        %v2253 = vand.u32 %v2252, 127
        %v2254 = vlaneseq
        %v2255 = vshrl.u32 %v2254, 7
        %v2256 = vsub.s32 %v2253, %v2255
        %v2257 = vrot.slane %v2247, %v2256
        %v2258 = vadd.s32 %v2253, 4294967288
        %v2259 = vlaneseq
        %v2260 = vshrl.u32 %v2259, 7
        %v2261 = vsub.s32 %v2258, %v2260
        %v2262 = vrot.slane %v2249, %v2261
        %vm2263 = vcmask 130112
        %v2264 = vsel %vm2263, %v2262, %v2257
        %vm2266 = vcmask 122880
        %2267 = vst.msk [vmem:[%s61] sm:$0x1] %vm2266, %v2264
        %s2268 = sand.u32 %s35, 1
        %s2269 = scalar_lea.sflag [#allocation14], %s2268
        %s2270 = sand.u32 %s35, 1
        %s2271 = scalar_lea.vmem [#allocation13], %s2270
        // Predicated region
        $region813: #{tpu_custom_call.1} parent=11 // pred_check
          %p2272 = pneg %p41
        $region814: #{tpu_custom_call.1} parent=11 // pred_check_branch
          %2274 = sbr.rel (%p2272) target = $region816
        $region815: #{tpu_custom_call.1} parent=11 // pred_region
          %s2276 = ssub.s32 16, 16
          %2277 = vsyncadd %s2269, %s2276
          %s2278 = smul.addr %s26, 16
          %s2279 = scalar_lea.hbm %s7, %s2278
          %s2281 = sshll.u32 %s2271, 4
          %s2282 = int_to_ptr.vmem [resolvable:$true] %s2281
          %2284 = dma.vmem_to_hbm [thread:$0]  %s2282, 16, %s2279, %s2269
        $region816: #{tpu_custom_call.1} parent=11 // pred_fallthru
          _
      $region12: #{tpu_custom_call.1} parent=5 // pred_fallthru
        _
      %p2285 = scmp.le.s32.totalorder 1, %s26
      // Predicated region
      $region817: #{tpu_custom_call.1} parent=5 // pred_check
        %p2286 = pneg %p2285
      $region818: #{tpu_custom_call.1} parent=5 // pred_check_branch
        %2288 = sbr.rel (%p2286) target = $region820
      $region819: #{tpu_custom_call.1} parent=5 // pred_region
        %s2289 = ssub.s32 %s26, 1
        // Predicated region
        $region821: #{tpu_custom_call.1} parent=819 // pred_check
          %p2290 = pneg %p47
        $region822: #{tpu_custom_call.1} parent=819 // pred_check_branch
          %2292 = sbr.rel (%p2290) target = $region824
        $region823: #{tpu_custom_call.1} parent=819 // pred_region
          %s2293 = sand.u32 %s38, 1
          %s2294 = scalar_lea.sflag [#allocation14], %s2293
          %s2295 = sand.u32 %s38, 1
          %s2296 = scalar_lea.vmem [#allocation13], %s2295
          %2297 = dma.done %s2294, 16
        $region824: #{tpu_custom_call.1} parent=819 // pred_fallthru
          _
      $region820: #{tpu_custom_call.1} parent=5 // pred_fallthru
        _
    $region6: #{tpu_custom_call.1} parent=1 // loop_footer
      %s30 = sadd.s32 1, %s26
    $region7: #{tpu_custom_call.1} parent=1 // loop_footer_branch
      %25 = sbr.rel target = $region3
    $region8: #{tpu_custom_call.1} parent=1 // loop_exit
      _
    %2298 = vsyncpa [#allocation14], 1
    %s2299 = scalar_lea.sflag [#allocation14], 1
    %2300 = vsyncpa %s2299, 1
  %2301 = vsyncmov [#allocation8]
  %s2302 = vpop.sfrf %2301
  %p2303 = scmp.eq.s32.totalorder %s2302, 0
  %p2304 = pneg %p2303
  %2306 = shalt.err (%p2304)
  %s2307 = scalar_lea.sflag [#allocation8], 1
  %2308 = vsyncmov %s2307
  %s2309 = vpop.sfrf %2308
  %p2310 = scmp.eq.s32.totalorder %s2309, 0
  %p2311 = pneg %p2310
  %2313 = shalt.err (%p2311)
  %s2314 = scalar_lea.sflag [#allocation8], 2
  %2315 = vsyncmov %s2314
  %s2316 = vpop.sfrf %2315
  %p2317 = scmp.eq.s32.totalorder %s2316, 0
  %p2318 = pneg %p2317
  %2320 = shalt.err (%p2318)
  %s2321 = scalar_lea.sflag [#allocation8], 3
  %2322 = vsyncmov %s2321
  %s2323 = vpop.sfrf %2322
  %p2324 = scmp.eq.s32.totalorder %s2323, 0
  %p2325 = pneg %p2324
  %2327 = shalt.err (%p2325)
  %s2328 = scalar_lea.sflag [#allocation8], 4
  %2329 = vsyncmov %s2328
  %s2330 = vpop.sfrf %2329
  %p2331 = scmp.eq.s32.totalorder %s2330, 0
  %p2332 = pneg %p2331
  %2334 = shalt.err (%p2332)
  %s2335 = scalar_lea.sflag [#allocation8], 5
  %2336 = vsyncmov %s2335
  %s2337 = vpop.sfrf %2336
  %p2338 = scmp.eq.s32.totalorder %s2337, 0
  %p2339 = pneg %p2338
  %2341 = shalt.err (%p2339)
  %s2342 = scalar_lea.sflag [#allocation8], 6
  %2343 = vsyncmov %s2342
  %s2344 = vpop.sfrf %2343
  %p2345 = scmp.eq.s32.totalorder %s2344, 0
  %p2346 = pneg %p2345
  %2348 = shalt.err (%p2346)
  %s2349 = scalar_lea.sflag [#allocation8], 7
  %2350 = vsyncmov %s2349
  %s2351 = vpop.sfrf %2350
  %p2352 = scmp.eq.s32.totalorder %s2351, 0
  %p2353 = pneg %p2352
  %2355 = shalt.err (%p2353)
  %s2356 = scalar_lea.sflag [#allocation8], 8
  %2357 = vsyncmov %s2356
  %s2358 = vpop.sfrf %2357
  %p2359 = scmp.eq.s32.totalorder %s2358, 0
  %p2360 = pneg %p2359
  %2362 = shalt.err (%p2360)
  %s2363 = scalar_lea.sflag [#allocation8], 9
  %2364 = vsyncmov %s2363
  %s2365 = vpop.sfrf %2364
  %p2366 = scmp.eq.s32.totalorder %s2365, 0
  %p2367 = pneg %p2366
  %2369 = shalt.err (%p2367)
  %s2370 = scalar_lea.sflag [#allocation8], 10
  %2371 = vsyncmov %s2370
  %s2372 = vpop.sfrf %2371
  %p2373 = scmp.eq.s32.totalorder %s2372, 0
  %p2374 = pneg %p2373
  %2376 = shalt.err (%p2374)
  %s2377 = scalar_lea.sflag [#allocation8], 11
  %2378 = vsyncmov %s2377
  %s2379 = vpop.sfrf %2378
  %p2380 = scmp.eq.s32.totalorder %s2379, 0
  %p2381 = pneg %p2380
  %2383 = shalt.err (%p2381)
  %s2384 = scalar_lea.sflag [#allocation8], 12
  %2385 = vsyncmov %s2384
  %s2386 = vpop.sfrf %2385
  %p2387 = scmp.eq.s32.totalorder %s2386, 0
  %p2388 = pneg %p2387
  %2390 = shalt.err (%p2388)
  %s2391 = scalar_lea.sflag [#allocation8], 13
  %2392 = vsyncmov %s2391
  %s2393 = vpop.sfrf %2392
  %p2394 = scmp.eq.s32.totalorder %s2393, 0
  %p2395 = pneg %p2394
  %2397 = shalt.err (%p2395)
  %s2398 = scalar_lea.sflag [#allocation8], 14
  %2399 = vsyncmov %s2398
  %s2400 = vpop.sfrf %2399
  %p2401 = scmp.eq.s32.totalorder %s2400, 0
  %p2402 = pneg %p2401
  %2404 = shalt.err (%p2402)
  %s2405 = scalar_lea.sflag [#allocation8], 15
  %2406 = vsyncmov %s2405
  %s2407 = vpop.sfrf %2406
  %p2408 = scmp.eq.s32.totalorder %s2407, 0
  %p2409 = pneg %p2408
  %2411 = shalt.err (%p2409)

</llo_original>
